<compile_context>
chip_gen: v7x
topology: tpu7x:2x2x1
jax: 0.10.0
libtpu: 0.0.40
codegen_flags: <defaults>
</compile_context>

<pallas_src>
import functools

import jax
import jax.numpy as jnp
import numpy as np
from jax import lax
from jax.experimental import pallas as pl
from jax.experimental.pallas import tpu as pltpu

NEG_FEATURES = 3072
SYM_FEATURES = 1024
HEAD_DIM = 4          # 3 "neg" outputs + 1 "sym" output


# ---------------------------------------------------------------------------
# Generation-aware tiling
# ---------------------------------------------------------------------------
def _tpu_generation():
    try:
        kind = jax.devices()[0].device_kind.lower()
    except Exception:
        return "unknown"
    if ("v5 lite" in kind) or ("v5e" in kind) or ("v5litepod" in kind):
        return "v5e"
    if "v6" in kind:
        return "v6e"
    # v7x / v5p / anything else -> conservative multi-TensorCore config.
    return "multicore"


def _pad(x, m):
    return ((x + m - 1) // m) * m


def _vmem_bytes(batch, feat, tk, tn, sym_tn, wbytes):
    """Rough double-buffered VMEM footprint of the fused kernel (per TensorCore)."""
    bp = _pad(batch, 8)
    est = 0
    est += 2 * 2 * bp * _pad(feat, 128) * 4                                  # v1, v2 (f32)
    est += 2 * _pad(feat, 8) * tk * wbytes                                   # q_neg_w K-chunk
    est += 2 * _pad(feat, 8) * SYM_FEATURES * wbytes                         # q_sym_w (resident)
    est += 2 * 8 * SYM_FEATURES * 4                                          # q_sym_b
    est += 2 * tk * tn * wbytes                                              # neg_l1_w tile (dominant)
    est += 2 * SYM_FEATURES * sym_tn * wbytes                                # sym_l1_w block
    est += 2 * 8 * sym_tn * 4                                                # sym_l1_b
    est += 2 * _pad(HEAD_DIM, 8) * (NEG_FEATURES + SYM_FEATURES) * wbytes    # packed head^T
    est += 2 * 8 * 128 * 4                                                   # (1, B, 4) output block
    est += bp * tn * 4                                                       # f32 accumulator scratch
    return est


def _kernel_config(weight_dtype, batch, feat):
    gen = _tpu_generation()
    wbytes = jnp.dtype(weight_dtype).itemsize
    if gen in ("v5e", "v6e"):
        # Single TensorCore, 128 MiB physical VMEM (scoped default is only 16/32 MiB):
        # bigger tiles -> only 2 grid steps for the dominant 3072x3072 weight stream.
        nj, nk = 1, 2
        vmem_cap = 100 << 20
    else:
        # v7x (2 TensorCores x 64 MiB VMEM) and unknown chips: 2 "parallel" j blocks so both
        # cores stream half of every weight; leave >= 16 MiB VMEM headroom per core.
        nj, nk = 2, 2
        vmem_cap = 48 << 20
    tn = NEG_FEATURES // nj
    tk = NEG_FEATURES // nk
    sym_tn = SYM_FEATURES // nj
    est = _vmem_bytes(batch, feat, tk, tn, sym_tn, wbytes)
    vmem_limit = int(min(max(est + (8 << 20), 32 << 20), vmem_cap))
    assert est <= vmem_limit, (est, vmem_limit)
    return nj, nk, tn, tk, sym_tn, vmem_limit


# ---------------------------------------------------------------------------
# Fused forward kernel
# ---------------------------------------------------------------------------
def _fused_kernel(v1_ref, v2_ref, qn_w_ref, qs_w_ref, qs_b_ref,
                  w1n_ref, w1s_ref, w1s_b_ref, wht_ref, out_ref,
                  *scratch, nk, tn, sym_tn):
    """Fused SplitCompareNet forward.

    Grid = (nj, nk) over the dominant (3072, 3072) neg_l1 weight:
      j ("parallel")  -> output-column block of neg_l1 / column block of sym_l1 / head rows
      k ("arbitrary") -> K-reduction chunk of neg_l1 (with matching q_neg_w column chunk)
    All other weights are VMEM-resident (constant index_map) or streamed exactly once per j.
    """
    j = pl.program_id(0)
    k = pl.program_id(1)

    v1 = v1_ref[...].astype(jnp.float32)
    v2 = v2_ref[...].astype(jnp.float32)

    # neg branch, current K chunk: tanh((v1 - v2) @ Wq_neg[:, kblk]) @ W1n[kblk, jblk]
    d = (v1 - v2).astype(qn_w_ref.dtype)
    x_neg = jnp.dot(d, qn_w_ref[...], preferred_element_type=jnp.float32)         # (B, tk)
    t_neg = jnp.tanh(x_neg).astype(w1n_ref.dtype)
    part_neg = jnp.dot(t_neg, w1n_ref[...], preferred_element_type=jnp.float32)   # (B, tn)

    def finalize(acc):
        # h_neg for this j block and its contribution to the packed 4-wide head.
        h_neg = jnp.tanh(acc)                                                      # (B, tn) f32
        j0 = pl.multiple_of(j * tn, 128)
        wh_neg = wht_ref[:, pl.ds(j0, tn)]                                         # (4, tn)
        head = lax.dot_general(h_neg.astype(wh_neg.dtype), wh_neg,
                               (((1,), (1,)), ((), ())),
                               preferred_element_type=jnp.float32)                 # (B, 4)

        # sym branch (small; its 1024 hidden columns are split across the j blocks so both
        # TensorCores share its weight stream and head contribution).
        s = (v1 + v2).astype(qs_w_ref.dtype)
        x_sym = jnp.dot(s, qs_w_ref[...], preferred_element_type=jnp.float32) + qs_b_ref[...]
        t_sym = jnp.tanh(x_sym).astype(w1s_ref.dtype)                              # (B, 1024)
        h_sym = jnp.tanh(jnp.dot(t_sym, w1s_ref[...], preferred_element_type=jnp.float32)
                         + w1s_b_ref[...])                                          # (B, sym_tn)
        s0 = pl.multiple_of(NEG_FEATURES + j * sym_tn, 128)
        wh_sym = wht_ref[:, pl.ds(s0, sym_tn)]                                     # (4, sym_tn)
        head = head + lax.dot_general(h_sym.astype(wh_sym.dtype), wh_sym,
                                      (((1,), (1,)), ((), ())),
                                      preferred_element_type=jnp.float32)
        out_ref[0, :, :] = head.astype(out_ref.dtype)

    if nk == 1:
        # Trace-time specialization: no accumulator scratch, no zero-fill.
        finalize(part_neg)
    else:
        hacc_ref = scratch[0]

        @pl.when(k == 0)
        def _():
            hacc_ref[...] = part_neg

        @pl.when(k != 0)
        def _():
            hacc_ref[...] += part_neg

        @pl.when(k == nk - 1)
        def _():
            finalize(hacc_ref[...])


def split_compare_forward(v1, v2, p):
    B, F = v1.shape
    assert v2.shape == (B, F)
    # TODO(synk): batches > 256 would need an extra batch grid axis; target workload is batch=2.
    #             (Batching many (v1, v2) pairs per call is the biggest throughput lever: it
    #              amortizes the fixed ~20 MiB bf16 weight stream over more MXU rows.)
    assert B <= 256

    wdtype = p["neg_l1_w"].dtype
    nj, nk, tn, tk, sym_tn, vmem_limit = _kernel_config(wdtype, B, F)

    kernel = functools.partial(_fused_kernel, nk=nk, tn=tn, sym_tn=sym_tn)
    scratch = [pltpu.VMEM((B, tn), jnp.float32)] if nk > 1 else []

    partials = pl.pallas_call(
        kernel,
        out_shape=jax.ShapeDtypeStruct((nj, B, HEAD_DIM), jnp.float32),
        grid_spec=pltpu.PrefetchScalarGridSpec(
            num_scalar_prefetch=0,
            grid=(nj, nk),
            in_specs=[
                pl.BlockSpec((B, F), lambda j, k: (0, 0)),                    # v1 (resident)
                pl.BlockSpec((B, F), lambda j, k: (0, 0)),                    # v2 (resident)
                pl.BlockSpec((F, tk), lambda j, k: (0, k)),                   # q_neg_w K-chunk
                pl.BlockSpec((F, SYM_FEATURES), lambda j, k: (0, 0)),         # q_sym_w (resident)
                pl.BlockSpec((1, SYM_FEATURES), lambda j, k: (0, 0)),         # q_sym_b (resident)
                pl.BlockSpec((tk, tn), lambda j, k: (k, j)),                  # neg_l1_w (dominant stream)
                pl.BlockSpec((SYM_FEATURES, sym_tn), lambda j, k: (0, j)),    # sym_l1_w (once per j)
                pl.BlockSpec((1, sym_tn), lambda j, k: (0, j)),               # sym_l1_b
                pl.BlockSpec((HEAD_DIM, NEG_FEATURES + SYM_FEATURES),
                             lambda j, k: (0, 0)),                            # packed head^T (resident)
            ],
            out_specs=pl.BlockSpec((1, B, HEAD_DIM), lambda j, k: (j, 0, 0)),
            scratch_shapes=scratch,
        ),
        compiler_params=pltpu.CompilerParams(
            dimension_semantics=("parallel", "arbitrary"),
            vmem_limit_bytes=vmem_limit,
        ),
    )(v1, v2, p["q_neg_w"], p["q_sym_w"], p["q_sym_b"],
      p["neg_l1_w"], p["sym_l1_w"], p["sym_l1_b"], p["w_head_t"])

    # Tiny XLA epilogue: sum the per-j head partials and add the sym output bias.
    return partials.sum(axis=0) + p["b_head"][None, :]


# ---------------------------------------------------------------------------
# Parameters (PyTorch-style uniform(+/- 1/sqrt(fan_in)) init)
# ---------------------------------------------------------------------------
def init_params(key, features_size):
    def linear(k, fan_in, fan_out, bias=True):
        kw, kb = jax.random.split(k)
        bound = 1.0 / np.sqrt(fan_in)
        w = jax.random.uniform(kw, (fan_in, fan_out), jnp.float32, -bound, bound)
        bvec = (jax.random.uniform(kb, (fan_out,), jnp.float32, -bound, bound)
                if bias else None)
        return w, bvec

    keys = jax.random.split(key, 6)
    q_neg_w, _ = linear(keys[0], features_size, NEG_FEATURES, bias=False)
    q_sym_w, q_sym_b = linear(keys[1], features_size, SYM_FEATURES)
    neg_l1_w, _ = linear(keys[2], NEG_FEATURES, NEG_FEATURES, bias=False)
    neg_l2_w, _ = linear(keys[3], NEG_FEATURES, 3, bias=False)
    sym_l1_w, sym_l1_b = linear(keys[4], SYM_FEATURES, SYM_FEATURES)
    sym_l2_w, sym_l2_b = linear(keys[5], SYM_FEATURES, 1)
    return dict(q_neg_w=q_neg_w, q_sym_w=q_sym_w, q_sym_b=q_sym_b,
                neg_l1_w=neg_l1_w, neg_l2_w=neg_l2_w,
                sym_l1_w=sym_l1_w, sym_l1_b=sym_l1_b,
                sym_l2_w=sym_l2_w, sym_l2_b=sym_l2_b)


def prepare_params(raw, dtype=jnp.bfloat16):
    """Cast weights to the (default bf16) streaming dtype, keep biases in f32, and pack the two
    tiny head layers (3072->3, 1024->1) into one transposed, lane-dense (4, 4096) weight."""
    p = {
        "q_neg_w": raw["q_neg_w"].astype(dtype),
        "q_sym_w": raw["q_sym_w"].astype(dtype),
        "q_sym_b": raw["q_sym_b"].astype(jnp.float32).reshape(1, SYM_FEATURES),
        "neg_l1_w": raw["neg_l1_w"].astype(dtype),
        "sym_l1_w": raw["sym_l1_w"].astype(dtype),
        "sym_l1_b": raw["sym_l1_b"].astype(jnp.float32).reshape(1, SYM_FEATURES),
    }
    wht = jnp.zeros((HEAD_DIM, NEG_FEATURES + SYM_FEATURES), dtype)
    wht = wht.at[0:3, :NEG_FEATURES].set(raw["neg_l2_w"].astype(dtype).T)
    wht = wht.at[3:4, NEG_FEATURES:].set(raw["sym_l2_w"].astype(dtype).T)
    p["w_head_t"] = wht
    p["b_head"] = jnp.concatenate(
        [jnp.zeros((3,), jnp.float32), raw["sym_l2_b"].astype(jnp.float32)])
    return p


def reference_forward(v1, v2, raw, dtype=jnp.float32):
    """Pure-JAX reference mirroring the PyTorch module (and the kernel's cast pipeline)."""
    hp = jax.lax.Precision.HIGHEST

    def mm(a, w):
        return jax.lax.dot(a.astype(dtype), w.astype(dtype),
                           precision=hp, preferred_element_type=jnp.float32)

    d = v1 - v2
    s = v1 + v2
    x_neg = mm(d, raw["q_neg_w"])                                  # QSymetric antisym half
    x_sym = mm(s, raw["q_sym_w"]) + raw["q_sym_b"]                 # QSymetric sym half
    h_neg = jnp.tanh(mm(jnp.tanh(x_neg), raw["neg_l1_w"]))
    o_neg = mm(h_neg, raw["neg_l2_w"])
    h_sym = jnp.tanh(mm(jnp.tanh(x_sym), raw["sym_l1_w"]) + raw["sym_l1_b"])
    o_sym = mm(h_sym, raw["sym_l2_w"]) + raw["sym_l2_b"]
    return jnp.concatenate([o_neg, o_sym], axis=1)


if __name__ == "__main__":
    features_size = 32
    output_dim = (4,)
    assert int(np.prod(output_dim)) == 4, "Only split regression compare implemented"
    batch = 2

    key = jax.random.PRNGKey(0)
    k1, k2, kp = jax.random.split(key, 3)
    v1 = jax.random.normal(k1, (batch, features_size), jnp.float32)
    v2 = jax.random.normal(k2, (batch, features_size), jnp.float32)

    raw = init_params(kp, features_size)
    fwd = jax.jit(split_compare_forward)

    # Primary path: bf16 weights (default) -> half the HBM bytes of f32 on this
    # weight-streaming-bound workload. Checked against a bf16 reference with the same casts.
    pbf = prepare_params(raw)                     # default dtype = bfloat16
    outbf = jax.block_until_ready(fwd(v1, v2, pbf))
    refbf = jax.block_until_ready(reference_forward(v1, v2, raw, jnp.bfloat16))
    assert outbf.shape == (batch, 4)
    np.testing.assert_allclose(np.asarray(outbf), np.asarray(refbf), rtol=1e-2, atol=1e-2)

    # f32 path (PyTorch numerics) kept as a correctness cross-check of the fused kernel.
    p32 = prepare_params(raw, jnp.float32)
    out32 = jax.block_until_ready(fwd(v1, v2, p32))
    ref32 = jax.block_until_ready(reference_forward(v1, v2, raw, jnp.float32))
    np.testing.assert_allclose(np.asarray(out32), np.asarray(ref32), rtol=1e-4, atol=1e-4)

    print("KERNEL_OK")
</pallas_src>

<mosaic_0001>
module attributes {stable_mosaic.version = 11 : i64} {
  func.func @_fused_kernel(%arg0: i32, %arg1: i32, %arg2: memref<2x32xf32, #tpu.memory_space<vmem>>, %arg3: memref<2x32xf32, #tpu.memory_space<vmem>>, %arg4: memref<32x1536xbf16, #tpu.memory_space<vmem>>, %arg5: memref<32x1024xbf16, #tpu.memory_space<vmem>>, %arg6: memref<1x1024xf32, #tpu.memory_space<vmem>>, %arg7: memref<1536x1536xbf16, #tpu.memory_space<vmem>>, %arg8: memref<1024x512xbf16, #tpu.memory_space<vmem>>, %arg9: memref<1x512xf32, #tpu.memory_space<vmem>>, %arg10: memref<4x4096xbf16, #tpu.memory_space<vmem>>, %arg11: memref<1x2x4xf32, #tpu.memory_space<vmem>>, %arg12: memref<2x1536xf32, #tpu.memory_space<vmem>>) attributes {dimension_semantics = [#tpu.dimension_semantics<parallel>, #tpu.dimension_semantics<arbitrary>], iteration_bounds = array<i64: 2, 2>, scalar_prefetch = 0 : i64, scratch_operands = 1 : i64, tpu.core_type = #tpu.core_type<tc>, window_params = [{pipeline_mode = #tpu.pipeline_mode<synchronous>, transform_indices = @transform_0, window_bounds = array<i64: 2, 32>}, {pipeline_mode = #tpu.pipeline_mode<synchronous>, transform_indices = @transform_1, window_bounds = array<i64: 2, 32>}, {transform_indices = @transform_2, window_bounds = array<i64: 32, 1536>}, {pipeline_mode = #tpu.pipeline_mode<synchronous>, transform_indices = @transform_3, window_bounds = array<i64: 32, 1024>}, {pipeline_mode = #tpu.pipeline_mode<synchronous>, transform_indices = @transform_4, window_bounds = array<i64: 1, 1024>}, {transform_indices = @transform_5, window_bounds = array<i64: 1536, 1536>}, {transform_indices = @transform_6, window_bounds = array<i64: 1024, 512>}, {transform_indices = @transform_7, window_bounds = array<i64: 1, 512>}, {pipeline_mode = #tpu.pipeline_mode<synchronous>, transform_indices = @transform_8, window_bounds = array<i64: 4, 4096>}, {transform_indices = @transform_9, window_bounds = array<i64: 1, 2, 4>}]} {
    %c0 = arith.constant 0 : index
    %c0_0 = arith.constant 0 : index
    %0 = vector.load %arg2[%c0, %c0_0] : memref<2x32xf32, #tpu.memory_space<vmem>>, vector<2x32xf32>
    %c0_1 = arith.constant 0 : index
    %c0_2 = arith.constant 0 : index
    %1 = vector.load %arg3[%c0_1, %c0_2] : memref<2x32xf32, #tpu.memory_space<vmem>>, vector<2x32xf32>
    %2 = arith.subf %0, %1 : vector<2x32xf32>
    %3 = arith.truncf %2 : vector<2x32xf32> to vector<2x32xbf16>
    %c0_3 = arith.constant 0 : index
    %c0_4 = arith.constant 0 : index
    %4 = vector.load %arg4[%c0_3, %c0_4] : memref<32x1536xbf16, #tpu.memory_space<vmem>>, vector<32x1536xbf16>
    %cst = arith.constant dense<0.000000e+00> : vector<2x1536xf32>
    %5 = tpu.matmul %3, %4, %cst {dimension_numbers = #tpu.dot_dimension_numbers<[1], [0], [0], [1], [0, 0, 1, 1], [], []>} : vector<2x32xbf16>, vector<32x1536xbf16>, vector<2x1536xf32> -> vector<2x1536xf32>
    %6 = math.tanh %5 : vector<2x1536xf32>
    %7 = arith.truncf %6 : vector<2x1536xf32> to vector<2x1536xbf16>
    %c0_5 = arith.constant 0 : index
    %c0_6 = arith.constant 0 : index
    %8 = vector.load %arg7[%c0_5, %c0_6] : memref<1536x1536xbf16, #tpu.memory_space<vmem>>, vector<1536x1536xbf16>
    %cst_7 = arith.constant dense<0.000000e+00> : vector<2x1536xf32>
    %9 = tpu.matmul %7, %8, %cst_7 {dimension_numbers = #tpu.dot_dimension_numbers<[1], [0], [0], [1], [0, 0, 1, 1], [], []>} : vector<2x1536xbf16>, vector<1536x1536xbf16>, vector<2x1536xf32> -> vector<2x1536xf32>
    %c0_i32 = arith.constant 0 : i32
    %10 = arith.cmpi eq, %arg1, %c0_i32 : i32
    %11 = arith.extui %10 : i1 to i32
    %c0_i32_8 = arith.constant 0 : i32
    %12 = arith.cmpi ne, %11, %c0_i32_8 : i32
    scf.if %12 {
      %c0_12 = arith.constant 0 : index
      %c0_13 = arith.constant 0 : index
      %19 = vector.load %arg12[%c0_12, %c0_13] : memref<2x1536xf32, #tpu.memory_space<vmem>>, vector<2x1536xf32>
      tpu.vector_store %arg12[%c0_12, %c0_13], %9 {strides = array<i32>} : memref<2x1536xf32, #tpu.memory_space<vmem>>, vector<2x1536xf32>,
    } else {
    }
    %c0_i32_9 = arith.constant 0 : i32
    %13 = arith.cmpi ne, %arg1, %c0_i32_9 : i32
    %14 = arith.extui %13 : i1 to i32
    %c0_i32_10 = arith.constant 0 : i32
    %15 = arith.cmpi ne, %14, %c0_i32_10 : i32
    scf.if %15 {
      %c0_12 = arith.constant 0 : index
      %c0_13 = arith.constant 0 : index
      %19 = vector.load %arg12[%c0_12, %c0_13] : memref<2x1536xf32, #tpu.memory_space<vmem>>, vector<2x1536xf32>
      %20 = arith.addf %19, %9 : vector<2x1536xf32>
      %c0_14 = arith.constant 0 : index
      %c0_15 = arith.constant 0 : index
      %21 = vector.load %arg12[%c0_14, %c0_15] : memref<2x1536xf32, #tpu.memory_space<vmem>>, vector<2x1536xf32>
      tpu.vector_store %arg12[%c0_14, %c0_15], %20 {strides = array<i32>} : memref<2x1536xf32, #tpu.memory_space<vmem>>, vector<2x1536xf32>,
    } else {
    }
    %c1_i32 = arith.constant 1 : i32
    %16 = arith.cmpi eq, %arg1, %c1_i32 : i32
    %17 = arith.extui %16 : i1 to i32
    %c0_i32_11 = arith.constant 0 : i32
    %18 = arith.cmpi ne, %17, %c0_i32_11 : i32
    scf.if %18 {
      %c0_12 = arith.constant 0 : index
      %c0_13 = arith.constant 0 : index
      %19 = vector.load %arg12[%c0_12, %c0_13] : memref<2x1536xf32, #tpu.memory_space<vmem>>, vector<2x1536xf32>
      %20 = math.tanh %19 : vector<2x1536xf32>
      %c1536_i32 = arith.constant 1536 : i32
      %21 = arith.muli %arg0, %c1536_i32 : i32
      %22 = tpu.assume_multiple %21, 128 : i32
      %c0_14 = arith.constant 0 : index
      %23 = arith.index_cast %22 : i32 to index
      %24 = vector.load %arg10[%c0_14, %23] : memref<4x4096xbf16, #tpu.memory_space<vmem>>, vector<4x1536xbf16>
      %25 = arith.truncf %20 : vector<2x1536xf32> to vector<2x1536xbf16>
      %cst_15 = arith.constant dense<0.000000e+00> : vector<2x4xf32>
      %26 = tpu.matmul %25, %24, %cst_15 {dimension_numbers = #tpu.dot_dimension_numbers<[1], [1], [0], [0], [0, 0, 1, 0], [], []>} : vector<2x1536xbf16>, vector<4x1536xbf16>, vector<2x4xf32> -> vector<2x4xf32>
      %27 = arith.addf %0, %1 : vector<2x32xf32>
      %28 = arith.truncf %27 : vector<2x32xf32> to vector<2x32xbf16>
      %c0_16 = arith.constant 0 : index
      %c0_17 = arith.constant 0 : index
      %29 = vector.load %arg5[%c0_16, %c0_17] : memref<32x1024xbf16, #tpu.memory_space<vmem>>, vector<32x1024xbf16>
      %cst_18 = arith.constant dense<0.000000e+00> : vector<2x1024xf32>
      %30 = tpu.matmul %28, %29, %cst_18 {dimension_numbers = #tpu.dot_dimension_numbers<[1], [0], [0], [1], [0, 0, 1, 1], [], []>} : vector<2x32xbf16>, vector<32x1024xbf16>, vector<2x1024xf32> -> vector<2x1024xf32>
      %c0_19 = arith.constant 0 : index
      %c0_20 = arith.constant 0 : index
      %31 = vector.load %arg6[%c0_19, %c0_20] : memref<1x1024xf32, #tpu.memory_space<vmem>>, vector<1x1024xf32>
      %32 = vector.broadcast %31 : vector<1x1024xf32> to vector<2x1024xf32>
      %33 = arith.addf %30, %32 : vector<2x1024xf32>
      %34 = math.tanh %33 : vector<2x1024xf32>
      %35 = arith.truncf %34 : vector<2x1024xf32> to vector<2x1024xbf16>
      %c0_21 = arith.constant 0 : index
      %c0_22 = arith.constant 0 : index
      %36 = vector.load %arg8[%c0_21, %c0_22] : memref<1024x512xbf16, #tpu.memory_space<vmem>>, vector<1024x512xbf16>
      %cst_23 = arith.constant dense<0.000000e+00> : vector<2x512xf32>
      %37 = tpu.matmul %35, %36, %cst_23 {dimension_numbers = #tpu.dot_dimension_numbers<[1], [0], [0], [1], [0, 0, 1, 1], [], []>} : vector<2x1024xbf16>, vector<1024x512xbf16>, vector<2x512xf32> -> vector<2x512xf32>
      %c0_24 = arith.constant 0 : index
      %c0_25 = arith.constant 0 : index
      %38 = vector.load %arg9[%c0_24, %c0_25] : memref<1x512xf32, #tpu.memory_space<vmem>>, vector<1x512xf32>
      %39 = vector.broadcast %38 : vector<1x512xf32> to vector<2x512xf32>
      %40 = arith.addf %37, %39 : vector<2x512xf32>
      %41 = math.tanh %40 : vector<2x512xf32>
      %c512_i32 = arith.constant 512 : i32
      %42 = arith.muli %arg0, %c512_i32 : i32
      %c3072_i32 = arith.constant 3072 : i32
      %43 = arith.addi %c3072_i32, %42 : i32
      %44 = tpu.assume_multiple %43, 128 : i32
      %c0_26 = arith.constant 0 : index
      %45 = arith.index_cast %44 : i32 to index
      %46 = vector.load %arg10[%c0_26, %45] : memref<4x4096xbf16, #tpu.memory_space<vmem>>, vector<4x512xbf16>
      %47 = arith.truncf %41 : vector<2x512xf32> to vector<2x512xbf16>
      %cst_27 = arith.constant dense<0.000000e+00> : vector<2x4xf32>
      %48 = tpu.matmul %47, %46, %cst_27 {dimension_numbers = #tpu.dot_dimension_numbers<[1], [1], [0], [0], [0, 0, 1, 0], [], []>} : vector<2x512xbf16>, vector<4x512xbf16>, vector<2x4xf32> -> vector<2x4xf32>
      %49 = arith.addf %26, %48 : vector<2x4xf32>
      %c0_28 = arith.constant 0 : index
      %c0_29 = arith.constant 0 : index
      %c0_30 = arith.constant 0 : index
      %50 = vector.load %arg11[%c0_28, %c0_29, %c0_30] : memref<1x2x4xf32, #tpu.memory_space<vmem>>, vector<1x2x4xf32>
      %51 = vector.shape_cast %50 : vector<1x2x4xf32> to vector<2x4xf32>
      %52 = vector.shape_cast %49 : vector<2x4xf32> to vector<1x2x4xf32>
      tpu.vector_store %arg11[%c0_28, %c0_29, %c0_30], %52 {strides = array<i32>} : memref<1x2x4xf32, #tpu.memory_space<vmem>>, vector<1x2x4xf32>,
    } else {
    }
    return
  }
  func.func @transform_0(%arg0: i32, %arg1: i32) -> (i32, i32) {
    %c0_i32 = arith.constant 0 : i32
    %c0_i32_0 = arith.constant 0 : i32
    %c0_i32_1 = arith.constant 0 : i32
    return %c0_i32, %c0_i32_0 : i32, i32
  }
  func.func @transform_1(%arg0: i32, %arg1: i32) -> (i32, i32) {
    %c0_i32 = arith.constant 0 : i32
    %c0_i32_0 = arith.constant 0 : i32
    %c0_i32_1 = arith.constant 0 : i32
    return %c0_i32, %c0_i32_0 : i32, i32
  }
  func.func @transform_2(%arg0: i32, %arg1: i32) -> (i32, i32) {
    %c0_i32 = arith.constant 0 : i32
    %c0_i32_0 = arith.constant 0 : i32
    return %c0_i32, %arg1 : i32, i32
  }
  func.func @transform_3(%arg0: i32, %arg1: i32) -> (i32, i32) {
    %c0_i32 = arith.constant 0 : i32
    %c0_i32_0 = arith.constant 0 : i32
    %c0_i32_1 = arith.constant 0 : i32
    return %c0_i32, %c0_i32_0 : i32, i32
  }
  func.func @transform_4(%arg0: i32, %arg1: i32) -> (i32, i32) {
    %c0_i32 = arith.constant 0 : i32
    %c0_i32_0 = arith.constant 0 : i32
    %c0_i32_1 = arith.constant 0 : i32
    return %c0_i32, %c0_i32_0 : i32, i32
  }
  func.func @transform_5(%arg0: i32, %arg1: i32) -> (i32, i32) {
    %c0_i32 = arith.constant 0 : i32
    return %arg1, %arg0 : i32, i32
  }
  func.func @transform_6(%arg0: i32, %arg1: i32) -> (i32, i32) {
    %c0_i32 = arith.constant 0 : i32
    %c0_i32_0 = arith.constant 0 : i32
    return %c0_i32, %arg0 : i32, i32
  }
  func.func @transform_7(%arg0: i32, %arg1: i32) -> (i32, i32) {
    %c0_i32 = arith.constant 0 : i32
    %c0_i32_0 = arith.constant 0 : i32
    return %c0_i32, %arg0 : i32, i32
  }
  func.func @transform_8(%arg0: i32, %arg1: i32) -> (i32, i32) {
    %c0_i32 = arith.constant 0 : i32
    %c0_i32_0 = arith.constant 0 : i32
    %c0_i32_1 = arith.constant 0 : i32
    return %c0_i32, %c0_i32_0 : i32, i32
  }
  func.func @transform_9(%arg0: i32, %arg1: i32) -> (i32, i32, i32) {
    %c0_i32 = arith.constant 0 : i32
    %c0_i32_0 = arith.constant 0 : i32
    %c0_i32_1 = arith.constant 0 : i32
    return %arg0, %c0_i32, %c0_i32_0 : i32, i32, i32
  }
}

</mosaic_0001>

<llo_original>
// kernel: split_compare_forward.1
$region0: #{split_compare_forward.1}
  #allocation0 [shape = 'u32[]', space=smem, size = 0x4, offset = 0x4, fixed_abs, tag = 'smem constant byte address 0x4 - core index']
  #allocation1 [shape = 'u32[144,128]{1,0:T(1,128)}', space=vmem, size = 0x12000, scoped, tag = 'internal scratch']
  #allocation2 [shape = 'f32[2,1536]{1,0:T(2,128)}', space=vmem, size = 0x3000, scoped, tag = 'scratch operand']
  %s0 = inlined_call_operand.hbm [shape: f32[2,32], index: 0, kind: input, shape index: {}]
  %s1 = inlined_call_operand.hbm [shape: f32[2,32], index: 1, kind: input, shape index: {}]
  %s2 = inlined_call_operand.hbm [shape: bf16[32,3072], index: 2, kind: input, shape index: {}]
  %s3 = inlined_call_operand.hbm [shape: bf16[32,1024], index: 3, kind: input, shape index: {}]
  %s4 = inlined_call_operand.hbm [shape: f32[1,1024], index: 4, kind: input, shape index: {}]
  %s5 = inlined_call_operand.hbm [shape: bf16[3072,3072], index: 5, kind: input, shape index: {}]
  %s6 = inlined_call_operand.hbm [shape: bf16[1024,1024], index: 6, kind: input, shape index: {}]
  %s7 = inlined_call_operand.hbm [shape: f32[1,1024], index: 7, kind: input, shape index: {}]
  %s8 = inlined_call_operand.hbm [shape: bf16[4,4096], index: 8, kind: input, shape index: {}]
  %s9 = inlined_call_operand.vmem [shape: f32[2,2,4], index: 9, kind: output, shape index: {}]
  %s10 = sld [smem:[#allocation0]]
  $region117: #{split_compare_forward.1} parent=0
    _
  %s12 = ssub.s32 1, %s10
  %s13 = scalar_select 0, %s12, %s10
  $region1: #{split_compare_forward.1} parent=0
    #allocation3 [shape = 'u8[1024]{0}', space=vmem, size = 0x400, scoped, tag = 'input window, operand 0, single buffered']
    #allocation4 [shape = 's32[2]{0}', space=sflag, size = 0x8, scoped, tag = 'scoped memory for split_compare_forward.1']
    #allocation5 [shape = 'u8[1024]{0}', space=vmem, size = 0x400, scoped, tag = 'input window, operand 1, single buffered']
    #allocation6 [shape = 's32[1]{0}', space=sflag, size = 0x4, scoped, tag = 'scoped memory for split_compare_forward.1']
    #allocation7 [shape = 'u8[196608]{0}', space=vmem, size = 0x30000, scoped, tag = 'input window, operand 2']
    #allocation8 [shape = 'u8[65536]{0}', space=vmem, size = 0x10000, scoped, tag = 'input window, operand 3, single buffered']
    #allocation9 [shape = 'u8[4096]{0}', space=vmem, size = 0x1000, scoped, tag = 'input window, operand 4, single buffered']
    #allocation10 [shape = 's32[1]{0}', space=sflag, size = 0x4, scoped, tag = 'scoped memory for split_compare_forward.1']
    #allocation11 [shape = 'u8[9437184]{0}', space=vmem, size = 0x900000, scoped, tag = 'input window, operand 5']
    #allocation12 [shape = 'u8[2097152]{0}', space=vmem, size = 0x200000, scoped, tag = 'input window, operand 6']
    #allocation13 [shape = 'u8[4096]{0}', space=vmem, size = 0x1000, scoped, tag = 'input window, operand 7']
    #allocation14 [shape = 'u8[32768]{0}', space=vmem, size = 0x8000, scoped, tag = 'input window, operand 8, single buffered']
    %14 = vsyncpa [#allocation4], 0
    %15 = vsyncpa [#allocation6], 0
    %16 = vsyncpa [#allocation10], 0
    loop: start=0, step=1, limit=6
    $region2: #{split_compare_forward.1} parent=1 // loop_pre_header
      _
    $region3: #{split_compare_forward.1} parent=1 // loop_header
      %s18 = sphi 0, %s22
      %p19 = scmp.ge.s32.totalorder %s18, 6
      %s25 = sphi 0, %s37
      %s26 = sphi 0, %s33
      %s27 = sphi 0, %s25
      %s28 = sphi 0, %s26
      %s29 = sphi 0, %s27
      %s30 = sphi 0, %s28
      %s38 = sphi 0, %s38
      %s40 = sphi 0, %s38
      %s41 = sphi 0, %s40
      %s55 = sphi 0, %s41
      %s59 = sphi 0, %s59
      %s61 = sphi 0, %s59
      %s62 = sphi 0, %s61
      %s76 = sphi 0, %s62
      %s82 = sphi 0, %s84
      %s85 = sphi 0, %s82
      %s86 = sphi 0, %s85
      %s102 = sphi 0, %s86
      %s106 = sphi 0, %s106
      %s108 = sphi 0, %s106
      %s109 = sphi 0, %s108
      %s123 = sphi 0, %s109
      %s127 = sphi 0, %s127
      %s129 = sphi 0, %s127
      %s130 = sphi 0, %s129
      %s144 = sphi 0, %s130
      %s152 = sphi 0, %s154
      %s155 = sphi 0, %s152
      %s156 = sphi 0, %s155
      %s172 = sphi 0, %s156
      %s178 = sphi 0, %s180
      %s181 = sphi 0, %s178
      %s182 = sphi 0, %s181
      %s198 = sphi 0, %s182
      %s204 = sphi 0, %s206
      %s207 = sphi 0, %s204
      %s208 = sphi 0, %s207
      %s224 = sphi 0, %s208
      %s228 = sphi 0, %s228
      %s230 = sphi 0, %s228
      %s231 = sphi 0, %s230
      %s245 = sphi 0, %s231
      %s251 = sphi 0, %s253
      %s254 = sphi 0, %s251
      %s255 = sphi 0, %s254
      %s271 = sphi 0, %s255
    $region4: #{split_compare_forward.1} parent=1 // loop_header_branch
      %21 = sbr.rel (%p19) target = $region8
    $region5: #{split_compare_forward.1} parent=1 // loop_body
      %s23 = ssub.s32 %s18, 1
      %s24 = ssub.s32 %s18, 2
      %s31 = sadd.s32 1, %s26
      %p32 = scmp.ge.s32.totalorder %s31, 2
      %s33 = scalar_select %p32, 0, %s31
      %s34 = sadd.s32 1, %s25
      %s35 = scalar_select %p32, %s34, %s25
      %p36 = scmp.ge.s32.totalorder %s35, 2
      %s37 = scalar_select %p36, 0, %s35
      %s39 = sadd.s32 %s38, 1
      %p42 = scmp.eq.s32.totalorder %s18, 3
      %p43 = scmp.ne.s32.totalorder %s38, %s40
      %p44 = scmp.eq.s32.totalorder %s18, 0
      %p45 = por %p43, %p44
      %p46 = scmp.ne.s32.totalorder %s38, %s40
      %p47 = scmp.eq.s32.totalorder %s23, 3
      %p48 = por %p46, %p47
      %p49 = scmp.ne.s32.totalorder %s40, %s41
      %p50 = scmp.eq.s32.totalorder %s23, 0
      %p51 = por %p49, %p50
      %p52 = scmp.ne.s32.totalorder %s40, %s41
      %p53 = scmp.eq.s32.totalorder %s24, 3
      %p54 = por %p52, %p53
      %p56 = scmp.ne.s32.totalorder %s41, %s55
      %p57 = scmp.eq.s32.totalorder %s24, 0
      %p58 = por %p56, %p57
      %s60 = sadd.s32 %s59, 1
      %p63 = scmp.eq.s32.totalorder %s18, 3
      %p64 = scmp.ne.s32.totalorder %s59, %s61
      %p65 = scmp.eq.s32.totalorder %s18, 0
      %p66 = por %p64, %p65
      %p67 = scmp.ne.s32.totalorder %s59, %s61
      %p68 = scmp.eq.s32.totalorder %s23, 3
      %p69 = por %p67, %p68
      %p70 = scmp.ne.s32.totalorder %s61, %s62
      %p71 = scmp.eq.s32.totalorder %s23, 0
      %p72 = por %p70, %p71
      %p73 = scmp.ne.s32.totalorder %s61, %s62
      %p74 = scmp.eq.s32.totalorder %s24, 3
      %p75 = por %p73, %p74
      %p77 = scmp.ne.s32.totalorder %s62, %s76
      %p78 = scmp.eq.s32.totalorder %s24, 0
      %p79 = por %p77, %p78
      %s80 = ssub.s32 %s26, %s33
      %p81 = scmp.eq.s32.totalorder %s80, 0
      %s83 = sadd.s32 %s82, 1
      %s84 = scalar_select %p81, %s82, %s83
      %p87 = pneg %p81
      %p88 = scmp.eq.s32.totalorder %s18, 3
      %p89 = por %p87, %p88
      %p90 = scmp.ne.s32.totalorder %s82, %s85
      %p91 = scmp.eq.s32.totalorder %s18, 0
      %p92 = por %p90, %p91
      %p93 = scmp.ne.s32.totalorder %s82, %s85
      %p94 = scmp.eq.s32.totalorder %s23, 3
      %p95 = por %p93, %p94
      %p96 = scmp.ne.s32.totalorder %s85, %s86
      %p97 = scmp.eq.s32.totalorder %s23, 0
      %p98 = por %p96, %p97
      %p99 = scmp.ne.s32.totalorder %s85, %s86
      %p100 = scmp.eq.s32.totalorder %s24, 3
      %p101 = por %p99, %p100
      %p103 = scmp.ne.s32.totalorder %s86, %s102
      %p104 = scmp.eq.s32.totalorder %s24, 0
      %p105 = por %p103, %p104
      %s107 = sadd.s32 %s106, 1
      %p110 = scmp.eq.s32.totalorder %s18, 3
      %p111 = scmp.ne.s32.totalorder %s106, %s108
      %p112 = scmp.eq.s32.totalorder %s18, 0
      %p113 = por %p111, %p112
      %p114 = scmp.ne.s32.totalorder %s106, %s108
      %p115 = scmp.eq.s32.totalorder %s23, 3
      %p116 = por %p114, %p115
      %p117 = scmp.ne.s32.totalorder %s108, %s109
      %p118 = scmp.eq.s32.totalorder %s23, 0
      %p119 = por %p117, %p118
      %p120 = scmp.ne.s32.totalorder %s108, %s109
      %p121 = scmp.eq.s32.totalorder %s24, 3
      %p122 = por %p120, %p121
      %p124 = scmp.ne.s32.totalorder %s109, %s123
      %p125 = scmp.eq.s32.totalorder %s24, 0
      %p126 = por %p124, %p125
      %s128 = sadd.s32 %s127, 1
      %p131 = scmp.eq.s32.totalorder %s18, 3
      %p132 = scmp.ne.s32.totalorder %s127, %s129
      %p133 = scmp.eq.s32.totalorder %s18, 0
      %p134 = por %p132, %p133
      %p135 = scmp.ne.s32.totalorder %s127, %s129
      %p136 = scmp.eq.s32.totalorder %s23, 3
      %p137 = por %p135, %p136
      %p138 = scmp.ne.s32.totalorder %s129, %s130
      %p139 = scmp.eq.s32.totalorder %s23, 0
      %p140 = por %p138, %p139
      %p141 = scmp.ne.s32.totalorder %s129, %s130
      %p142 = scmp.eq.s32.totalorder %s24, 3
      %p143 = por %p141, %p142
      %p145 = scmp.ne.s32.totalorder %s130, %s144
      %p146 = scmp.eq.s32.totalorder %s24, 0
      %p147 = por %p145, %p146
      %s148 = ssub.s32 %s26, %s33
      %s149 = ssub.s32 %s25, %s37
      %s150 = sor.u32 %s148, %s149
      %p151 = scmp.eq.s32.totalorder %s150, 0
      %s153 = sadd.s32 %s152, 1
      %s154 = scalar_select %p151, %s152, %s153
      %p157 = pneg %p151
      %p158 = scmp.eq.s32.totalorder %s18, 3
      %p159 = por %p157, %p158
      %p160 = scmp.ne.s32.totalorder %s152, %s155
      %p161 = scmp.eq.s32.totalorder %s18, 0
      %p162 = por %p160, %p161
      %p163 = scmp.ne.s32.totalorder %s152, %s155
      %p164 = scmp.eq.s32.totalorder %s23, 3
      %p165 = por %p163, %p164
      %p166 = scmp.ne.s32.totalorder %s155, %s156
      %p167 = scmp.eq.s32.totalorder %s23, 0
      %p168 = por %p166, %p167
      %p169 = scmp.ne.s32.totalorder %s155, %s156
      %p170 = scmp.eq.s32.totalorder %s24, 3
      %p171 = por %p169, %p170
      %p173 = scmp.ne.s32.totalorder %s156, %s172
      %p174 = scmp.eq.s32.totalorder %s24, 0
      %p175 = por %p173, %p174
      %s176 = ssub.s32 %s25, %s37
      %p177 = scmp.eq.s32.totalorder %s176, 0
      %s179 = sadd.s32 %s178, 1
      %s180 = scalar_select %p177, %s178, %s179
      %p183 = pneg %p177
      %p184 = scmp.eq.s32.totalorder %s18, 3
      %p185 = por %p183, %p184
      %p186 = scmp.ne.s32.totalorder %s178, %s181
      %p187 = scmp.eq.s32.totalorder %s18, 0
      %p188 = por %p186, %p187
      %p189 = scmp.ne.s32.totalorder %s178, %s181
      %p190 = scmp.eq.s32.totalorder %s23, 3
      %p191 = por %p189, %p190
      %p192 = scmp.ne.s32.totalorder %s181, %s182
      %p193 = scmp.eq.s32.totalorder %s23, 0
      %p194 = por %p192, %p193
      %p195 = scmp.ne.s32.totalorder %s181, %s182
      %p196 = scmp.eq.s32.totalorder %s24, 3
      %p197 = por %p195, %p196
      %p199 = scmp.ne.s32.totalorder %s182, %s198
      %p200 = scmp.eq.s32.totalorder %s24, 0
      %p201 = por %p199, %p200
      %s202 = ssub.s32 %s25, %s37
      %p203 = scmp.eq.s32.totalorder %s202, 0
      %s205 = sadd.s32 %s204, 1
      %s206 = scalar_select %p203, %s204, %s205
      %p209 = pneg %p203
      %p210 = scmp.eq.s32.totalorder %s18, 3
      %p211 = por %p209, %p210
      %p212 = scmp.ne.s32.totalorder %s204, %s207
      %p213 = scmp.eq.s32.totalorder %s18, 0
      %p214 = por %p212, %p213
      %p215 = scmp.ne.s32.totalorder %s204, %s207
      %p216 = scmp.eq.s32.totalorder %s23, 3
      %p217 = por %p215, %p216
      %p218 = scmp.ne.s32.totalorder %s207, %s208
      %p219 = scmp.eq.s32.totalorder %s23, 0
      %p220 = por %p218, %p219
      %p221 = scmp.ne.s32.totalorder %s207, %s208
      %p222 = scmp.eq.s32.totalorder %s24, 3
      %p223 = por %p221, %p222
      %p225 = scmp.ne.s32.totalorder %s208, %s224
      %p226 = scmp.eq.s32.totalorder %s24, 0
      %p227 = por %p225, %p226
      %s229 = sadd.s32 %s228, 1
      %p232 = scmp.eq.s32.totalorder %s18, 3
      %p233 = scmp.ne.s32.totalorder %s228, %s230
      %p234 = scmp.eq.s32.totalorder %s18, 0
      %p235 = por %p233, %p234
      %p236 = scmp.ne.s32.totalorder %s228, %s230
      %p237 = scmp.eq.s32.totalorder %s23, 3
      %p238 = por %p236, %p237
      %p239 = scmp.ne.s32.totalorder %s230, %s231
      %p240 = scmp.eq.s32.totalorder %s23, 0
      %p241 = por %p239, %p240
      %p242 = scmp.ne.s32.totalorder %s230, %s231
      %p243 = scmp.eq.s32.totalorder %s24, 3
      %p244 = por %p242, %p243
      %p246 = scmp.ne.s32.totalorder %s231, %s245
      %p247 = scmp.eq.s32.totalorder %s24, 0
      %p248 = por %p246, %p247
      %s249 = ssub.s32 %s25, %s37
      %p250 = scmp.eq.s32.totalorder %s249, 0
      %s252 = sadd.s32 %s251, 1
      %s253 = scalar_select %p250, %s251, %s252
      %p256 = pneg %p250
      %p257 = scmp.eq.s32.totalorder %s18, 3
      %p258 = por %p256, %p257
      %p259 = scmp.ne.s32.totalorder %s251, %s254
      %p260 = scmp.eq.s32.totalorder %s18, 0
      %p261 = por %p259, %p260
      %p262 = scmp.ne.s32.totalorder %s251, %s254
      %p263 = scmp.eq.s32.totalorder %s23, 3
      %p264 = por %p262, %p263
      %p265 = scmp.ne.s32.totalorder %s254, %s255
      %p266 = scmp.eq.s32.totalorder %s23, 0
      %p267 = por %p265, %p266
      %p268 = scmp.ne.s32.totalorder %s254, %s255
      %p269 = scmp.eq.s32.totalorder %s24, 3
      %p270 = por %p268, %p269
      %p272 = scmp.ne.s32.totalorder %s255, %s271
      %p273 = scmp.eq.s32.totalorder %s24, 0
      %p274 = por %p272, %p273
      %p275 = scmp.le.s32.totalorder 1, %s18
      %p276 = scmp.lt.s32.totalorder %s18, 5
      %p277 = pnand %p275, %p276
      %p278 = pneg %p277
      // Predicated region
      $region9: #{split_compare_forward.1} parent=5 // pred_check
        _
      $region10: #{split_compare_forward.1} parent=5 // pred_check_branch
        %280 = sbr.rel (%p277) target = $region12
      $region11: #{split_compare_forward.1} parent=5 // pred_region
        %s281 = ssub.s32 %s18, 1
        // Predicated region
        $region13: #{split_compare_forward.1} parent=11 // pred_check
          %p282 = pneg %p51
        $region14: #{split_compare_forward.1} parent=11 // pred_check_branch
          %284 = sbr.rel (%p282) target = $region16
        $region15: #{split_compare_forward.1} parent=11 // pred_region
          %s286 = ssub.s32 32, 32
          %287 = vsyncadd [#allocation4], %s286
          %s289 = sshll.u32 [#allocation3], 4
          %s290 = int_to_ptr.vmem [resolvable:$true] %s289
          %292 = dma.hbm_to_vmem [thread:$0]  %s0, 32, %s290, [#allocation4]
        $region16: #{split_compare_forward.1} parent=11 // pred_fallthru
          _
        // Predicated region
        $region17: #{split_compare_forward.1} parent=11 // pred_check
          %p293 = pneg %p72
        $region18: #{split_compare_forward.1} parent=11 // pred_check_branch
          %295 = sbr.rel (%p293) target = $region20
        $region19: #{split_compare_forward.1} parent=11 // pred_region
          %s297 = ssub.s32 32, 32
          %298 = vsyncadd [#allocation6], %s297
          %s300 = sshll.u32 [#allocation5], 4
          %s301 = int_to_ptr.vmem [resolvable:$true] %s300
          %303 = dma.hbm_to_vmem [thread:$0]  %s1, 32, %s301, [#allocation6]
        $region20: #{split_compare_forward.1} parent=11 // pred_fallthru
          _
        // Predicated region
        $region21: #{split_compare_forward.1} parent=11 // pred_check
          %p304 = pneg %p119
        $region22: #{split_compare_forward.1} parent=11 // pred_check_branch
          %306 = sbr.rel (%p304) target = $region24
        $region23: #{split_compare_forward.1} parent=11 // pred_region
          %s308 = ssub.s32 2048, 2048
          %309 = vsyncadd [#allocation6], %s308
          %s310 = sshll.u32 [#allocation8], 4
          %s311 = int_to_ptr.vmem [resolvable:$true] %s310
          %316 = dma.hbm_to_vmem [thread:$0]  %s3, 2048, %s311, [#allocation6], 512, 512, 32
        $region24: #{split_compare_forward.1} parent=11 // pred_fallthru
          _
        // Predicated region
        $region25: #{split_compare_forward.1} parent=11 // pred_check
          %p317 = pneg %p140
        $region26: #{split_compare_forward.1} parent=11 // pred_check_branch
          %319 = sbr.rel (%p317) target = $region28
        $region27: #{split_compare_forward.1} parent=11 // pred_region
          %s321 = ssub.s32 128, 128
          %322 = vsyncadd [#allocation10], %s321
          %s324 = sshll.u32 [#allocation9], 4
          %s325 = int_to_ptr.vmem [resolvable:$true] %s324
          %327 = dma.hbm_to_vmem [thread:$0]  %s4, 128, %s325, [#allocation10]
        $region28: #{split_compare_forward.1} parent=11 // pred_fallthru
          _
        // Predicated region
        $region29: #{split_compare_forward.1} parent=11 // pred_check
          %p328 = pneg %p241
        $region30: #{split_compare_forward.1} parent=11 // pred_check_branch
          %330 = sbr.rel (%p328) target = $region32
        $region31: #{split_compare_forward.1} parent=11 // pred_region
          %s332 = ssub.s32 1024, 1024
          %333 = vsyncadd [#allocation6], %s332
          %s335 = sshll.u32 [#allocation14], 4
          %s336 = int_to_ptr.vmem [resolvable:$true] %s335
          %338 = dma.hbm_to_vmem [thread:$0]  %s8, 1024, %s336, [#allocation6]
        $region32: #{split_compare_forward.1} parent=11 // pred_fallthru
          _
      $region12: #{split_compare_forward.1} parent=5 // pred_fallthru
        _
      %p339 = scmp.lt.s32.totalorder %s18, 4
      // Predicated region
      $region33: #{split_compare_forward.1} parent=5 // pred_check
        %p340 = pneg %p339
      $region34: #{split_compare_forward.1} parent=5 // pred_check_branch
        %342 = sbr.rel (%p340) target = $region36
      $region35: #{split_compare_forward.1} parent=5 // pred_region
        // Predicated region
        $region37: #{split_compare_forward.1} parent=35 // pred_check
          %p343 = pneg %p92
        $region38: #{split_compare_forward.1} parent=35 // pred_check_branch
          %345 = sbr.rel (%p343) target = $region40
        $region39: #{split_compare_forward.1} parent=35 // pred_region
          %s346 = sand.u32 %s18, 1
          %s347 = scalar_lea.sflag [#allocation4], %s346
          %s348 = sand.u32 %s82, 1
          %s349 = smul.addr %s348, 192
          %s350 = scalar_lea.vmem [#allocation7], %s349
          %s351 = smul.u32 12, %s26
          %s353 = ssub.s32 3072, 3072
          %354 = vsyncadd %s347, %s353
          %s355 = smul.addr %s351, 64
          %s356 = scalar_lea.hbm %s2, %s355
          %s357 = sshll.u32 %s350, 4
          %s358 = int_to_ptr.vmem [resolvable:$true] %s357
          %363 = dma.hbm_to_vmem [thread:$0]  %s356, 3072, %s358, %s347, 1536, 768, 48
        $region40: #{split_compare_forward.1} parent=35 // pred_fallthru
          _
        // Predicated region
        $region41: #{split_compare_forward.1} parent=35 // pred_check
          %p364 = pneg %p162
        $region42: #{split_compare_forward.1} parent=35 // pred_check_branch
          %366 = sbr.rel (%p364) target = $region44
        $region43: #{split_compare_forward.1} parent=35 // pred_region
          %s367 = sand.u32 %s18, 1
          %s368 = scalar_lea.sflag [#allocation4], %s367
          %s369 = sand.u32 %s152, 1
          %s370 = smul.addr %s369, 9216
          %s371 = scalar_lea.vmem [#allocation11], %s370
          %s372 = smul.u32 192, %s26
          %s373 = smul.u32 12, %s25
          %s375 = ssub.s32 147456, 147456
          %376 = vsyncadd %s368, %s375
          %s377 = smul.addr %s372, 24
          %s378 = sadd.s32 %s373, %s377
          %s379 = smul.addr %s378, 64
          %s380 = scalar_lea.hbm %s5, %s379
          %s381 = sshll.u32 %s371, 4
          %s382 = int_to_ptr.vmem [resolvable:$true] %s381
          %387 = dma.hbm_to_vmem [thread:$0]  %s380, 147456, %s382, %s368, 1536, 768, 48
        $region44: #{split_compare_forward.1} parent=35 // pred_fallthru
          _
        // Predicated region
        $region45: #{split_compare_forward.1} parent=35 // pred_check
          %p388 = pneg %p188
        $region46: #{split_compare_forward.1} parent=35 // pred_check_branch
          %390 = sbr.rel (%p388) target = $region48
        $region47: #{split_compare_forward.1} parent=35 // pred_region
          %s391 = sand.u32 %s18, 1
          %s392 = scalar_lea.sflag [#allocation4], %s391
          %s393 = sand.u32 %s178, 1
          %s394 = smul.addr %s393, 2048
          %s395 = scalar_lea.vmem [#allocation12], %s394
          %s396 = smul.u32 4, %s25
          %s398 = ssub.s32 32768, 32768
          %399 = vsyncadd %s392, %s398
          %s400 = smul.addr %s396, 64
          %s401 = scalar_lea.hbm %s6, %s400
          %s402 = sshll.u32 %s395, 4
          %s403 = int_to_ptr.vmem [resolvable:$true] %s402
          %408 = dma.hbm_to_vmem [thread:$0]  %s401, 32768, %s403, %s392, 512, 256, 16
        $region48: #{split_compare_forward.1} parent=35 // pred_fallthru
          _
        // Predicated region
        $region49: #{split_compare_forward.1} parent=35 // pred_check
          %p409 = pneg %p214
        $region50: #{split_compare_forward.1} parent=35 // pred_check_branch
          %411 = sbr.rel (%p409) target = $region52
        $region51: #{split_compare_forward.1} parent=35 // pred_region
          %s412 = sand.u32 %s18, 1
          %s413 = scalar_lea.sflag [#allocation4], %s412
          %s414 = sand.u32 %s204, 1
          %s415 = smul.addr %s414, 4
          %s416 = scalar_lea.vmem [#allocation13], %s415
          %s417 = smul.u32 4, %s25
          %s419 = ssub.s32 64, 64
          %420 = vsyncadd %s413, %s419
          %s421 = smul.addr %s417, 16
          %s422 = scalar_lea.hbm %s7, %s421
          %s424 = sshll.u32 %s416, 4
          %s425 = int_to_ptr.vmem [resolvable:$true] %s424
          %427 = dma.hbm_to_vmem [thread:$0]  %s422, 64, %s425, %s413
        $region52: #{split_compare_forward.1} parent=35 // pred_fallthru
          _
      $region36: #{split_compare_forward.1} parent=5 // pred_fallthru
        _
      %p428 = scmp.le.s32.totalorder 1, %s18
      %p429 = scmp.lt.s32.totalorder %s18, 5
      %p430 = pnand %p428, %p429
      %p431 = pneg %p430
      // Predicated region
      $region53: #{split_compare_forward.1} parent=5 // pred_check
        _
      $region54: #{split_compare_forward.1} parent=5 // pred_check_branch
        %433 = sbr.rel (%p430) target = $region56
      $region55: #{split_compare_forward.1} parent=5 // pred_region
        %s434 = ssub.s32 %s18, 1
        // Predicated region
        $region57: #{split_compare_forward.1} parent=55 // pred_check
          %p435 = pneg %p51
        $region58: #{split_compare_forward.1} parent=55 // pred_check_branch
          %437 = sbr.rel (%p435) target = $region60
        $region59: #{split_compare_forward.1} parent=55 // pred_region
          %438 = dma.done [#allocation4], 32
        $region60: #{split_compare_forward.1} parent=55 // pred_fallthru
          _
        // Predicated region
        $region61: #{split_compare_forward.1} parent=55 // pred_check
          %p439 = pneg %p72
        $region62: #{split_compare_forward.1} parent=55 // pred_check_branch
          %441 = sbr.rel (%p439) target = $region64
        $region63: #{split_compare_forward.1} parent=55 // pred_region
          %442 = dma.done [#allocation6], 32
        $region64: #{split_compare_forward.1} parent=55 // pred_fallthru
          _
        %s443 = sand.u32 %s23, 1
        %s444 = scalar_lea.sflag [#allocation4], %s443
        %s445 = sand.u32 %s85, 1
        %s446 = smul.addr %s445, 192
        %s447 = scalar_lea.vmem [#allocation7], %s446
        // Predicated region
        $region65: #{split_compare_forward.1} parent=55 // pred_check
          %p448 = pneg %p98
        $region66: #{split_compare_forward.1} parent=55 // pred_check_branch
          %450 = sbr.rel (%p448) target = $region68
        $region67: #{split_compare_forward.1} parent=55 // pred_region
          %451 = dma.done %s444, 3072
        $region68: #{split_compare_forward.1} parent=55 // pred_fallthru
          _
        // Predicated region
        $region69: #{split_compare_forward.1} parent=55 // pred_check
          %p452 = pneg %p119
        $region70: #{split_compare_forward.1} parent=55 // pred_check_branch
          %454 = sbr.rel (%p452) target = $region72
        $region71: #{split_compare_forward.1} parent=55 // pred_region
          %455 = dma.done [#allocation6], 2048
        $region72: #{split_compare_forward.1} parent=55 // pred_fallthru
          _
        // Predicated region
        $region73: #{split_compare_forward.1} parent=55 // pred_check
          %p456 = pneg %p140
        $region74: #{split_compare_forward.1} parent=55 // pred_check_branch
          %458 = sbr.rel (%p456) target = $region76
        $region75: #{split_compare_forward.1} parent=55 // pred_region
          %459 = dma.done [#allocation10], 128
        $region76: #{split_compare_forward.1} parent=55 // pred_fallthru
          _
        %s460 = sand.u32 %s23, 1
        %s461 = scalar_lea.sflag [#allocation4], %s460
        %s462 = sand.u32 %s155, 1
        %s463 = smul.addr %s462, 9216
        %s464 = scalar_lea.vmem [#allocation11], %s463
        // Predicated region
        $region77: #{split_compare_forward.1} parent=55 // pred_check
          %p465 = pneg %p168
        $region78: #{split_compare_forward.1} parent=55 // pred_check_branch
          %467 = sbr.rel (%p465) target = $region80
        $region79: #{split_compare_forward.1} parent=55 // pred_region
          %468 = dma.done %s461, 147456
        $region80: #{split_compare_forward.1} parent=55 // pred_fallthru
          _
        %s469 = sand.u32 %s23, 1
        %s470 = scalar_lea.sflag [#allocation4], %s469
        %s471 = sand.u32 %s181, 1
        %s472 = smul.addr %s471, 2048
        %s473 = scalar_lea.vmem [#allocation12], %s472
        // Predicated region
        $region81: #{split_compare_forward.1} parent=55 // pred_check
          %p474 = pneg %p194
        $region82: #{split_compare_forward.1} parent=55 // pred_check_branch
          %476 = sbr.rel (%p474) target = $region84
        $region83: #{split_compare_forward.1} parent=55 // pred_region
          %477 = dma.done %s470, 32768
        $region84: #{split_compare_forward.1} parent=55 // pred_fallthru
          _
        %s478 = sand.u32 %s23, 1
        %s479 = scalar_lea.sflag [#allocation4], %s478
        %s480 = sand.u32 %s207, 1
        %s481 = smul.addr %s480, 4
        %s482 = scalar_lea.vmem [#allocation13], %s481
        // Predicated region
        $region85: #{split_compare_forward.1} parent=55 // pred_check
          %p483 = pneg %p220
        $region86: #{split_compare_forward.1} parent=55 // pred_check_branch
          %485 = sbr.rel (%p483) target = $region88
        $region87: #{split_compare_forward.1} parent=55 // pred_region
          %486 = dma.done %s479, 64
        $region88: #{split_compare_forward.1} parent=55 // pred_fallthru
          _
        // Predicated region
        $region89: #{split_compare_forward.1} parent=55 // pred_check
          %p487 = pneg %p241
        $region90: #{split_compare_forward.1} parent=55 // pred_check_branch
          %489 = sbr.rel (%p487) target = $region92
        $region91: #{split_compare_forward.1} parent=55 // pred_region
          %490 = dma.done [#allocation6], 1024
        $region92: #{split_compare_forward.1} parent=55 // pred_fallthru
          _
        %p491 = pneg %p51
        %p492 = pneg %p48
        %p493 = pneg %p72
        %p494 = pneg %p69
        %s495 = sand.u32 %s23, 1
        %s496 = scalar_lea.sflag [#allocation4], %s495
        %s497 = sand.u32 %s85, 1
        %s498 = smul.addr %s497, 192
        %s499 = scalar_lea.vmem [#allocation7], %s498
        %p500 = pneg %p98
        %p501 = pneg %p95
        %p502 = pneg %p119
        %p503 = pneg %p116
        %p504 = pneg %p140
        %p505 = pneg %p137
        %s506 = sand.u32 %s23, 1
        %s507 = scalar_lea.sflag [#allocation4], %s506
        %s508 = sand.u32 %s155, 1
        %s509 = smul.addr %s508, 9216
        %s510 = scalar_lea.vmem [#allocation11], %s509
        %p511 = pneg %p168
        %p512 = pneg %p165
        %s513 = sand.u32 %s23, 1
        %s514 = scalar_lea.sflag [#allocation4], %s513
        %s515 = sand.u32 %s181, 1
        %s516 = smul.addr %s515, 2048
        %s517 = scalar_lea.vmem [#allocation12], %s516
        %p518 = pneg %p194
        %p519 = pneg %p191
        %s520 = sand.u32 %s23, 1
        %s521 = scalar_lea.sflag [#allocation4], %s520
        %s522 = sand.u32 %s207, 1
        %s523 = smul.addr %s522, 4
        %s524 = scalar_lea.vmem [#allocation13], %s523
        %p525 = pneg %p220
        %p526 = pneg %p217
        %p527 = pneg %p241
        %p528 = pneg %p238
        %p529 = pneg %p267
        %p530 = pneg %p264
        %p531 = scmp.lt.s32.totalorder %s27, 1
        %s532 = scalar_select %p531, %s27, 1
        %s533 = smul.addr %s532, 2
        %s534 = scalar_lea.vmem %s9, %s533
        %s535 = smul.u32 12, %s28
        %s536 = smul.u32 192, %s28
        %s537 = smul.u32 12, %s27
        %s538 = smul.u32 4, %s27
        %s539 = smul.u32 4, %s27
        %p540 = scmp.lt.s32.totalorder %s27, 1
        %s541 = scalar_select %p540, %s27, 1
        %s542 = smul.addr %s541, 2
        %s543 = scalar_lea.vmem %s9, %s542
        %v545 = vld [vmem:[#allocation3] sm:$0x3]
        %v546 = vld [vmem:[#allocation5] sm:$0x3]
        %v547 = vsub.f32 %v545, %v546
        %v548 = vpack.c.bf16 %v547, %v547
        %v549 = vld [vmem:[%s447] sm:$0xff]
        %v550 = vld [vmem:[%s447 + $0x8] sm:$0xff]
        %v551 = vld [vmem:[%s447 + $0x10] sm:$0xff]
        %v552 = vld [vmem:[%s447 + $0x18] sm:$0xff]
        %v553 = vld [vmem:[%s447 + $0x20] sm:$0xff]
        %v554 = vld [vmem:[%s447 + $0x28] sm:$0xff]
        %v555 = vld [vmem:[%s447 + $0x30] sm:$0xff]
        %v556 = vld [vmem:[%s447 + $0x38] sm:$0xff]
        %v557 = vld [vmem:[%s447 + $0x40] sm:$0xff]
        %v558 = vld [vmem:[%s447 + $0x48] sm:$0xff]
        %v559 = vld [vmem:[%s447 + $0x50] sm:$0xff]
        %v560 = vld [vmem:[%s447 + $0x58] sm:$0xff]
        %v561 = vld [vmem:[%s447 + $0x60] sm:$0xff]
        %v562 = vld [vmem:[%s447 + $0x68] sm:$0xff]
        %v563 = vld [vmem:[%s447 + $0x70] sm:$0xff]
        %v564 = vld [vmem:[%s447 + $0x78] sm:$0xff]
        %v565 = vld [vmem:[%s447 + $0x80] sm:$0xff]
        %v566 = vld [vmem:[%s447 + $0x88] sm:$0xff]
        %v567 = vld [vmem:[%s447 + $0x90] sm:$0xff]
        %v568 = vld [vmem:[%s447 + $0x98] sm:$0xff]
        %v569 = vld [vmem:[%s447 + $0xa0] sm:$0xff]
        %v570 = vld [vmem:[%s447 + $0xa8] sm:$0xff]
        %v571 = vld [vmem:[%s447 + $0xb0] sm:$0xff]
        %v572 = vld [vmem:[%s447 + $0xb8] sm:$0xff]
        %v597 = vunpack.c.l.b16 %v549
        %v598 = vunpack.c.h.b16 %v549
        %v599 = vunpack.c.l.b16 %v550
        %v600 = vunpack.c.h.b16 %v550
        %v601 = vunpack.c.l.b16 %v551
        %v602 = vunpack.c.h.b16 %v551
        %v603 = vunpack.c.l.b16 %v552
        %v604 = vunpack.c.h.b16 %v552
        %v605 = vunpack.c.l.b16 %v553
        %v606 = vunpack.c.h.b16 %v553
        %v607 = vunpack.c.l.b16 %v554
        %v608 = vunpack.c.h.b16 %v554
        %v609 = vunpack.c.l.b16 %v555
        %v610 = vunpack.c.h.b16 %v555
        %v611 = vunpack.c.l.b16 %v556
        %v612 = vunpack.c.h.b16 %v556
        %v613 = vunpack.c.l.b16 %v557
        %v614 = vunpack.c.h.b16 %v557
        %v615 = vunpack.c.l.b16 %v558
        %v616 = vunpack.c.h.b16 %v558
        %v617 = vunpack.c.l.b16 %v559
        %v618 = vunpack.c.h.b16 %v559
        %v619 = vunpack.c.l.b16 %v560
        %v620 = vunpack.c.h.b16 %v560
        %v621 = vunpack.c.l.b16 %v561
        %v622 = vunpack.c.h.b16 %v561
        %v623 = vunpack.c.l.b16 %v562
        %v624 = vunpack.c.h.b16 %v562
        %v625 = vunpack.c.l.b16 %v563
        %v626 = vunpack.c.h.b16 %v563
        %v627 = vunpack.c.l.b16 %v564
        %v628 = vunpack.c.h.b16 %v564
        %v629 = vunpack.c.l.b16 %v565
        %v630 = vunpack.c.h.b16 %v565
        %v631 = vunpack.c.l.b16 %v566
        %v632 = vunpack.c.h.b16 %v566
        %v633 = vunpack.c.l.b16 %v567
        %v634 = vunpack.c.h.b16 %v567
        %v635 = vunpack.c.l.b16 %v568
        %v636 = vunpack.c.h.b16 %v568
        %v637 = vunpack.c.l.b16 %v569
        %v638 = vunpack.c.h.b16 %v569
        %v639 = vunpack.c.l.b16 %v570
        %v640 = vunpack.c.h.b16 %v570
        %v641 = vunpack.c.l.b16 %v571
        %v642 = vunpack.c.h.b16 %v571
        %v643 = vunpack.c.l.b16 %v572
        %v644 = vunpack.c.h.b16 %v572
        %v645 = vpack.c.b16 %v609, %v597
        %v646 = vpack.c.b16 %v610, %v598
        %v647 = vpack.c.b16 %v611, %v599
        %v648 = vpack.c.b16 %v612, %v600
        %v649 = vpack.c.b16 %v613, %v601
        %v650 = vpack.c.b16 %v614, %v602
        %v651 = vpack.c.b16 %v615, %v603
        %v652 = vpack.c.b16 %v616, %v604
        %v653 = vpack.c.b16 %v617, %v605
        %v654 = vpack.c.b16 %v618, %v606
        %v655 = vpack.c.b16 %v619, %v607
        %v656 = vpack.c.b16 %v620, %v608
        %v657 = vpack.c.b16 %v633, %v621
        %v658 = vpack.c.b16 %v634, %v622
        %v659 = vpack.c.b16 %v635, %v623
        %v660 = vpack.c.b16 %v636, %v624
        %v661 = vpack.c.b16 %v637, %v625
        %v662 = vpack.c.b16 %v638, %v626
        %v663 = vpack.c.b16 %v639, %v627
        %v664 = vpack.c.b16 %v640, %v628
        %v665 = vpack.c.b16 %v641, %v629
        %v666 = vpack.c.b16 %v642, %v630
        %v667 = vpack.c.b16 %v643, %v631
        %v668 = vpack.c.b16 %v644, %v632
        %vm693 = vcmask 261120
        %v695 = vsel %vm693, %v548, 0
        %697 = vmatprep.subr.bf16.mxu0 %v646
        %698 = vmatpush1.bf16.msra.mxu0 %v645
        %699 = vmatprep.subr.bf16.mxu0 %v658
        %700 = vmatpush1.bf16.msra.mxu0 %v657
        %701 = vmatprep.subr.bf16.mxu0 0
        %702 = vmatpush1.bf16.msra.mxu0 0
        %703 = vmatprep.subr.bf16.mxu0 0
        %704 = vmatpush1.bf16.msra.mxu0 0
        %705 = vmatprep.subr.bf16.mxu0 0
        %706 = vmatpush1.bf16.msra.mxu0 0
        %707 = vmatprep.subr.bf16.mxu0 0
        %708 = vmatpush1.bf16.msra.mxu0 0
        %709 = vmatprep.subr.bf16.mxu0 0
        %710 = vmatpush1.bf16.msra.mxu0 0
        %711 = vmatprep.subr.bf16.mxu0 0
        %712 = vmatpush1.bf16.msra.mxu0 0
        %713 = vmatprep.subr.bf16.mxu0 0
        %714 = vmatpush1.bf16.msra.mxu0 0
        %715 = vmatprep.subr.bf16.mxu0 0
        %716 = vmatpush1.bf16.msra.mxu0 0
        %717 = vmatprep.subr.bf16.mxu0 0
        %718 = vmatpush1.bf16.msra.mxu0 0
        %719 = vmatprep.subr.bf16.mxu0 0
        %720 = vmatpush1.bf16.msra.mxu0 0
        %721 = vmatprep.subr.bf16.mxu0 0
        %722 = vmatpush1.bf16.msra.mxu0 0
        %723 = vmatprep.subr.bf16.mxu0 0
        %724 = vmatpush1.bf16.msra.mxu0 0
        %725 = vmatprep.subr.bf16.mxu0 0
        %726 = vmatpush1.bf16.msra.mxu0 0
        %727 = vmatprep.subr.bf16.mxu0 0
        %728 = vmatpush1.bf16.msra.mxu0 0
        %729 = vmatprep.mubr.bf16.mxu0 0
        %730 = vmatmul.mubr.bf16.gmra.mrb[0].mxu0 %v695
        %v731 = vpop.f32.mrb[0].mxu0
        %v732 = vadd.f32 0.0, %v731
        %v733 = vpop.f32.mrb[0].mxu0
        %v734 = vadd.f32 0.0, %v733
        %v735 = vpop.f32.mrb[0].mxu0
        %v736 = vpop.f32.mrb[0].mxu0
        %737 = vdwg.mxu0
        %738 = vmatprep.subr.bf16.mxu0 %v648
        %739 = vmatpush1.bf16.msra.mxu0 %v647
        %740 = vmatprep.subr.bf16.mxu0 %v660
        %741 = vmatpush1.bf16.msra.mxu0 %v659
        %742 = vmatprep.subr.bf16.mxu0 0
        %743 = vmatpush1.bf16.msra.mxu0 0
        %744 = vmatprep.subr.bf16.mxu0 0
        %745 = vmatpush1.bf16.msra.mxu0 0
        %746 = vmatprep.subr.bf16.mxu0 0
        %747 = vmatpush1.bf16.msra.mxu0 0
        %748 = vmatprep.subr.bf16.mxu0 0
        %749 = vmatpush1.bf16.msra.mxu0 0
        %750 = vmatprep.subr.bf16.mxu0 0
        %751 = vmatpush1.bf16.msra.mxu0 0
        %752 = vmatprep.subr.bf16.mxu0 0
        %753 = vmatpush1.bf16.msra.mxu0 0
        %754 = vmatprep.subr.bf16.mxu0 0
        %755 = vmatpush1.bf16.msra.mxu0 0
        %756 = vmatprep.subr.bf16.mxu0 0
        %757 = vmatpush1.bf16.msra.mxu0 0
        %758 = vmatprep.subr.bf16.mxu0 0
        %759 = vmatpush1.bf16.msra.mxu0 0
        %760 = vmatprep.subr.bf16.mxu0 0
        %761 = vmatpush1.bf16.msra.mxu0 0
        %762 = vmatprep.subr.bf16.mxu0 0
        %763 = vmatpush1.bf16.msra.mxu0 0
        %764 = vmatprep.subr.bf16.mxu0 0
        %765 = vmatpush1.bf16.msra.mxu0 0
        %766 = vmatprep.subr.bf16.mxu0 0
        %767 = vmatpush1.bf16.msra.mxu0 0
        %768 = vmatprep.subr.bf16.mxu0 0
        %769 = vmatpush1.bf16.msra.mxu0 0
        %770 = vmatprep.mubr.bf16.mxu0 0
        %771 = vmatmul.mubr.bf16.gmra.mrb[0].mxu0 %v695
        %v772 = vpop.f32.mrb[0].mxu0
        %v773 = vadd.f32 0.0, %v772
        %v774 = vpop.f32.mrb[0].mxu0
        %v775 = vadd.f32 0.0, %v774
        %v776 = vpop.f32.mrb[0].mxu0
        %v777 = vpop.f32.mrb[0].mxu0
        %778 = vdwg.mxu0
        %779 = vmatprep.subr.bf16.mxu0 %v650
        %780 = vmatpush1.bf16.msra.mxu0 %v649
        %781 = vmatprep.subr.bf16.mxu0 %v662
        %782 = vmatpush1.bf16.msra.mxu0 %v661
        %783 = vmatprep.subr.bf16.mxu0 0
        %784 = vmatpush1.bf16.msra.mxu0 0
        %785 = vmatprep.subr.bf16.mxu0 0
        %786 = vmatpush1.bf16.msra.mxu0 0
        %787 = vmatprep.subr.bf16.mxu0 0
        %788 = vmatpush1.bf16.msra.mxu0 0
        %789 = vmatprep.subr.bf16.mxu0 0
        %790 = vmatpush1.bf16.msra.mxu0 0
        %791 = vmatprep.subr.bf16.mxu0 0
        %792 = vmatpush1.bf16.msra.mxu0 0
        %793 = vmatprep.subr.bf16.mxu0 0
        %794 = vmatpush1.bf16.msra.mxu0 0
        %795 = vmatprep.subr.bf16.mxu0 0
        %796 = vmatpush1.bf16.msra.mxu0 0
        %797 = vmatprep.subr.bf16.mxu0 0
        %798 = vmatpush1.bf16.msra.mxu0 0
        %799 = vmatprep.subr.bf16.mxu0 0
        %800 = vmatpush1.bf16.msra.mxu0 0
        %801 = vmatprep.subr.bf16.mxu0 0
        %802 = vmatpush1.bf16.msra.mxu0 0
        %803 = vmatprep.subr.bf16.mxu0 0
        %804 = vmatpush1.bf16.msra.mxu0 0
        %805 = vmatprep.subr.bf16.mxu0 0
        %806 = vmatpush1.bf16.msra.mxu0 0
        %807 = vmatprep.subr.bf16.mxu0 0
        %808 = vmatpush1.bf16.msra.mxu0 0
        %809 = vmatprep.subr.bf16.mxu0 0
        %810 = vmatpush1.bf16.msra.mxu0 0
        %811 = vmatprep.mubr.bf16.mxu0 0
        %812 = vmatmul.mubr.bf16.gmra.mrb[0].mxu0 %v695
        %v813 = vpop.f32.mrb[0].mxu0
        %v814 = vadd.f32 0.0, %v813
        %v815 = vpop.f32.mrb[0].mxu0
        %v816 = vadd.f32 0.0, %v815
        %v817 = vpop.f32.mrb[0].mxu0
        %v818 = vpop.f32.mrb[0].mxu0
        %819 = vdwg.mxu0
        %820 = vmatprep.subr.bf16.mxu0 %v652
        %821 = vmatpush1.bf16.msra.mxu0 %v651
        %822 = vmatprep.subr.bf16.mxu0 %v664
        %823 = vmatpush1.bf16.msra.mxu0 %v663
        %824 = vmatprep.subr.bf16.mxu0 0
        %825 = vmatpush1.bf16.msra.mxu0 0
        %826 = vmatprep.subr.bf16.mxu0 0
        %827 = vmatpush1.bf16.msra.mxu0 0
        %828 = vmatprep.subr.bf16.mxu0 0
        %829 = vmatpush1.bf16.msra.mxu0 0
        %830 = vmatprep.subr.bf16.mxu0 0
        %831 = vmatpush1.bf16.msra.mxu0 0
        %832 = vmatprep.subr.bf16.mxu0 0
        %833 = vmatpush1.bf16.msra.mxu0 0
        %834 = vmatprep.subr.bf16.mxu0 0
        %835 = vmatpush1.bf16.msra.mxu0 0
        %836 = vmatprep.subr.bf16.mxu0 0
        %837 = vmatpush1.bf16.msra.mxu0 0
        %838 = vmatprep.subr.bf16.mxu0 0
        %839 = vmatpush1.bf16.msra.mxu0 0
        %840 = vmatprep.subr.bf16.mxu0 0
        %841 = vmatpush1.bf16.msra.mxu0 0
        %842 = vmatprep.subr.bf16.mxu0 0
        %843 = vmatpush1.bf16.msra.mxu0 0
        %844 = vmatprep.subr.bf16.mxu0 0
        %845 = vmatpush1.bf16.msra.mxu0 0
        %846 = vmatprep.subr.bf16.mxu0 0
        %847 = vmatpush1.bf16.msra.mxu0 0
        %848 = vmatprep.subr.bf16.mxu0 0
        %849 = vmatpush1.bf16.msra.mxu0 0
        %850 = vmatprep.subr.bf16.mxu0 0
        %851 = vmatpush1.bf16.msra.mxu0 0
        %852 = vmatprep.mubr.bf16.mxu0 0
        %853 = vmatmul.mubr.bf16.gmra.mrb[0].mxu0 %v695
        %v854 = vpop.f32.mrb[0].mxu0
        %v855 = vadd.f32 0.0, %v854
        %v856 = vpop.f32.mrb[0].mxu0
        %v857 = vadd.f32 0.0, %v856
        %v858 = vpop.f32.mrb[0].mxu0
        %v859 = vpop.f32.mrb[0].mxu0
        %860 = vdwg.mxu0
        %861 = vmatprep.subr.bf16.mxu0 %v654
        %862 = vmatpush1.bf16.msra.mxu0 %v653
        %863 = vmatprep.subr.bf16.mxu0 %v666
        %864 = vmatpush1.bf16.msra.mxu0 %v665
        %865 = vmatprep.subr.bf16.mxu0 0
        %866 = vmatpush1.bf16.msra.mxu0 0
        %867 = vmatprep.subr.bf16.mxu0 0
        %868 = vmatpush1.bf16.msra.mxu0 0
        %869 = vmatprep.subr.bf16.mxu0 0
        %870 = vmatpush1.bf16.msra.mxu0 0
        %871 = vmatprep.subr.bf16.mxu0 0
        %872 = vmatpush1.bf16.msra.mxu0 0
        %873 = vmatprep.subr.bf16.mxu0 0
        %874 = vmatpush1.bf16.msra.mxu0 0
        %875 = vmatprep.subr.bf16.mxu0 0
        %876 = vmatpush1.bf16.msra.mxu0 0
        %877 = vmatprep.subr.bf16.mxu0 0
        %878 = vmatpush1.bf16.msra.mxu0 0
        %879 = vmatprep.subr.bf16.mxu0 0
        %880 = vmatpush1.bf16.msra.mxu0 0
        %881 = vmatprep.subr.bf16.mxu0 0
        %882 = vmatpush1.bf16.msra.mxu0 0
        %883 = vmatprep.subr.bf16.mxu0 0
        %884 = vmatpush1.bf16.msra.mxu0 0
        %885 = vmatprep.subr.bf16.mxu0 0
        %886 = vmatpush1.bf16.msra.mxu0 0
        %887 = vmatprep.subr.bf16.mxu0 0
        %888 = vmatpush1.bf16.msra.mxu0 0
        %889 = vmatprep.subr.bf16.mxu0 0
        %890 = vmatpush1.bf16.msra.mxu0 0
        %891 = vmatprep.subr.bf16.mxu0 0
        %892 = vmatpush1.bf16.msra.mxu0 0
        %893 = vmatprep.mubr.bf16.mxu0 0
        %894 = vmatmul.mubr.bf16.gmra.mrb[0].mxu0 %v695
        %v895 = vpop.f32.mrb[0].mxu0
        %v896 = vadd.f32 0.0, %v895
        %v897 = vpop.f32.mrb[0].mxu0
        %v898 = vadd.f32 0.0, %v897
        %v899 = vpop.f32.mrb[0].mxu0
        %v900 = vpop.f32.mrb[0].mxu0
        %901 = vdwg.mxu0
        %902 = vmatprep.subr.bf16.mxu0 %v656
        %903 = vmatpush1.bf16.msra.mxu0 %v655
        %904 = vmatprep.subr.bf16.mxu0 %v668
        %905 = vmatpush1.bf16.msra.mxu0 %v667
        %906 = vmatprep.subr.bf16.mxu0 0
        %907 = vmatpush1.bf16.msra.mxu0 0
        %908 = vmatprep.subr.bf16.mxu0 0
        %909 = vmatpush1.bf16.msra.mxu0 0
        %910 = vmatprep.subr.bf16.mxu0 0
        %911 = vmatpush1.bf16.msra.mxu0 0
        %912 = vmatprep.subr.bf16.mxu0 0
        %913 = vmatpush1.bf16.msra.mxu0 0
        %914 = vmatprep.subr.bf16.mxu0 0
        %915 = vmatpush1.bf16.msra.mxu0 0
        %916 = vmatprep.subr.bf16.mxu0 0
        %917 = vmatpush1.bf16.msra.mxu0 0
        %918 = vmatprep.subr.bf16.mxu0 0
        %919 = vmatpush1.bf16.msra.mxu0 0
        %920 = vmatprep.subr.bf16.mxu0 0
        %921 = vmatpush1.bf16.msra.mxu0 0
        %922 = vmatprep.subr.bf16.mxu0 0
        %923 = vmatpush1.bf16.msra.mxu0 0
        %924 = vmatprep.subr.bf16.mxu0 0
        %925 = vmatpush1.bf16.msra.mxu0 0
        %926 = vmatprep.subr.bf16.mxu0 0
        %927 = vmatpush1.bf16.msra.mxu0 0
        %928 = vmatprep.subr.bf16.mxu0 0
        %929 = vmatpush1.bf16.msra.mxu0 0
        %930 = vmatprep.subr.bf16.mxu0 0
        %931 = vmatpush1.bf16.msra.mxu0 0
        %932 = vmatprep.subr.bf16.mxu0 0
        %933 = vmatpush1.bf16.msra.mxu0 0
        %934 = vmatprep.mubr.bf16.mxu0 0
        %935 = vmatmul.mubr.bf16.gmra.mrb[0].mxu0 %v695
        %v936 = vpop.f32.mrb[0].mxu0
        %v937 = vadd.f32 0.0, %v936
        %v938 = vpop.f32.mrb[0].mxu0
        %v939 = vadd.f32 0.0, %v938
        %v940 = vpop.f32.mrb[0].mxu0
        %v941 = vpop.f32.mrb[0].mxu0
        %942 = vdwg.mxu0
        %v943 = vtanh.pop %v732
        %v944 = vtanh.pop %v734
        %v945 = vtanh.pop %v773
        %v946 = vtanh.pop %v775
        %v947 = vtanh.pop %v814
        %v948 = vtanh.pop %v816
        %v949 = vtanh.pop %v855
        %v950 = vtanh.pop %v857
        %v951 = vtanh.pop %v896
        %v952 = vtanh.pop %v898
        %v953 = vtanh.pop %v937
        %v954 = vtanh.pop %v939
        %v955 = vpack.c.bf16 %v943, %v943
        %v956 = vpack.c.bf16 %v944, %v944
        %v957 = vpack.c.bf16 %v945, %v945
        %v958 = vpack.c.bf16 %v946, %v946
        %v959 = vpack.c.bf16 %v947, %v947
        %v960 = vpack.c.bf16 %v948, %v948
        %v961 = vpack.c.bf16 %v949, %v949
        %v962 = vpack.c.bf16 %v950, %v950
        %v963 = vpack.c.bf16 %v951, %v951
        %v964 = vpack.c.bf16 %v952, %v952
        %v965 = vpack.c.bf16 %v953, %v953
        %v966 = vpack.c.bf16 %v954, %v954
        %v967 = vld [vmem:[%s464] sm:$0xff]
        %v968 = vld [vmem:[%s464 + $0x8] sm:$0xff]
        %v969 = vld [vmem:[%s464 + $0x10] sm:$0xff]
        %v970 = vld [vmem:[%s464 + $0x18] sm:$0xff]
        %v971 = vld [vmem:[%s464 + $0x20] sm:$0xff]
        %v972 = vld [vmem:[%s464 + $0x28] sm:$0xff]
        %v973 = vld [vmem:[%s464 + $0x30] sm:$0xff]
        %v974 = vld [vmem:[%s464 + $0x38] sm:$0xff]
        %v975 = vld [vmem:[%s464 + $0x40] sm:$0xff]
        %v976 = vld [vmem:[%s464 + $0x48] sm:$0xff]
        %v977 = vld [vmem:[%s464 + $0x50] sm:$0xff]
        %v978 = vld [vmem:[%s464 + $0x58] sm:$0xff]
        %v979 = vld [vmem:[%s464 + $0x60] sm:$0xff]
        %v980 = vld [vmem:[%s464 + $0x68] sm:$0xff]
        %v981 = vld [vmem:[%s464 + $0x70] sm:$0xff]
        %v982 = vld [vmem:[%s464 + $0x78] sm:$0xff]
        %v983 = vld [vmem:[%s464 + $0x80] sm:$0xff]
        %v984 = vld [vmem:[%s464 + $0x88] sm:$0xff]
        %v985 = vld [vmem:[%s464 + $0x90] sm:$0xff]
        %v986 = vld [vmem:[%s464 + $0x98] sm:$0xff]
        %v987 = vld [vmem:[%s464 + $0xa0] sm:$0xff]
        %v988 = vld [vmem:[%s464 + $0xa8] sm:$0xff]
        %v989 = vld [vmem:[%s464 + $0xb0] sm:$0xff]
        %v990 = vld [vmem:[%s464 + $0xb8] sm:$0xff]
        %v991 = vld [vmem:[%s464 + $0xc0] sm:$0xff]
        %v992 = vld [vmem:[%s464 + $0xc8] sm:$0xff]
        %v993 = vld [vmem:[%s464 + $0xd0] sm:$0xff]
        %v994 = vld [vmem:[%s464 + $0xd8] sm:$0xff]
        %v995 = vld [vmem:[%s464 + $0xe0] sm:$0xff]
        %v996 = vld [vmem:[%s464 + $0xe8] sm:$0xff]
        %v997 = vld [vmem:[%s464 + $0xf0] sm:$0xff]
        %v998 = vld [vmem:[%s464 + $0xf8] sm:$0xff]
        %v999 = vld [vmem:[%s464 + $0x100] sm:$0xff]
        %v1000 = vld [vmem:[%s464 + $0x108] sm:$0xff]
        %v1001 = vld [vmem:[%s464 + $0x110] sm:$0xff]
        %v1002 = vld [vmem:[%s464 + $0x118] sm:$0xff]
        %v1003 = vld [vmem:[%s464 + $0x120] sm:$0xff]
        %v1004 = vld [vmem:[%s464 + $0x128] sm:$0xff]
        %v1005 = vld [vmem:[%s464 + $0x130] sm:$0xff]
        %v1006 = vld [vmem:[%s464 + $0x138] sm:$0xff]
        %v1007 = vld [vmem:[%s464 + $0x140] sm:$0xff]
        %v1008 = vld [vmem:[%s464 + $0x148] sm:$0xff]
        %v1009 = vld [vmem:[%s464 + $0x150] sm:$0xff]
        %v1010 = vld [vmem:[%s464 + $0x158] sm:$0xff]
        %v1011 = vld [vmem:[%s464 + $0x160] sm:$0xff]
        %v1012 = vld [vmem:[%s464 + $0x168] sm:$0xff]
        %v1013 = vld [vmem:[%s464 + $0x170] sm:$0xff]
        %v1014 = vld [vmem:[%s464 + $0x178] sm:$0xff]
        %v1015 = vld [vmem:[%s464 + $0x180] sm:$0xff]
        %v1016 = vld [vmem:[%s464 + $0x188] sm:$0xff]
        %v1017 = vld [vmem:[%s464 + $0x190] sm:$0xff]
        %v1018 = vld [vmem:[%s464 + $0x198] sm:$0xff]
        %v1019 = vld [vmem:[%s464 + $0x1a0] sm:$0xff]
        %v1020 = vld [vmem:[%s464 + $0x1a8] sm:$0xff]
        %v1021 = vld [vmem:[%s464 + $0x1b0] sm:$0xff]
        %v1022 = vld [vmem:[%s464 + $0x1b8] sm:$0xff]
        %v1023 = vld [vmem:[%s464 + $0x1c0] sm:$0xff]
        %v1024 = vld [vmem:[%s464 + $0x1c8] sm:$0xff]
        %v1025 = vld [vmem:[%s464 + $0x1d0] sm:$0xff]
        %v1026 = vld [vmem:[%s464 + $0x1d8] sm:$0xff]
        %v1027 = vld [vmem:[%s464 + $0x1e0] sm:$0xff]
        %v1028 = vld [vmem:[%s464 + $0x1e8] sm:$0xff]
        %v1029 = vld [vmem:[%s464 + $0x1f0] sm:$0xff]
        %v1030 = vld [vmem:[%s464 + $0x1f8] sm:$0xff]
        %v1031 = vld [vmem:[%s464 + $0x200] sm:$0xff]
        %v1032 = vld [vmem:[%s464 + $0x208] sm:$0xff]
        %v1033 = vld [vmem:[%s464 + $0x210] sm:$0xff]
        %v1034 = vld [vmem:[%s464 + $0x218] sm:$0xff]
        %v1035 = vld [vmem:[%s464 + $0x220] sm:$0xff]
        %v1036 = vld [vmem:[%s464 + $0x228] sm:$0xff]
        %v1037 = vld [vmem:[%s464 + $0x230] sm:$0xff]
        %v1038 = vld [vmem:[%s464 + $0x238] sm:$0xff]
        %v1039 = vld [vmem:[%s464 + $0x240] sm:$0xff]
        %v1040 = vld [vmem:[%s464 + $0x248] sm:$0xff]
        %v1041 = vld [vmem:[%s464 + $0x250] sm:$0xff]
        %v1042 = vld [vmem:[%s464 + $0x258] sm:$0xff]
        %v1043 = vld [vmem:[%s464 + $0x260] sm:$0xff]
        %v1044 = vld [vmem:[%s464 + $0x268] sm:$0xff]
        %v1045 = vld [vmem:[%s464 + $0x270] sm:$0xff]
        %v1046 = vld [vmem:[%s464 + $0x278] sm:$0xff]
        %v1047 = vld [vmem:[%s464 + $0x280] sm:$0xff]
        %v1048 = vld [vmem:[%s464 + $0x288] sm:$0xff]
        %v1049 = vld [vmem:[%s464 + $0x290] sm:$0xff]
        %v1050 = vld [vmem:[%s464 + $0x298] sm:$0xff]
        %v1051 = vld [vmem:[%s464 + $0x2a0] sm:$0xff]
        %v1052 = vld [vmem:[%s464 + $0x2a8] sm:$0xff]
        %v1053 = vld [vmem:[%s464 + $0x2b0] sm:$0xff]
        %v1054 = vld [vmem:[%s464 + $0x2b8] sm:$0xff]
        %v1055 = vld [vmem:[%s464 + $0x2c0] sm:$0xff]
        %v1056 = vld [vmem:[%s464 + $0x2c8] sm:$0xff]
        %v1057 = vld [vmem:[%s464 + $0x2d0] sm:$0xff]
        %v1058 = vld [vmem:[%s464 + $0x2d8] sm:$0xff]
        %v1059 = vld [vmem:[%s464 + $0x2e0] sm:$0xff]
        %v1060 = vld [vmem:[%s464 + $0x2e8] sm:$0xff]
        %v1061 = vld [vmem:[%s464 + $0x2f0] sm:$0xff]
        %v1062 = vld [vmem:[%s464 + $0x2f8] sm:$0xff]
        %v1063 = vld [vmem:[%s464 + $0x300] sm:$0xff]
        %v1064 = vld [vmem:[%s464 + $0x308] sm:$0xff]
        %v1065 = vld [vmem:[%s464 + $0x310] sm:$0xff]
        %v1066 = vld [vmem:[%s464 + $0x318] sm:$0xff]
        %v1067 = vld [vmem:[%s464 + $0x320] sm:$0xff]
        %v1068 = vld [vmem:[%s464 + $0x328] sm:$0xff]
        %v1069 = vld [vmem:[%s464 + $0x330] sm:$0xff]
        %v1070 = vld [vmem:[%s464 + $0x338] sm:$0xff]
        %v1071 = vld [vmem:[%s464 + $0x340] sm:$0xff]
        %v1072 = vld [vmem:[%s464 + $0x348] sm:$0xff]
        %v1073 = vld [vmem:[%s464 + $0x350] sm:$0xff]
        %v1074 = vld [vmem:[%s464 + $0x358] sm:$0xff]
        %v1075 = vld [vmem:[%s464 + $0x360] sm:$0xff]
        %v1076 = vld [vmem:[%s464 + $0x368] sm:$0xff]
        %v1077 = vld [vmem:[%s464 + $0x370] sm:$0xff]
        %v1078 = vld [vmem:[%s464 + $0x378] sm:$0xff]
        %v1079 = vld [vmem:[%s464 + $0x380] sm:$0xff]
        %v1080 = vld [vmem:[%s464 + $0x388] sm:$0xff]
        %v1081 = vld [vmem:[%s464 + $0x390] sm:$0xff]
        %v1082 = vld [vmem:[%s464 + $0x398] sm:$0xff]
        %v1083 = vld [vmem:[%s464 + $0x3a0] sm:$0xff]
        %v1084 = vld [vmem:[%s464 + $0x3a8] sm:$0xff]
        %v1085 = vld [vmem:[%s464 + $0x3b0] sm:$0xff]
        %v1086 = vld [vmem:[%s464 + $0x3b8] sm:$0xff]
        %v1087 = vld [vmem:[%s464 + $0x3c0] sm:$0xff]
        %v1088 = vld [vmem:[%s464 + $0x3c8] sm:$0xff]
        %v1089 = vld [vmem:[%s464 + $0x3d0] sm:$0xff]
        %v1090 = vld [vmem:[%s464 + $0x3d8] sm:$0xff]
        %v1091 = vld [vmem:[%s464 + $0x3e0] sm:$0xff]
        %v1092 = vld [vmem:[%s464 + $0x3e8] sm:$0xff]
        %v1093 = vld [vmem:[%s464 + $0x3f0] sm:$0xff]
        %v1094 = vld [vmem:[%s464 + $0x3f8] sm:$0xff]
        %v1095 = vld [vmem:[%s464 + $0x400] sm:$0xff]
        %v1096 = vld [vmem:[%s464 + $0x408] sm:$0xff]
        %v1097 = vld [vmem:[%s464 + $0x410] sm:$0xff]
        %v1098 = vld [vmem:[%s464 + $0x418] sm:$0xff]
        %v1099 = vld [vmem:[%s464 + $0x420] sm:$0xff]
        %v1100 = vld [vmem:[%s464 + $0x428] sm:$0xff]
        %v1101 = vld [vmem:[%s464 + $0x430] sm:$0xff]
        %v1102 = vld [vmem:[%s464 + $0x438] sm:$0xff]
        %v1103 = vld [vmem:[%s464 + $0x440] sm:$0xff]
        %v1104 = vld [vmem:[%s464 + $0x448] sm:$0xff]
        %v1105 = vld [vmem:[%s464 + $0x450] sm:$0xff]
        %v1106 = vld [vmem:[%s464 + $0x458] sm:$0xff]
        %v1107 = vld [vmem:[%s464 + $0x460] sm:$0xff]
        %v1108 = vld [vmem:[%s464 + $0x468] sm:$0xff]
        %v1109 = vld [vmem:[%s464 + $0x470] sm:$0xff]
        %v1110 = vld [vmem:[%s464 + $0x478] sm:$0xff]
        %v1111 = vld [vmem:[%s464 + $0x480] sm:$0xff]
        %v1112 = vld [vmem:[%s464 + $0x488] sm:$0xff]
        %v1113 = vld [vmem:[%s464 + $0x490] sm:$0xff]
        %v1114 = vld [vmem:[%s464 + $0x498] sm:$0xff]
        %v1115 = vld [vmem:[%s464 + $0x4a0] sm:$0xff]
        %v1116 = vld [vmem:[%s464 + $0x4a8] sm:$0xff]
        %v1117 = vld [vmem:[%s464 + $0x4b0] sm:$0xff]
        %v1118 = vld [vmem:[%s464 + $0x4b8] sm:$0xff]
        %v1119 = vld [vmem:[%s464 + $0x4c0] sm:$0xff]
        %v1120 = vld [vmem:[%s464 + $0x4c8] sm:$0xff]
        %v1121 = vld [vmem:[%s464 + $0x4d0] sm:$0xff]
        %v1122 = vld [vmem:[%s464 + $0x4d8] sm:$0xff]
        %v1123 = vld [vmem:[%s464 + $0x4e0] sm:$0xff]
        %v1124 = vld [vmem:[%s464 + $0x4e8] sm:$0xff]
        %v1125 = vld [vmem:[%s464 + $0x4f0] sm:$0xff]
        %v1126 = vld [vmem:[%s464 + $0x4f8] sm:$0xff]
        %v1127 = vld [vmem:[%s464 + $0x500] sm:$0xff]
        %v1128 = vld [vmem:[%s464 + $0x508] sm:$0xff]
        %v1129 = vld [vmem:[%s464 + $0x510] sm:$0xff]
        %v1130 = vld [vmem:[%s464 + $0x518] sm:$0xff]
        %v1131 = vld [vmem:[%s464 + $0x520] sm:$0xff]
        %v1132 = vld [vmem:[%s464 + $0x528] sm:$0xff]
        %v1133 = vld [vmem:[%s464 + $0x530] sm:$0xff]
        %v1134 = vld [vmem:[%s464 + $0x538] sm:$0xff]
        %v1135 = vld [vmem:[%s464 + $0x540] sm:$0xff]
        %v1136 = vld [vmem:[%s464 + $0x548] sm:$0xff]
        %v1137 = vld [vmem:[%s464 + $0x550] sm:$0xff]
        %v1138 = vld [vmem:[%s464 + $0x558] sm:$0xff]
        %v1139 = vld [vmem:[%s464 + $0x560] sm:$0xff]
        %v1140 = vld [vmem:[%s464 + $0x568] sm:$0xff]
        %v1141 = vld [vmem:[%s464 + $0x570] sm:$0xff]
        %v1142 = vld [vmem:[%s464 + $0x578] sm:$0xff]
        %v1143 = vld [vmem:[%s464 + $0x580] sm:$0xff]
        %v1144 = vld [vmem:[%s464 + $0x588] sm:$0xff]
        %v1145 = vld [vmem:[%s464 + $0x590] sm:$0xff]
        %v1146 = vld [vmem:[%s464 + $0x598] sm:$0xff]
        %v1147 = vld [vmem:[%s464 + $0x5a0] sm:$0xff]
        %v1148 = vld [vmem:[%s464 + $0x5a8] sm:$0xff]
        %v1149 = vld [vmem:[%s464 + $0x5b0] sm:$0xff]
        %v1150 = vld [vmem:[%s464 + $0x5b8] sm:$0xff]
        %v1151 = vld [vmem:[%s464 + $0x5c0] sm:$0xff]
        %v1152 = vld [vmem:[%s464 + $0x5c8] sm:$0xff]
        %v1153 = vld [vmem:[%s464 + $0x5d0] sm:$0xff]
        %v1154 = vld [vmem:[%s464 + $0x5d8] sm:$0xff]
        %v1155 = vld [vmem:[%s464 + $0x5e0] sm:$0xff]
        %v1156 = vld [vmem:[%s464 + $0x5e8] sm:$0xff]
        %v1157 = vld [vmem:[%s464 + $0x5f0] sm:$0xff]
        %v1158 = vld [vmem:[%s464 + $0x5f8] sm:$0xff]
        %v1159 = vld [vmem:[%s464 + $0x600] sm:$0xff]
        %v1160 = vld [vmem:[%s464 + $0x608] sm:$0xff]
        %v1161 = vld [vmem:[%s464 + $0x610] sm:$0xff]
        %v1162 = vld [vmem:[%s464 + $0x618] sm:$0xff]
        %v1163 = vld [vmem:[%s464 + $0x620] sm:$0xff]
        %v1164 = vld [vmem:[%s464 + $0x628] sm:$0xff]
        %v1165 = vld [vmem:[%s464 + $0x630] sm:$0xff]
        %v1166 = vld [vmem:[%s464 + $0x638] sm:$0xff]
        %v1167 = vld [vmem:[%s464 + $0x640] sm:$0xff]
        %v1168 = vld [vmem:[%s464 + $0x648] sm:$0xff]
        %v1169 = vld [vmem:[%s464 + $0x650] sm:$0xff]
        %v1170 = vld [vmem:[%s464 + $0x658] sm:$0xff]
        %v1171 = vld [vmem:[%s464 + $0x660] sm:$0xff]
        %v1172 = vld [vmem:[%s464 + $0x668] sm:$0xff]
        %v1173 = vld [vmem:[%s464 + $0x670] sm:$0xff]
        %v1174 = vld [vmem:[%s464 + $0x678] sm:$0xff]
        %v1175 = vld [vmem:[%s464 + $0x680] sm:$0xff]
        %v1176 = vld [vmem:[%s464 + $0x688] sm:$0xff]
        %v1177 = vld [vmem:[%s464 + $0x690] sm:$0xff]
        %v1178 = vld [vmem:[%s464 + $0x698] sm:$0xff]
        %v1179 = vld [vmem:[%s464 + $0x6a0] sm:$0xff]
        %v1180 = vld [vmem:[%s464 + $0x6a8] sm:$0xff]
        %v1181 = vld [vmem:[%s464 + $0x6b0] sm:$0xff]
        %v1182 = vld [vmem:[%s464 + $0x6b8] sm:$0xff]
        %v1183 = vld [vmem:[%s464 + $0x6c0] sm:$0xff]
        %v1184 = vld [vmem:[%s464 + $0x6c8] sm:$0xff]
        %v1185 = vld [vmem:[%s464 + $0x6d0] sm:$0xff]
        %v1186 = vld [vmem:[%s464 + $0x6d8] sm:$0xff]
        %v1187 = vld [vmem:[%s464 + $0x6e0] sm:$0xff]
        %v1188 = vld [vmem:[%s464 + $0x6e8] sm:$0xff]
        %v1189 = vld [vmem:[%s464 + $0x6f0] sm:$0xff]
        %v1190 = vld [vmem:[%s464 + $0x6f8] sm:$0xff]
        %v1191 = vld [vmem:[%s464 + $0x700] sm:$0xff]
        %v1192 = vld [vmem:[%s464 + $0x708] sm:$0xff]
        %v1193 = vld [vmem:[%s464 + $0x710] sm:$0xff]
        %v1194 = vld [vmem:[%s464 + $0x718] sm:$0xff]
        %v1195 = vld [vmem:[%s464 + $0x720] sm:$0xff]
        %v1196 = vld [vmem:[%s464 + $0x728] sm:$0xff]
        %v1197 = vld [vmem:[%s464 + $0x730] sm:$0xff]
        %v1198 = vld [vmem:[%s464 + $0x738] sm:$0xff]
        %v1199 = vld [vmem:[%s464 + $0x740] sm:$0xff]
        %v1200 = vld [vmem:[%s464 + $0x748] sm:$0xff]
        %v1201 = vld [vmem:[%s464 + $0x750] sm:$0xff]
        %v1202 = vld [vmem:[%s464 + $0x758] sm:$0xff]
        %v1203 = vld [vmem:[%s464 + $0x760] sm:$0xff]
        %v1204 = vld [vmem:[%s464 + $0x768] sm:$0xff]
        %v1205 = vld [vmem:[%s464 + $0x770] sm:$0xff]
        %v1206 = vld [vmem:[%s464 + $0x778] sm:$0xff]
        %v1207 = vld [vmem:[%s464 + $0x780] sm:$0xff]
        %v1208 = vld [vmem:[%s464 + $0x788] sm:$0xff]
        %v1209 = vld [vmem:[%s464 + $0x790] sm:$0xff]
        %v1210 = vld [vmem:[%s464 + $0x798] sm:$0xff]
        %v1211 = vld [vmem:[%s464 + $0x7a0] sm:$0xff]
        %v1212 = vld [vmem:[%s464 + $0x7a8] sm:$0xff]
        %v1213 = vld [vmem:[%s464 + $0x7b0] sm:$0xff]
        %v1214 = vld [vmem:[%s464 + $0x7b8] sm:$0xff]
        %v1215 = vld [vmem:[%s464 + $0x7c0] sm:$0xff]
        %v1216 = vld [vmem:[%s464 + $0x7c8] sm:$0xff]
        %v1217 = vld [vmem:[%s464 + $0x7d0] sm:$0xff]
        %v1218 = vld [vmem:[%s464 + $0x7d8] sm:$0xff]
        %v1219 = vld [vmem:[%s464 + $0x7e0] sm:$0xff]
        %v1220 = vld [vmem:[%s464 + $0x7e8] sm:$0xff]
        %v1221 = vld [vmem:[%s464 + $0x7f0] sm:$0xff]
        %v1222 = vld [vmem:[%s464 + $0x7f8] sm:$0xff]
        %v1223 = vld [vmem:[%s464 + $0x800] sm:$0xff]
        %v1224 = vld [vmem:[%s464 + $0x808] sm:$0xff]
        %v1225 = vld [vmem:[%s464 + $0x810] sm:$0xff]
        %v1226 = vld [vmem:[%s464 + $0x818] sm:$0xff]
        %v1227 = vld [vmem:[%s464 + $0x820] sm:$0xff]
        %v1228 = vld [vmem:[%s464 + $0x828] sm:$0xff]
        %v1229 = vld [vmem:[%s464 + $0x830] sm:$0xff]
        %v1230 = vld [vmem:[%s464 + $0x838] sm:$0xff]
        %v1231 = vld [vmem:[%s464 + $0x840] sm:$0xff]
        %v1232 = vld [vmem:[%s464 + $0x848] sm:$0xff]
        %v1233 = vld [vmem:[%s464 + $0x850] sm:$0xff]
        %v1234 = vld [vmem:[%s464 + $0x858] sm:$0xff]
        %v1235 = vld [vmem:[%s464 + $0x860] sm:$0xff]
        %v1236 = vld [vmem:[%s464 + $0x868] sm:$0xff]
        %v1237 = vld [vmem:[%s464 + $0x870] sm:$0xff]
        %v1238 = vld [vmem:[%s464 + $0x878] sm:$0xff]
        %v1239 = vld [vmem:[%s464 + $0x880] sm:$0xff]
        %v1240 = vld [vmem:[%s464 + $0x888] sm:$0xff]
        %v1241 = vld [vmem:[%s464 + $0x890] sm:$0xff]
        %v1242 = vld [vmem:[%s464 + $0x898] sm:$0xff]
        %v1243 = vld [vmem:[%s464 + $0x8a0] sm:$0xff]
        %v1244 = vld [vmem:[%s464 + $0x8a8] sm:$0xff]
        %v1245 = vld [vmem:[%s464 + $0x8b0] sm:$0xff]
        %v1246 = vld [vmem:[%s464 + $0x8b8] sm:$0xff]
        %v1247 = vld [vmem:[%s464 + $0x8c0] sm:$0xff]
        %v1248 = vld [vmem:[%s464 + $0x8c8] sm:$0xff]
        %v1249 = vld [vmem:[%s464 + $0x8d0] sm:$0xff]
        %v1250 = vld [vmem:[%s464 + $0x8d8] sm:$0xff]
        %v1251 = vld [vmem:[%s464 + $0x8e0] sm:$0xff]
        %v1252 = vld [vmem:[%s464 + $0x8e8] sm:$0xff]
        %v1253 = vld [vmem:[%s464 + $0x8f0] sm:$0xff]
        %v1254 = vld [vmem:[%s464 + $0x8f8] sm:$0xff]
        %v1255 = vld [vmem:[%s464 + $0x900] sm:$0xff]
        %v1256 = vld [vmem:[%s464 + $0x908] sm:$0xff]
        %v1257 = vld [vmem:[%s464 + $0x910] sm:$0xff]
        %v1258 = vld [vmem:[%s464 + $0x918] sm:$0xff]
        %v1259 = vld [vmem:[%s464 + $0x920] sm:$0xff]
        %v1260 = vld [vmem:[%s464 + $0x928] sm:$0xff]
        %v1261 = vld [vmem:[%s464 + $0x930] sm:$0xff]
        %v1262 = vld [vmem:[%s464 + $0x938] sm:$0xff]
        %v1263 = vld [vmem:[%s464 + $0x940] sm:$0xff]
        %v1264 = vld [vmem:[%s464 + $0x948] sm:$0xff]
        %v1265 = vld [vmem:[%s464 + $0x950] sm:$0xff]
        %v1266 = vld [vmem:[%s464 + $0x958] sm:$0xff]
        %v1267 = vld [vmem:[%s464 + $0x960] sm:$0xff]
        %v1268 = vld [vmem:[%s464 + $0x968] sm:$0xff]
        %v1269 = vld [vmem:[%s464 + $0x970] sm:$0xff]
        %v1270 = vld [vmem:[%s464 + $0x978] sm:$0xff]
        %v1271 = vld [vmem:[%s464 + $0x980] sm:$0xff]
        %v1272 = vld [vmem:[%s464 + $0x988] sm:$0xff]
        %v1273 = vld [vmem:[%s464 + $0x990] sm:$0xff]
        %v1274 = vld [vmem:[%s464 + $0x998] sm:$0xff]
        %v1275 = vld [vmem:[%s464 + $0x9a0] sm:$0xff]
        %v1276 = vld [vmem:[%s464 + $0x9a8] sm:$0xff]
        %v1277 = vld [vmem:[%s464 + $0x9b0] sm:$0xff]
        %v1278 = vld [vmem:[%s464 + $0x9b8] sm:$0xff]
        %v1279 = vld [vmem:[%s464 + $0x9c0] sm:$0xff]
        %v1280 = vld [vmem:[%s464 + $0x9c8] sm:$0xff]
        %v1281 = vld [vmem:[%s464 + $0x9d0] sm:$0xff]
        %v1282 = vld [vmem:[%s464 + $0x9d8] sm:$0xff]
        %v1283 = vld [vmem:[%s464 + $0x9e0] sm:$0xff]
        %v1284 = vld [vmem:[%s464 + $0x9e8] sm:$0xff]
        %v1285 = vld [vmem:[%s464 + $0x9f0] sm:$0xff]
        %v1286 = vld [vmem:[%s464 + $0x9f8] sm:$0xff]
        %v1287 = vld [vmem:[%s464 + $0xa00] sm:$0xff]
        %v1288 = vld [vmem:[%s464 + $0xa08] sm:$0xff]
        %v1289 = vld [vmem:[%s464 + $0xa10] sm:$0xff]
        %v1290 = vld [vmem:[%s464 + $0xa18] sm:$0xff]
        %v1291 = vld [vmem:[%s464 + $0xa20] sm:$0xff]
        %v1292 = vld [vmem:[%s464 + $0xa28] sm:$0xff]
        %v1293 = vld [vmem:[%s464 + $0xa30] sm:$0xff]
        %v1294 = vld [vmem:[%s464 + $0xa38] sm:$0xff]
        %v1295 = vld [vmem:[%s464 + $0xa40] sm:$0xff]
        %v1296 = vld [vmem:[%s464 + $0xa48] sm:$0xff]
        %v1297 = vld [vmem:[%s464 + $0xa50] sm:$0xff]
        %v1298 = vld [vmem:[%s464 + $0xa58] sm:$0xff]
        %v1299 = vld [vmem:[%s464 + $0xa60] sm:$0xff]
        %v1300 = vld [vmem:[%s464 + $0xa68] sm:$0xff]
        %v1301 = vld [vmem:[%s464 + $0xa70] sm:$0xff]
        %v1302 = vld [vmem:[%s464 + $0xa78] sm:$0xff]
        %v1303 = vld [vmem:[%s464 + $0xa80] sm:$0xff]
        %v1304 = vld [vmem:[%s464 + $0xa88] sm:$0xff]
        %v1305 = vld [vmem:[%s464 + $0xa90] sm:$0xff]
        %v1306 = vld [vmem:[%s464 + $0xa98] sm:$0xff]
        %v1307 = vld [vmem:[%s464 + $0xaa0] sm:$0xff]
        %v1308 = vld [vmem:[%s464 + $0xaa8] sm:$0xff]
        %v1309 = vld [vmem:[%s464 + $0xab0] sm:$0xff]
        %v1310 = vld [vmem:[%s464 + $0xab8] sm:$0xff]
        %v1311 = vld [vmem:[%s464 + $0xac0] sm:$0xff]
        %v1312 = vld [vmem:[%s464 + $0xac8] sm:$0xff]
        %v1313 = vld [vmem:[%s464 + $0xad0] sm:$0xff]
        %v1314 = vld [vmem:[%s464 + $0xad8] sm:$0xff]
        %v1315 = vld [vmem:[%s464 + $0xae0] sm:$0xff]
        %v1316 = vld [vmem:[%s464 + $0xae8] sm:$0xff]
        %v1317 = vld [vmem:[%s464 + $0xaf0] sm:$0xff]
        %v1318 = vld [vmem:[%s464 + $0xaf8] sm:$0xff]
        %v1319 = vld [vmem:[%s464 + $0xb00] sm:$0xff]
        %v1320 = vld [vmem:[%s464 + $0xb08] sm:$0xff]
        %v1321 = vld [vmem:[%s464 + $0xb10] sm:$0xff]
        %v1322 = vld [vmem:[%s464 + $0xb18] sm:$0xff]
        %v1323 = vld [vmem:[%s464 + $0xb20] sm:$0xff]
        %v1324 = vld [vmem:[%s464 + $0xb28] sm:$0xff]
        %v1325 = vld [vmem:[%s464 + $0xb30] sm:$0xff]
        %v1326 = vld [vmem:[%s464 + $0xb38] sm:$0xff]
        %v1327 = vld [vmem:[%s464 + $0xb40] sm:$0xff]
        %v1328 = vld [vmem:[%s464 + $0xb48] sm:$0xff]
        %v1329 = vld [vmem:[%s464 + $0xb50] sm:$0xff]
        %v1330 = vld [vmem:[%s464 + $0xb58] sm:$0xff]
        %v1331 = vld [vmem:[%s464 + $0xb60] sm:$0xff]
        %v1332 = vld [vmem:[%s464 + $0xb68] sm:$0xff]
        %v1333 = vld [vmem:[%s464 + $0xb70] sm:$0xff]
        %v1334 = vld [vmem:[%s464 + $0xb78] sm:$0xff]
        %v1335 = vld [vmem:[%s464 + $0xb80] sm:$0xff]
        %v1336 = vld [vmem:[%s464 + $0xb88] sm:$0xff]
        %v1337 = vld [vmem:[%s464 + $0xb90] sm:$0xff]
        %v1338 = vld [vmem:[%s464 + $0xb98] sm:$0xff]
        %v1339 = vld [vmem:[%s464 + $0xba0] sm:$0xff]
        %v1340 = vld [vmem:[%s464 + $0xba8] sm:$0xff]
        %v1341 = vld [vmem:[%s464 + $0xbb0] sm:$0xff]
        %v1342 = vld [vmem:[%s464 + $0xbb8] sm:$0xff]
        %v1343 = vld [vmem:[%s464 + $0xbc0] sm:$0xff]
        %v1344 = vld [vmem:[%s464 + $0xbc8] sm:$0xff]
        %v1345 = vld [vmem:[%s464 + $0xbd0] sm:$0xff]
        %v1346 = vld [vmem:[%s464 + $0xbd8] sm:$0xff]
        %v1347 = vld [vmem:[%s464 + $0xbe0] sm:$0xff]
        %v1348 = vld [vmem:[%s464 + $0xbe8] sm:$0xff]
        %v1349 = vld [vmem:[%s464 + $0xbf0] sm:$0xff]
        %v1350 = vld [vmem:[%s464 + $0xbf8] sm:$0xff]
        %v1351 = vld [vmem:[%s464 + $0xc00] sm:$0xff]
        %v1352 = vld [vmem:[%s464 + $0xc08] sm:$0xff]
        %v1353 = vld [vmem:[%s464 + $0xc10] sm:$0xff]
        %v1354 = vld [vmem:[%s464 + $0xc18] sm:$0xff]
        %v1355 = vld [vmem:[%s464 + $0xc20] sm:$0xff]
        %v1356 = vld [vmem:[%s464 + $0xc28] sm:$0xff]
        %v1357 = vld [vmem:[%s464 + $0xc30] sm:$0xff]
        %v1358 = vld [vmem:[%s464 + $0xc38] sm:$0xff]
        %v1359 = vld [vmem:[%s464 + $0xc40] sm:$0xff]
        %v1360 = vld [vmem:[%s464 + $0xc48] sm:$0xff]
        %v1361 = vld [vmem:[%s464 + $0xc50] sm:$0xff]
        %v1362 = vld [vmem:[%s464 + $0xc58] sm:$0xff]
        %v1363 = vld [vmem:[%s464 + $0xc60] sm:$0xff]
        %v1364 = vld [vmem:[%s464 + $0xc68] sm:$0xff]
        %v1365 = vld [vmem:[%s464 + $0xc70] sm:$0xff]
        %v1366 = vld [vmem:[%s464 + $0xc78] sm:$0xff]
        %v1367 = vld [vmem:[%s464 + $0xc80] sm:$0xff]
        %v1368 = vld [vmem:[%s464 + $0xc88] sm:$0xff]
        %v1369 = vld [vmem:[%s464 + $0xc90] sm:$0xff]
        %v1370 = vld [vmem:[%s464 + $0xc98] sm:$0xff]
        %v1371 = vld [vmem:[%s464 + $0xca0] sm:$0xff]
        %v1372 = vld [vmem:[%s464 + $0xca8] sm:$0xff]
        %v1373 = vld [vmem:[%s464 + $0xcb0] sm:$0xff]
        %v1374 = vld [vmem:[%s464 + $0xcb8] sm:$0xff]
        %v1375 = vld [vmem:[%s464 + $0xcc0] sm:$0xff]
        %v1376 = vld [vmem:[%s464 + $0xcc8] sm:$0xff]
        %v1377 = vld [vmem:[%s464 + $0xcd0] sm:$0xff]
        %v1378 = vld [vmem:[%s464 + $0xcd8] sm:$0xff]
        %v1379 = vld [vmem:[%s464 + $0xce0] sm:$0xff]
        %v1380 = vld [vmem:[%s464 + $0xce8] sm:$0xff]
        %v1381 = vld [vmem:[%s464 + $0xcf0] sm:$0xff]
        %v1382 = vld [vmem:[%s464 + $0xcf8] sm:$0xff]
        %v1383 = vld [vmem:[%s464 + $0xd00] sm:$0xff]
        %v1384 = vld [vmem:[%s464 + $0xd08] sm:$0xff]
        %v1385 = vld [vmem:[%s464 + $0xd10] sm:$0xff]
        %v1386 = vld [vmem:[%s464 + $0xd18] sm:$0xff]
        %v1387 = vld [vmem:[%s464 + $0xd20] sm:$0xff]
        %v1388 = vld [vmem:[%s464 + $0xd28] sm:$0xff]
        %v1389 = vld [vmem:[%s464 + $0xd30] sm:$0xff]
        %v1390 = vld [vmem:[%s464 + $0xd38] sm:$0xff]
        %v1391 = vld [vmem:[%s464 + $0xd40] sm:$0xff]
        %v1392 = vld [vmem:[%s464 + $0xd48] sm:$0xff]
        %v1393 = vld [vmem:[%s464 + $0xd50] sm:$0xff]
        %v1394 = vld [vmem:[%s464 + $0xd58] sm:$0xff]
        %v1395 = vld [vmem:[%s464 + $0xd60] sm:$0xff]
        %v1396 = vld [vmem:[%s464 + $0xd68] sm:$0xff]
        %v1397 = vld [vmem:[%s464 + $0xd70] sm:$0xff]
        %v1398 = vld [vmem:[%s464 + $0xd78] sm:$0xff]
        %v1399 = vld [vmem:[%s464 + $0xd80] sm:$0xff]
        %v1400 = vld [vmem:[%s464 + $0xd88] sm:$0xff]
        %v1401 = vld [vmem:[%s464 + $0xd90] sm:$0xff]
        %v1402 = vld [vmem:[%s464 + $0xd98] sm:$0xff]
        %v1403 = vld [vmem:[%s464 + $0xda0] sm:$0xff]
        %v1404 = vld [vmem:[%s464 + $0xda8] sm:$0xff]
        %v1405 = vld [vmem:[%s464 + $0xdb0] sm:$0xff]
        %v1406 = vld [vmem:[%s464 + $0xdb8] sm:$0xff]
        %v1407 = vld [vmem:[%s464 + $0xdc0] sm:$0xff]
        %v1408 = vld [vmem:[%s464 + $0xdc8] sm:$0xff]
        %v1409 = vld [vmem:[%s464 + $0xdd0] sm:$0xff]
        %v1410 = vld [vmem:[%s464 + $0xdd8] sm:$0xff]
        %v1411 = vld [vmem:[%s464 + $0xde0] sm:$0xff]
        %v1412 = vld [vmem:[%s464 + $0xde8] sm:$0xff]
        %v1413 = vld [vmem:[%s464 + $0xdf0] sm:$0xff]
        %v1414 = vld [vmem:[%s464 + $0xdf8] sm:$0xff]
        %v1415 = vld [vmem:[%s464 + $0xe00] sm:$0xff]
        %v1416 = vld [vmem:[%s464 + $0xe08] sm:$0xff]
        %v1417 = vld [vmem:[%s464 + $0xe10] sm:$0xff]
        %v1418 = vld [vmem:[%s464 + $0xe18] sm:$0xff]
        %v1419 = vld [vmem:[%s464 + $0xe20] sm:$0xff]
        %v1420 = vld [vmem:[%s464 + $0xe28] sm:$0xff]
        %v1421 = vld [vmem:[%s464 + $0xe30] sm:$0xff]
        %v1422 = vld [vmem:[%s464 + $0xe38] sm:$0xff]
        %v1423 = vld [vmem:[%s464 + $0xe40] sm:$0xff]
        %v1424 = vld [vmem:[%s464 + $0xe48] sm:$0xff]
        %v1425 = vld [vmem:[%s464 + $0xe50] sm:$0xff]
        %v1426 = vld [vmem:[%s464 + $0xe58] sm:$0xff]
        %v1427 = vld [vmem:[%s464 + $0xe60] sm:$0xff]
        %v1428 = vld [vmem:[%s464 + $0xe68] sm:$0xff]
        %v1429 = vld [vmem:[%s464 + $0xe70] sm:$0xff]
        %v1430 = vld [vmem:[%s464 + $0xe78] sm:$0xff]
        %v1431 = vld [vmem:[%s464 + $0xe80] sm:$0xff]
        %v1432 = vld [vmem:[%s464 + $0xe88] sm:$0xff]
        %v1433 = vld [vmem:[%s464 + $0xe90] sm:$0xff]
        %v1434 = vld [vmem:[%s464 + $0xe98] sm:$0xff]
        %v1435 = vld [vmem:[%s464 + $0xea0] sm:$0xff]
        %v1436 = vld [vmem:[%s464 + $0xea8] sm:$0xff]
        %v1437 = vld [vmem:[%s464 + $0xeb0] sm:$0xff]
        %v1438 = vld [vmem:[%s464 + $0xeb8] sm:$0xff]
        %v1439 = vld [vmem:[%s464 + $0xec0] sm:$0xff]
        %v1440 = vld [vmem:[%s464 + $0xec8] sm:$0xff]
        %v1441 = vld [vmem:[%s464 + $0xed0] sm:$0xff]
        %v1442 = vld [vmem:[%s464 + $0xed8] sm:$0xff]
        %v1443 = vld [vmem:[%s464 + $0xee0] sm:$0xff]
        %v1444 = vld [vmem:[%s464 + $0xee8] sm:$0xff]
        %v1445 = vld [vmem:[%s464 + $0xef0] sm:$0xff]
        %v1446 = vld [vmem:[%s464 + $0xef8] sm:$0xff]
        %v1447 = vld [vmem:[%s464 + $0xf00] sm:$0xff]
        %v1448 = vld [vmem:[%s464 + $0xf08] sm:$0xff]
        %v1449 = vld [vmem:[%s464 + $0xf10] sm:$0xff]
        %v1450 = vld [vmem:[%s464 + $0xf18] sm:$0xff]
        %v1451 = vld [vmem:[%s464 + $0xf20] sm:$0xff]
        %v1452 = vld [vmem:[%s464 + $0xf28] sm:$0xff]
        %v1453 = vld [vmem:[%s464 + $0xf30] sm:$0xff]
        %v1454 = vld [vmem:[%s464 + $0xf38] sm:$0xff]
        %v1455 = vld [vmem:[%s464 + $0xf40] sm:$0xff]
        %v1456 = vld [vmem:[%s464 + $0xf48] sm:$0xff]
        %v1457 = vld [vmem:[%s464 + $0xf50] sm:$0xff]
        %v1458 = vld [vmem:[%s464 + $0xf58] sm:$0xff]
        %v1459 = vld [vmem:[%s464 + $0xf60] sm:$0xff]
        %v1460 = vld [vmem:[%s464 + $0xf68] sm:$0xff]
        %v1461 = vld [vmem:[%s464 + $0xf70] sm:$0xff]
        %v1462 = vld [vmem:[%s464 + $0xf78] sm:$0xff]
        %v1463 = vld [vmem:[%s464 + $0xf80] sm:$0xff]
        %v1464 = vld [vmem:[%s464 + $0xf88] sm:$0xff]
        %v1465 = vld [vmem:[%s464 + $0xf90] sm:$0xff]
        %v1466 = vld [vmem:[%s464 + $0xf98] sm:$0xff]
        %v1467 = vld [vmem:[%s464 + $0xfa0] sm:$0xff]
        %v1468 = vld [vmem:[%s464 + $0xfa8] sm:$0xff]
        %v1469 = vld [vmem:[%s464 + $0xfb0] sm:$0xff]
        %v1470 = vld [vmem:[%s464 + $0xfb8] sm:$0xff]
        %v1471 = vld [vmem:[%s464 + $0xfc0] sm:$0xff]
        %v1472 = vld [vmem:[%s464 + $0xfc8] sm:$0xff]
        %v1473 = vld [vmem:[%s464 + $0xfd0] sm:$0xff]
        %v1474 = vld [vmem:[%s464 + $0xfd8] sm:$0xff]
        %v1475 = vld [vmem:[%s464 + $0xfe0] sm:$0xff]
        %v1476 = vld [vmem:[%s464 + $0xfe8] sm:$0xff]
        %v1477 = vld [vmem:[%s464 + $0xff0] sm:$0xff]
        %v1478 = vld [vmem:[%s464 + $0xff8] sm:$0xff]
        %v1479 = vld [vmem:[%s464 + $0x1000] sm:$0xff]
        %v1480 = vld [vmem:[%s464 + $0x1008] sm:$0xff]
        %v1481 = vld [vmem:[%s464 + $0x1010] sm:$0xff]
        %v1482 = vld [vmem:[%s464 + $0x1018] sm:$0xff]
        %v1483 = vld [vmem:[%s464 + $0x1020] sm:$0xff]
        %v1484 = vld [vmem:[%s464 + $0x1028] sm:$0xff]
        %v1485 = vld [vmem:[%s464 + $0x1030] sm:$0xff]
        %v1486 = vld [vmem:[%s464 + $0x1038] sm:$0xff]
        %v1487 = vld [vmem:[%s464 + $0x1040] sm:$0xff]
        %v1488 = vld [vmem:[%s464 + $0x1048] sm:$0xff]
        %v1489 = vld [vmem:[%s464 + $0x1050] sm:$0xff]
        %v1490 = vld [vmem:[%s464 + $0x1058] sm:$0xff]
        %v1491 = vld [vmem:[%s464 + $0x1060] sm:$0xff]
        %v1492 = vld [vmem:[%s464 + $0x1068] sm:$0xff]
        %v1493 = vld [vmem:[%s464 + $0x1070] sm:$0xff]
        %v1494 = vld [vmem:[%s464 + $0x1078] sm:$0xff]
        %v1495 = vld [vmem:[%s464 + $0x1080] sm:$0xff]
        %v1496 = vld [vmem:[%s464 + $0x1088] sm:$0xff]
        %v1497 = vld [vmem:[%s464 + $0x1090] sm:$0xff]
        %v1498 = vld [vmem:[%s464 + $0x1098] sm:$0xff]
        %v1499 = vld [vmem:[%s464 + $0x10a0] sm:$0xff]
        %v1500 = vld [vmem:[%s464 + $0x10a8] sm:$0xff]
        %v1501 = vld [vmem:[%s464 + $0x10b0] sm:$0xff]
        %v1502 = vld [vmem:[%s464 + $0x10b8] sm:$0xff]
        %v1503 = vld [vmem:[%s464 + $0x10c0] sm:$0xff]
        %v1504 = vld [vmem:[%s464 + $0x10c8] sm:$0xff]
        %v1505 = vld [vmem:[%s464 + $0x10d0] sm:$0xff]
        %v1506 = vld [vmem:[%s464 + $0x10d8] sm:$0xff]
        %v1507 = vld [vmem:[%s464 + $0x10e0] sm:$0xff]
        %v1508 = vld [vmem:[%s464 + $0x10e8] sm:$0xff]
        %v1509 = vld [vmem:[%s464 + $0x10f0] sm:$0xff]
        %v1510 = vld [vmem:[%s464 + $0x10f8] sm:$0xff]
        %v1511 = vld [vmem:[%s464 + $0x1100] sm:$0xff]
        %v1512 = vld [vmem:[%s464 + $0x1108] sm:$0xff]
        %v1513 = vld [vmem:[%s464 + $0x1110] sm:$0xff]
        %v1514 = vld [vmem:[%s464 + $0x1118] sm:$0xff]
        %v1515 = vld [vmem:[%s464 + $0x1120] sm:$0xff]
        %v1516 = vld [vmem:[%s464 + $0x1128] sm:$0xff]
        %v1517 = vld [vmem:[%s464 + $0x1130] sm:$0xff]
        %v1518 = vld [vmem:[%s464 + $0x1138] sm:$0xff]
        %v1519 = vld [vmem:[%s464 + $0x1140] sm:$0xff]
        %v1520 = vld [vmem:[%s464 + $0x1148] sm:$0xff]
        %v1521 = vld [vmem:[%s464 + $0x1150] sm:$0xff]
        %v1522 = vld [vmem:[%s464 + $0x1158] sm:$0xff]
        %v1523 = vld [vmem:[%s464 + $0x1160] sm:$0xff]
        %v1524 = vld [vmem:[%s464 + $0x1168] sm:$0xff]
        %v1525 = vld [vmem:[%s464 + $0x1170] sm:$0xff]
        %v1526 = vld [vmem:[%s464 + $0x1178] sm:$0xff]
        %v1527 = vld [vmem:[%s464 + $0x1180] sm:$0xff]
        %v1528 = vld [vmem:[%s464 + $0x1188] sm:$0xff]
        %v1529 = vld [vmem:[%s464 + $0x1190] sm:$0xff]
        %v1530 = vld [vmem:[%s464 + $0x1198] sm:$0xff]
        %v1531 = vld [vmem:[%s464 + $0x11a0] sm:$0xff]
        %v1532 = vld [vmem:[%s464 + $0x11a8] sm:$0xff]
        %v1533 = vld [vmem:[%s464 + $0x11b0] sm:$0xff]
        %v1534 = vld [vmem:[%s464 + $0x11b8] sm:$0xff]
        %v1535 = vld [vmem:[%s464 + $0x11c0] sm:$0xff]
        %v1536 = vld [vmem:[%s464 + $0x11c8] sm:$0xff]
        %v1537 = vld [vmem:[%s464 + $0x11d0] sm:$0xff]
        %v1538 = vld [vmem:[%s464 + $0x11d8] sm:$0xff]
        %v1539 = vld [vmem:[%s464 + $0x11e0] sm:$0xff]
        %v1540 = vld [vmem:[%s464 + $0x11e8] sm:$0xff]
        %v1541 = vld [vmem:[%s464 + $0x11f0] sm:$0xff]
        %v1542 = vld [vmem:[%s464 + $0x11f8] sm:$0xff]
        %v1543 = vld [vmem:[%s464 + $0x1200] sm:$0xff]
        %v1544 = vld [vmem:[%s464 + $0x1208] sm:$0xff]
        %v1545 = vld [vmem:[%s464 + $0x1210] sm:$0xff]
        %v1546 = vld [vmem:[%s464 + $0x1218] sm:$0xff]
        %v1547 = vld [vmem:[%s464 + $0x1220] sm:$0xff]
        %v1548 = vld [vmem:[%s464 + $0x1228] sm:$0xff]
        %v1549 = vld [vmem:[%s464 + $0x1230] sm:$0xff]
        %v1550 = vld [vmem:[%s464 + $0x1238] sm:$0xff]
        %v1551 = vld [vmem:[%s464 + $0x1240] sm:$0xff]
        %v1552 = vld [vmem:[%s464 + $0x1248] sm:$0xff]
        %v1553 = vld [vmem:[%s464 + $0x1250] sm:$0xff]
        %v1554 = vld [vmem:[%s464 + $0x1258] sm:$0xff]
        %v1555 = vld [vmem:[%s464 + $0x1260] sm:$0xff]
        %v1556 = vld [vmem:[%s464 + $0x1268] sm:$0xff]
        %v1557 = vld [vmem:[%s464 + $0x1270] sm:$0xff]
        %v1558 = vld [vmem:[%s464 + $0x1278] sm:$0xff]
        %v1559 = vld [vmem:[%s464 + $0x1280] sm:$0xff]
        %v1560 = vld [vmem:[%s464 + $0x1288] sm:$0xff]
        %v1561 = vld [vmem:[%s464 + $0x1290] sm:$0xff]
        %v1562 = vld [vmem:[%s464 + $0x1298] sm:$0xff]
        %v1563 = vld [vmem:[%s464 + $0x12a0] sm:$0xff]
        %v1564 = vld [vmem:[%s464 + $0x12a8] sm:$0xff]
        %v1565 = vld [vmem:[%s464 + $0x12b0] sm:$0xff]
        %v1566 = vld [vmem:[%s464 + $0x12b8] sm:$0xff]
        %v1567 = vld [vmem:[%s464 + $0x12c0] sm:$0xff]
        %v1568 = vld [vmem:[%s464 + $0x12c8] sm:$0xff]
        %v1569 = vld [vmem:[%s464 + $0x12d0] sm:$0xff]
        %v1570 = vld [vmem:[%s464 + $0x12d8] sm:$0xff]
        %v1571 = vld [vmem:[%s464 + $0x12e0] sm:$0xff]
        %v1572 = vld [vmem:[%s464 + $0x12e8] sm:$0xff]
        %v1573 = vld [vmem:[%s464 + $0x12f0] sm:$0xff]
        %v1574 = vld [vmem:[%s464 + $0x12f8] sm:$0xff]
        %v1575 = vld [vmem:[%s464 + $0x1300] sm:$0xff]
        %v1576 = vld [vmem:[%s464 + $0x1308] sm:$0xff]
        %v1577 = vld [vmem:[%s464 + $0x1310] sm:$0xff]
        %v1578 = vld [vmem:[%s464 + $0x1318] sm:$0xff]
        %v1579 = vld [vmem:[%s464 + $0x1320] sm:$0xff]
        %v1580 = vld [vmem:[%s464 + $0x1328] sm:$0xff]
        %v1581 = vld [vmem:[%s464 + $0x1330] sm:$0xff]
        %v1582 = vld [vmem:[%s464 + $0x1338] sm:$0xff]
        %v1583 = vld [vmem:[%s464 + $0x1340] sm:$0xff]
        %v1584 = vld [vmem:[%s464 + $0x1348] sm:$0xff]
        %v1585 = vld [vmem:[%s464 + $0x1350] sm:$0xff]
        %v1586 = vld [vmem:[%s464 + $0x1358] sm:$0xff]
        %v1587 = vld [vmem:[%s464 + $0x1360] sm:$0xff]
        %v1588 = vld [vmem:[%s464 + $0x1368] sm:$0xff]
        %v1589 = vld [vmem:[%s464 + $0x1370] sm:$0xff]
        %v1590 = vld [vmem:[%s464 + $0x1378] sm:$0xff]
        %v1591 = vld [vmem:[%s464 + $0x1380] sm:$0xff]
        %v1592 = vld [vmem:[%s464 + $0x1388] sm:$0xff]
        %v1593 = vld [vmem:[%s464 + $0x1390] sm:$0xff]
        %v1594 = vld [vmem:[%s464 + $0x1398] sm:$0xff]
        %v1595 = vld [vmem:[%s464 + $0x13a0] sm:$0xff]
        %v1596 = vld [vmem:[%s464 + $0x13a8] sm:$0xff]
        %v1597 = vld [vmem:[%s464 + $0x13b0] sm:$0xff]
        %v1598 = vld [vmem:[%s464 + $0x13b8] sm:$0xff]
        %v1599 = vld [vmem:[%s464 + $0x13c0] sm:$0xff]
        %v1600 = vld [vmem:[%s464 + $0x13c8] sm:$0xff]
        %v1601 = vld [vmem:[%s464 + $0x13d0] sm:$0xff]
        %v1602 = vld [vmem:[%s464 + $0x13d8] sm:$0xff]
        %v1603 = vld [vmem:[%s464 + $0x13e0] sm:$0xff]
        %v1604 = vld [vmem:[%s464 + $0x13e8] sm:$0xff]
        %v1605 = vld [vmem:[%s464 + $0x13f0] sm:$0xff]
        %v1606 = vld [vmem:[%s464 + $0x13f8] sm:$0xff]
        %v1607 = vld [vmem:[%s464 + $0x1400] sm:$0xff]
        %v1608 = vld [vmem:[%s464 + $0x1408] sm:$0xff]
        %v1609 = vld [vmem:[%s464 + $0x1410] sm:$0xff]
        %v1610 = vld [vmem:[%s464 + $0x1418] sm:$0xff]
        %v1611 = vld [vmem:[%s464 + $0x1420] sm:$0xff]
        %v1612 = vld [vmem:[%s464 + $0x1428] sm:$0xff]
        %v1613 = vld [vmem:[%s464 + $0x1430] sm:$0xff]
        %v1614 = vld [vmem:[%s464 + $0x1438] sm:$0xff]
        %v1615 = vld [vmem:[%s464 + $0x1440] sm:$0xff]
        %v1616 = vld [vmem:[%s464 + $0x1448] sm:$0xff]
        %v1617 = vld [vmem:[%s464 + $0x1450] sm:$0xff]
        %v1618 = vld [vmem:[%s464 + $0x1458] sm:$0xff]
        %v1619 = vld [vmem:[%s464 + $0x1460] sm:$0xff]
        %v1620 = vld [vmem:[%s464 + $0x1468] sm:$0xff]
        %v1621 = vld [vmem:[%s464 + $0x1470] sm:$0xff]
        %v1622 = vld [vmem:[%s464 + $0x1478] sm:$0xff]
        %v1623 = vld [vmem:[%s464 + $0x1480] sm:$0xff]
        %v1624 = vld [vmem:[%s464 + $0x1488] sm:$0xff]
        %v1625 = vld [vmem:[%s464 + $0x1490] sm:$0xff]
        %v1626 = vld [vmem:[%s464 + $0x1498] sm:$0xff]
        %v1627 = vld [vmem:[%s464 + $0x14a0] sm:$0xff]
        %v1628 = vld [vmem:[%s464 + $0x14a8] sm:$0xff]
        %v1629 = vld [vmem:[%s464 + $0x14b0] sm:$0xff]
        %v1630 = vld [vmem:[%s464 + $0x14b8] sm:$0xff]
        %v1631 = vld [vmem:[%s464 + $0x14c0] sm:$0xff]
        %v1632 = vld [vmem:[%s464 + $0x14c8] sm:$0xff]
        %v1633 = vld [vmem:[%s464 + $0x14d0] sm:$0xff]
        %v1634 = vld [vmem:[%s464 + $0x14d8] sm:$0xff]
        %v1635 = vld [vmem:[%s464 + $0x14e0] sm:$0xff]
        %v1636 = vld [vmem:[%s464 + $0x14e8] sm:$0xff]
        %v1637 = vld [vmem:[%s464 + $0x14f0] sm:$0xff]
        %v1638 = vld [vmem:[%s464 + $0x14f8] sm:$0xff]
        %v1639 = vld [vmem:[%s464 + $0x1500] sm:$0xff]
        %v1640 = vld [vmem:[%s464 + $0x1508] sm:$0xff]
        %v1641 = vld [vmem:[%s464 + $0x1510] sm:$0xff]
        %v1642 = vld [vmem:[%s464 + $0x1518] sm:$0xff]
        %v1643 = vld [vmem:[%s464 + $0x1520] sm:$0xff]
        %v1644 = vld [vmem:[%s464 + $0x1528] sm:$0xff]
        %v1645 = vld [vmem:[%s464 + $0x1530] sm:$0xff]
        %v1646 = vld [vmem:[%s464 + $0x1538] sm:$0xff]
        %v1647 = vld [vmem:[%s464 + $0x1540] sm:$0xff]
        %v1648 = vld [vmem:[%s464 + $0x1548] sm:$0xff]
        %v1649 = vld [vmem:[%s464 + $0x1550] sm:$0xff]
        %v1650 = vld [vmem:[%s464 + $0x1558] sm:$0xff]
        %v1651 = vld [vmem:[%s464 + $0x1560] sm:$0xff]
        %v1652 = vld [vmem:[%s464 + $0x1568] sm:$0xff]
        %v1653 = vld [vmem:[%s464 + $0x1570] sm:$0xff]
        %v1654 = vld [vmem:[%s464 + $0x1578] sm:$0xff]
        %v1655 = vld [vmem:[%s464 + $0x1580] sm:$0xff]
        %v1656 = vld [vmem:[%s464 + $0x1588] sm:$0xff]
        %v1657 = vld [vmem:[%s464 + $0x1590] sm:$0xff]
        %v1658 = vld [vmem:[%s464 + $0x1598] sm:$0xff]
        %v1659 = vld [vmem:[%s464 + $0x15a0] sm:$0xff]
        %v1660 = vld [vmem:[%s464 + $0x15a8] sm:$0xff]
        %v1661 = vld [vmem:[%s464 + $0x15b0] sm:$0xff]
        %v1662 = vld [vmem:[%s464 + $0x15b8] sm:$0xff]
        %v1663 = vld [vmem:[%s464 + $0x15c0] sm:$0xff]
        %v1664 = vld [vmem:[%s464 + $0x15c8] sm:$0xff]
        %v1665 = vld [vmem:[%s464 + $0x15d0] sm:$0xff]
        %v1666 = vld [vmem:[%s464 + $0x15d8] sm:$0xff]
        %v1667 = vld [vmem:[%s464 + $0x15e0] sm:$0xff]
        %v1668 = vld [vmem:[%s464 + $0x15e8] sm:$0xff]
        %v1669 = vld [vmem:[%s464 + $0x15f0] sm:$0xff]
        %v1670 = vld [vmem:[%s464 + $0x15f8] sm:$0xff]
        %v1671 = vld [vmem:[%s464 + $0x1600] sm:$0xff]
        %v1672 = vld [vmem:[%s464 + $0x1608] sm:$0xff]
        %v1673 = vld [vmem:[%s464 + $0x1610] sm:$0xff]
        %v1674 = vld [vmem:[%s464 + $0x1618] sm:$0xff]
        %v1675 = vld [vmem:[%s464 + $0x1620] sm:$0xff]
        %v1676 = vld [vmem:[%s464 + $0x1628] sm:$0xff]
        %v1677 = vld [vmem:[%s464 + $0x1630] sm:$0xff]
        %v1678 = vld [vmem:[%s464 + $0x1638] sm:$0xff]
        %v1679 = vld [vmem:[%s464 + $0x1640] sm:$0xff]
        %v1680 = vld [vmem:[%s464 + $0x1648] sm:$0xff]
        %v1681 = vld [vmem:[%s464 + $0x1650] sm:$0xff]
        %v1682 = vld [vmem:[%s464 + $0x1658] sm:$0xff]
        %v1683 = vld [vmem:[%s464 + $0x1660] sm:$0xff]
        %v1684 = vld [vmem:[%s464 + $0x1668] sm:$0xff]
        %v1685 = vld [vmem:[%s464 + $0x1670] sm:$0xff]
        %v1686 = vld [vmem:[%s464 + $0x1678] sm:$0xff]
        %v1687 = vld [vmem:[%s464 + $0x1680] sm:$0xff]
        %v1688 = vld [vmem:[%s464 + $0x1688] sm:$0xff]
        %v1689 = vld [vmem:[%s464 + $0x1690] sm:$0xff]
        %v1690 = vld [vmem:[%s464 + $0x1698] sm:$0xff]
        %v1691 = vld [vmem:[%s464 + $0x16a0] sm:$0xff]
        %v1692 = vld [vmem:[%s464 + $0x16a8] sm:$0xff]
        %v1693 = vld [vmem:[%s464 + $0x16b0] sm:$0xff]
        %v1694 = vld [vmem:[%s464 + $0x16b8] sm:$0xff]
        %v1695 = vld [vmem:[%s464 + $0x16c0] sm:$0xff]
        %v1696 = vld [vmem:[%s464 + $0x16c8] sm:$0xff]
        %v1697 = vld [vmem:[%s464 + $0x16d0] sm:$0xff]
        %v1698 = vld [vmem:[%s464 + $0x16d8] sm:$0xff]
        %v1699 = vld [vmem:[%s464 + $0x16e0] sm:$0xff]
        %v1700 = vld [vmem:[%s464 + $0x16e8] sm:$0xff]
        %v1701 = vld [vmem:[%s464 + $0x16f0] sm:$0xff]
        %v1702 = vld [vmem:[%s464 + $0x16f8] sm:$0xff]
        %v1703 = vld [vmem:[%s464 + $0x1700] sm:$0xff]
        %v1704 = vld [vmem:[%s464 + $0x1708] sm:$0xff]
        %v1705 = vld [vmem:[%s464 + $0x1710] sm:$0xff]
        %v1706 = vld [vmem:[%s464 + $0x1718] sm:$0xff]
        %v1707 = vld [vmem:[%s464 + $0x1720] sm:$0xff]
        %v1708 = vld [vmem:[%s464 + $0x1728] sm:$0xff]
        %v1709 = vld [vmem:[%s464 + $0x1730] sm:$0xff]
        %v1710 = vld [vmem:[%s464 + $0x1738] sm:$0xff]
        %v1711 = vld [vmem:[%s464 + $0x1740] sm:$0xff]
        %v1712 = vld [vmem:[%s464 + $0x1748] sm:$0xff]
        %v1713 = vld [vmem:[%s464 + $0x1750] sm:$0xff]
        %v1714 = vld [vmem:[%s464 + $0x1758] sm:$0xff]
        %v1715 = vld [vmem:[%s464 + $0x1760] sm:$0xff]
        %v1716 = vld [vmem:[%s464 + $0x1768] sm:$0xff]
        %v1717 = vld [vmem:[%s464 + $0x1770] sm:$0xff]
        %v1718 = vld [vmem:[%s464 + $0x1778] sm:$0xff]
        %v1719 = vld [vmem:[%s464 + $0x1780] sm:$0xff]
        %v1720 = vld [vmem:[%s464 + $0x1788] sm:$0xff]
        %v1721 = vld [vmem:[%s464 + $0x1790] sm:$0xff]
        %v1722 = vld [vmem:[%s464 + $0x1798] sm:$0xff]
        %v1723 = vld [vmem:[%s464 + $0x17a0] sm:$0xff]
        %v1724 = vld [vmem:[%s464 + $0x17a8] sm:$0xff]
        %v1725 = vld [vmem:[%s464 + $0x17b0] sm:$0xff]
        %v1726 = vld [vmem:[%s464 + $0x17b8] sm:$0xff]
        %v1727 = vld [vmem:[%s464 + $0x17c0] sm:$0xff]
        %v1728 = vld [vmem:[%s464 + $0x17c8] sm:$0xff]
        %v1729 = vld [vmem:[%s464 + $0x17d0] sm:$0xff]
        %v1730 = vld [vmem:[%s464 + $0x17d8] sm:$0xff]
        %v1731 = vld [vmem:[%s464 + $0x17e0] sm:$0xff]
        %v1732 = vld [vmem:[%s464 + $0x17e8] sm:$0xff]
        %v1733 = vld [vmem:[%s464 + $0x17f0] sm:$0xff]
        %v1734 = vld [vmem:[%s464 + $0x17f8] sm:$0xff]
        %v1735 = vld [vmem:[%s464 + $0x1800] sm:$0xff]
        %v1736 = vld [vmem:[%s464 + $0x1808] sm:$0xff]
        %v1737 = vld [vmem:[%s464 + $0x1810] sm:$0xff]
        %v1738 = vld [vmem:[%s464 + $0x1818] sm:$0xff]
        %v1739 = vld [vmem:[%s464 + $0x1820] sm:$0xff]
        %v1740 = vld [vmem:[%s464 + $0x1828] sm:$0xff]
        %v1741 = vld [vmem:[%s464 + $0x1830] sm:$0xff]
        %v1742 = vld [vmem:[%s464 + $0x1838] sm:$0xff]
        %v1743 = vld [vmem:[%s464 + $0x1840] sm:$0xff]
        %v1744 = vld [vmem:[%s464 + $0x1848] sm:$0xff]
        %v1745 = vld [vmem:[%s464 + $0x1850] sm:$0xff]
        %v1746 = vld [vmem:[%s464 + $0x1858] sm:$0xff]
        %v1747 = vld [vmem:[%s464 + $0x1860] sm:$0xff]
        %v1748 = vld [vmem:[%s464 + $0x1868] sm:$0xff]
        %v1749 = vld [vmem:[%s464 + $0x1870] sm:$0xff]
        %v1750 = vld [vmem:[%s464 + $0x1878] sm:$0xff]
        %v1751 = vld [vmem:[%s464 + $0x1880] sm:$0xff]
        %v1752 = vld [vmem:[%s464 + $0x1888] sm:$0xff]
        %v1753 = vld [vmem:[%s464 + $0x1890] sm:$0xff]
        %v1754 = vld [vmem:[%s464 + $0x1898] sm:$0xff]
        %v1755 = vld [vmem:[%s464 + $0x18a0] sm:$0xff]
        %v1756 = vld [vmem:[%s464 + $0x18a8] sm:$0xff]
        %v1757 = vld [vmem:[%s464 + $0x18b0] sm:$0xff]
        %v1758 = vld [vmem:[%s464 + $0x18b8] sm:$0xff]
        %v1759 = vld [vmem:[%s464 + $0x18c0] sm:$0xff]
        %v1760 = vld [vmem:[%s464 + $0x18c8] sm:$0xff]
        %v1761 = vld [vmem:[%s464 + $0x18d0] sm:$0xff]
        %v1762 = vld [vmem:[%s464 + $0x18d8] sm:$0xff]
        %v1763 = vld [vmem:[%s464 + $0x18e0] sm:$0xff]
        %v1764 = vld [vmem:[%s464 + $0x18e8] sm:$0xff]
        %v1765 = vld [vmem:[%s464 + $0x18f0] sm:$0xff]
        %v1766 = vld [vmem:[%s464 + $0x18f8] sm:$0xff]
        %v1767 = vld [vmem:[%s464 + $0x1900] sm:$0xff]
        %v1768 = vld [vmem:[%s464 + $0x1908] sm:$0xff]
        %v1769 = vld [vmem:[%s464 + $0x1910] sm:$0xff]
        %v1770 = vld [vmem:[%s464 + $0x1918] sm:$0xff]
        %v1771 = vld [vmem:[%s464 + $0x1920] sm:$0xff]
        %v1772 = vld [vmem:[%s464 + $0x1928] sm:$0xff]
        %v1773 = vld [vmem:[%s464 + $0x1930] sm:$0xff]
        %v1774 = vld [vmem:[%s464 + $0x1938] sm:$0xff]
        %v1775 = vld [vmem:[%s464 + $0x1940] sm:$0xff]
        %v1776 = vld [vmem:[%s464 + $0x1948] sm:$0xff]
        %v1777 = vld [vmem:[%s464 + $0x1950] sm:$0xff]
        %v1778 = vld [vmem:[%s464 + $0x1958] sm:$0xff]
        %v1779 = vld [vmem:[%s464 + $0x1960] sm:$0xff]
        %v1780 = vld [vmem:[%s464 + $0x1968] sm:$0xff]
        %v1781 = vld [vmem:[%s464 + $0x1970] sm:$0xff]
        %v1782 = vld [vmem:[%s464 + $0x1978] sm:$0xff]
        %v1783 = vld [vmem:[%s464 + $0x1980] sm:$0xff]
        %v1784 = vld [vmem:[%s464 + $0x1988] sm:$0xff]
        %v1785 = vld [vmem:[%s464 + $0x1990] sm:$0xff]
        %v1786 = vld [vmem:[%s464 + $0x1998] sm:$0xff]
        %v1787 = vld [vmem:[%s464 + $0x19a0] sm:$0xff]
        %v1788 = vld [vmem:[%s464 + $0x19a8] sm:$0xff]
        %v1789 = vld [vmem:[%s464 + $0x19b0] sm:$0xff]
        %v1790 = vld [vmem:[%s464 + $0x19b8] sm:$0xff]
        %v1791 = vld [vmem:[%s464 + $0x19c0] sm:$0xff]
        %v1792 = vld [vmem:[%s464 + $0x19c8] sm:$0xff]
        %v1793 = vld [vmem:[%s464 + $0x19d0] sm:$0xff]
        %v1794 = vld [vmem:[%s464 + $0x19d8] sm:$0xff]
        %v1795 = vld [vmem:[%s464 + $0x19e0] sm:$0xff]
        %v1796 = vld [vmem:[%s464 + $0x19e8] sm:$0xff]
        %v1797 = vld [vmem:[%s464 + $0x19f0] sm:$0xff]
        %v1798 = vld [vmem:[%s464 + $0x19f8] sm:$0xff]
        %v1799 = vld [vmem:[%s464 + $0x1a00] sm:$0xff]
        %v1800 = vld [vmem:[%s464 + $0x1a08] sm:$0xff]
        %v1801 = vld [vmem:[%s464 + $0x1a10] sm:$0xff]
        %v1802 = vld [vmem:[%s464 + $0x1a18] sm:$0xff]
        %v1803 = vld [vmem:[%s464 + $0x1a20] sm:$0xff]
        %v1804 = vld [vmem:[%s464 + $0x1a28] sm:$0xff]
        %v1805 = vld [vmem:[%s464 + $0x1a30] sm:$0xff]
        %v1806 = vld [vmem:[%s464 + $0x1a38] sm:$0xff]
        %v1807 = vld [vmem:[%s464 + $0x1a40] sm:$0xff]
        %v1808 = vld [vmem:[%s464 + $0x1a48] sm:$0xff]
        %v1809 = vld [vmem:[%s464 + $0x1a50] sm:$0xff]
        %v1810 = vld [vmem:[%s464 + $0x1a58] sm:$0xff]
        %v1811 = vld [vmem:[%s464 + $0x1a60] sm:$0xff]
        %v1812 = vld [vmem:[%s464 + $0x1a68] sm:$0xff]
        %v1813 = vld [vmem:[%s464 + $0x1a70] sm:$0xff]
        %v1814 = vld [vmem:[%s464 + $0x1a78] sm:$0xff]
        %v1815 = vld [vmem:[%s464 + $0x1a80] sm:$0xff]
        %v1816 = vld [vmem:[%s464 + $0x1a88] sm:$0xff]
        %v1817 = vld [vmem:[%s464 + $0x1a90] sm:$0xff]
        %v1818 = vld [vmem:[%s464 + $0x1a98] sm:$0xff]
        %v1819 = vld [vmem:[%s464 + $0x1aa0] sm:$0xff]
        %v1820 = vld [vmem:[%s464 + $0x1aa8] sm:$0xff]
        %v1821 = vld [vmem:[%s464 + $0x1ab0] sm:$0xff]
        %v1822 = vld [vmem:[%s464 + $0x1ab8] sm:$0xff]
        %v1823 = vld [vmem:[%s464 + $0x1ac0] sm:$0xff]
        %v1824 = vld [vmem:[%s464 + $0x1ac8] sm:$0xff]
        %v1825 = vld [vmem:[%s464 + $0x1ad0] sm:$0xff]
        %v1826 = vld [vmem:[%s464 + $0x1ad8] sm:$0xff]
        %v1827 = vld [vmem:[%s464 + $0x1ae0] sm:$0xff]
        %v1828 = vld [vmem:[%s464 + $0x1ae8] sm:$0xff]
        %v1829 = vld [vmem:[%s464 + $0x1af0] sm:$0xff]
        %v1830 = vld [vmem:[%s464 + $0x1af8] sm:$0xff]
        %v1831 = vld [vmem:[%s464 + $0x1b00] sm:$0xff]
        %v1832 = vld [vmem:[%s464 + $0x1b08] sm:$0xff]
        %v1833 = vld [vmem:[%s464 + $0x1b10] sm:$0xff]
        %v1834 = vld [vmem:[%s464 + $0x1b18] sm:$0xff]
        %v1835 = vld [vmem:[%s464 + $0x1b20] sm:$0xff]
        %v1836 = vld [vmem:[%s464 + $0x1b28] sm:$0xff]
        %v1837 = vld [vmem:[%s464 + $0x1b30] sm:$0xff]
        %v1838 = vld [vmem:[%s464 + $0x1b38] sm:$0xff]
        %v1839 = vld [vmem:[%s464 + $0x1b40] sm:$0xff]
        %v1840 = vld [vmem:[%s464 + $0x1b48] sm:$0xff]
        %v1841 = vld [vmem:[%s464 + $0x1b50] sm:$0xff]
        %v1842 = vld [vmem:[%s464 + $0x1b58] sm:$0xff]
        %v1843 = vld [vmem:[%s464 + $0x1b60] sm:$0xff]
        %v1844 = vld [vmem:[%s464 + $0x1b68] sm:$0xff]
        %v1845 = vld [vmem:[%s464 + $0x1b70] sm:$0xff]
        %v1846 = vld [vmem:[%s464 + $0x1b78] sm:$0xff]
        %v1847 = vld [vmem:[%s464 + $0x1b80] sm:$0xff]
        %v1848 = vld [vmem:[%s464 + $0x1b88] sm:$0xff]
        %v1849 = vld [vmem:[%s464 + $0x1b90] sm:$0xff]
        %v1850 = vld [vmem:[%s464 + $0x1b98] sm:$0xff]
        %v1851 = vld [vmem:[%s464 + $0x1ba0] sm:$0xff]
        %v1852 = vld [vmem:[%s464 + $0x1ba8] sm:$0xff]
        %v1853 = vld [vmem:[%s464 + $0x1bb0] sm:$0xff]
        %v1854 = vld [vmem:[%s464 + $0x1bb8] sm:$0xff]
        %v1855 = vld [vmem:[%s464 + $0x1bc0] sm:$0xff]
        %v1856 = vld [vmem:[%s464 + $0x1bc8] sm:$0xff]
        %v1857 = vld [vmem:[%s464 + $0x1bd0] sm:$0xff]
        %v1858 = vld [vmem:[%s464 + $0x1bd8] sm:$0xff]
        %v1859 = vld [vmem:[%s464 + $0x1be0] sm:$0xff]
        %v1860 = vld [vmem:[%s464 + $0x1be8] sm:$0xff]
        %v1861 = vld [vmem:[%s464 + $0x1bf0] sm:$0xff]
        %v1862 = vld [vmem:[%s464 + $0x1bf8] sm:$0xff]
        %v1863 = vld [vmem:[%s464 + $0x1c00] sm:$0xff]
        %v1864 = vld [vmem:[%s464 + $0x1c08] sm:$0xff]
        %v1865 = vld [vmem:[%s464 + $0x1c10] sm:$0xff]
        %v1866 = vld [vmem:[%s464 + $0x1c18] sm:$0xff]
        %v1867 = vld [vmem:[%s464 + $0x1c20] sm:$0xff]
        %v1868 = vld [vmem:[%s464 + $0x1c28] sm:$0xff]
        %v1869 = vld [vmem:[%s464 + $0x1c30] sm:$0xff]
        %v1870 = vld [vmem:[%s464 + $0x1c38] sm:$0xff]
        %v1871 = vld [vmem:[%s464 + $0x1c40] sm:$0xff]
        %v1872 = vld [vmem:[%s464 + $0x1c48] sm:$0xff]
        %v1873 = vld [vmem:[%s464 + $0x1c50] sm:$0xff]
        %v1874 = vld [vmem:[%s464 + $0x1c58] sm:$0xff]
        %v1875 = vld [vmem:[%s464 + $0x1c60] sm:$0xff]
        %v1876 = vld [vmem:[%s464 + $0x1c68] sm:$0xff]
        %v1877 = vld [vmem:[%s464 + $0x1c70] sm:$0xff]
        %v1878 = vld [vmem:[%s464 + $0x1c78] sm:$0xff]
        %v1879 = vld [vmem:[%s464 + $0x1c80] sm:$0xff]
        %v1880 = vld [vmem:[%s464 + $0x1c88] sm:$0xff]
        %v1881 = vld [vmem:[%s464 + $0x1c90] sm:$0xff]
        %v1882 = vld [vmem:[%s464 + $0x1c98] sm:$0xff]
        %v1883 = vld [vmem:[%s464 + $0x1ca0] sm:$0xff]
        %v1884 = vld [vmem:[%s464 + $0x1ca8] sm:$0xff]
        %v1885 = vld [vmem:[%s464 + $0x1cb0] sm:$0xff]
        %v1886 = vld [vmem:[%s464 + $0x1cb8] sm:$0xff]
        %v1887 = vld [vmem:[%s464 + $0x1cc0] sm:$0xff]
        %v1888 = vld [vmem:[%s464 + $0x1cc8] sm:$0xff]
        %v1889 = vld [vmem:[%s464 + $0x1cd0] sm:$0xff]
        %v1890 = vld [vmem:[%s464 + $0x1cd8] sm:$0xff]
        %v1891 = vld [vmem:[%s464 + $0x1ce0] sm:$0xff]
        %v1892 = vld [vmem:[%s464 + $0x1ce8] sm:$0xff]
        %v1893 = vld [vmem:[%s464 + $0x1cf0] sm:$0xff]
        %v1894 = vld [vmem:[%s464 + $0x1cf8] sm:$0xff]
        %v1895 = vld [vmem:[%s464 + $0x1d00] sm:$0xff]
        %v1896 = vld [vmem:[%s464 + $0x1d08] sm:$0xff]
        %v1897 = vld [vmem:[%s464 + $0x1d10] sm:$0xff]
        %v1898 = vld [vmem:[%s464 + $0x1d18] sm:$0xff]
        %v1899 = vld [vmem:[%s464 + $0x1d20] sm:$0xff]
        %v1900 = vld [vmem:[%s464 + $0x1d28] sm:$0xff]
        %v1901 = vld [vmem:[%s464 + $0x1d30] sm:$0xff]
        %v1902 = vld [vmem:[%s464 + $0x1d38] sm:$0xff]
        %v1903 = vld [vmem:[%s464 + $0x1d40] sm:$0xff]
        %v1904 = vld [vmem:[%s464 + $0x1d48] sm:$0xff]
        %v1905 = vld [vmem:[%s464 + $0x1d50] sm:$0xff]
        %v1906 = vld [vmem:[%s464 + $0x1d58] sm:$0xff]
        %v1907 = vld [vmem:[%s464 + $0x1d60] sm:$0xff]
        %v1908 = vld [vmem:[%s464 + $0x1d68] sm:$0xff]
        %v1909 = vld [vmem:[%s464 + $0x1d70] sm:$0xff]
        %v1910 = vld [vmem:[%s464 + $0x1d78] sm:$0xff]
        %v1911 = vld [vmem:[%s464 + $0x1d80] sm:$0xff]
        %v1912 = vld [vmem:[%s464 + $0x1d88] sm:$0xff]
        %v1913 = vld [vmem:[%s464 + $0x1d90] sm:$0xff]
        %v1914 = vld [vmem:[%s464 + $0x1d98] sm:$0xff]
        %v1915 = vld [vmem:[%s464 + $0x1da0] sm:$0xff]
        %v1916 = vld [vmem:[%s464 + $0x1da8] sm:$0xff]
        %v1917 = vld [vmem:[%s464 + $0x1db0] sm:$0xff]
        %v1918 = vld [vmem:[%s464 + $0x1db8] sm:$0xff]
        %v1919 = vld [vmem:[%s464 + $0x1dc0] sm:$0xff]
        %v1920 = vld [vmem:[%s464 + $0x1dc8] sm:$0xff]
        %v1921 = vld [vmem:[%s464 + $0x1dd0] sm:$0xff]
        %v1922 = vld [vmem:[%s464 + $0x1dd8] sm:$0xff]
        %v1923 = vld [vmem:[%s464 + $0x1de0] sm:$0xff]
        %v1924 = vld [vmem:[%s464 + $0x1de8] sm:$0xff]
        %v1925 = vld [vmem:[%s464 + $0x1df0] sm:$0xff]
        %v1926 = vld [vmem:[%s464 + $0x1df8] sm:$0xff]
        %v1927 = vld [vmem:[%s464 + $0x1e00] sm:$0xff]
        %v1928 = vld [vmem:[%s464 + $0x1e08] sm:$0xff]
        %v1929 = vld [vmem:[%s464 + $0x1e10] sm:$0xff]
        %v1930 = vld [vmem:[%s464 + $0x1e18] sm:$0xff]
        %v1931 = vld [vmem:[%s464 + $0x1e20] sm:$0xff]
        %v1932 = vld [vmem:[%s464 + $0x1e28] sm:$0xff]
        %v1933 = vld [vmem:[%s464 + $0x1e30] sm:$0xff]
        %v1934 = vld [vmem:[%s464 + $0x1e38] sm:$0xff]
        %v1935 = vld [vmem:[%s464 + $0x1e40] sm:$0xff]
        %v1936 = vld [vmem:[%s464 + $0x1e48] sm:$0xff]
        %v1937 = vld [vmem:[%s464 + $0x1e50] sm:$0xff]
        %v1938 = vld [vmem:[%s464 + $0x1e58] sm:$0xff]
        %v1939 = vld [vmem:[%s464 + $0x1e60] sm:$0xff]
        %v1940 = vld [vmem:[%s464 + $0x1e68] sm:$0xff]
        %v1941 = vld [vmem:[%s464 + $0x1e70] sm:$0xff]
        %v1942 = vld [vmem:[%s464 + $0x1e78] sm:$0xff]
        %v1943 = vld [vmem:[%s464 + $0x1e80] sm:$0xff]
        %v1944 = vld [vmem:[%s464 + $0x1e88] sm:$0xff]
        %v1945 = vld [vmem:[%s464 + $0x1e90] sm:$0xff]
        %v1946 = vld [vmem:[%s464 + $0x1e98] sm:$0xff]
        %v1947 = vld [vmem:[%s464 + $0x1ea0] sm:$0xff]
        %v1948 = vld [vmem:[%s464 + $0x1ea8] sm:$0xff]
        %v1949 = vld [vmem:[%s464 + $0x1eb0] sm:$0xff]
        %v1950 = vld [vmem:[%s464 + $0x1eb8] sm:$0xff]
        %v1951 = vld [vmem:[%s464 + $0x1ec0] sm:$0xff]
        %v1952 = vld [vmem:[%s464 + $0x1ec8] sm:$0xff]
        %v1953 = vld [vmem:[%s464 + $0x1ed0] sm:$0xff]
        %v1954 = vld [vmem:[%s464 + $0x1ed8] sm:$0xff]
        %v1955 = vld [vmem:[%s464 + $0x1ee0] sm:$0xff]
        %v1956 = vld [vmem:[%s464 + $0x1ee8] sm:$0xff]
        %v1957 = vld [vmem:[%s464 + $0x1ef0] sm:$0xff]
        %v1958 = vld [vmem:[%s464 + $0x1ef8] sm:$0xff]
        %v1959 = vld [vmem:[%s464 + $0x1f00] sm:$0xff]
        %v1960 = vld [vmem:[%s464 + $0x1f08] sm:$0xff]
        %v1961 = vld [vmem:[%s464 + $0x1f10] sm:$0xff]
        %v1962 = vld [vmem:[%s464 + $0x1f18] sm:$0xff]
        %v1963 = vld [vmem:[%s464 + $0x1f20] sm:$0xff]
        %v1964 = vld [vmem:[%s464 + $0x1f28] sm:$0xff]
        %v1965 = vld [vmem:[%s464 + $0x1f30] sm:$0xff]
        %v1966 = vld [vmem:[%s464 + $0x1f38] sm:$0xff]
        %v1967 = vld [vmem:[%s464 + $0x1f40] sm:$0xff]
        %v1968 = vld [vmem:[%s464 + $0x1f48] sm:$0xff]
        %v1969 = vld [vmem:[%s464 + $0x1f50] sm:$0xff]
        %v1970 = vld [vmem:[%s464 + $0x1f58] sm:$0xff]
        %v1971 = vld [vmem:[%s464 + $0x1f60] sm:$0xff]
        %v1972 = vld [vmem:[%s464 + $0x1f68] sm:$0xff]
        %v1973 = vld [vmem:[%s464 + $0x1f70] sm:$0xff]
        %v1974 = vld [vmem:[%s464 + $0x1f78] sm:$0xff]
        %v1975 = vld [vmem:[%s464 + $0x1f80] sm:$0xff]
        %v1976 = vld [vmem:[%s464 + $0x1f88] sm:$0xff]
        %v1977 = vld [vmem:[%s464 + $0x1f90] sm:$0xff]
        %v1978 = vld [vmem:[%s464 + $0x1f98] sm:$0xff]
        %v1979 = vld [vmem:[%s464 + $0x1fa0] sm:$0xff]
        %v1980 = vld [vmem:[%s464 + $0x1fa8] sm:$0xff]
        %v1981 = vld [vmem:[%s464 + $0x1fb0] sm:$0xff]
        %v1982 = vld [vmem:[%s464 + $0x1fb8] sm:$0xff]
        %v1983 = vld [vmem:[%s464 + $0x1fc0] sm:$0xff]
        %v1984 = vld [vmem:[%s464 + $0x1fc8] sm:$0xff]
        %v1985 = vld [vmem:[%s464 + $0x1fd0] sm:$0xff]
        %v1986 = vld [vmem:[%s464 + $0x1fd8] sm:$0xff]
        %v1987 = vld [vmem:[%s464 + $0x1fe0] sm:$0xff]
        %v1988 = vld [vmem:[%s464 + $0x1fe8] sm:$0xff]
        %v1989 = vld [vmem:[%s464 + $0x1ff0] sm:$0xff]
        %v1990 = vld [vmem:[%s464 + $0x1ff8] sm:$0xff]
        %v1991 = vld [vmem:[%s464 + $0x2000] sm:$0xff]
        %v1992 = vld [vmem:[%s464 + $0x2008] sm:$0xff]
        %v1993 = vld [vmem:[%s464 + $0x2010] sm:$0xff]
        %v1994 = vld [vmem:[%s464 + $0x2018] sm:$0xff]
        %v1995 = vld [vmem:[%s464 + $0x2020] sm:$0xff]
        %v1996 = vld [vmem:[%s464 + $0x2028] sm:$0xff]
        %v1997 = vld [vmem:[%s464 + $0x2030] sm:$0xff]
        %v1998 = vld [vmem:[%s464 + $0x2038] sm:$0xff]
        %v1999 = vld [vmem:[%s464 + $0x2040] sm:$0xff]
        %v2000 = vld [vmem:[%s464 + $0x2048] sm:$0xff]
        %v2001 = vld [vmem:[%s464 + $0x2050] sm:$0xff]
        %v2002 = vld [vmem:[%s464 + $0x2058] sm:$0xff]
        %v2003 = vld [vmem:[%s464 + $0x2060] sm:$0xff]
        %v2004 = vld [vmem:[%s464 + $0x2068] sm:$0xff]
        %v2005 = vld [vmem:[%s464 + $0x2070] sm:$0xff]
        %v2006 = vld [vmem:[%s464 + $0x2078] sm:$0xff]
        %v2007 = vld [vmem:[%s464 + $0x2080] sm:$0xff]
        %v2008 = vld [vmem:[%s464 + $0x2088] sm:$0xff]
        %v2009 = vld [vmem:[%s464 + $0x2090] sm:$0xff]
        %v2010 = vld [vmem:[%s464 + $0x2098] sm:$0xff]
        %v2011 = vld [vmem:[%s464 + $0x20a0] sm:$0xff]
        %v2012 = vld [vmem:[%s464 + $0x20a8] sm:$0xff]
        %v2013 = vld [vmem:[%s464 + $0x20b0] sm:$0xff]
        %v2014 = vld [vmem:[%s464 + $0x20b8] sm:$0xff]
        %v2015 = vld [vmem:[%s464 + $0x20c0] sm:$0xff]
        %v2016 = vld [vmem:[%s464 + $0x20c8] sm:$0xff]
        %v2017 = vld [vmem:[%s464 + $0x20d0] sm:$0xff]
        %v2018 = vld [vmem:[%s464 + $0x20d8] sm:$0xff]
        %v2019 = vld [vmem:[%s464 + $0x20e0] sm:$0xff]
        %v2020 = vld [vmem:[%s464 + $0x20e8] sm:$0xff]
        %v2021 = vld [vmem:[%s464 + $0x20f0] sm:$0xff]
        %v2022 = vld [vmem:[%s464 + $0x20f8] sm:$0xff]
        %v2023 = vld [vmem:[%s464 + $0x2100] sm:$0xff]
        %v2024 = vld [vmem:[%s464 + $0x2108] sm:$0xff]
        %v2025 = vld [vmem:[%s464 + $0x2110] sm:$0xff]
        %v2026 = vld [vmem:[%s464 + $0x2118] sm:$0xff]
        %v2027 = vld [vmem:[%s464 + $0x2120] sm:$0xff]
        %v2028 = vld [vmem:[%s464 + $0x2128] sm:$0xff]
        %v2029 = vld [vmem:[%s464 + $0x2130] sm:$0xff]
        %v2030 = vld [vmem:[%s464 + $0x2138] sm:$0xff]
        %v2031 = vld [vmem:[%s464 + $0x2140] sm:$0xff]
        %v2032 = vld [vmem:[%s464 + $0x2148] sm:$0xff]
        %v2033 = vld [vmem:[%s464 + $0x2150] sm:$0xff]
        %v2034 = vld [vmem:[%s464 + $0x2158] sm:$0xff]
        %v2035 = vld [vmem:[%s464 + $0x2160] sm:$0xff]
        %v2036 = vld [vmem:[%s464 + $0x2168] sm:$0xff]
        %v2037 = vld [vmem:[%s464 + $0x2170] sm:$0xff]
        %v2038 = vld [vmem:[%s464 + $0x2178] sm:$0xff]
        %v2039 = vld [vmem:[%s464 + $0x2180] sm:$0xff]
        %v2040 = vld [vmem:[%s464 + $0x2188] sm:$0xff]
        %v2041 = vld [vmem:[%s464 + $0x2190] sm:$0xff]
        %v2042 = vld [vmem:[%s464 + $0x2198] sm:$0xff]
        %v2043 = vld [vmem:[%s464 + $0x21a0] sm:$0xff]
        %v2044 = vld [vmem:[%s464 + $0x21a8] sm:$0xff]
        %v2045 = vld [vmem:[%s464 + $0x21b0] sm:$0xff]
        %v2046 = vld [vmem:[%s464 + $0x21b8] sm:$0xff]
        %v2047 = vld [vmem:[%s464 + $0x21c0] sm:$0xff]
        %v2048 = vld [vmem:[%s464 + $0x21c8] sm:$0xff]
        %v2049 = vld [vmem:[%s464 + $0x21d0] sm:$0xff]
        %v2050 = vld [vmem:[%s464 + $0x21d8] sm:$0xff]
        %v2051 = vld [vmem:[%s464 + $0x21e0] sm:$0xff]
        %v2052 = vld [vmem:[%s464 + $0x21e8] sm:$0xff]
        %v2053 = vld [vmem:[%s464 + $0x21f0] sm:$0xff]
        %v2054 = vld [vmem:[%s464 + $0x21f8] sm:$0xff]
        %v2055 = vld [vmem:[%s464 + $0x2200] sm:$0xff]
        %v2056 = vld [vmem:[%s464 + $0x2208] sm:$0xff]
        %v2057 = vld [vmem:[%s464 + $0x2210] sm:$0xff]
        %v2058 = vld [vmem:[%s464 + $0x2218] sm:$0xff]
        %v2059 = vld [vmem:[%s464 + $0x2220] sm:$0xff]
        %v2060 = vld [vmem:[%s464 + $0x2228] sm:$0xff]
        %v2061 = vld [vmem:[%s464 + $0x2230] sm:$0xff]
        %v2062 = vld [vmem:[%s464 + $0x2238] sm:$0xff]
        %v2063 = vld [vmem:[%s464 + $0x2240] sm:$0xff]
        %v2064 = vld [vmem:[%s464 + $0x2248] sm:$0xff]
        %v2065 = vld [vmem:[%s464 + $0x2250] sm:$0xff]
        %v2066 = vld [vmem:[%s464 + $0x2258] sm:$0xff]
        %v2067 = vld [vmem:[%s464 + $0x2260] sm:$0xff]
        %v2068 = vld [vmem:[%s464 + $0x2268] sm:$0xff]
        %v2069 = vld [vmem:[%s464 + $0x2270] sm:$0xff]
        %v2070 = vld [vmem:[%s464 + $0x2278] sm:$0xff]
        %v2071 = vld [vmem:[%s464 + $0x2280] sm:$0xff]
        %v2072 = vld [vmem:[%s464 + $0x2288] sm:$0xff]
        %v2073 = vld [vmem:[%s464 + $0x2290] sm:$0xff]
        %v2074 = vld [vmem:[%s464 + $0x2298] sm:$0xff]
        %v2075 = vld [vmem:[%s464 + $0x22a0] sm:$0xff]
        %v2076 = vld [vmem:[%s464 + $0x22a8] sm:$0xff]
        %v2077 = vld [vmem:[%s464 + $0x22b0] sm:$0xff]
        %v2078 = vld [vmem:[%s464 + $0x22b8] sm:$0xff]
        %v2079 = vld [vmem:[%s464 + $0x22c0] sm:$0xff]
        %v2080 = vld [vmem:[%s464 + $0x22c8] sm:$0xff]
        %v2081 = vld [vmem:[%s464 + $0x22d0] sm:$0xff]
        %v2082 = vld [vmem:[%s464 + $0x22d8] sm:$0xff]
        %v2083 = vld [vmem:[%s464 + $0x22e0] sm:$0xff]
        %v2084 = vld [vmem:[%s464 + $0x22e8] sm:$0xff]
        %v2085 = vld [vmem:[%s464 + $0x22f0] sm:$0xff]
        %v2086 = vld [vmem:[%s464 + $0x22f8] sm:$0xff]
        %v2087 = vld [vmem:[%s464 + $0x2300] sm:$0xff]
        %v2088 = vld [vmem:[%s464 + $0x2308] sm:$0xff]
        %v2089 = vld [vmem:[%s464 + $0x2310] sm:$0xff]
        %v2090 = vld [vmem:[%s464 + $0x2318] sm:$0xff]
        %v2091 = vld [vmem:[%s464 + $0x2320] sm:$0xff]
        %v2092 = vld [vmem:[%s464 + $0x2328] sm:$0xff]
        %v2093 = vld [vmem:[%s464 + $0x2330] sm:$0xff]
        %v2094 = vld [vmem:[%s464 + $0x2338] sm:$0xff]
        %v2095 = vld [vmem:[%s464 + $0x2340] sm:$0xff]
        %v2096 = vld [vmem:[%s464 + $0x2348] sm:$0xff]
        %v2097 = vld [vmem:[%s464 + $0x2350] sm:$0xff]
        %v2098 = vld [vmem:[%s464 + $0x2358] sm:$0xff]
        %v2099 = vld [vmem:[%s464 + $0x2360] sm:$0xff]
        %v2100 = vld [vmem:[%s464 + $0x2368] sm:$0xff]
        %v2101 = vld [vmem:[%s464 + $0x2370] sm:$0xff]
        %v2102 = vld [vmem:[%s464 + $0x2378] sm:$0xff]
        %v2103 = vld [vmem:[%s464 + $0x2380] sm:$0xff]
        %v2104 = vld [vmem:[%s464 + $0x2388] sm:$0xff]
        %v2105 = vld [vmem:[%s464 + $0x2390] sm:$0xff]
        %v2106 = vld [vmem:[%s464 + $0x2398] sm:$0xff]
        %v2107 = vld [vmem:[%s464 + $0x23a0] sm:$0xff]
        %v2108 = vld [vmem:[%s464 + $0x23a8] sm:$0xff]
        %v2109 = vld [vmem:[%s464 + $0x23b0] sm:$0xff]
        %v2110 = vld [vmem:[%s464 + $0x23b8] sm:$0xff]
        %v2111 = vld [vmem:[%s464 + $0x23c0] sm:$0xff]
        %v2112 = vld [vmem:[%s464 + $0x23c8] sm:$0xff]
        %v2113 = vld [vmem:[%s464 + $0x23d0] sm:$0xff]
        %v2114 = vld [vmem:[%s464 + $0x23d8] sm:$0xff]
        %v2115 = vld [vmem:[%s464 + $0x23e0] sm:$0xff]
        %v2116 = vld [vmem:[%s464 + $0x23e8] sm:$0xff]
        %v2117 = vld [vmem:[%s464 + $0x23f0] sm:$0xff]
        %v2118 = vld [vmem:[%s464 + $0x23f8] sm:$0xff]
        %v3271 = vunpack.c.l.b16 %v967
        %v3272 = vunpack.c.h.b16 %v967
        %v3273 = vunpack.c.l.b16 %v968
        %v3274 = vunpack.c.h.b16 %v968
        %v3275 = vunpack.c.l.b16 %v969
        %v3276 = vunpack.c.h.b16 %v969
        %v3277 = vunpack.c.l.b16 %v970
        %v3278 = vunpack.c.h.b16 %v970
        %v3279 = vunpack.c.l.b16 %v971
        %v3280 = vunpack.c.h.b16 %v971
        %v3281 = vunpack.c.l.b16 %v972
        %v3282 = vunpack.c.h.b16 %v972
        %v3283 = vunpack.c.l.b16 %v973
        %v3284 = vunpack.c.h.b16 %v973
        %v3285 = vunpack.c.l.b16 %v974
        %v3286 = vunpack.c.h.b16 %v974
        %v3287 = vunpack.c.l.b16 %v975
        %v3288 = vunpack.c.h.b16 %v975
        %v3289 = vunpack.c.l.b16 %v976
        %v3290 = vunpack.c.h.b16 %v976
        %v3291 = vunpack.c.l.b16 %v977
        %v3292 = vunpack.c.h.b16 %v977
        %v3293 = vunpack.c.l.b16 %v978
        %v3294 = vunpack.c.h.b16 %v978
        %v3295 = vunpack.c.l.b16 %v979
        %v3296 = vunpack.c.h.b16 %v979
        %v3297 = vunpack.c.l.b16 %v980
        %v3298 = vunpack.c.h.b16 %v980
        %v3299 = vunpack.c.l.b16 %v981
        %v3300 = vunpack.c.h.b16 %v981
        %v3301 = vunpack.c.l.b16 %v982
        %v3302 = vunpack.c.h.b16 %v982
        %v3303 = vunpack.c.l.b16 %v983
        %v3304 = vunpack.c.h.b16 %v983
        %v3305 = vunpack.c.l.b16 %v984
        %v3306 = vunpack.c.h.b16 %v984
        %v3307 = vunpack.c.l.b16 %v985
        %v3308 = vunpack.c.h.b16 %v985
        %v3309 = vunpack.c.l.b16 %v986
        %v3310 = vunpack.c.h.b16 %v986
        %v3311 = vunpack.c.l.b16 %v987
        %v3312 = vunpack.c.h.b16 %v987
        %v3313 = vunpack.c.l.b16 %v988
        %v3314 = vunpack.c.h.b16 %v988
        %v3315 = vunpack.c.l.b16 %v989
        %v3316 = vunpack.c.h.b16 %v989
        %v3317 = vunpack.c.l.b16 %v990
        %v3318 = vunpack.c.h.b16 %v990
        %v3319 = vunpack.c.l.b16 %v991
        %v3320 = vunpack.c.h.b16 %v991
        %v3321 = vunpack.c.l.b16 %v992
        %v3322 = vunpack.c.h.b16 %v992
        %v3323 = vunpack.c.l.b16 %v993
        %v3324 = vunpack.c.h.b16 %v993
        %v3325 = vunpack.c.l.b16 %v994
        %v3326 = vunpack.c.h.b16 %v994
        %v3327 = vunpack.c.l.b16 %v995
        %v3328 = vunpack.c.h.b16 %v995
        %v3329 = vunpack.c.l.b16 %v996
        %v3330 = vunpack.c.h.b16 %v996
        %v3331 = vunpack.c.l.b16 %v997
        %v3332 = vunpack.c.h.b16 %v997
        %v3333 = vunpack.c.l.b16 %v998
        %v3334 = vunpack.c.h.b16 %v998
        %v3335 = vunpack.c.l.b16 %v999
        %v3336 = vunpack.c.h.b16 %v999
        %v3337 = vunpack.c.l.b16 %v1000
        %v3338 = vunpack.c.h.b16 %v1000
        %v3339 = vunpack.c.l.b16 %v1001
        %v3340 = vunpack.c.h.b16 %v1001
        %v3341 = vunpack.c.l.b16 %v1002
        %v3342 = vunpack.c.h.b16 %v1002
        %v3343 = vunpack.c.l.b16 %v1003
        %v3344 = vunpack.c.h.b16 %v1003
        %v3345 = vunpack.c.l.b16 %v1004
        %v3346 = vunpack.c.h.b16 %v1004
        %v3347 = vunpack.c.l.b16 %v1005
        %v3348 = vunpack.c.h.b16 %v1005
        %v3349 = vunpack.c.l.b16 %v1006
        %v3350 = vunpack.c.h.b16 %v1006
        %v3351 = vunpack.c.l.b16 %v1007
        %v3352 = vunpack.c.h.b16 %v1007
        %v3353 = vunpack.c.l.b16 %v1008
        %v3354 = vunpack.c.h.b16 %v1008
        %v3355 = vunpack.c.l.b16 %v1009
        %v3356 = vunpack.c.h.b16 %v1009
        %v3357 = vunpack.c.l.b16 %v1010
        %v3358 = vunpack.c.h.b16 %v1010
        %v3359 = vunpack.c.l.b16 %v1011
        %v3360 = vunpack.c.h.b16 %v1011
        %v3361 = vunpack.c.l.b16 %v1012
        %v3362 = vunpack.c.h.b16 %v1012
        %v3363 = vunpack.c.l.b16 %v1013
        %v3364 = vunpack.c.h.b16 %v1013
        %v3365 = vunpack.c.l.b16 %v1014
        %v3366 = vunpack.c.h.b16 %v1014
        %v3367 = vunpack.c.l.b16 %v1015
        %v3368 = vunpack.c.h.b16 %v1015
        %v3369 = vunpack.c.l.b16 %v1016
        %v3370 = vunpack.c.h.b16 %v1016
        %v3371 = vunpack.c.l.b16 %v1017
        %v3372 = vunpack.c.h.b16 %v1017
        %v3373 = vunpack.c.l.b16 %v1018
        %v3374 = vunpack.c.h.b16 %v1018
        %v3375 = vunpack.c.l.b16 %v1019
        %v3376 = vunpack.c.h.b16 %v1019
        %v3377 = vunpack.c.l.b16 %v1020
        %v3378 = vunpack.c.h.b16 %v1020
        %v3379 = vunpack.c.l.b16 %v1021
        %v3380 = vunpack.c.h.b16 %v1021
        %v3381 = vunpack.c.l.b16 %v1022
        %v3382 = vunpack.c.h.b16 %v1022
        %v3383 = vunpack.c.l.b16 %v1023
        %v3384 = vunpack.c.h.b16 %v1023
        %v3385 = vunpack.c.l.b16 %v1024
        %v3386 = vunpack.c.h.b16 %v1024
        %v3387 = vunpack.c.l.b16 %v1025
        %v3388 = vunpack.c.h.b16 %v1025
        %v3389 = vunpack.c.l.b16 %v1026
        %v3390 = vunpack.c.h.b16 %v1026
        %v3391 = vunpack.c.l.b16 %v1027
        %v3392 = vunpack.c.h.b16 %v1027
        %v3393 = vunpack.c.l.b16 %v1028
        %v3394 = vunpack.c.h.b16 %v1028
        %v3395 = vunpack.c.l.b16 %v1029
        %v3396 = vunpack.c.h.b16 %v1029
        %v3397 = vunpack.c.l.b16 %v1030
        %v3398 = vunpack.c.h.b16 %v1030
        %v3399 = vunpack.c.l.b16 %v1031
        %v3400 = vunpack.c.h.b16 %v1031
        %v3401 = vunpack.c.l.b16 %v1032
        %v3402 = vunpack.c.h.b16 %v1032
        %v3403 = vunpack.c.l.b16 %v1033
        %v3404 = vunpack.c.h.b16 %v1033
        %v3405 = vunpack.c.l.b16 %v1034
        %v3406 = vunpack.c.h.b16 %v1034
        %v3407 = vunpack.c.l.b16 %v1035
        %v3408 = vunpack.c.h.b16 %v1035
        %v3409 = vunpack.c.l.b16 %v1036
        %v3410 = vunpack.c.h.b16 %v1036
        %v3411 = vunpack.c.l.b16 %v1037
        %v3412 = vunpack.c.h.b16 %v1037
        %v3413 = vunpack.c.l.b16 %v1038
        %v3414 = vunpack.c.h.b16 %v1038
        %v3415 = vunpack.c.l.b16 %v1039
        %v3416 = vunpack.c.h.b16 %v1039
        %v3417 = vunpack.c.l.b16 %v1040
        %v3418 = vunpack.c.h.b16 %v1040
        %v3419 = vunpack.c.l.b16 %v1041
        %v3420 = vunpack.c.h.b16 %v1041
        %v3421 = vunpack.c.l.b16 %v1042
        %v3422 = vunpack.c.h.b16 %v1042
        %v3423 = vunpack.c.l.b16 %v1043
        %v3424 = vunpack.c.h.b16 %v1043
        %v3425 = vunpack.c.l.b16 %v1044
        %v3426 = vunpack.c.h.b16 %v1044
        %v3427 = vunpack.c.l.b16 %v1045
        %v3428 = vunpack.c.h.b16 %v1045
        %v3429 = vunpack.c.l.b16 %v1046
        %v3430 = vunpack.c.h.b16 %v1046
        %v3431 = vunpack.c.l.b16 %v1047
        %v3432 = vunpack.c.h.b16 %v1047
        %v3433 = vunpack.c.l.b16 %v1048
        %v3434 = vunpack.c.h.b16 %v1048
        %v3435 = vunpack.c.l.b16 %v1049
        %v3436 = vunpack.c.h.b16 %v1049
        %v3437 = vunpack.c.l.b16 %v1050
        %v3438 = vunpack.c.h.b16 %v1050
        %v3439 = vunpack.c.l.b16 %v1051
        %v3440 = vunpack.c.h.b16 %v1051
        %v3441 = vunpack.c.l.b16 %v1052
        %v3442 = vunpack.c.h.b16 %v1052
        %v3443 = vunpack.c.l.b16 %v1053
        %v3444 = vunpack.c.h.b16 %v1053
        %v3445 = vunpack.c.l.b16 %v1054
        %v3446 = vunpack.c.h.b16 %v1054
        %v3447 = vunpack.c.l.b16 %v1055
        %v3448 = vunpack.c.h.b16 %v1055
        %v3449 = vunpack.c.l.b16 %v1056
        %v3450 = vunpack.c.h.b16 %v1056
        %v3451 = vunpack.c.l.b16 %v1057
        %v3452 = vunpack.c.h.b16 %v1057
        %v3453 = vunpack.c.l.b16 %v1058
        %v3454 = vunpack.c.h.b16 %v1058
        %v3455 = vunpack.c.l.b16 %v1059
        %v3456 = vunpack.c.h.b16 %v1059
        %v3457 = vunpack.c.l.b16 %v1060
        %v3458 = vunpack.c.h.b16 %v1060
        %v3459 = vunpack.c.l.b16 %v1061
        %v3460 = vunpack.c.h.b16 %v1061
        %v3461 = vunpack.c.l.b16 %v1062
        %v3462 = vunpack.c.h.b16 %v1062
        %v3463 = vunpack.c.l.b16 %v1063
        %v3464 = vunpack.c.h.b16 %v1063
        %v3465 = vunpack.c.l.b16 %v1064
        %v3466 = vunpack.c.h.b16 %v1064
        %v3467 = vunpack.c.l.b16 %v1065
        %v3468 = vunpack.c.h.b16 %v1065
        %v3469 = vunpack.c.l.b16 %v1066
        %v3470 = vunpack.c.h.b16 %v1066
        %v3471 = vunpack.c.l.b16 %v1067
        %v3472 = vunpack.c.h.b16 %v1067
        %v3473 = vunpack.c.l.b16 %v1068
        %v3474 = vunpack.c.h.b16 %v1068
        %v3475 = vunpack.c.l.b16 %v1069
        %v3476 = vunpack.c.h.b16 %v1069
        %v3477 = vunpack.c.l.b16 %v1070
        %v3478 = vunpack.c.h.b16 %v1070
        %v3479 = vunpack.c.l.b16 %v1071
        %v3480 = vunpack.c.h.b16 %v1071
        %v3481 = vunpack.c.l.b16 %v1072
        %v3482 = vunpack.c.h.b16 %v1072
        %v3483 = vunpack.c.l.b16 %v1073
        %v3484 = vunpack.c.h.b16 %v1073
        %v3485 = vunpack.c.l.b16 %v1074
        %v3486 = vunpack.c.h.b16 %v1074
        %v3487 = vunpack.c.l.b16 %v1075
        %v3488 = vunpack.c.h.b16 %v1075
        %v3489 = vunpack.c.l.b16 %v1076
        %v3490 = vunpack.c.h.b16 %v1076
        %v3491 = vunpack.c.l.b16 %v1077
        %v3492 = vunpack.c.h.b16 %v1077
        %v3493 = vunpack.c.l.b16 %v1078
        %v3494 = vunpack.c.h.b16 %v1078
        %v3495 = vunpack.c.l.b16 %v1079
        %v3496 = vunpack.c.h.b16 %v1079
        %v3497 = vunpack.c.l.b16 %v1080
        %v3498 = vunpack.c.h.b16 %v1080
        %v3499 = vunpack.c.l.b16 %v1081
        %v3500 = vunpack.c.h.b16 %v1081
        %v3501 = vunpack.c.l.b16 %v1082
        %v3502 = vunpack.c.h.b16 %v1082
        %v3503 = vunpack.c.l.b16 %v1083
        %v3504 = vunpack.c.h.b16 %v1083
        %v3505 = vunpack.c.l.b16 %v1084
        %v3506 = vunpack.c.h.b16 %v1084
        %v3507 = vunpack.c.l.b16 %v1085
        %v3508 = vunpack.c.h.b16 %v1085
        %v3509 = vunpack.c.l.b16 %v1086
        %v3510 = vunpack.c.h.b16 %v1086
        %v3511 = vunpack.c.l.b16 %v1087
        %v3512 = vunpack.c.h.b16 %v1087
        %v3513 = vunpack.c.l.b16 %v1088
        %v3514 = vunpack.c.h.b16 %v1088
        %v3515 = vunpack.c.l.b16 %v1089
        %v3516 = vunpack.c.h.b16 %v1089
        %v3517 = vunpack.c.l.b16 %v1090
        %v3518 = vunpack.c.h.b16 %v1090
        %v3519 = vunpack.c.l.b16 %v1091
        %v3520 = vunpack.c.h.b16 %v1091
        %v3521 = vunpack.c.l.b16 %v1092
        %v3522 = vunpack.c.h.b16 %v1092
        %v3523 = vunpack.c.l.b16 %v1093
        %v3524 = vunpack.c.h.b16 %v1093
        %v3525 = vunpack.c.l.b16 %v1094
        %v3526 = vunpack.c.h.b16 %v1094
        %v3527 = vunpack.c.l.b16 %v1095
        %v3528 = vunpack.c.h.b16 %v1095
        %v3529 = vunpack.c.l.b16 %v1096
        %v3530 = vunpack.c.h.b16 %v1096
        %v3531 = vunpack.c.l.b16 %v1097
        %v3532 = vunpack.c.h.b16 %v1097
        %v3533 = vunpack.c.l.b16 %v1098
        %v3534 = vunpack.c.h.b16 %v1098
        %v3535 = vunpack.c.l.b16 %v1099
        %v3536 = vunpack.c.h.b16 %v1099
        %v3537 = vunpack.c.l.b16 %v1100
        %v3538 = vunpack.c.h.b16 %v1100
        %v3539 = vunpack.c.l.b16 %v1101
        %v3540 = vunpack.c.h.b16 %v1101
        %v3541 = vunpack.c.l.b16 %v1102
        %v3542 = vunpack.c.h.b16 %v1102
        %v3543 = vunpack.c.l.b16 %v1103
        %v3544 = vunpack.c.h.b16 %v1103
        %v3545 = vunpack.c.l.b16 %v1104
        %v3546 = vunpack.c.h.b16 %v1104
        %v3547 = vunpack.c.l.b16 %v1105
        %v3548 = vunpack.c.h.b16 %v1105
        %v3549 = vunpack.c.l.b16 %v1106
        %v3550 = vunpack.c.h.b16 %v1106
        %v3551 = vunpack.c.l.b16 %v1107
        %v3552 = vunpack.c.h.b16 %v1107
        %v3553 = vunpack.c.l.b16 %v1108
        %v3554 = vunpack.c.h.b16 %v1108
        %v3555 = vunpack.c.l.b16 %v1109
        %v3556 = vunpack.c.h.b16 %v1109
        %v3557 = vunpack.c.l.b16 %v1110
        %v3558 = vunpack.c.h.b16 %v1110
        %v3559 = vunpack.c.l.b16 %v1111
        %v3560 = vunpack.c.h.b16 %v1111
        %v3561 = vunpack.c.l.b16 %v1112
        %v3562 = vunpack.c.h.b16 %v1112
        %v3563 = vunpack.c.l.b16 %v1113
        %v3564 = vunpack.c.h.b16 %v1113
        %v3565 = vunpack.c.l.b16 %v1114
        %v3566 = vunpack.c.h.b16 %v1114
        %v3567 = vunpack.c.l.b16 %v1115
        %v3568 = vunpack.c.h.b16 %v1115
        %v3569 = vunpack.c.l.b16 %v1116
        %v3570 = vunpack.c.h.b16 %v1116
        %v3571 = vunpack.c.l.b16 %v1117
        %v3572 = vunpack.c.h.b16 %v1117
        %v3573 = vunpack.c.l.b16 %v1118
        %v3574 = vunpack.c.h.b16 %v1118
        %v3575 = vunpack.c.l.b16 %v1119
        %v3576 = vunpack.c.h.b16 %v1119
        %v3577 = vunpack.c.l.b16 %v1120
        %v3578 = vunpack.c.h.b16 %v1120
        %v3579 = vunpack.c.l.b16 %v1121
        %v3580 = vunpack.c.h.b16 %v1121
        %v3581 = vunpack.c.l.b16 %v1122
        %v3582 = vunpack.c.h.b16 %v1122
        %v3583 = vunpack.c.l.b16 %v1123
        %v3584 = vunpack.c.h.b16 %v1123
        %v3585 = vunpack.c.l.b16 %v1124
        %v3586 = vunpack.c.h.b16 %v1124
        %v3587 = vunpack.c.l.b16 %v1125
        %v3588 = vunpack.c.h.b16 %v1125
        %v3589 = vunpack.c.l.b16 %v1126
        %v3590 = vunpack.c.h.b16 %v1126
        %v3591 = vunpack.c.l.b16 %v1127
        %v3592 = vunpack.c.h.b16 %v1127
        %v3593 = vunpack.c.l.b16 %v1128
        %v3594 = vunpack.c.h.b16 %v1128
        %v3595 = vunpack.c.l.b16 %v1129
        %v3596 = vunpack.c.h.b16 %v1129
        %v3597 = vunpack.c.l.b16 %v1130
        %v3598 = vunpack.c.h.b16 %v1130
        %v3599 = vunpack.c.l.b16 %v1131
        %v3600 = vunpack.c.h.b16 %v1131
        %v3601 = vunpack.c.l.b16 %v1132
        %v3602 = vunpack.c.h.b16 %v1132
        %v3603 = vunpack.c.l.b16 %v1133
        %v3604 = vunpack.c.h.b16 %v1133
        %v3605 = vunpack.c.l.b16 %v1134
        %v3606 = vunpack.c.h.b16 %v1134
        %v3607 = vunpack.c.l.b16 %v1135
        %v3608 = vunpack.c.h.b16 %v1135
        %v3609 = vunpack.c.l.b16 %v1136
        %v3610 = vunpack.c.h.b16 %v1136
        %v3611 = vunpack.c.l.b16 %v1137
        %v3612 = vunpack.c.h.b16 %v1137
        %v3613 = vunpack.c.l.b16 %v1138
        %v3614 = vunpack.c.h.b16 %v1138
        %v3615 = vunpack.c.l.b16 %v1139
        %v3616 = vunpack.c.h.b16 %v1139
        %v3617 = vunpack.c.l.b16 %v1140
        %v3618 = vunpack.c.h.b16 %v1140
        %v3619 = vunpack.c.l.b16 %v1141
        %v3620 = vunpack.c.h.b16 %v1141
        %v3621 = vunpack.c.l.b16 %v1142
        %v3622 = vunpack.c.h.b16 %v1142
        %v3623 = vunpack.c.l.b16 %v1143
        %v3624 = vunpack.c.h.b16 %v1143
        %v3625 = vunpack.c.l.b16 %v1144
        %v3626 = vunpack.c.h.b16 %v1144
        %v3627 = vunpack.c.l.b16 %v1145
        %v3628 = vunpack.c.h.b16 %v1145
        %v3629 = vunpack.c.l.b16 %v1146
        %v3630 = vunpack.c.h.b16 %v1146
        %v3631 = vunpack.c.l.b16 %v1147
        %v3632 = vunpack.c.h.b16 %v1147
        %v3633 = vunpack.c.l.b16 %v1148
        %v3634 = vunpack.c.h.b16 %v1148
        %v3635 = vunpack.c.l.b16 %v1149
        %v3636 = vunpack.c.h.b16 %v1149
        %v3637 = vunpack.c.l.b16 %v1150
        %v3638 = vunpack.c.h.b16 %v1150
        %v3639 = vunpack.c.l.b16 %v1151
        %v3640 = vunpack.c.h.b16 %v1151
        %v3641 = vunpack.c.l.b16 %v1152
        %v3642 = vunpack.c.h.b16 %v1152
        %v3643 = vunpack.c.l.b16 %v1153
        %v3644 = vunpack.c.h.b16 %v1153
        %v3645 = vunpack.c.l.b16 %v1154
        %v3646 = vunpack.c.h.b16 %v1154
        %v3647 = vunpack.c.l.b16 %v1155
        %v3648 = vunpack.c.h.b16 %v1155
        %v3649 = vunpack.c.l.b16 %v1156
        %v3650 = vunpack.c.h.b16 %v1156
        %v3651 = vunpack.c.l.b16 %v1157
        %v3652 = vunpack.c.h.b16 %v1157
        %v3653 = vunpack.c.l.b16 %v1158
        %v3654 = vunpack.c.h.b16 %v1158
        %v3655 = vunpack.c.l.b16 %v1159
        %v3656 = vunpack.c.h.b16 %v1159
        %v3657 = vunpack.c.l.b16 %v1160
        %v3658 = vunpack.c.h.b16 %v1160
        %v3659 = vunpack.c.l.b16 %v1161
        %v3660 = vunpack.c.h.b16 %v1161
        %v3661 = vunpack.c.l.b16 %v1162
        %v3662 = vunpack.c.h.b16 %v1162
        %v3663 = vunpack.c.l.b16 %v1163
        %v3664 = vunpack.c.h.b16 %v1163
        %v3665 = vunpack.c.l.b16 %v1164
        %v3666 = vunpack.c.h.b16 %v1164
        %v3667 = vunpack.c.l.b16 %v1165
        %v3668 = vunpack.c.h.b16 %v1165
        %v3669 = vunpack.c.l.b16 %v1166
        %v3670 = vunpack.c.h.b16 %v1166
        %v3671 = vunpack.c.l.b16 %v1167
        %v3672 = vunpack.c.h.b16 %v1167
        %v3673 = vunpack.c.l.b16 %v1168
        %v3674 = vunpack.c.h.b16 %v1168
        %v3675 = vunpack.c.l.b16 %v1169
        %v3676 = vunpack.c.h.b16 %v1169
        %v3677 = vunpack.c.l.b16 %v1170
        %v3678 = vunpack.c.h.b16 %v1170
        %v3679 = vunpack.c.l.b16 %v1171
        %v3680 = vunpack.c.h.b16 %v1171
        %v3681 = vunpack.c.l.b16 %v1172
        %v3682 = vunpack.c.h.b16 %v1172
        %v3683 = vunpack.c.l.b16 %v1173
        %v3684 = vunpack.c.h.b16 %v1173
        %v3685 = vunpack.c.l.b16 %v1174
        %v3686 = vunpack.c.h.b16 %v1174
        %v3687 = vunpack.c.l.b16 %v1175
        %v3688 = vunpack.c.h.b16 %v1175
        %v3689 = vunpack.c.l.b16 %v1176
        %v3690 = vunpack.c.h.b16 %v1176
        %v3691 = vunpack.c.l.b16 %v1177
        %v3692 = vunpack.c.h.b16 %v1177
        %v3693 = vunpack.c.l.b16 %v1178
        %v3694 = vunpack.c.h.b16 %v1178
        %v3695 = vunpack.c.l.b16 %v1179
        %v3696 = vunpack.c.h.b16 %v1179
        %v3697 = vunpack.c.l.b16 %v1180
        %v3698 = vunpack.c.h.b16 %v1180
        %v3699 = vunpack.c.l.b16 %v1181
        %v3700 = vunpack.c.h.b16 %v1181
        %v3701 = vunpack.c.l.b16 %v1182
        %v3702 = vunpack.c.h.b16 %v1182
        %v3703 = vunpack.c.l.b16 %v1183
        %v3704 = vunpack.c.h.b16 %v1183
        %v3705 = vunpack.c.l.b16 %v1184
        %v3706 = vunpack.c.h.b16 %v1184
        %v3707 = vunpack.c.l.b16 %v1185
        %v3708 = vunpack.c.h.b16 %v1185
        %v3709 = vunpack.c.l.b16 %v1186
        %v3710 = vunpack.c.h.b16 %v1186
        %v3711 = vunpack.c.l.b16 %v1187
        %v3712 = vunpack.c.h.b16 %v1187
        %v3713 = vunpack.c.l.b16 %v1188
        %v3714 = vunpack.c.h.b16 %v1188
        %v3715 = vunpack.c.l.b16 %v1189
        %v3716 = vunpack.c.h.b16 %v1189
        %v3717 = vunpack.c.l.b16 %v1190
        %v3718 = vunpack.c.h.b16 %v1190
        %v3719 = vunpack.c.l.b16 %v1191
        %v3720 = vunpack.c.h.b16 %v1191
        %v3721 = vunpack.c.l.b16 %v1192
        %v3722 = vunpack.c.h.b16 %v1192
        %v3723 = vunpack.c.l.b16 %v1193
        %v3724 = vunpack.c.h.b16 %v1193
        %v3725 = vunpack.c.l.b16 %v1194
        %v3726 = vunpack.c.h.b16 %v1194
        %v3727 = vunpack.c.l.b16 %v1195
        %v3728 = vunpack.c.h.b16 %v1195
        %v3729 = vunpack.c.l.b16 %v1196
        %v3730 = vunpack.c.h.b16 %v1196
        %v3731 = vunpack.c.l.b16 %v1197
        %v3732 = vunpack.c.h.b16 %v1197
        %v3733 = vunpack.c.l.b16 %v1198
        %v3734 = vunpack.c.h.b16 %v1198
        %v3735 = vunpack.c.l.b16 %v1199
        %v3736 = vunpack.c.h.b16 %v1199
        %v3737 = vunpack.c.l.b16 %v1200
        %v3738 = vunpack.c.h.b16 %v1200
        %v3739 = vunpack.c.l.b16 %v1201
        %v3740 = vunpack.c.h.b16 %v1201
        %v3741 = vunpack.c.l.b16 %v1202
        %v3742 = vunpack.c.h.b16 %v1202
        %v3743 = vunpack.c.l.b16 %v1203
        %v3744 = vunpack.c.h.b16 %v1203
        %v3745 = vunpack.c.l.b16 %v1204
        %v3746 = vunpack.c.h.b16 %v1204
        %v3747 = vunpack.c.l.b16 %v1205
        %v3748 = vunpack.c.h.b16 %v1205
        %v3749 = vunpack.c.l.b16 %v1206
        %v3750 = vunpack.c.h.b16 %v1206
        %v3751 = vunpack.c.l.b16 %v1207
        %v3752 = vunpack.c.h.b16 %v1207
        %v3753 = vunpack.c.l.b16 %v1208
        %v3754 = vunpack.c.h.b16 %v1208
        %v3755 = vunpack.c.l.b16 %v1209
        %v3756 = vunpack.c.h.b16 %v1209
        %v3757 = vunpack.c.l.b16 %v1210
        %v3758 = vunpack.c.h.b16 %v1210
        %v3759 = vunpack.c.l.b16 %v1211
        %v3760 = vunpack.c.h.b16 %v1211
        %v3761 = vunpack.c.l.b16 %v1212
        %v3762 = vunpack.c.h.b16 %v1212
        %v3763 = vunpack.c.l.b16 %v1213
        %v3764 = vunpack.c.h.b16 %v1213
        %v3765 = vunpack.c.l.b16 %v1214
        %v3766 = vunpack.c.h.b16 %v1214
        %v3767 = vunpack.c.l.b16 %v1215
        %v3768 = vunpack.c.h.b16 %v1215
        %v3769 = vunpack.c.l.b16 %v1216
        %v3770 = vunpack.c.h.b16 %v1216
        %v3771 = vunpack.c.l.b16 %v1217
        %v3772 = vunpack.c.h.b16 %v1217
        %v3773 = vunpack.c.l.b16 %v1218
        %v3774 = vunpack.c.h.b16 %v1218
        %v3775 = vunpack.c.l.b16 %v1219
        %v3776 = vunpack.c.h.b16 %v1219
        %v3777 = vunpack.c.l.b16 %v1220
        %v3778 = vunpack.c.h.b16 %v1220
        %v3779 = vunpack.c.l.b16 %v1221
        %v3780 = vunpack.c.h.b16 %v1221
        %v3781 = vunpack.c.l.b16 %v1222
        %v3782 = vunpack.c.h.b16 %v1222
        %v3783 = vunpack.c.l.b16 %v1223
        %v3784 = vunpack.c.h.b16 %v1223
        %v3785 = vunpack.c.l.b16 %v1224
        %v3786 = vunpack.c.h.b16 %v1224
        %v3787 = vunpack.c.l.b16 %v1225
        %v3788 = vunpack.c.h.b16 %v1225
        %v3789 = vunpack.c.l.b16 %v1226
        %v3790 = vunpack.c.h.b16 %v1226
        %v3791 = vunpack.c.l.b16 %v1227
        %v3792 = vunpack.c.h.b16 %v1227
        %v3793 = vunpack.c.l.b16 %v1228
        %v3794 = vunpack.c.h.b16 %v1228
        %v3795 = vunpack.c.l.b16 %v1229
        %v3796 = vunpack.c.h.b16 %v1229
        %v3797 = vunpack.c.l.b16 %v1230
        %v3798 = vunpack.c.h.b16 %v1230
        %v3799 = vunpack.c.l.b16 %v1231
        %v3800 = vunpack.c.h.b16 %v1231
        %v3801 = vunpack.c.l.b16 %v1232
        %v3802 = vunpack.c.h.b16 %v1232
        %v3803 = vunpack.c.l.b16 %v1233
        %v3804 = vunpack.c.h.b16 %v1233
        %v3805 = vunpack.c.l.b16 %v1234
        %v3806 = vunpack.c.h.b16 %v1234
        %v3807 = vunpack.c.l.b16 %v1235
        %v3808 = vunpack.c.h.b16 %v1235
        %v3809 = vunpack.c.l.b16 %v1236
        %v3810 = vunpack.c.h.b16 %v1236
        %v3811 = vunpack.c.l.b16 %v1237
        %v3812 = vunpack.c.h.b16 %v1237
        %v3813 = vunpack.c.l.b16 %v1238
        %v3814 = vunpack.c.h.b16 %v1238
        %v3815 = vunpack.c.l.b16 %v1239
        %v3816 = vunpack.c.h.b16 %v1239
        %v3817 = vunpack.c.l.b16 %v1240
        %v3818 = vunpack.c.h.b16 %v1240
        %v3819 = vunpack.c.l.b16 %v1241
        %v3820 = vunpack.c.h.b16 %v1241
        %v3821 = vunpack.c.l.b16 %v1242
        %v3822 = vunpack.c.h.b16 %v1242
        %v3823 = vunpack.c.l.b16 %v1243
        %v3824 = vunpack.c.h.b16 %v1243
        %v3825 = vunpack.c.l.b16 %v1244
        %v3826 = vunpack.c.h.b16 %v1244
        %v3827 = vunpack.c.l.b16 %v1245
        %v3828 = vunpack.c.h.b16 %v1245
        %v3829 = vunpack.c.l.b16 %v1246
        %v3830 = vunpack.c.h.b16 %v1246
        %v3831 = vunpack.c.l.b16 %v1247
        %v3832 = vunpack.c.h.b16 %v1247
        %v3833 = vunpack.c.l.b16 %v1248
        %v3834 = vunpack.c.h.b16 %v1248
        %v3835 = vunpack.c.l.b16 %v1249
        %v3836 = vunpack.c.h.b16 %v1249
        %v3837 = vunpack.c.l.b16 %v1250
        %v3838 = vunpack.c.h.b16 %v1250
        %v3839 = vunpack.c.l.b16 %v1251
        %v3840 = vunpack.c.h.b16 %v1251
        %v3841 = vunpack.c.l.b16 %v1252
        %v3842 = vunpack.c.h.b16 %v1252
        %v3843 = vunpack.c.l.b16 %v1253
        %v3844 = vunpack.c.h.b16 %v1253
        %v3845 = vunpack.c.l.b16 %v1254
        %v3846 = vunpack.c.h.b16 %v1254
        %v3847 = vunpack.c.l.b16 %v1255
        %v3848 = vunpack.c.h.b16 %v1255
        %v3849 = vunpack.c.l.b16 %v1256
        %v3850 = vunpack.c.h.b16 %v1256
        %v3851 = vunpack.c.l.b16 %v1257
        %v3852 = vunpack.c.h.b16 %v1257
        %v3853 = vunpack.c.l.b16 %v1258
        %v3854 = vunpack.c.h.b16 %v1258
        %v3855 = vunpack.c.l.b16 %v1259
        %v3856 = vunpack.c.h.b16 %v1259
        %v3857 = vunpack.c.l.b16 %v1260
        %v3858 = vunpack.c.h.b16 %v1260
        %v3859 = vunpack.c.l.b16 %v1261
        %v3860 = vunpack.c.h.b16 %v1261
        %v3861 = vunpack.c.l.b16 %v1262
        %v3862 = vunpack.c.h.b16 %v1262
        %v3863 = vunpack.c.l.b16 %v1263
        %v3864 = vunpack.c.h.b16 %v1263
        %v3865 = vunpack.c.l.b16 %v1264
        %v3866 = vunpack.c.h.b16 %v1264
        %v3867 = vunpack.c.l.b16 %v1265
        %v3868 = vunpack.c.h.b16 %v1265
        %v3869 = vunpack.c.l.b16 %v1266
        %v3870 = vunpack.c.h.b16 %v1266
        %v3871 = vunpack.c.l.b16 %v1267
        %v3872 = vunpack.c.h.b16 %v1267
        %v3873 = vunpack.c.l.b16 %v1268
        %v3874 = vunpack.c.h.b16 %v1268
        %v3875 = vunpack.c.l.b16 %v1269
        %v3876 = vunpack.c.h.b16 %v1269
        %v3877 = vunpack.c.l.b16 %v1270
        %v3878 = vunpack.c.h.b16 %v1270
        %v3879 = vunpack.c.l.b16 %v1271
        %v3880 = vunpack.c.h.b16 %v1271
        %v3881 = vunpack.c.l.b16 %v1272
        %v3882 = vunpack.c.h.b16 %v1272
        %v3883 = vunpack.c.l.b16 %v1273
        %v3884 = vunpack.c.h.b16 %v1273
        %v3885 = vunpack.c.l.b16 %v1274
        %v3886 = vunpack.c.h.b16 %v1274
        %v3887 = vunpack.c.l.b16 %v1275
        %v3888 = vunpack.c.h.b16 %v1275
        %v3889 = vunpack.c.l.b16 %v1276
        %v3890 = vunpack.c.h.b16 %v1276
        %v3891 = vunpack.c.l.b16 %v1277
        %v3892 = vunpack.c.h.b16 %v1277
        %v3893 = vunpack.c.l.b16 %v1278
        %v3894 = vunpack.c.h.b16 %v1278
        %v3895 = vunpack.c.l.b16 %v1279
        %v3896 = vunpack.c.h.b16 %v1279
        %v3897 = vunpack.c.l.b16 %v1280
        %v3898 = vunpack.c.h.b16 %v1280
        %v3899 = vunpack.c.l.b16 %v1281
        %v3900 = vunpack.c.h.b16 %v1281
        %v3901 = vunpack.c.l.b16 %v1282
        %v3902 = vunpack.c.h.b16 %v1282
        %v3903 = vunpack.c.l.b16 %v1283
        %v3904 = vunpack.c.h.b16 %v1283
        %v3905 = vunpack.c.l.b16 %v1284
        %v3906 = vunpack.c.h.b16 %v1284
        %v3907 = vunpack.c.l.b16 %v1285
        %v3908 = vunpack.c.h.b16 %v1285
        %v3909 = vunpack.c.l.b16 %v1286
        %v3910 = vunpack.c.h.b16 %v1286
        %v3911 = vunpack.c.l.b16 %v1287
        %v3912 = vunpack.c.h.b16 %v1287
        %v3913 = vunpack.c.l.b16 %v1288
        %v3914 = vunpack.c.h.b16 %v1288
        %v3915 = vunpack.c.l.b16 %v1289
        %v3916 = vunpack.c.h.b16 %v1289
        %v3917 = vunpack.c.l.b16 %v1290
        %v3918 = vunpack.c.h.b16 %v1290
        %v3919 = vunpack.c.l.b16 %v1291
        %v3920 = vunpack.c.h.b16 %v1291
        %v3921 = vunpack.c.l.b16 %v1292
        %v3922 = vunpack.c.h.b16 %v1292
        %v3923 = vunpack.c.l.b16 %v1293
        %v3924 = vunpack.c.h.b16 %v1293
        %v3925 = vunpack.c.l.b16 %v1294
        %v3926 = vunpack.c.h.b16 %v1294
        %v3927 = vunpack.c.l.b16 %v1295
        %v3928 = vunpack.c.h.b16 %v1295
        %v3929 = vunpack.c.l.b16 %v1296
        %v3930 = vunpack.c.h.b16 %v1296
        %v3931 = vunpack.c.l.b16 %v1297
        %v3932 = vunpack.c.h.b16 %v1297
        %v3933 = vunpack.c.l.b16 %v1298
        %v3934 = vunpack.c.h.b16 %v1298
        %v3935 = vunpack.c.l.b16 %v1299
        %v3936 = vunpack.c.h.b16 %v1299
        %v3937 = vunpack.c.l.b16 %v1300
        %v3938 = vunpack.c.h.b16 %v1300
        %v3939 = vunpack.c.l.b16 %v1301
        %v3940 = vunpack.c.h.b16 %v1301
        %v3941 = vunpack.c.l.b16 %v1302
        %v3942 = vunpack.c.h.b16 %v1302
        %v3943 = vunpack.c.l.b16 %v1303
        %v3944 = vunpack.c.h.b16 %v1303
        %v3945 = vunpack.c.l.b16 %v1304
        %v3946 = vunpack.c.h.b16 %v1304
        %v3947 = vunpack.c.l.b16 %v1305
        %v3948 = vunpack.c.h.b16 %v1305
        %v3949 = vunpack.c.l.b16 %v1306
        %v3950 = vunpack.c.h.b16 %v1306
        %v3951 = vunpack.c.l.b16 %v1307
        %v3952 = vunpack.c.h.b16 %v1307
        %v3953 = vunpack.c.l.b16 %v1308
        %v3954 = vunpack.c.h.b16 %v1308
        %v3955 = vunpack.c.l.b16 %v1309
        %v3956 = vunpack.c.h.b16 %v1309
        %v3957 = vunpack.c.l.b16 %v1310
        %v3958 = vunpack.c.h.b16 %v1310
        %v3959 = vunpack.c.l.b16 %v1311
        %v3960 = vunpack.c.h.b16 %v1311
        %v3961 = vunpack.c.l.b16 %v1312
        %v3962 = vunpack.c.h.b16 %v1312
        %v3963 = vunpack.c.l.b16 %v1313
        %v3964 = vunpack.c.h.b16 %v1313
        %v3965 = vunpack.c.l.b16 %v1314
        %v3966 = vunpack.c.h.b16 %v1314
        %v3967 = vunpack.c.l.b16 %v1315
        %v3968 = vunpack.c.h.b16 %v1315
        %v3969 = vunpack.c.l.b16 %v1316
        %v3970 = vunpack.c.h.b16 %v1316
        %v3971 = vunpack.c.l.b16 %v1317
        %v3972 = vunpack.c.h.b16 %v1317
        %v3973 = vunpack.c.l.b16 %v1318
        %v3974 = vunpack.c.h.b16 %v1318
        %v3975 = vunpack.c.l.b16 %v1319
        %v3976 = vunpack.c.h.b16 %v1319
        %v3977 = vunpack.c.l.b16 %v1320
        %v3978 = vunpack.c.h.b16 %v1320
        %v3979 = vunpack.c.l.b16 %v1321
        %v3980 = vunpack.c.h.b16 %v1321
        %v3981 = vunpack.c.l.b16 %v1322
        %v3982 = vunpack.c.h.b16 %v1322
        %v3983 = vunpack.c.l.b16 %v1323
        %v3984 = vunpack.c.h.b16 %v1323
        %v3985 = vunpack.c.l.b16 %v1324
        %v3986 = vunpack.c.h.b16 %v1324
        %v3987 = vunpack.c.l.b16 %v1325
        %v3988 = vunpack.c.h.b16 %v1325
        %v3989 = vunpack.c.l.b16 %v1326
        %v3990 = vunpack.c.h.b16 %v1326
        %v3991 = vunpack.c.l.b16 %v1327
        %v3992 = vunpack.c.h.b16 %v1327
        %v3993 = vunpack.c.l.b16 %v1328
        %v3994 = vunpack.c.h.b16 %v1328
        %v3995 = vunpack.c.l.b16 %v1329
        %v3996 = vunpack.c.h.b16 %v1329
        %v3997 = vunpack.c.l.b16 %v1330
        %v3998 = vunpack.c.h.b16 %v1330
        %v3999 = vunpack.c.l.b16 %v1331
        %v4000 = vunpack.c.h.b16 %v1331
        %v4001 = vunpack.c.l.b16 %v1332
        %v4002 = vunpack.c.h.b16 %v1332
        %v4003 = vunpack.c.l.b16 %v1333
        %v4004 = vunpack.c.h.b16 %v1333
        %v4005 = vunpack.c.l.b16 %v1334
        %v4006 = vunpack.c.h.b16 %v1334
        %v4007 = vunpack.c.l.b16 %v1335
        %v4008 = vunpack.c.h.b16 %v1335
        %v4009 = vunpack.c.l.b16 %v1336
        %v4010 = vunpack.c.h.b16 %v1336
        %v4011 = vunpack.c.l.b16 %v1337
        %v4012 = vunpack.c.h.b16 %v1337
        %v4013 = vunpack.c.l.b16 %v1338
        %v4014 = vunpack.c.h.b16 %v1338
        %v4015 = vunpack.c.l.b16 %v1339
        %v4016 = vunpack.c.h.b16 %v1339
        %v4017 = vunpack.c.l.b16 %v1340
        %v4018 = vunpack.c.h.b16 %v1340
        %v4019 = vunpack.c.l.b16 %v1341
        %v4020 = vunpack.c.h.b16 %v1341
        %v4021 = vunpack.c.l.b16 %v1342
        %v4022 = vunpack.c.h.b16 %v1342
        %v4023 = vunpack.c.l.b16 %v1343
        %v4024 = vunpack.c.h.b16 %v1343
        %v4025 = vunpack.c.l.b16 %v1344
        %v4026 = vunpack.c.h.b16 %v1344
        %v4027 = vunpack.c.l.b16 %v1345
        %v4028 = vunpack.c.h.b16 %v1345
        %v4029 = vunpack.c.l.b16 %v1346
        %v4030 = vunpack.c.h.b16 %v1346
        %v4031 = vunpack.c.l.b16 %v1347
        %v4032 = vunpack.c.h.b16 %v1347
        %v4033 = vunpack.c.l.b16 %v1348
        %v4034 = vunpack.c.h.b16 %v1348
        %v4035 = vunpack.c.l.b16 %v1349
        %v4036 = vunpack.c.h.b16 %v1349
        %v4037 = vunpack.c.l.b16 %v1350
        %v4038 = vunpack.c.h.b16 %v1350
        %v4039 = vunpack.c.l.b16 %v1351
        %v4040 = vunpack.c.h.b16 %v1351
        %v4041 = vunpack.c.l.b16 %v1352
        %v4042 = vunpack.c.h.b16 %v1352
        %v4043 = vunpack.c.l.b16 %v1353
        %v4044 = vunpack.c.h.b16 %v1353
        %v4045 = vunpack.c.l.b16 %v1354
        %v4046 = vunpack.c.h.b16 %v1354
        %v4047 = vunpack.c.l.b16 %v1355
        %v4048 = vunpack.c.h.b16 %v1355
        %v4049 = vunpack.c.l.b16 %v1356
        %v4050 = vunpack.c.h.b16 %v1356
        %v4051 = vunpack.c.l.b16 %v1357
        %v4052 = vunpack.c.h.b16 %v1357
        %v4053 = vunpack.c.l.b16 %v1358
        %v4054 = vunpack.c.h.b16 %v1358
        %v4055 = vunpack.c.l.b16 %v1359
        %v4056 = vunpack.c.h.b16 %v1359
        %v4057 = vunpack.c.l.b16 %v1360
        %v4058 = vunpack.c.h.b16 %v1360
        %v4059 = vunpack.c.l.b16 %v1361
        %v4060 = vunpack.c.h.b16 %v1361
        %v4061 = vunpack.c.l.b16 %v1362
        %v4062 = vunpack.c.h.b16 %v1362
        %v4063 = vunpack.c.l.b16 %v1363
        %v4064 = vunpack.c.h.b16 %v1363
        %v4065 = vunpack.c.l.b16 %v1364
        %v4066 = vunpack.c.h.b16 %v1364
        %v4067 = vunpack.c.l.b16 %v1365
        %v4068 = vunpack.c.h.b16 %v1365
        %v4069 = vunpack.c.l.b16 %v1366
        %v4070 = vunpack.c.h.b16 %v1366
        %v4071 = vunpack.c.l.b16 %v1367
        %v4072 = vunpack.c.h.b16 %v1367
        %v4073 = vunpack.c.l.b16 %v1368
        %v4074 = vunpack.c.h.b16 %v1368
        %v4075 = vunpack.c.l.b16 %v1369
        %v4076 = vunpack.c.h.b16 %v1369
        %v4077 = vunpack.c.l.b16 %v1370
        %v4078 = vunpack.c.h.b16 %v1370
        %v4079 = vunpack.c.l.b16 %v1371
        %v4080 = vunpack.c.h.b16 %v1371
        %v4081 = vunpack.c.l.b16 %v1372
        %v4082 = vunpack.c.h.b16 %v1372
        %v4083 = vunpack.c.l.b16 %v1373
        %v4084 = vunpack.c.h.b16 %v1373
        %v4085 = vunpack.c.l.b16 %v1374
        %v4086 = vunpack.c.h.b16 %v1374
        %v4087 = vunpack.c.l.b16 %v1375
        %v4088 = vunpack.c.h.b16 %v1375
        %v4089 = vunpack.c.l.b16 %v1376
        %v4090 = vunpack.c.h.b16 %v1376
        %v4091 = vunpack.c.l.b16 %v1377
        %v4092 = vunpack.c.h.b16 %v1377
        %v4093 = vunpack.c.l.b16 %v1378
        %v4094 = vunpack.c.h.b16 %v1378
        %v4095 = vunpack.c.l.b16 %v1379
        %v4096 = vunpack.c.h.b16 %v1379
        %v4097 = vunpack.c.l.b16 %v1380
        %v4098 = vunpack.c.h.b16 %v1380
        %v4099 = vunpack.c.l.b16 %v1381
        %v4100 = vunpack.c.h.b16 %v1381
        %v4101 = vunpack.c.l.b16 %v1382
        %v4102 = vunpack.c.h.b16 %v1382
        %v4103 = vunpack.c.l.b16 %v1383
        %v4104 = vunpack.c.h.b16 %v1383
        %v4105 = vunpack.c.l.b16 %v1384
        %v4106 = vunpack.c.h.b16 %v1384
        %v4107 = vunpack.c.l.b16 %v1385
        %v4108 = vunpack.c.h.b16 %v1385
        %v4109 = vunpack.c.l.b16 %v1386
        %v4110 = vunpack.c.h.b16 %v1386
        %v4111 = vunpack.c.l.b16 %v1387
        %v4112 = vunpack.c.h.b16 %v1387
        %v4113 = vunpack.c.l.b16 %v1388
        %v4114 = vunpack.c.h.b16 %v1388
        %v4115 = vunpack.c.l.b16 %v1389
        %v4116 = vunpack.c.h.b16 %v1389
        %v4117 = vunpack.c.l.b16 %v1390
        %v4118 = vunpack.c.h.b16 %v1390
        %v4119 = vunpack.c.l.b16 %v1391
        %v4120 = vunpack.c.h.b16 %v1391
        %v4121 = vunpack.c.l.b16 %v1392
        %v4122 = vunpack.c.h.b16 %v1392
        %v4123 = vunpack.c.l.b16 %v1393
        %v4124 = vunpack.c.h.b16 %v1393
        %v4125 = vunpack.c.l.b16 %v1394
        %v4126 = vunpack.c.h.b16 %v1394
        %v4127 = vunpack.c.l.b16 %v1395
        %v4128 = vunpack.c.h.b16 %v1395
        %v4129 = vunpack.c.l.b16 %v1396
        %v4130 = vunpack.c.h.b16 %v1396
        %v4131 = vunpack.c.l.b16 %v1397
        %v4132 = vunpack.c.h.b16 %v1397
        %v4133 = vunpack.c.l.b16 %v1398
        %v4134 = vunpack.c.h.b16 %v1398
        %v4135 = vunpack.c.l.b16 %v1399
        %v4136 = vunpack.c.h.b16 %v1399
        %v4137 = vunpack.c.l.b16 %v1400
        %v4138 = vunpack.c.h.b16 %v1400
        %v4139 = vunpack.c.l.b16 %v1401
        %v4140 = vunpack.c.h.b16 %v1401
        %v4141 = vunpack.c.l.b16 %v1402
        %v4142 = vunpack.c.h.b16 %v1402
        %v4143 = vunpack.c.l.b16 %v1403
        %v4144 = vunpack.c.h.b16 %v1403
        %v4145 = vunpack.c.l.b16 %v1404
        %v4146 = vunpack.c.h.b16 %v1404
        %v4147 = vunpack.c.l.b16 %v1405
        %v4148 = vunpack.c.h.b16 %v1405
        %v4149 = vunpack.c.l.b16 %v1406
        %v4150 = vunpack.c.h.b16 %v1406
        %v4151 = vunpack.c.l.b16 %v1407
        %v4152 = vunpack.c.h.b16 %v1407
        %v4153 = vunpack.c.l.b16 %v1408
        %v4154 = vunpack.c.h.b16 %v1408
        %v4155 = vunpack.c.l.b16 %v1409
        %v4156 = vunpack.c.h.b16 %v1409
        %v4157 = vunpack.c.l.b16 %v1410
        %v4158 = vunpack.c.h.b16 %v1410
        %v4159 = vunpack.c.l.b16 %v1411
        %v4160 = vunpack.c.h.b16 %v1411
        %v4161 = vunpack.c.l.b16 %v1412
        %v4162 = vunpack.c.h.b16 %v1412
        %v4163 = vunpack.c.l.b16 %v1413
        %v4164 = vunpack.c.h.b16 %v1413
        %v4165 = vunpack.c.l.b16 %v1414
        %v4166 = vunpack.c.h.b16 %v1414
        %v4167 = vunpack.c.l.b16 %v1415
        %v4168 = vunpack.c.h.b16 %v1415
        %v4169 = vunpack.c.l.b16 %v1416
        %v4170 = vunpack.c.h.b16 %v1416
        %v4171 = vunpack.c.l.b16 %v1417
        %v4172 = vunpack.c.h.b16 %v1417
        %v4173 = vunpack.c.l.b16 %v1418
        %v4174 = vunpack.c.h.b16 %v1418
        %v4175 = vunpack.c.l.b16 %v1419
        %v4176 = vunpack.c.h.b16 %v1419
        %v4177 = vunpack.c.l.b16 %v1420
        %v4178 = vunpack.c.h.b16 %v1420
        %v4179 = vunpack.c.l.b16 %v1421
        %v4180 = vunpack.c.h.b16 %v1421
        %v4181 = vunpack.c.l.b16 %v1422
        %v4182 = vunpack.c.h.b16 %v1422
        %v4183 = vunpack.c.l.b16 %v1423
        %v4184 = vunpack.c.h.b16 %v1423
        %v4185 = vunpack.c.l.b16 %v1424
        %v4186 = vunpack.c.h.b16 %v1424
        %v4187 = vunpack.c.l.b16 %v1425
        %v4188 = vunpack.c.h.b16 %v1425
        %v4189 = vunpack.c.l.b16 %v1426
        %v4190 = vunpack.c.h.b16 %v1426
        %v4191 = vunpack.c.l.b16 %v1427
        %v4192 = vunpack.c.h.b16 %v1427
        %v4193 = vunpack.c.l.b16 %v1428
        %v4194 = vunpack.c.h.b16 %v1428
        %v4195 = vunpack.c.l.b16 %v1429
        %v4196 = vunpack.c.h.b16 %v1429
        %v4197 = vunpack.c.l.b16 %v1430
        %v4198 = vunpack.c.h.b16 %v1430
        %v4199 = vunpack.c.l.b16 %v1431
        %v4200 = vunpack.c.h.b16 %v1431
        %v4201 = vunpack.c.l.b16 %v1432
        %v4202 = vunpack.c.h.b16 %v1432
        %v4203 = vunpack.c.l.b16 %v1433
        %v4204 = vunpack.c.h.b16 %v1433
        %v4205 = vunpack.c.l.b16 %v1434
        %v4206 = vunpack.c.h.b16 %v1434
        %v4207 = vunpack.c.l.b16 %v1435
        %v4208 = vunpack.c.h.b16 %v1435
        %v4209 = vunpack.c.l.b16 %v1436
        %v4210 = vunpack.c.h.b16 %v1436
        %v4211 = vunpack.c.l.b16 %v1437
        %v4212 = vunpack.c.h.b16 %v1437
        %v4213 = vunpack.c.l.b16 %v1438
        %v4214 = vunpack.c.h.b16 %v1438
        %v4215 = vunpack.c.l.b16 %v1439
        %v4216 = vunpack.c.h.b16 %v1439
        %v4217 = vunpack.c.l.b16 %v1440
        %v4218 = vunpack.c.h.b16 %v1440
        %v4219 = vunpack.c.l.b16 %v1441
        %v4220 = vunpack.c.h.b16 %v1441
        %v4221 = vunpack.c.l.b16 %v1442
        %v4222 = vunpack.c.h.b16 %v1442
        %v4223 = vunpack.c.l.b16 %v1443
        %v4224 = vunpack.c.h.b16 %v1443
        %v4225 = vunpack.c.l.b16 %v1444
        %v4226 = vunpack.c.h.b16 %v1444
        %v4227 = vunpack.c.l.b16 %v1445
        %v4228 = vunpack.c.h.b16 %v1445
        %v4229 = vunpack.c.l.b16 %v1446
        %v4230 = vunpack.c.h.b16 %v1446
        %v4231 = vunpack.c.l.b16 %v1447
        %v4232 = vunpack.c.h.b16 %v1447
        %v4233 = vunpack.c.l.b16 %v1448
        %v4234 = vunpack.c.h.b16 %v1448
        %v4235 = vunpack.c.l.b16 %v1449
        %v4236 = vunpack.c.h.b16 %v1449
        %v4237 = vunpack.c.l.b16 %v1450
        %v4238 = vunpack.c.h.b16 %v1450
        %v4239 = vunpack.c.l.b16 %v1451
        %v4240 = vunpack.c.h.b16 %v1451
        %v4241 = vunpack.c.l.b16 %v1452
        %v4242 = vunpack.c.h.b16 %v1452
        %v4243 = vunpack.c.l.b16 %v1453
        %v4244 = vunpack.c.h.b16 %v1453
        %v4245 = vunpack.c.l.b16 %v1454
        %v4246 = vunpack.c.h.b16 %v1454
        %v4247 = vunpack.c.l.b16 %v1455
        %v4248 = vunpack.c.h.b16 %v1455
        %v4249 = vunpack.c.l.b16 %v1456
        %v4250 = vunpack.c.h.b16 %v1456
        %v4251 = vunpack.c.l.b16 %v1457
        %v4252 = vunpack.c.h.b16 %v1457
        %v4253 = vunpack.c.l.b16 %v1458
        %v4254 = vunpack.c.h.b16 %v1458
        %v4255 = vunpack.c.l.b16 %v1459
        %v4256 = vunpack.c.h.b16 %v1459
        %v4257 = vunpack.c.l.b16 %v1460
        %v4258 = vunpack.c.h.b16 %v1460
        %v4259 = vunpack.c.l.b16 %v1461
        %v4260 = vunpack.c.h.b16 %v1461
        %v4261 = vunpack.c.l.b16 %v1462
        %v4262 = vunpack.c.h.b16 %v1462
        %v4263 = vunpack.c.l.b16 %v1463
        %v4264 = vunpack.c.h.b16 %v1463
        %v4265 = vunpack.c.l.b16 %v1464
        %v4266 = vunpack.c.h.b16 %v1464
        %v4267 = vunpack.c.l.b16 %v1465
        %v4268 = vunpack.c.h.b16 %v1465
        %v4269 = vunpack.c.l.b16 %v1466
        %v4270 = vunpack.c.h.b16 %v1466
        %v4271 = vunpack.c.l.b16 %v1467
        %v4272 = vunpack.c.h.b16 %v1467
        %v4273 = vunpack.c.l.b16 %v1468
        %v4274 = vunpack.c.h.b16 %v1468
        %v4275 = vunpack.c.l.b16 %v1469
        %v4276 = vunpack.c.h.b16 %v1469
        %v4277 = vunpack.c.l.b16 %v1470
        %v4278 = vunpack.c.h.b16 %v1470
        %v4279 = vunpack.c.l.b16 %v1471
        %v4280 = vunpack.c.h.b16 %v1471
        %v4281 = vunpack.c.l.b16 %v1472
        %v4282 = vunpack.c.h.b16 %v1472
        %v4283 = vunpack.c.l.b16 %v1473
        %v4284 = vunpack.c.h.b16 %v1473
        %v4285 = vunpack.c.l.b16 %v1474
        %v4286 = vunpack.c.h.b16 %v1474
        %v4287 = vunpack.c.l.b16 %v1475
        %v4288 = vunpack.c.h.b16 %v1475
        %v4289 = vunpack.c.l.b16 %v1476
        %v4290 = vunpack.c.h.b16 %v1476
        %v4291 = vunpack.c.l.b16 %v1477
        %v4292 = vunpack.c.h.b16 %v1477
        %v4293 = vunpack.c.l.b16 %v1478
        %v4294 = vunpack.c.h.b16 %v1478
        %v4295 = vunpack.c.l.b16 %v1479
        %v4296 = vunpack.c.h.b16 %v1479
        %v4297 = vunpack.c.l.b16 %v1480
        %v4298 = vunpack.c.h.b16 %v1480
        %v4299 = vunpack.c.l.b16 %v1481
        %v4300 = vunpack.c.h.b16 %v1481
        %v4301 = vunpack.c.l.b16 %v1482
        %v4302 = vunpack.c.h.b16 %v1482
        %v4303 = vunpack.c.l.b16 %v1483
        %v4304 = vunpack.c.h.b16 %v1483
        %v4305 = vunpack.c.l.b16 %v1484
        %v4306 = vunpack.c.h.b16 %v1484
        %v4307 = vunpack.c.l.b16 %v1485
        %v4308 = vunpack.c.h.b16 %v1485
        %v4309 = vunpack.c.l.b16 %v1486
        %v4310 = vunpack.c.h.b16 %v1486
        %v4311 = vunpack.c.l.b16 %v1487
        %v4312 = vunpack.c.h.b16 %v1487
        %v4313 = vunpack.c.l.b16 %v1488
        %v4314 = vunpack.c.h.b16 %v1488
        %v4315 = vunpack.c.l.b16 %v1489
        %v4316 = vunpack.c.h.b16 %v1489
        %v4317 = vunpack.c.l.b16 %v1490
        %v4318 = vunpack.c.h.b16 %v1490
        %v4319 = vunpack.c.l.b16 %v1491
        %v4320 = vunpack.c.h.b16 %v1491
        %v4321 = vunpack.c.l.b16 %v1492
        %v4322 = vunpack.c.h.b16 %v1492
        %v4323 = vunpack.c.l.b16 %v1493
        %v4324 = vunpack.c.h.b16 %v1493
        %v4325 = vunpack.c.l.b16 %v1494
        %v4326 = vunpack.c.h.b16 %v1494
        %v4327 = vunpack.c.l.b16 %v1495
        %v4328 = vunpack.c.h.b16 %v1495
        %v4329 = vunpack.c.l.b16 %v1496
        %v4330 = vunpack.c.h.b16 %v1496
        %v4331 = vunpack.c.l.b16 %v1497
        %v4332 = vunpack.c.h.b16 %v1497
        %v4333 = vunpack.c.l.b16 %v1498
        %v4334 = vunpack.c.h.b16 %v1498
        %v4335 = vunpack.c.l.b16 %v1499
        %v4336 = vunpack.c.h.b16 %v1499
        %v4337 = vunpack.c.l.b16 %v1500
        %v4338 = vunpack.c.h.b16 %v1500
        %v4339 = vunpack.c.l.b16 %v1501
        %v4340 = vunpack.c.h.b16 %v1501
        %v4341 = vunpack.c.l.b16 %v1502
        %v4342 = vunpack.c.h.b16 %v1502
        %v4343 = vunpack.c.l.b16 %v1503
        %v4344 = vunpack.c.h.b16 %v1503
        %v4345 = vunpack.c.l.b16 %v1504
        %v4346 = vunpack.c.h.b16 %v1504
        %v4347 = vunpack.c.l.b16 %v1505
        %v4348 = vunpack.c.h.b16 %v1505
        %v4349 = vunpack.c.l.b16 %v1506
        %v4350 = vunpack.c.h.b16 %v1506
        %v4351 = vunpack.c.l.b16 %v1507
        %v4352 = vunpack.c.h.b16 %v1507
        %v4353 = vunpack.c.l.b16 %v1508
        %v4354 = vunpack.c.h.b16 %v1508
        %v4355 = vunpack.c.l.b16 %v1509
        %v4356 = vunpack.c.h.b16 %v1509
        %v4357 = vunpack.c.l.b16 %v1510
        %v4358 = vunpack.c.h.b16 %v1510
        %v4359 = vunpack.c.l.b16 %v1511
        %v4360 = vunpack.c.h.b16 %v1511
        %v4361 = vunpack.c.l.b16 %v1512
        %v4362 = vunpack.c.h.b16 %v1512
        %v4363 = vunpack.c.l.b16 %v1513
        %v4364 = vunpack.c.h.b16 %v1513
        %v4365 = vunpack.c.l.b16 %v1514
        %v4366 = vunpack.c.h.b16 %v1514
        %v4367 = vunpack.c.l.b16 %v1515
        %v4368 = vunpack.c.h.b16 %v1515
        %v4369 = vunpack.c.l.b16 %v1516
        %v4370 = vunpack.c.h.b16 %v1516
        %v4371 = vunpack.c.l.b16 %v1517
        %v4372 = vunpack.c.h.b16 %v1517
        %v4373 = vunpack.c.l.b16 %v1518
        %v4374 = vunpack.c.h.b16 %v1518
        %v4375 = vunpack.c.l.b16 %v1519
        %v4376 = vunpack.c.h.b16 %v1519
        %v4377 = vunpack.c.l.b16 %v1520
        %v4378 = vunpack.c.h.b16 %v1520
        %v4379 = vunpack.c.l.b16 %v1521
        %v4380 = vunpack.c.h.b16 %v1521
        %v4381 = vunpack.c.l.b16 %v1522
        %v4382 = vunpack.c.h.b16 %v1522
        %v4383 = vunpack.c.l.b16 %v1523
        %v4384 = vunpack.c.h.b16 %v1523
        %v4385 = vunpack.c.l.b16 %v1524
        %v4386 = vunpack.c.h.b16 %v1524
        %v4387 = vunpack.c.l.b16 %v1525
        %v4388 = vunpack.c.h.b16 %v1525
        %v4389 = vunpack.c.l.b16 %v1526
        %v4390 = vunpack.c.h.b16 %v1526
        %v4391 = vunpack.c.l.b16 %v1527
        %v4392 = vunpack.c.h.b16 %v1527
        %v4393 = vunpack.c.l.b16 %v1528
        %v4394 = vunpack.c.h.b16 %v1528
        %v4395 = vunpack.c.l.b16 %v1529
        %v4396 = vunpack.c.h.b16 %v1529
        %v4397 = vunpack.c.l.b16 %v1530
        %v4398 = vunpack.c.h.b16 %v1530
        %v4399 = vunpack.c.l.b16 %v1531
        %v4400 = vunpack.c.h.b16 %v1531
        %v4401 = vunpack.c.l.b16 %v1532
        %v4402 = vunpack.c.h.b16 %v1532
        %v4403 = vunpack.c.l.b16 %v1533
        %v4404 = vunpack.c.h.b16 %v1533
        %v4405 = vunpack.c.l.b16 %v1534
        %v4406 = vunpack.c.h.b16 %v1534
        %v4407 = vunpack.c.l.b16 %v1535
        %v4408 = vunpack.c.h.b16 %v1535
        %v4409 = vunpack.c.l.b16 %v1536
        %v4410 = vunpack.c.h.b16 %v1536
        %v4411 = vunpack.c.l.b16 %v1537
        %v4412 = vunpack.c.h.b16 %v1537
        %v4413 = vunpack.c.l.b16 %v1538
        %v4414 = vunpack.c.h.b16 %v1538
        %v4415 = vunpack.c.l.b16 %v1539
        %v4416 = vunpack.c.h.b16 %v1539
        %v4417 = vunpack.c.l.b16 %v1540
        %v4418 = vunpack.c.h.b16 %v1540
        %v4419 = vunpack.c.l.b16 %v1541
        %v4420 = vunpack.c.h.b16 %v1541
        %v4421 = vunpack.c.l.b16 %v1542
        %v4422 = vunpack.c.h.b16 %v1542
        %v4423 = vunpack.c.l.b16 %v1543
        %v4424 = vunpack.c.h.b16 %v1543
        %v4425 = vunpack.c.l.b16 %v1544
        %v4426 = vunpack.c.h.b16 %v1544
        %v4427 = vunpack.c.l.b16 %v1545
        %v4428 = vunpack.c.h.b16 %v1545
        %v4429 = vunpack.c.l.b16 %v1546
        %v4430 = vunpack.c.h.b16 %v1546
        %v4431 = vunpack.c.l.b16 %v1547
        %v4432 = vunpack.c.h.b16 %v1547
        %v4433 = vunpack.c.l.b16 %v1548
        %v4434 = vunpack.c.h.b16 %v1548
        %v4435 = vunpack.c.l.b16 %v1549
        %v4436 = vunpack.c.h.b16 %v1549
        %v4437 = vunpack.c.l.b16 %v1550
        %v4438 = vunpack.c.h.b16 %v1550
        %v4439 = vunpack.c.l.b16 %v1551
        %v4440 = vunpack.c.h.b16 %v1551
        %v4441 = vunpack.c.l.b16 %v1552
        %v4442 = vunpack.c.h.b16 %v1552
        %v4443 = vunpack.c.l.b16 %v1553
        %v4444 = vunpack.c.h.b16 %v1553
        %v4445 = vunpack.c.l.b16 %v1554
        %v4446 = vunpack.c.h.b16 %v1554
        %v4447 = vunpack.c.l.b16 %v1555
        %v4448 = vunpack.c.h.b16 %v1555
        %v4449 = vunpack.c.l.b16 %v1556
        %v4450 = vunpack.c.h.b16 %v1556
        %v4451 = vunpack.c.l.b16 %v1557
        %v4452 = vunpack.c.h.b16 %v1557
        %v4453 = vunpack.c.l.b16 %v1558
        %v4454 = vunpack.c.h.b16 %v1558
        %v4455 = vunpack.c.l.b16 %v1559
        %v4456 = vunpack.c.h.b16 %v1559
        %v4457 = vunpack.c.l.b16 %v1560
        %v4458 = vunpack.c.h.b16 %v1560
        %v4459 = vunpack.c.l.b16 %v1561
        %v4460 = vunpack.c.h.b16 %v1561
        %v4461 = vunpack.c.l.b16 %v1562
        %v4462 = vunpack.c.h.b16 %v1562
        %v4463 = vunpack.c.l.b16 %v1563
        %v4464 = vunpack.c.h.b16 %v1563
        %v4465 = vunpack.c.l.b16 %v1564
        %v4466 = vunpack.c.h.b16 %v1564
        %v4467 = vunpack.c.l.b16 %v1565
        %v4468 = vunpack.c.h.b16 %v1565
        %v4469 = vunpack.c.l.b16 %v1566
        %v4470 = vunpack.c.h.b16 %v1566
        %v4471 = vunpack.c.l.b16 %v1567
        %v4472 = vunpack.c.h.b16 %v1567
        %v4473 = vunpack.c.l.b16 %v1568
        %v4474 = vunpack.c.h.b16 %v1568
        %v4475 = vunpack.c.l.b16 %v1569
        %v4476 = vunpack.c.h.b16 %v1569
        %v4477 = vunpack.c.l.b16 %v1570
        %v4478 = vunpack.c.h.b16 %v1570
        %v4479 = vunpack.c.l.b16 %v1571
        %v4480 = vunpack.c.h.b16 %v1571
        %v4481 = vunpack.c.l.b16 %v1572
        %v4482 = vunpack.c.h.b16 %v1572
        %v4483 = vunpack.c.l.b16 %v1573
        %v4484 = vunpack.c.h.b16 %v1573
        %v4485 = vunpack.c.l.b16 %v1574
        %v4486 = vunpack.c.h.b16 %v1574
        %v4487 = vunpack.c.l.b16 %v1575
        %v4488 = vunpack.c.h.b16 %v1575
        %v4489 = vunpack.c.l.b16 %v1576
        %v4490 = vunpack.c.h.b16 %v1576
        %v4491 = vunpack.c.l.b16 %v1577
        %v4492 = vunpack.c.h.b16 %v1577
        %v4493 = vunpack.c.l.b16 %v1578
        %v4494 = vunpack.c.h.b16 %v1578
        %v4495 = vunpack.c.l.b16 %v1579
        %v4496 = vunpack.c.h.b16 %v1579
        %v4497 = vunpack.c.l.b16 %v1580
        %v4498 = vunpack.c.h.b16 %v1580
        %v4499 = vunpack.c.l.b16 %v1581
        %v4500 = vunpack.c.h.b16 %v1581
        %v4501 = vunpack.c.l.b16 %v1582
        %v4502 = vunpack.c.h.b16 %v1582
        %v4503 = vunpack.c.l.b16 %v1583
        %v4504 = vunpack.c.h.b16 %v1583
        %v4505 = vunpack.c.l.b16 %v1584
        %v4506 = vunpack.c.h.b16 %v1584
        %v4507 = vunpack.c.l.b16 %v1585
        %v4508 = vunpack.c.h.b16 %v1585
        %v4509 = vunpack.c.l.b16 %v1586
        %v4510 = vunpack.c.h.b16 %v1586
        %v4511 = vunpack.c.l.b16 %v1587
        %v4512 = vunpack.c.h.b16 %v1587
        %v4513 = vunpack.c.l.b16 %v1588
        %v4514 = vunpack.c.h.b16 %v1588
        %v4515 = vunpack.c.l.b16 %v1589
        %v4516 = vunpack.c.h.b16 %v1589
        %v4517 = vunpack.c.l.b16 %v1590
        %v4518 = vunpack.c.h.b16 %v1590
        %v4519 = vunpack.c.l.b16 %v1591
        %v4520 = vunpack.c.h.b16 %v1591
        %v4521 = vunpack.c.l.b16 %v1592
        %v4522 = vunpack.c.h.b16 %v1592
        %v4523 = vunpack.c.l.b16 %v1593
        %v4524 = vunpack.c.h.b16 %v1593
        %v4525 = vunpack.c.l.b16 %v1594
        %v4526 = vunpack.c.h.b16 %v1594
        %v4527 = vunpack.c.l.b16 %v1595
        %v4528 = vunpack.c.h.b16 %v1595
        %v4529 = vunpack.c.l.b16 %v1596
        %v4530 = vunpack.c.h.b16 %v1596
        %v4531 = vunpack.c.l.b16 %v1597
        %v4532 = vunpack.c.h.b16 %v1597
        %v4533 = vunpack.c.l.b16 %v1598
        %v4534 = vunpack.c.h.b16 %v1598
        %v4535 = vunpack.c.l.b16 %v1599
        %v4536 = vunpack.c.h.b16 %v1599
        %v4537 = vunpack.c.l.b16 %v1600
        %v4538 = vunpack.c.h.b16 %v1600
        %v4539 = vunpack.c.l.b16 %v1601
        %v4540 = vunpack.c.h.b16 %v1601
        %v4541 = vunpack.c.l.b16 %v1602
        %v4542 = vunpack.c.h.b16 %v1602
        %v4543 = vunpack.c.l.b16 %v1603
        %v4544 = vunpack.c.h.b16 %v1603
        %v4545 = vunpack.c.l.b16 %v1604
        %v4546 = vunpack.c.h.b16 %v1604
        %v4547 = vunpack.c.l.b16 %v1605
        %v4548 = vunpack.c.h.b16 %v1605
        %v4549 = vunpack.c.l.b16 %v1606
        %v4550 = vunpack.c.h.b16 %v1606
        %v4551 = vunpack.c.l.b16 %v1607
        %v4552 = vunpack.c.h.b16 %v1607
        %v4553 = vunpack.c.l.b16 %v1608
        %v4554 = vunpack.c.h.b16 %v1608
        %v4555 = vunpack.c.l.b16 %v1609
        %v4556 = vunpack.c.h.b16 %v1609
        %v4557 = vunpack.c.l.b16 %v1610
        %v4558 = vunpack.c.h.b16 %v1610
        %v4559 = vunpack.c.l.b16 %v1611
        %v4560 = vunpack.c.h.b16 %v1611
        %v4561 = vunpack.c.l.b16 %v1612
        %v4562 = vunpack.c.h.b16 %v1612
        %v4563 = vunpack.c.l.b16 %v1613
        %v4564 = vunpack.c.h.b16 %v1613
        %v4565 = vunpack.c.l.b16 %v1614
        %v4566 = vunpack.c.h.b16 %v1614
        %v4567 = vunpack.c.l.b16 %v1615
        %v4568 = vunpack.c.h.b16 %v1615
        %v4569 = vunpack.c.l.b16 %v1616
        %v4570 = vunpack.c.h.b16 %v1616
        %v4571 = vunpack.c.l.b16 %v1617
        %v4572 = vunpack.c.h.b16 %v1617
        %v4573 = vunpack.c.l.b16 %v1618
        %v4574 = vunpack.c.h.b16 %v1618
        %v4575 = vunpack.c.l.b16 %v1619
        %v4576 = vunpack.c.h.b16 %v1619
        %v4577 = vunpack.c.l.b16 %v1620
        %v4578 = vunpack.c.h.b16 %v1620
        %v4579 = vunpack.c.l.b16 %v1621
        %v4580 = vunpack.c.h.b16 %v1621
        %v4581 = vunpack.c.l.b16 %v1622
        %v4582 = vunpack.c.h.b16 %v1622
        %v4583 = vunpack.c.l.b16 %v1623
        %v4584 = vunpack.c.h.b16 %v1623
        %v4585 = vunpack.c.l.b16 %v1624
        %v4586 = vunpack.c.h.b16 %v1624
        %v4587 = vunpack.c.l.b16 %v1625
        %v4588 = vunpack.c.h.b16 %v1625
        %v4589 = vunpack.c.l.b16 %v1626
        %v4590 = vunpack.c.h.b16 %v1626
        %v4591 = vunpack.c.l.b16 %v1627
        %v4592 = vunpack.c.h.b16 %v1627
        %v4593 = vunpack.c.l.b16 %v1628
        %v4594 = vunpack.c.h.b16 %v1628
        %v4595 = vunpack.c.l.b16 %v1629
        %v4596 = vunpack.c.h.b16 %v1629
        %v4597 = vunpack.c.l.b16 %v1630
        %v4598 = vunpack.c.h.b16 %v1630
        %v4599 = vunpack.c.l.b16 %v1631
        %v4600 = vunpack.c.h.b16 %v1631
        %v4601 = vunpack.c.l.b16 %v1632
        %v4602 = vunpack.c.h.b16 %v1632
        %v4603 = vunpack.c.l.b16 %v1633
        %v4604 = vunpack.c.h.b16 %v1633
        %v4605 = vunpack.c.l.b16 %v1634
        %v4606 = vunpack.c.h.b16 %v1634
        %v4607 = vunpack.c.l.b16 %v1635
        %v4608 = vunpack.c.h.b16 %v1635
        %v4609 = vunpack.c.l.b16 %v1636
        %v4610 = vunpack.c.h.b16 %v1636
        %v4611 = vunpack.c.l.b16 %v1637
        %v4612 = vunpack.c.h.b16 %v1637
        %v4613 = vunpack.c.l.b16 %v1638
        %v4614 = vunpack.c.h.b16 %v1638
        %v4615 = vunpack.c.l.b16 %v1639
        %v4616 = vunpack.c.h.b16 %v1639
        %v4617 = vunpack.c.l.b16 %v1640
        %v4618 = vunpack.c.h.b16 %v1640
        %v4619 = vunpack.c.l.b16 %v1641
        %v4620 = vunpack.c.h.b16 %v1641
        %v4621 = vunpack.c.l.b16 %v1642
        %v4622 = vunpack.c.h.b16 %v1642
        %v4623 = vunpack.c.l.b16 %v1643
        %v4624 = vunpack.c.h.b16 %v1643
        %v4625 = vunpack.c.l.b16 %v1644
        %v4626 = vunpack.c.h.b16 %v1644
        %v4627 = vunpack.c.l.b16 %v1645
        %v4628 = vunpack.c.h.b16 %v1645
        %v4629 = vunpack.c.l.b16 %v1646
        %v4630 = vunpack.c.h.b16 %v1646
        %v4631 = vunpack.c.l.b16 %v1647
        %v4632 = vunpack.c.h.b16 %v1647
        %v4633 = vunpack.c.l.b16 %v1648
        %v4634 = vunpack.c.h.b16 %v1648
        %v4635 = vunpack.c.l.b16 %v1649
        %v4636 = vunpack.c.h.b16 %v1649
        %v4637 = vunpack.c.l.b16 %v1650
        %v4638 = vunpack.c.h.b16 %v1650
        %v4639 = vunpack.c.l.b16 %v1651
        %v4640 = vunpack.c.h.b16 %v1651
        %v4641 = vunpack.c.l.b16 %v1652
        %v4642 = vunpack.c.h.b16 %v1652
        %v4643 = vunpack.c.l.b16 %v1653
        %v4644 = vunpack.c.h.b16 %v1653
        %v4645 = vunpack.c.l.b16 %v1654
        %v4646 = vunpack.c.h.b16 %v1654
        %v4647 = vunpack.c.l.b16 %v1655
        %v4648 = vunpack.c.h.b16 %v1655
        %v4649 = vunpack.c.l.b16 %v1656
        %v4650 = vunpack.c.h.b16 %v1656
        %v4651 = vunpack.c.l.b16 %v1657
        %v4652 = vunpack.c.h.b16 %v1657
        %v4653 = vunpack.c.l.b16 %v1658
        %v4654 = vunpack.c.h.b16 %v1658
        %v4655 = vunpack.c.l.b16 %v1659
        %v4656 = vunpack.c.h.b16 %v1659
        %v4657 = vunpack.c.l.b16 %v1660
        %v4658 = vunpack.c.h.b16 %v1660
        %v4659 = vunpack.c.l.b16 %v1661
        %v4660 = vunpack.c.h.b16 %v1661
        %v4661 = vunpack.c.l.b16 %v1662
        %v4662 = vunpack.c.h.b16 %v1662
        %v4663 = vunpack.c.l.b16 %v1663
        %v4664 = vunpack.c.h.b16 %v1663
        %v4665 = vunpack.c.l.b16 %v1664
        %v4666 = vunpack.c.h.b16 %v1664
        %v4667 = vunpack.c.l.b16 %v1665
        %v4668 = vunpack.c.h.b16 %v1665
        %v4669 = vunpack.c.l.b16 %v1666
        %v4670 = vunpack.c.h.b16 %v1666
        %v4671 = vunpack.c.l.b16 %v1667
        %v4672 = vunpack.c.h.b16 %v1667
        %v4673 = vunpack.c.l.b16 %v1668
        %v4674 = vunpack.c.h.b16 %v1668
        %v4675 = vunpack.c.l.b16 %v1669
        %v4676 = vunpack.c.h.b16 %v1669
        %v4677 = vunpack.c.l.b16 %v1670
        %v4678 = vunpack.c.h.b16 %v1670
        %v4679 = vunpack.c.l.b16 %v1671
        %v4680 = vunpack.c.h.b16 %v1671
        %v4681 = vunpack.c.l.b16 %v1672
        %v4682 = vunpack.c.h.b16 %v1672
        %v4683 = vunpack.c.l.b16 %v1673
        %v4684 = vunpack.c.h.b16 %v1673
        %v4685 = vunpack.c.l.b16 %v1674
        %v4686 = vunpack.c.h.b16 %v1674
        %v4687 = vunpack.c.l.b16 %v1675
        %v4688 = vunpack.c.h.b16 %v1675
        %v4689 = vunpack.c.l.b16 %v1676
        %v4690 = vunpack.c.h.b16 %v1676
        %v4691 = vunpack.c.l.b16 %v1677
        %v4692 = vunpack.c.h.b16 %v1677
        %v4693 = vunpack.c.l.b16 %v1678
        %v4694 = vunpack.c.h.b16 %v1678
        %v4695 = vunpack.c.l.b16 %v1679
        %v4696 = vunpack.c.h.b16 %v1679
        %v4697 = vunpack.c.l.b16 %v1680
        %v4698 = vunpack.c.h.b16 %v1680
        %v4699 = vunpack.c.l.b16 %v1681
        %v4700 = vunpack.c.h.b16 %v1681
        %v4701 = vunpack.c.l.b16 %v1682
        %v4702 = vunpack.c.h.b16 %v1682
        %v4703 = vunpack.c.l.b16 %v1683
        %v4704 = vunpack.c.h.b16 %v1683
        %v4705 = vunpack.c.l.b16 %v1684
        %v4706 = vunpack.c.h.b16 %v1684
        %v4707 = vunpack.c.l.b16 %v1685
        %v4708 = vunpack.c.h.b16 %v1685
        %v4709 = vunpack.c.l.b16 %v1686
        %v4710 = vunpack.c.h.b16 %v1686
        %v4711 = vunpack.c.l.b16 %v1687
        %v4712 = vunpack.c.h.b16 %v1687
        %v4713 = vunpack.c.l.b16 %v1688
        %v4714 = vunpack.c.h.b16 %v1688
        %v4715 = vunpack.c.l.b16 %v1689
        %v4716 = vunpack.c.h.b16 %v1689
        %v4717 = vunpack.c.l.b16 %v1690
        %v4718 = vunpack.c.h.b16 %v1690
        %v4719 = vunpack.c.l.b16 %v1691
        %v4720 = vunpack.c.h.b16 %v1691
        %v4721 = vunpack.c.l.b16 %v1692
        %v4722 = vunpack.c.h.b16 %v1692
        %v4723 = vunpack.c.l.b16 %v1693
        %v4724 = vunpack.c.h.b16 %v1693
        %v4725 = vunpack.c.l.b16 %v1694
        %v4726 = vunpack.c.h.b16 %v1694
        %v4727 = vunpack.c.l.b16 %v1695
        %v4728 = vunpack.c.h.b16 %v1695
        %v4729 = vunpack.c.l.b16 %v1696
        %v4730 = vunpack.c.h.b16 %v1696
        %v4731 = vunpack.c.l.b16 %v1697
        %v4732 = vunpack.c.h.b16 %v1697
        %v4733 = vunpack.c.l.b16 %v1698
        %v4734 = vunpack.c.h.b16 %v1698
        %v4735 = vunpack.c.l.b16 %v1699
        %v4736 = vunpack.c.h.b16 %v1699
        %v4737 = vunpack.c.l.b16 %v1700
        %v4738 = vunpack.c.h.b16 %v1700
        %v4739 = vunpack.c.l.b16 %v1701
        %v4740 = vunpack.c.h.b16 %v1701
        %v4741 = vunpack.c.l.b16 %v1702
        %v4742 = vunpack.c.h.b16 %v1702
        %v4743 = vunpack.c.l.b16 %v1703
        %v4744 = vunpack.c.h.b16 %v1703
        %v4745 = vunpack.c.l.b16 %v1704
        %v4746 = vunpack.c.h.b16 %v1704
        %v4747 = vunpack.c.l.b16 %v1705
        %v4748 = vunpack.c.h.b16 %v1705
        %v4749 = vunpack.c.l.b16 %v1706
        %v4750 = vunpack.c.h.b16 %v1706
        %v4751 = vunpack.c.l.b16 %v1707
        %v4752 = vunpack.c.h.b16 %v1707
        %v4753 = vunpack.c.l.b16 %v1708
        %v4754 = vunpack.c.h.b16 %v1708
        %v4755 = vunpack.c.l.b16 %v1709
        %v4756 = vunpack.c.h.b16 %v1709
        %v4757 = vunpack.c.l.b16 %v1710
        %v4758 = vunpack.c.h.b16 %v1710
        %v4759 = vunpack.c.l.b16 %v1711
        %v4760 = vunpack.c.h.b16 %v1711
        %v4761 = vunpack.c.l.b16 %v1712
        %v4762 = vunpack.c.h.b16 %v1712
        %v4763 = vunpack.c.l.b16 %v1713
        %v4764 = vunpack.c.h.b16 %v1713
        %v4765 = vunpack.c.l.b16 %v1714
        %v4766 = vunpack.c.h.b16 %v1714
        %v4767 = vunpack.c.l.b16 %v1715
        %v4768 = vunpack.c.h.b16 %v1715
        %v4769 = vunpack.c.l.b16 %v1716
        %v4770 = vunpack.c.h.b16 %v1716
        %v4771 = vunpack.c.l.b16 %v1717
        %v4772 = vunpack.c.h.b16 %v1717
        %v4773 = vunpack.c.l.b16 %v1718
        %v4774 = vunpack.c.h.b16 %v1718
        %v4775 = vunpack.c.l.b16 %v1719
        %v4776 = vunpack.c.h.b16 %v1719
        %v4777 = vunpack.c.l.b16 %v1720
        %v4778 = vunpack.c.h.b16 %v1720
        %v4779 = vunpack.c.l.b16 %v1721
        %v4780 = vunpack.c.h.b16 %v1721
        %v4781 = vunpack.c.l.b16 %v1722
        %v4782 = vunpack.c.h.b16 %v1722
        %v4783 = vunpack.c.l.b16 %v1723
        %v4784 = vunpack.c.h.b16 %v1723
        %v4785 = vunpack.c.l.b16 %v1724
        %v4786 = vunpack.c.h.b16 %v1724
        %v4787 = vunpack.c.l.b16 %v1725
        %v4788 = vunpack.c.h.b16 %v1725
        %v4789 = vunpack.c.l.b16 %v1726
        %v4790 = vunpack.c.h.b16 %v1726
        %v4791 = vunpack.c.l.b16 %v1727
        %v4792 = vunpack.c.h.b16 %v1727
        %v4793 = vunpack.c.l.b16 %v1728
        %v4794 = vunpack.c.h.b16 %v1728
        %v4795 = vunpack.c.l.b16 %v1729
        %v4796 = vunpack.c.h.b16 %v1729
        %v4797 = vunpack.c.l.b16 %v1730
        %v4798 = vunpack.c.h.b16 %v1730
        %v4799 = vunpack.c.l.b16 %v1731
        %v4800 = vunpack.c.h.b16 %v1731
        %v4801 = vunpack.c.l.b16 %v1732
        %v4802 = vunpack.c.h.b16 %v1732
        %v4803 = vunpack.c.l.b16 %v1733
        %v4804 = vunpack.c.h.b16 %v1733
        %v4805 = vunpack.c.l.b16 %v1734
        %v4806 = vunpack.c.h.b16 %v1734
        %v4807 = vunpack.c.l.b16 %v1735
        %v4808 = vunpack.c.h.b16 %v1735
        %v4809 = vunpack.c.l.b16 %v1736
        %v4810 = vunpack.c.h.b16 %v1736
        %v4811 = vunpack.c.l.b16 %v1737
        %v4812 = vunpack.c.h.b16 %v1737
        %v4813 = vunpack.c.l.b16 %v1738
        %v4814 = vunpack.c.h.b16 %v1738
        %v4815 = vunpack.c.l.b16 %v1739
        %v4816 = vunpack.c.h.b16 %v1739
        %v4817 = vunpack.c.l.b16 %v1740
        %v4818 = vunpack.c.h.b16 %v1740
        %v4819 = vunpack.c.l.b16 %v1741
        %v4820 = vunpack.c.h.b16 %v1741
        %v4821 = vunpack.c.l.b16 %v1742
        %v4822 = vunpack.c.h.b16 %v1742
        %v4823 = vunpack.c.l.b16 %v1743
        %v4824 = vunpack.c.h.b16 %v1743
        %v4825 = vunpack.c.l.b16 %v1744
        %v4826 = vunpack.c.h.b16 %v1744
        %v4827 = vunpack.c.l.b16 %v1745
        %v4828 = vunpack.c.h.b16 %v1745
        %v4829 = vunpack.c.l.b16 %v1746
        %v4830 = vunpack.c.h.b16 %v1746
        %v4831 = vunpack.c.l.b16 %v1747
        %v4832 = vunpack.c.h.b16 %v1747
        %v4833 = vunpack.c.l.b16 %v1748
        %v4834 = vunpack.c.h.b16 %v1748
        %v4835 = vunpack.c.l.b16 %v1749
        %v4836 = vunpack.c.h.b16 %v1749
        %v4837 = vunpack.c.l.b16 %v1750
        %v4838 = vunpack.c.h.b16 %v1750
        %v4839 = vunpack.c.l.b16 %v1751
        %v4840 = vunpack.c.h.b16 %v1751
        %v4841 = vunpack.c.l.b16 %v1752
        %v4842 = vunpack.c.h.b16 %v1752
        %v4843 = vunpack.c.l.b16 %v1753
        %v4844 = vunpack.c.h.b16 %v1753
        %v4845 = vunpack.c.l.b16 %v1754
        %v4846 = vunpack.c.h.b16 %v1754
        %v4847 = vunpack.c.l.b16 %v1755
        %v4848 = vunpack.c.h.b16 %v1755
        %v4849 = vunpack.c.l.b16 %v1756
        %v4850 = vunpack.c.h.b16 %v1756
        %v4851 = vunpack.c.l.b16 %v1757
        %v4852 = vunpack.c.h.b16 %v1757
        %v4853 = vunpack.c.l.b16 %v1758
        %v4854 = vunpack.c.h.b16 %v1758
        %v4855 = vunpack.c.l.b16 %v1759
        %v4856 = vunpack.c.h.b16 %v1759
        %v4857 = vunpack.c.l.b16 %v1760
        %v4858 = vunpack.c.h.b16 %v1760
        %v4859 = vunpack.c.l.b16 %v1761
        %v4860 = vunpack.c.h.b16 %v1761
        %v4861 = vunpack.c.l.b16 %v1762
        %v4862 = vunpack.c.h.b16 %v1762
        %v4863 = vunpack.c.l.b16 %v1763
        %v4864 = vunpack.c.h.b16 %v1763
        %v4865 = vunpack.c.l.b16 %v1764
        %v4866 = vunpack.c.h.b16 %v1764
        %v4867 = vunpack.c.l.b16 %v1765
        %v4868 = vunpack.c.h.b16 %v1765
        %v4869 = vunpack.c.l.b16 %v1766
        %v4870 = vunpack.c.h.b16 %v1766
        %v4871 = vunpack.c.l.b16 %v1767
        %v4872 = vunpack.c.h.b16 %v1767
        %v4873 = vunpack.c.l.b16 %v1768
        %v4874 = vunpack.c.h.b16 %v1768
        %v4875 = vunpack.c.l.b16 %v1769
        %v4876 = vunpack.c.h.b16 %v1769
        %v4877 = vunpack.c.l.b16 %v1770
        %v4878 = vunpack.c.h.b16 %v1770
        %v4879 = vunpack.c.l.b16 %v1771
        %v4880 = vunpack.c.h.b16 %v1771
        %v4881 = vunpack.c.l.b16 %v1772
        %v4882 = vunpack.c.h.b16 %v1772
        %v4883 = vunpack.c.l.b16 %v1773
        %v4884 = vunpack.c.h.b16 %v1773
        %v4885 = vunpack.c.l.b16 %v1774
        %v4886 = vunpack.c.h.b16 %v1774
        %v4887 = vunpack.c.l.b16 %v1775
        %v4888 = vunpack.c.h.b16 %v1775
        %v4889 = vunpack.c.l.b16 %v1776
        %v4890 = vunpack.c.h.b16 %v1776
        %v4891 = vunpack.c.l.b16 %v1777
        %v4892 = vunpack.c.h.b16 %v1777
        %v4893 = vunpack.c.l.b16 %v1778
        %v4894 = vunpack.c.h.b16 %v1778
        %v4895 = vunpack.c.l.b16 %v1779
        %v4896 = vunpack.c.h.b16 %v1779
        %v4897 = vunpack.c.l.b16 %v1780
        %v4898 = vunpack.c.h.b16 %v1780
        %v4899 = vunpack.c.l.b16 %v1781
        %v4900 = vunpack.c.h.b16 %v1781
        %v4901 = vunpack.c.l.b16 %v1782
        %v4902 = vunpack.c.h.b16 %v1782
        %v4903 = vunpack.c.l.b16 %v1783
        %v4904 = vunpack.c.h.b16 %v1783
        %v4905 = vunpack.c.l.b16 %v1784
        %v4906 = vunpack.c.h.b16 %v1784
        %v4907 = vunpack.c.l.b16 %v1785
        %v4908 = vunpack.c.h.b16 %v1785
        %v4909 = vunpack.c.l.b16 %v1786
        %v4910 = vunpack.c.h.b16 %v1786
        %v4911 = vunpack.c.l.b16 %v1787
        %v4912 = vunpack.c.h.b16 %v1787
        %v4913 = vunpack.c.l.b16 %v1788
        %v4914 = vunpack.c.h.b16 %v1788
        %v4915 = vunpack.c.l.b16 %v1789
        %v4916 = vunpack.c.h.b16 %v1789
        %v4917 = vunpack.c.l.b16 %v1790
        %v4918 = vunpack.c.h.b16 %v1790
        %v4919 = vunpack.c.l.b16 %v1791
        %v4920 = vunpack.c.h.b16 %v1791
        %v4921 = vunpack.c.l.b16 %v1792
        %v4922 = vunpack.c.h.b16 %v1792
        %v4923 = vunpack.c.l.b16 %v1793
        %v4924 = vunpack.c.h.b16 %v1793
        %v4925 = vunpack.c.l.b16 %v1794
        %v4926 = vunpack.c.h.b16 %v1794
        %v4927 = vunpack.c.l.b16 %v1795
        %v4928 = vunpack.c.h.b16 %v1795
        %v4929 = vunpack.c.l.b16 %v1796
        %v4930 = vunpack.c.h.b16 %v1796
        %v4931 = vunpack.c.l.b16 %v1797
        %v4932 = vunpack.c.h.b16 %v1797
        %v4933 = vunpack.c.l.b16 %v1798
        %v4934 = vunpack.c.h.b16 %v1798
        %v4935 = vunpack.c.l.b16 %v1799
        %v4936 = vunpack.c.h.b16 %v1799
        %v4937 = vunpack.c.l.b16 %v1800
        %v4938 = vunpack.c.h.b16 %v1800
        %v4939 = vunpack.c.l.b16 %v1801
        %v4940 = vunpack.c.h.b16 %v1801
        %v4941 = vunpack.c.l.b16 %v1802
        %v4942 = vunpack.c.h.b16 %v1802
        %v4943 = vunpack.c.l.b16 %v1803
        %v4944 = vunpack.c.h.b16 %v1803
        %v4945 = vunpack.c.l.b16 %v1804
        %v4946 = vunpack.c.h.b16 %v1804
        %v4947 = vunpack.c.l.b16 %v1805
        %v4948 = vunpack.c.h.b16 %v1805
        %v4949 = vunpack.c.l.b16 %v1806
        %v4950 = vunpack.c.h.b16 %v1806
        %v4951 = vunpack.c.l.b16 %v1807
        %v4952 = vunpack.c.h.b16 %v1807
        %v4953 = vunpack.c.l.b16 %v1808
        %v4954 = vunpack.c.h.b16 %v1808
        %v4955 = vunpack.c.l.b16 %v1809
        %v4956 = vunpack.c.h.b16 %v1809
        %v4957 = vunpack.c.l.b16 %v1810
        %v4958 = vunpack.c.h.b16 %v1810
        %v4959 = vunpack.c.l.b16 %v1811
        %v4960 = vunpack.c.h.b16 %v1811
        %v4961 = vunpack.c.l.b16 %v1812
        %v4962 = vunpack.c.h.b16 %v1812
        %v4963 = vunpack.c.l.b16 %v1813
        %v4964 = vunpack.c.h.b16 %v1813
        %v4965 = vunpack.c.l.b16 %v1814
        %v4966 = vunpack.c.h.b16 %v1814
        %v4967 = vunpack.c.l.b16 %v1815
        %v4968 = vunpack.c.h.b16 %v1815
        %v4969 = vunpack.c.l.b16 %v1816
        %v4970 = vunpack.c.h.b16 %v1816
        %v4971 = vunpack.c.l.b16 %v1817
        %v4972 = vunpack.c.h.b16 %v1817
        %v4973 = vunpack.c.l.b16 %v1818
        %v4974 = vunpack.c.h.b16 %v1818
        %v4975 = vunpack.c.l.b16 %v1819
        %v4976 = vunpack.c.h.b16 %v1819
        %v4977 = vunpack.c.l.b16 %v1820
        %v4978 = vunpack.c.h.b16 %v1820
        %v4979 = vunpack.c.l.b16 %v1821
        %v4980 = vunpack.c.h.b16 %v1821
        %v4981 = vunpack.c.l.b16 %v1822
        %v4982 = vunpack.c.h.b16 %v1822
        %v4983 = vunpack.c.l.b16 %v1823
        %v4984 = vunpack.c.h.b16 %v1823
        %v4985 = vunpack.c.l.b16 %v1824
        %v4986 = vunpack.c.h.b16 %v1824
        %v4987 = vunpack.c.l.b16 %v1825
        %v4988 = vunpack.c.h.b16 %v1825
        %v4989 = vunpack.c.l.b16 %v1826
        %v4990 = vunpack.c.h.b16 %v1826
        %v4991 = vunpack.c.l.b16 %v1827
        %v4992 = vunpack.c.h.b16 %v1827
        %v4993 = vunpack.c.l.b16 %v1828
        %v4994 = vunpack.c.h.b16 %v1828
        %v4995 = vunpack.c.l.b16 %v1829
        %v4996 = vunpack.c.h.b16 %v1829
        %v4997 = vunpack.c.l.b16 %v1830
        %v4998 = vunpack.c.h.b16 %v1830
        %v4999 = vunpack.c.l.b16 %v1831
        %v5000 = vunpack.c.h.b16 %v1831
        %v5001 = vunpack.c.l.b16 %v1832
        %v5002 = vunpack.c.h.b16 %v1832
        %v5003 = vunpack.c.l.b16 %v1833
        %v5004 = vunpack.c.h.b16 %v1833
        %v5005 = vunpack.c.l.b16 %v1834
        %v5006 = vunpack.c.h.b16 %v1834
        %v5007 = vunpack.c.l.b16 %v1835
        %v5008 = vunpack.c.h.b16 %v1835
        %v5009 = vunpack.c.l.b16 %v1836
        %v5010 = vunpack.c.h.b16 %v1836
        %v5011 = vunpack.c.l.b16 %v1837
        %v5012 = vunpack.c.h.b16 %v1837
        %v5013 = vunpack.c.l.b16 %v1838
        %v5014 = vunpack.c.h.b16 %v1838
        %v5015 = vunpack.c.l.b16 %v1839
        %v5016 = vunpack.c.h.b16 %v1839
        %v5017 = vunpack.c.l.b16 %v1840
        %v5018 = vunpack.c.h.b16 %v1840
        %v5019 = vunpack.c.l.b16 %v1841
        %v5020 = vunpack.c.h.b16 %v1841
        %v5021 = vunpack.c.l.b16 %v1842
        %v5022 = vunpack.c.h.b16 %v1842
        %v5023 = vunpack.c.l.b16 %v1843
        %v5024 = vunpack.c.h.b16 %v1843
        %v5025 = vunpack.c.l.b16 %v1844
        %v5026 = vunpack.c.h.b16 %v1844
        %v5027 = vunpack.c.l.b16 %v1845
        %v5028 = vunpack.c.h.b16 %v1845
        %v5029 = vunpack.c.l.b16 %v1846
        %v5030 = vunpack.c.h.b16 %v1846
        %v5031 = vunpack.c.l.b16 %v1847
        %v5032 = vunpack.c.h.b16 %v1847
        %v5033 = vunpack.c.l.b16 %v1848
        %v5034 = vunpack.c.h.b16 %v1848
        %v5035 = vunpack.c.l.b16 %v1849
        %v5036 = vunpack.c.h.b16 %v1849
        %v5037 = vunpack.c.l.b16 %v1850
        %v5038 = vunpack.c.h.b16 %v1850
        %v5039 = vunpack.c.l.b16 %v1851
        %v5040 = vunpack.c.h.b16 %v1851
        %v5041 = vunpack.c.l.b16 %v1852
        %v5042 = vunpack.c.h.b16 %v1852
        %v5043 = vunpack.c.l.b16 %v1853
        %v5044 = vunpack.c.h.b16 %v1853
        %v5045 = vunpack.c.l.b16 %v1854
        %v5046 = vunpack.c.h.b16 %v1854
        %v5047 = vunpack.c.l.b16 %v1855
        %v5048 = vunpack.c.h.b16 %v1855
        %v5049 = vunpack.c.l.b16 %v1856
        %v5050 = vunpack.c.h.b16 %v1856
        %v5051 = vunpack.c.l.b16 %v1857
        %v5052 = vunpack.c.h.b16 %v1857
        %v5053 = vunpack.c.l.b16 %v1858
        %v5054 = vunpack.c.h.b16 %v1858
        %v5055 = vunpack.c.l.b16 %v1859
        %v5056 = vunpack.c.h.b16 %v1859
        %v5057 = vunpack.c.l.b16 %v1860
        %v5058 = vunpack.c.h.b16 %v1860
        %v5059 = vunpack.c.l.b16 %v1861
        %v5060 = vunpack.c.h.b16 %v1861
        %v5061 = vunpack.c.l.b16 %v1862
        %v5062 = vunpack.c.h.b16 %v1862
        %v5063 = vunpack.c.l.b16 %v1863
        %v5064 = vunpack.c.h.b16 %v1863
        %v5065 = vunpack.c.l.b16 %v1864
        %v5066 = vunpack.c.h.b16 %v1864
        %v5067 = vunpack.c.l.b16 %v1865
        %v5068 = vunpack.c.h.b16 %v1865
        %v5069 = vunpack.c.l.b16 %v1866
        %v5070 = vunpack.c.h.b16 %v1866
        %v5071 = vunpack.c.l.b16 %v1867
        %v5072 = vunpack.c.h.b16 %v1867
        %v5073 = vunpack.c.l.b16 %v1868
        %v5074 = vunpack.c.h.b16 %v1868
        %v5075 = vunpack.c.l.b16 %v1869
        %v5076 = vunpack.c.h.b16 %v1869
        %v5077 = vunpack.c.l.b16 %v1870
        %v5078 = vunpack.c.h.b16 %v1870
        %v5079 = vunpack.c.l.b16 %v1871
        %v5080 = vunpack.c.h.b16 %v1871
        %v5081 = vunpack.c.l.b16 %v1872
        %v5082 = vunpack.c.h.b16 %v1872
        %v5083 = vunpack.c.l.b16 %v1873
        %v5084 = vunpack.c.h.b16 %v1873
        %v5085 = vunpack.c.l.b16 %v1874
        %v5086 = vunpack.c.h.b16 %v1874
        %v5087 = vunpack.c.l.b16 %v1875
        %v5088 = vunpack.c.h.b16 %v1875
        %v5089 = vunpack.c.l.b16 %v1876
        %v5090 = vunpack.c.h.b16 %v1876
        %v5091 = vunpack.c.l.b16 %v1877
        %v5092 = vunpack.c.h.b16 %v1877
        %v5093 = vunpack.c.l.b16 %v1878
        %v5094 = vunpack.c.h.b16 %v1878
        %v5095 = vunpack.c.l.b16 %v1879
        %v5096 = vunpack.c.h.b16 %v1879
        %v5097 = vunpack.c.l.b16 %v1880
        %v5098 = vunpack.c.h.b16 %v1880
        %v5099 = vunpack.c.l.b16 %v1881
        %v5100 = vunpack.c.h.b16 %v1881
        %v5101 = vunpack.c.l.b16 %v1882
        %v5102 = vunpack.c.h.b16 %v1882
        %v5103 = vunpack.c.l.b16 %v1883
        %v5104 = vunpack.c.h.b16 %v1883
        %v5105 = vunpack.c.l.b16 %v1884
        %v5106 = vunpack.c.h.b16 %v1884
        %v5107 = vunpack.c.l.b16 %v1885
        %v5108 = vunpack.c.h.b16 %v1885
        %v5109 = vunpack.c.l.b16 %v1886
        %v5110 = vunpack.c.h.b16 %v1886
        %v5111 = vunpack.c.l.b16 %v1887
        %v5112 = vunpack.c.h.b16 %v1887
        %v5113 = vunpack.c.l.b16 %v1888
        %v5114 = vunpack.c.h.b16 %v1888
        %v5115 = vunpack.c.l.b16 %v1889
        %v5116 = vunpack.c.h.b16 %v1889
        %v5117 = vunpack.c.l.b16 %v1890
        %v5118 = vunpack.c.h.b16 %v1890
        %v5119 = vunpack.c.l.b16 %v1891
        %v5120 = vunpack.c.h.b16 %v1891
        %v5121 = vunpack.c.l.b16 %v1892
        %v5122 = vunpack.c.h.b16 %v1892
        %v5123 = vunpack.c.l.b16 %v1893
        %v5124 = vunpack.c.h.b16 %v1893
        %v5125 = vunpack.c.l.b16 %v1894
        %v5126 = vunpack.c.h.b16 %v1894
        %v5127 = vunpack.c.l.b16 %v1895
        %v5128 = vunpack.c.h.b16 %v1895
        %v5129 = vunpack.c.l.b16 %v1896
        %v5130 = vunpack.c.h.b16 %v1896
        %v5131 = vunpack.c.l.b16 %v1897
        %v5132 = vunpack.c.h.b16 %v1897
        %v5133 = vunpack.c.l.b16 %v1898
        %v5134 = vunpack.c.h.b16 %v1898
        %v5135 = vunpack.c.l.b16 %v1899
        %v5136 = vunpack.c.h.b16 %v1899
        %v5137 = vunpack.c.l.b16 %v1900
        %v5138 = vunpack.c.h.b16 %v1900
        %v5139 = vunpack.c.l.b16 %v1901
        %v5140 = vunpack.c.h.b16 %v1901
        %v5141 = vunpack.c.l.b16 %v1902
        %v5142 = vunpack.c.h.b16 %v1902
        %v5143 = vunpack.c.l.b16 %v1903
        %v5144 = vunpack.c.h.b16 %v1903
        %v5145 = vunpack.c.l.b16 %v1904
        %v5146 = vunpack.c.h.b16 %v1904
        %v5147 = vunpack.c.l.b16 %v1905
        %v5148 = vunpack.c.h.b16 %v1905
        %v5149 = vunpack.c.l.b16 %v1906
        %v5150 = vunpack.c.h.b16 %v1906
        %v5151 = vunpack.c.l.b16 %v1907
        %v5152 = vunpack.c.h.b16 %v1907
        %v5153 = vunpack.c.l.b16 %v1908
        %v5154 = vunpack.c.h.b16 %v1908
        %v5155 = vunpack.c.l.b16 %v1909
        %v5156 = vunpack.c.h.b16 %v1909
        %v5157 = vunpack.c.l.b16 %v1910
        %v5158 = vunpack.c.h.b16 %v1910
        %v5159 = vunpack.c.l.b16 %v1911
        %v5160 = vunpack.c.h.b16 %v1911
        %v5161 = vunpack.c.l.b16 %v1912
        %v5162 = vunpack.c.h.b16 %v1912
        %v5163 = vunpack.c.l.b16 %v1913
        %v5164 = vunpack.c.h.b16 %v1913
        %v5165 = vunpack.c.l.b16 %v1914
        %v5166 = vunpack.c.h.b16 %v1914
        %v5167 = vunpack.c.l.b16 %v1915
        %v5168 = vunpack.c.h.b16 %v1915
        %v5169 = vunpack.c.l.b16 %v1916
        %v5170 = vunpack.c.h.b16 %v1916
        %v5171 = vunpack.c.l.b16 %v1917
        %v5172 = vunpack.c.h.b16 %v1917
        %v5173 = vunpack.c.l.b16 %v1918
        %v5174 = vunpack.c.h.b16 %v1918
        %v5175 = vunpack.c.l.b16 %v1919
        %v5176 = vunpack.c.h.b16 %v1919
        %v5177 = vunpack.c.l.b16 %v1920
        %v5178 = vunpack.c.h.b16 %v1920
        %v5179 = vunpack.c.l.b16 %v1921
        %v5180 = vunpack.c.h.b16 %v1921
        %v5181 = vunpack.c.l.b16 %v1922
        %v5182 = vunpack.c.h.b16 %v1922
        %v5183 = vunpack.c.l.b16 %v1923
        %v5184 = vunpack.c.h.b16 %v1923
        %v5185 = vunpack.c.l.b16 %v1924
        %v5186 = vunpack.c.h.b16 %v1924
        %v5187 = vunpack.c.l.b16 %v1925
        %v5188 = vunpack.c.h.b16 %v1925
        %v5189 = vunpack.c.l.b16 %v1926
        %v5190 = vunpack.c.h.b16 %v1926
        %v5191 = vunpack.c.l.b16 %v1927
        %v5192 = vunpack.c.h.b16 %v1927
        %v5193 = vunpack.c.l.b16 %v1928
        %v5194 = vunpack.c.h.b16 %v1928
        %v5195 = vunpack.c.l.b16 %v1929
        %v5196 = vunpack.c.h.b16 %v1929
        %v5197 = vunpack.c.l.b16 %v1930
        %v5198 = vunpack.c.h.b16 %v1930
        %v5199 = vunpack.c.l.b16 %v1931
        %v5200 = vunpack.c.h.b16 %v1931
        %v5201 = vunpack.c.l.b16 %v1932
        %v5202 = vunpack.c.h.b16 %v1932
        %v5203 = vunpack.c.l.b16 %v1933
        %v5204 = vunpack.c.h.b16 %v1933
        %v5205 = vunpack.c.l.b16 %v1934
        %v5206 = vunpack.c.h.b16 %v1934
        %v5207 = vunpack.c.l.b16 %v1935
        %v5208 = vunpack.c.h.b16 %v1935
        %v5209 = vunpack.c.l.b16 %v1936
        %v5210 = vunpack.c.h.b16 %v1936
        %v5211 = vunpack.c.l.b16 %v1937
        %v5212 = vunpack.c.h.b16 %v1937
        %v5213 = vunpack.c.l.b16 %v1938
        %v5214 = vunpack.c.h.b16 %v1938
        %v5215 = vunpack.c.l.b16 %v1939
        %v5216 = vunpack.c.h.b16 %v1939
        %v5217 = vunpack.c.l.b16 %v1940
        %v5218 = vunpack.c.h.b16 %v1940
        %v5219 = vunpack.c.l.b16 %v1941
        %v5220 = vunpack.c.h.b16 %v1941
        %v5221 = vunpack.c.l.b16 %v1942
        %v5222 = vunpack.c.h.b16 %v1942
        %v5223 = vunpack.c.l.b16 %v1943
        %v5224 = vunpack.c.h.b16 %v1943
        %v5225 = vunpack.c.l.b16 %v1944
        %v5226 = vunpack.c.h.b16 %v1944
        %v5227 = vunpack.c.l.b16 %v1945
        %v5228 = vunpack.c.h.b16 %v1945
        %v5229 = vunpack.c.l.b16 %v1946
        %v5230 = vunpack.c.h.b16 %v1946
        %v5231 = vunpack.c.l.b16 %v1947
        %v5232 = vunpack.c.h.b16 %v1947
        %v5233 = vunpack.c.l.b16 %v1948
        %v5234 = vunpack.c.h.b16 %v1948
        %v5235 = vunpack.c.l.b16 %v1949
        %v5236 = vunpack.c.h.b16 %v1949
        %v5237 = vunpack.c.l.b16 %v1950
        %v5238 = vunpack.c.h.b16 %v1950
        %v5239 = vunpack.c.l.b16 %v1951
        %v5240 = vunpack.c.h.b16 %v1951
        %v5241 = vunpack.c.l.b16 %v1952
        %v5242 = vunpack.c.h.b16 %v1952
        %v5243 = vunpack.c.l.b16 %v1953
        %v5244 = vunpack.c.h.b16 %v1953
        %v5245 = vunpack.c.l.b16 %v1954
        %v5246 = vunpack.c.h.b16 %v1954
        %v5247 = vunpack.c.l.b16 %v1955
        %v5248 = vunpack.c.h.b16 %v1955
        %v5249 = vunpack.c.l.b16 %v1956
        %v5250 = vunpack.c.h.b16 %v1956
        %v5251 = vunpack.c.l.b16 %v1957
        %v5252 = vunpack.c.h.b16 %v1957
        %v5253 = vunpack.c.l.b16 %v1958
        %v5254 = vunpack.c.h.b16 %v1958
        %v5255 = vunpack.c.l.b16 %v1959
        %v5256 = vunpack.c.h.b16 %v1959
        %v5257 = vunpack.c.l.b16 %v1960
        %v5258 = vunpack.c.h.b16 %v1960
        %v5259 = vunpack.c.l.b16 %v1961
        %v5260 = vunpack.c.h.b16 %v1961
        %v5261 = vunpack.c.l.b16 %v1962
        %v5262 = vunpack.c.h.b16 %v1962
        %v5263 = vunpack.c.l.b16 %v1963
        %v5264 = vunpack.c.h.b16 %v1963
        %v5265 = vunpack.c.l.b16 %v1964
        %v5266 = vunpack.c.h.b16 %v1964
        %v5267 = vunpack.c.l.b16 %v1965
        %v5268 = vunpack.c.h.b16 %v1965
        %v5269 = vunpack.c.l.b16 %v1966
        %v5270 = vunpack.c.h.b16 %v1966
        %v5271 = vunpack.c.l.b16 %v1967
        %v5272 = vunpack.c.h.b16 %v1967
        %v5273 = vunpack.c.l.b16 %v1968
        %v5274 = vunpack.c.h.b16 %v1968
        %v5275 = vunpack.c.l.b16 %v1969
        %v5276 = vunpack.c.h.b16 %v1969
        %v5277 = vunpack.c.l.b16 %v1970
        %v5278 = vunpack.c.h.b16 %v1970
        %v5279 = vunpack.c.l.b16 %v1971
        %v5280 = vunpack.c.h.b16 %v1971
        %v5281 = vunpack.c.l.b16 %v1972
        %v5282 = vunpack.c.h.b16 %v1972
        %v5283 = vunpack.c.l.b16 %v1973
        %v5284 = vunpack.c.h.b16 %v1973
        %v5285 = vunpack.c.l.b16 %v1974
        %v5286 = vunpack.c.h.b16 %v1974
        %v5287 = vunpack.c.l.b16 %v1975
        %v5288 = vunpack.c.h.b16 %v1975
        %v5289 = vunpack.c.l.b16 %v1976
        %v5290 = vunpack.c.h.b16 %v1976
        %v5291 = vunpack.c.l.b16 %v1977
        %v5292 = vunpack.c.h.b16 %v1977
        %v5293 = vunpack.c.l.b16 %v1978
        %v5294 = vunpack.c.h.b16 %v1978
        %v5295 = vunpack.c.l.b16 %v1979
        %v5296 = vunpack.c.h.b16 %v1979
        %v5297 = vunpack.c.l.b16 %v1980
        %v5298 = vunpack.c.h.b16 %v1980
        %v5299 = vunpack.c.l.b16 %v1981
        %v5300 = vunpack.c.h.b16 %v1981
        %v5301 = vunpack.c.l.b16 %v1982
        %v5302 = vunpack.c.h.b16 %v1982
        %v5303 = vunpack.c.l.b16 %v1983
        %v5304 = vunpack.c.h.b16 %v1983
        %v5305 = vunpack.c.l.b16 %v1984
        %v5306 = vunpack.c.h.b16 %v1984
        %v5307 = vunpack.c.l.b16 %v1985
        %v5308 = vunpack.c.h.b16 %v1985
        %v5309 = vunpack.c.l.b16 %v1986
        %v5310 = vunpack.c.h.b16 %v1986
        %v5311 = vunpack.c.l.b16 %v1987
        %v5312 = vunpack.c.h.b16 %v1987
        %v5313 = vunpack.c.l.b16 %v1988
        %v5314 = vunpack.c.h.b16 %v1988
        %v5315 = vunpack.c.l.b16 %v1989
        %v5316 = vunpack.c.h.b16 %v1989
        %v5317 = vunpack.c.l.b16 %v1990
        %v5318 = vunpack.c.h.b16 %v1990
        %v5319 = vunpack.c.l.b16 %v1991
        %v5320 = vunpack.c.h.b16 %v1991
        %v5321 = vunpack.c.l.b16 %v1992
        %v5322 = vunpack.c.h.b16 %v1992
        %v5323 = vunpack.c.l.b16 %v1993
        %v5324 = vunpack.c.h.b16 %v1993
        %v5325 = vunpack.c.l.b16 %v1994
        %v5326 = vunpack.c.h.b16 %v1994
        %v5327 = vunpack.c.l.b16 %v1995
        %v5328 = vunpack.c.h.b16 %v1995
        %v5329 = vunpack.c.l.b16 %v1996
        %v5330 = vunpack.c.h.b16 %v1996
        %v5331 = vunpack.c.l.b16 %v1997
        %v5332 = vunpack.c.h.b16 %v1997
        %v5333 = vunpack.c.l.b16 %v1998
        %v5334 = vunpack.c.h.b16 %v1998
        %v5335 = vunpack.c.l.b16 %v1999
        %v5336 = vunpack.c.h.b16 %v1999
        %v5337 = vunpack.c.l.b16 %v2000
        %v5338 = vunpack.c.h.b16 %v2000
        %v5339 = vunpack.c.l.b16 %v2001
        %v5340 = vunpack.c.h.b16 %v2001
        %v5341 = vunpack.c.l.b16 %v2002
        %v5342 = vunpack.c.h.b16 %v2002
        %v5343 = vunpack.c.l.b16 %v2003
        %v5344 = vunpack.c.h.b16 %v2003
        %v5345 = vunpack.c.l.b16 %v2004
        %v5346 = vunpack.c.h.b16 %v2004
        %v5347 = vunpack.c.l.b16 %v2005
        %v5348 = vunpack.c.h.b16 %v2005
        %v5349 = vunpack.c.l.b16 %v2006
        %v5350 = vunpack.c.h.b16 %v2006
        %v5351 = vunpack.c.l.b16 %v2007
        %v5352 = vunpack.c.h.b16 %v2007
        %v5353 = vunpack.c.l.b16 %v2008
        %v5354 = vunpack.c.h.b16 %v2008
        %v5355 = vunpack.c.l.b16 %v2009
        %v5356 = vunpack.c.h.b16 %v2009
        %v5357 = vunpack.c.l.b16 %v2010
        %v5358 = vunpack.c.h.b16 %v2010
        %v5359 = vunpack.c.l.b16 %v2011
        %v5360 = vunpack.c.h.b16 %v2011
        %v5361 = vunpack.c.l.b16 %v2012
        %v5362 = vunpack.c.h.b16 %v2012
        %v5363 = vunpack.c.l.b16 %v2013
        %v5364 = vunpack.c.h.b16 %v2013
        %v5365 = vunpack.c.l.b16 %v2014
        %v5366 = vunpack.c.h.b16 %v2014
        %v5367 = vunpack.c.l.b16 %v2015
        %v5368 = vunpack.c.h.b16 %v2015
        %v5369 = vunpack.c.l.b16 %v2016
        %v5370 = vunpack.c.h.b16 %v2016
        %v5371 = vunpack.c.l.b16 %v2017
        %v5372 = vunpack.c.h.b16 %v2017
        %v5373 = vunpack.c.l.b16 %v2018
        %v5374 = vunpack.c.h.b16 %v2018
        %v5375 = vunpack.c.l.b16 %v2019
        %v5376 = vunpack.c.h.b16 %v2019
        %v5377 = vunpack.c.l.b16 %v2020
        %v5378 = vunpack.c.h.b16 %v2020
        %v5379 = vunpack.c.l.b16 %v2021
        %v5380 = vunpack.c.h.b16 %v2021
        %v5381 = vunpack.c.l.b16 %v2022
        %v5382 = vunpack.c.h.b16 %v2022
        %v5383 = vunpack.c.l.b16 %v2023
        %v5384 = vunpack.c.h.b16 %v2023
        %v5385 = vunpack.c.l.b16 %v2024
        %v5386 = vunpack.c.h.b16 %v2024
        %v5387 = vunpack.c.l.b16 %v2025
        %v5388 = vunpack.c.h.b16 %v2025
        %v5389 = vunpack.c.l.b16 %v2026
        %v5390 = vunpack.c.h.b16 %v2026
        %v5391 = vunpack.c.l.b16 %v2027
        %v5392 = vunpack.c.h.b16 %v2027
        %v5393 = vunpack.c.l.b16 %v2028
        %v5394 = vunpack.c.h.b16 %v2028
        %v5395 = vunpack.c.l.b16 %v2029
        %v5396 = vunpack.c.h.b16 %v2029
        %v5397 = vunpack.c.l.b16 %v2030
        %v5398 = vunpack.c.h.b16 %v2030
        %v5399 = vunpack.c.l.b16 %v2031
        %v5400 = vunpack.c.h.b16 %v2031
        %v5401 = vunpack.c.l.b16 %v2032
        %v5402 = vunpack.c.h.b16 %v2032
        %v5403 = vunpack.c.l.b16 %v2033
        %v5404 = vunpack.c.h.b16 %v2033
        %v5405 = vunpack.c.l.b16 %v2034
        %v5406 = vunpack.c.h.b16 %v2034
        %v5407 = vunpack.c.l.b16 %v2035
        %v5408 = vunpack.c.h.b16 %v2035
        %v5409 = vunpack.c.l.b16 %v2036
        %v5410 = vunpack.c.h.b16 %v2036
        %v5411 = vunpack.c.l.b16 %v2037
        %v5412 = vunpack.c.h.b16 %v2037
        %v5413 = vunpack.c.l.b16 %v2038
        %v5414 = vunpack.c.h.b16 %v2038
        %v5415 = vunpack.c.l.b16 %v2039
        %v5416 = vunpack.c.h.b16 %v2039
        %v5417 = vunpack.c.l.b16 %v2040
        %v5418 = vunpack.c.h.b16 %v2040
        %v5419 = vunpack.c.l.b16 %v2041
        %v5420 = vunpack.c.h.b16 %v2041
        %v5421 = vunpack.c.l.b16 %v2042
        %v5422 = vunpack.c.h.b16 %v2042
        %v5423 = vunpack.c.l.b16 %v2043
        %v5424 = vunpack.c.h.b16 %v2043
        %v5425 = vunpack.c.l.b16 %v2044
        %v5426 = vunpack.c.h.b16 %v2044
        %v5427 = vunpack.c.l.b16 %v2045
        %v5428 = vunpack.c.h.b16 %v2045
        %v5429 = vunpack.c.l.b16 %v2046
        %v5430 = vunpack.c.h.b16 %v2046
        %v5431 = vunpack.c.l.b16 %v2047
        %v5432 = vunpack.c.h.b16 %v2047
        %v5433 = vunpack.c.l.b16 %v2048
        %v5434 = vunpack.c.h.b16 %v2048
        %v5435 = vunpack.c.l.b16 %v2049
        %v5436 = vunpack.c.h.b16 %v2049
        %v5437 = vunpack.c.l.b16 %v2050
        %v5438 = vunpack.c.h.b16 %v2050
        %v5439 = vunpack.c.l.b16 %v2051
        %v5440 = vunpack.c.h.b16 %v2051
        %v5441 = vunpack.c.l.b16 %v2052
        %v5442 = vunpack.c.h.b16 %v2052
        %v5443 = vunpack.c.l.b16 %v2053
        %v5444 = vunpack.c.h.b16 %v2053
        %v5445 = vunpack.c.l.b16 %v2054
        %v5446 = vunpack.c.h.b16 %v2054
        %v5447 = vunpack.c.l.b16 %v2055
        %v5448 = vunpack.c.h.b16 %v2055
        %v5449 = vunpack.c.l.b16 %v2056
        %v5450 = vunpack.c.h.b16 %v2056
        %v5451 = vunpack.c.l.b16 %v2057
        %v5452 = vunpack.c.h.b16 %v2057
        %v5453 = vunpack.c.l.b16 %v2058
        %v5454 = vunpack.c.h.b16 %v2058
        %v5455 = vunpack.c.l.b16 %v2059
        %v5456 = vunpack.c.h.b16 %v2059
        %v5457 = vunpack.c.l.b16 %v2060
        %v5458 = vunpack.c.h.b16 %v2060
        %v5459 = vunpack.c.l.b16 %v2061
        %v5460 = vunpack.c.h.b16 %v2061
        %v5461 = vunpack.c.l.b16 %v2062
        %v5462 = vunpack.c.h.b16 %v2062
        %v5463 = vunpack.c.l.b16 %v2063
        %v5464 = vunpack.c.h.b16 %v2063
        %v5465 = vunpack.c.l.b16 %v2064
        %v5466 = vunpack.c.h.b16 %v2064
        %v5467 = vunpack.c.l.b16 %v2065
        %v5468 = vunpack.c.h.b16 %v2065
        %v5469 = vunpack.c.l.b16 %v2066
        %v5470 = vunpack.c.h.b16 %v2066
        %v5471 = vunpack.c.l.b16 %v2067
        %v5472 = vunpack.c.h.b16 %v2067
        %v5473 = vunpack.c.l.b16 %v2068
        %v5474 = vunpack.c.h.b16 %v2068
        %v5475 = vunpack.c.l.b16 %v2069
        %v5476 = vunpack.c.h.b16 %v2069
        %v5477 = vunpack.c.l.b16 %v2070
        %v5478 = vunpack.c.h.b16 %v2070
        %v5479 = vunpack.c.l.b16 %v2071
        %v5480 = vunpack.c.h.b16 %v2071
        %v5481 = vunpack.c.l.b16 %v2072
        %v5482 = vunpack.c.h.b16 %v2072
        %v5483 = vunpack.c.l.b16 %v2073
        %v5484 = vunpack.c.h.b16 %v2073
        %v5485 = vunpack.c.l.b16 %v2074
        %v5486 = vunpack.c.h.b16 %v2074
        %v5487 = vunpack.c.l.b16 %v2075
        %v5488 = vunpack.c.h.b16 %v2075
        %v5489 = vunpack.c.l.b16 %v2076
        %v5490 = vunpack.c.h.b16 %v2076
        %v5491 = vunpack.c.l.b16 %v2077
        %v5492 = vunpack.c.h.b16 %v2077
        %v5493 = vunpack.c.l.b16 %v2078
        %v5494 = vunpack.c.h.b16 %v2078
        %v5495 = vunpack.c.l.b16 %v2079
        %v5496 = vunpack.c.h.b16 %v2079
        %v5497 = vunpack.c.l.b16 %v2080
        %v5498 = vunpack.c.h.b16 %v2080
        %v5499 = vunpack.c.l.b16 %v2081
        %v5500 = vunpack.c.h.b16 %v2081
        %v5501 = vunpack.c.l.b16 %v2082
        %v5502 = vunpack.c.h.b16 %v2082
        %v5503 = vunpack.c.l.b16 %v2083
        %v5504 = vunpack.c.h.b16 %v2083
        %v5505 = vunpack.c.l.b16 %v2084
        %v5506 = vunpack.c.h.b16 %v2084
        %v5507 = vunpack.c.l.b16 %v2085
        %v5508 = vunpack.c.h.b16 %v2085
        %v5509 = vunpack.c.l.b16 %v2086
        %v5510 = vunpack.c.h.b16 %v2086
        %v5511 = vunpack.c.l.b16 %v2087
        %v5512 = vunpack.c.h.b16 %v2087
        %v5513 = vunpack.c.l.b16 %v2088
        %v5514 = vunpack.c.h.b16 %v2088
        %v5515 = vunpack.c.l.b16 %v2089
        %v5516 = vunpack.c.h.b16 %v2089
        %v5517 = vunpack.c.l.b16 %v2090
        %v5518 = vunpack.c.h.b16 %v2090
        %v5519 = vunpack.c.l.b16 %v2091
        %v5520 = vunpack.c.h.b16 %v2091
        %v5521 = vunpack.c.l.b16 %v2092
        %v5522 = vunpack.c.h.b16 %v2092
        %v5523 = vunpack.c.l.b16 %v2093
        %v5524 = vunpack.c.h.b16 %v2093
        %v5525 = vunpack.c.l.b16 %v2094
        %v5526 = vunpack.c.h.b16 %v2094
        %v5527 = vunpack.c.l.b16 %v2095
        %v5528 = vunpack.c.h.b16 %v2095
        %v5529 = vunpack.c.l.b16 %v2096
        %v5530 = vunpack.c.h.b16 %v2096
        %v5531 = vunpack.c.l.b16 %v2097
        %v5532 = vunpack.c.h.b16 %v2097
        %v5533 = vunpack.c.l.b16 %v2098
        %v5534 = vunpack.c.h.b16 %v2098
        %v5535 = vunpack.c.l.b16 %v2099
        %v5536 = vunpack.c.h.b16 %v2099
        %v5537 = vunpack.c.l.b16 %v2100
        %v5538 = vunpack.c.h.b16 %v2100
        %v5539 = vunpack.c.l.b16 %v2101
        %v5540 = vunpack.c.h.b16 %v2101
        %v5541 = vunpack.c.l.b16 %v2102
        %v5542 = vunpack.c.h.b16 %v2102
        %v5543 = vunpack.c.l.b16 %v2103
        %v5544 = vunpack.c.h.b16 %v2103
        %v5545 = vunpack.c.l.b16 %v2104
        %v5546 = vunpack.c.h.b16 %v2104
        %v5547 = vunpack.c.l.b16 %v2105
        %v5548 = vunpack.c.h.b16 %v2105
        %v5549 = vunpack.c.l.b16 %v2106
        %v5550 = vunpack.c.h.b16 %v2106
        %v5551 = vunpack.c.l.b16 %v2107
        %v5552 = vunpack.c.h.b16 %v2107
        %v5553 = vunpack.c.l.b16 %v2108
        %v5554 = vunpack.c.h.b16 %v2108
        %v5555 = vunpack.c.l.b16 %v2109
        %v5556 = vunpack.c.h.b16 %v2109
        %v5557 = vunpack.c.l.b16 %v2110
        %v5558 = vunpack.c.h.b16 %v2110
        %v5559 = vunpack.c.l.b16 %v2111
        %v5560 = vunpack.c.h.b16 %v2111
        %v5561 = vunpack.c.l.b16 %v2112
        %v5562 = vunpack.c.h.b16 %v2112
        %v5563 = vunpack.c.l.b16 %v2113
        %v5564 = vunpack.c.h.b16 %v2113
        %v5565 = vunpack.c.l.b16 %v2114
        %v5566 = vunpack.c.h.b16 %v2114
        %v5567 = vunpack.c.l.b16 %v2115
        %v5568 = vunpack.c.h.b16 %v2115
        %v5569 = vunpack.c.l.b16 %v2116
        %v5570 = vunpack.c.h.b16 %v2116
        %v5571 = vunpack.c.l.b16 %v2117
        %v5572 = vunpack.c.h.b16 %v2117
        %v5573 = vunpack.c.l.b16 %v2118
        %v5574 = vunpack.c.h.b16 %v2118
        %v5575 = vpack.c.b16 %v3283, %v3271
        %v5576 = vpack.c.b16 %v3284, %v3272
        %v5577 = vpack.c.b16 %v3285, %v3273
        %v5578 = vpack.c.b16 %v3286, %v3274
        %v5579 = vpack.c.b16 %v3287, %v3275
        %v5580 = vpack.c.b16 %v3288, %v3276
        %v5581 = vpack.c.b16 %v3289, %v3277
        %v5582 = vpack.c.b16 %v3290, %v3278
        %v5583 = vpack.c.b16 %v3291, %v3279
        %v5584 = vpack.c.b16 %v3292, %v3280
        %v5585 = vpack.c.b16 %v3293, %v3281
        %v5586 = vpack.c.b16 %v3294, %v3282
        %v5587 = vpack.c.b16 %v3307, %v3295
        %v5588 = vpack.c.b16 %v3308, %v3296
        %v5589 = vpack.c.b16 %v3309, %v3297
        %v5590 = vpack.c.b16 %v3310, %v3298
        %v5591 = vpack.c.b16 %v3311, %v3299
        %v5592 = vpack.c.b16 %v3312, %v3300
        %v5593 = vpack.c.b16 %v3313, %v3301
        %v5594 = vpack.c.b16 %v3314, %v3302
        %v5595 = vpack.c.b16 %v3315, %v3303
        %v5596 = vpack.c.b16 %v3316, %v3304
        %v5597 = vpack.c.b16 %v3317, %v3305
        %v5598 = vpack.c.b16 %v3318, %v3306
        %v5599 = vpack.c.b16 %v3331, %v3319
        %v5600 = vpack.c.b16 %v3332, %v3320
        %v5601 = vpack.c.b16 %v3333, %v3321
        %v5602 = vpack.c.b16 %v3334, %v3322
        %v5603 = vpack.c.b16 %v3335, %v3323
        %v5604 = vpack.c.b16 %v3336, %v3324
        %v5605 = vpack.c.b16 %v3337, %v3325
        %v5606 = vpack.c.b16 %v3338, %v3326
        %v5607 = vpack.c.b16 %v3339, %v3327
        %v5608 = vpack.c.b16 %v3340, %v3328
        %v5609 = vpack.c.b16 %v3341, %v3329
        %v5610 = vpack.c.b16 %v3342, %v3330
        %v5611 = vpack.c.b16 %v3355, %v3343
        %v5612 = vpack.c.b16 %v3356, %v3344
        %v5613 = vpack.c.b16 %v3357, %v3345
        %v5614 = vpack.c.b16 %v3358, %v3346
        %v5615 = vpack.c.b16 %v3359, %v3347
        %v5616 = vpack.c.b16 %v3360, %v3348
        %v5617 = vpack.c.b16 %v3361, %v3349
        %v5618 = vpack.c.b16 %v3362, %v3350
        %v5619 = vpack.c.b16 %v3363, %v3351
        %v5620 = vpack.c.b16 %v3364, %v3352
        %v5621 = vpack.c.b16 %v3365, %v3353
        %v5622 = vpack.c.b16 %v3366, %v3354
        %v5623 = vpack.c.b16 %v3379, %v3367
        %v5624 = vpack.c.b16 %v3380, %v3368
        %v5625 = vpack.c.b16 %v3381, %v3369
        %v5626 = vpack.c.b16 %v3382, %v3370
        %v5627 = vpack.c.b16 %v3383, %v3371
        %v5628 = vpack.c.b16 %v3384, %v3372
        %v5629 = vpack.c.b16 %v3385, %v3373
        %v5630 = vpack.c.b16 %v3386, %v3374
        %v5631 = vpack.c.b16 %v3387, %v3375
        %v5632 = vpack.c.b16 %v3388, %v3376
        %v5633 = vpack.c.b16 %v3389, %v3377
        %v5634 = vpack.c.b16 %v3390, %v3378
        %v5635 = vpack.c.b16 %v3403, %v3391
        %v5636 = vpack.c.b16 %v3404, %v3392
        %v5637 = vpack.c.b16 %v3405, %v3393
        %v5638 = vpack.c.b16 %v3406, %v3394
        %v5639 = vpack.c.b16 %v3407, %v3395
        %v5640 = vpack.c.b16 %v3408, %v3396
        %v5641 = vpack.c.b16 %v3409, %v3397
        %v5642 = vpack.c.b16 %v3410, %v3398
        %v5643 = vpack.c.b16 %v3411, %v3399
        %v5644 = vpack.c.b16 %v3412, %v3400
        %v5645 = vpack.c.b16 %v3413, %v3401
        %v5646 = vpack.c.b16 %v3414, %v3402
        %v5647 = vpack.c.b16 %v3427, %v3415
        %v5648 = vpack.c.b16 %v3428, %v3416
        %v5649 = vpack.c.b16 %v3429, %v3417
        %v5650 = vpack.c.b16 %v3430, %v3418
        %v5651 = vpack.c.b16 %v3431, %v3419
        %v5652 = vpack.c.b16 %v3432, %v3420
        %v5653 = vpack.c.b16 %v3433, %v3421
        %v5654 = vpack.c.b16 %v3434, %v3422
        %v5655 = vpack.c.b16 %v3435, %v3423
        %v5656 = vpack.c.b16 %v3436, %v3424
        %v5657 = vpack.c.b16 %v3437, %v3425
        %v5658 = vpack.c.b16 %v3438, %v3426
        %v5659 = vpack.c.b16 %v3451, %v3439
        %v5660 = vpack.c.b16 %v3452, %v3440
        %v5661 = vpack.c.b16 %v3453, %v3441
        %v5662 = vpack.c.b16 %v3454, %v3442
        %v5663 = vpack.c.b16 %v3455, %v3443
        %v5664 = vpack.c.b16 %v3456, %v3444
        %v5665 = vpack.c.b16 %v3457, %v3445
        %v5666 = vpack.c.b16 %v3458, %v3446
        %v5667 = vpack.c.b16 %v3459, %v3447
        %v5668 = vpack.c.b16 %v3460, %v3448
        %v5669 = vpack.c.b16 %v3461, %v3449
        %v5670 = vpack.c.b16 %v3462, %v3450
        %v5671 = vpack.c.b16 %v3475, %v3463
        %v5672 = vpack.c.b16 %v3476, %v3464
        %v5673 = vpack.c.b16 %v3477, %v3465
        %v5674 = vpack.c.b16 %v3478, %v3466
        %v5675 = vpack.c.b16 %v3479, %v3467
        %v5676 = vpack.c.b16 %v3480, %v3468
        %v5677 = vpack.c.b16 %v3481, %v3469
        %v5678 = vpack.c.b16 %v3482, %v3470
        %v5679 = vpack.c.b16 %v3483, %v3471
        %v5680 = vpack.c.b16 %v3484, %v3472
        %v5681 = vpack.c.b16 %v3485, %v3473
        %v5682 = vpack.c.b16 %v3486, %v3474
        %v5683 = vpack.c.b16 %v3499, %v3487
        %v5684 = vpack.c.b16 %v3500, %v3488
        %v5685 = vpack.c.b16 %v3501, %v3489
        %v5686 = vpack.c.b16 %v3502, %v3490
        %v5687 = vpack.c.b16 %v3503, %v3491
        %v5688 = vpack.c.b16 %v3504, %v3492
        %v5689 = vpack.c.b16 %v3505, %v3493
        %v5690 = vpack.c.b16 %v3506, %v3494
        %v5691 = vpack.c.b16 %v3507, %v3495
        %v5692 = vpack.c.b16 %v3508, %v3496
        %v5693 = vpack.c.b16 %v3509, %v3497
        %v5694 = vpack.c.b16 %v3510, %v3498
        %v5695 = vpack.c.b16 %v3523, %v3511
        %v5696 = vpack.c.b16 %v3524, %v3512
        %v5697 = vpack.c.b16 %v3525, %v3513
        %v5698 = vpack.c.b16 %v3526, %v3514
        %v5699 = vpack.c.b16 %v3527, %v3515
        %v5700 = vpack.c.b16 %v3528, %v3516
        %v5701 = vpack.c.b16 %v3529, %v3517
        %v5702 = vpack.c.b16 %v3530, %v3518
        %v5703 = vpack.c.b16 %v3531, %v3519
        %v5704 = vpack.c.b16 %v3532, %v3520
        %v5705 = vpack.c.b16 %v3533, %v3521
        %v5706 = vpack.c.b16 %v3534, %v3522
        %v5707 = vpack.c.b16 %v3547, %v3535
        %v5708 = vpack.c.b16 %v3548, %v3536
        %v5709 = vpack.c.b16 %v3549, %v3537
        %v5710 = vpack.c.b16 %v3550, %v3538
        %v5711 = vpack.c.b16 %v3551, %v3539
        %v5712 = vpack.c.b16 %v3552, %v3540
        %v5713 = vpack.c.b16 %v3553, %v3541
        %v5714 = vpack.c.b16 %v3554, %v3542
        %v5715 = vpack.c.b16 %v3555, %v3543
        %v5716 = vpack.c.b16 %v3556, %v3544
        %v5717 = vpack.c.b16 %v3557, %v3545
        %v5718 = vpack.c.b16 %v3558, %v3546
        %v5719 = vpack.c.b16 %v3571, %v3559
        %v5720 = vpack.c.b16 %v3572, %v3560
        %v5721 = vpack.c.b16 %v3573, %v3561
        %v5722 = vpack.c.b16 %v3574, %v3562
        %v5723 = vpack.c.b16 %v3575, %v3563
        %v5724 = vpack.c.b16 %v3576, %v3564
        %v5725 = vpack.c.b16 %v3577, %v3565
        %v5726 = vpack.c.b16 %v3578, %v3566
        %v5727 = vpack.c.b16 %v3579, %v3567
        %v5728 = vpack.c.b16 %v3580, %v3568
        %v5729 = vpack.c.b16 %v3581, %v3569
        %v5730 = vpack.c.b16 %v3582, %v3570
        %v5731 = vpack.c.b16 %v3595, %v3583
        %v5732 = vpack.c.b16 %v3596, %v3584
        %v5733 = vpack.c.b16 %v3597, %v3585
        %v5734 = vpack.c.b16 %v3598, %v3586
        %v5735 = vpack.c.b16 %v3599, %v3587
        %v5736 = vpack.c.b16 %v3600, %v3588
        %v5737 = vpack.c.b16 %v3601, %v3589
        %v5738 = vpack.c.b16 %v3602, %v3590
        %v5739 = vpack.c.b16 %v3603, %v3591
        %v5740 = vpack.c.b16 %v3604, %v3592
        %v5741 = vpack.c.b16 %v3605, %v3593
        %v5742 = vpack.c.b16 %v3606, %v3594
        %v5743 = vpack.c.b16 %v3619, %v3607
        %v5744 = vpack.c.b16 %v3620, %v3608
        %v5745 = vpack.c.b16 %v3621, %v3609
        %v5746 = vpack.c.b16 %v3622, %v3610
        %v5747 = vpack.c.b16 %v3623, %v3611
        %v5748 = vpack.c.b16 %v3624, %v3612
        %v5749 = vpack.c.b16 %v3625, %v3613
        %v5750 = vpack.c.b16 %v3626, %v3614
        %v5751 = vpack.c.b16 %v3627, %v3615
        %v5752 = vpack.c.b16 %v3628, %v3616
        %v5753 = vpack.c.b16 %v3629, %v3617
        %v5754 = vpack.c.b16 %v3630, %v3618
        %v5755 = vpack.c.b16 %v3643, %v3631
        %v5756 = vpack.c.b16 %v3644, %v3632
        %v5757 = vpack.c.b16 %v3645, %v3633
        %v5758 = vpack.c.b16 %v3646, %v3634
        %v5759 = vpack.c.b16 %v3647, %v3635
        %v5760 = vpack.c.b16 %v3648, %v3636
        %v5761 = vpack.c.b16 %v3649, %v3637
        %v5762 = vpack.c.b16 %v3650, %v3638
        %v5763 = vpack.c.b16 %v3651, %v3639
        %v5764 = vpack.c.b16 %v3652, %v3640
        %v5765 = vpack.c.b16 %v3653, %v3641
        %v5766 = vpack.c.b16 %v3654, %v3642
        %v5767 = vpack.c.b16 %v3667, %v3655
        %v5768 = vpack.c.b16 %v3668, %v3656
        %v5769 = vpack.c.b16 %v3669, %v3657
        %v5770 = vpack.c.b16 %v3670, %v3658
        %v5771 = vpack.c.b16 %v3671, %v3659
        %v5772 = vpack.c.b16 %v3672, %v3660
        %v5773 = vpack.c.b16 %v3673, %v3661
        %v5774 = vpack.c.b16 %v3674, %v3662
        %v5775 = vpack.c.b16 %v3675, %v3663
        %v5776 = vpack.c.b16 %v3676, %v3664
        %v5777 = vpack.c.b16 %v3677, %v3665
        %v5778 = vpack.c.b16 %v3678, %v3666
        %v5779 = vpack.c.b16 %v3691, %v3679
        %v5780 = vpack.c.b16 %v3692, %v3680
        %v5781 = vpack.c.b16 %v3693, %v3681
        %v5782 = vpack.c.b16 %v3694, %v3682
        %v5783 = vpack.c.b16 %v3695, %v3683
        %v5784 = vpack.c.b16 %v3696, %v3684
        %v5785 = vpack.c.b16 %v3697, %v3685
        %v5786 = vpack.c.b16 %v3698, %v3686
        %v5787 = vpack.c.b16 %v3699, %v3687
        %v5788 = vpack.c.b16 %v3700, %v3688
        %v5789 = vpack.c.b16 %v3701, %v3689
        %v5790 = vpack.c.b16 %v3702, %v3690
        %v5791 = vpack.c.b16 %v3715, %v3703
        %v5792 = vpack.c.b16 %v3716, %v3704
        %v5793 = vpack.c.b16 %v3717, %v3705
        %v5794 = vpack.c.b16 %v3718, %v3706
        %v5795 = vpack.c.b16 %v3719, %v3707
        %v5796 = vpack.c.b16 %v3720, %v3708
        %v5797 = vpack.c.b16 %v3721, %v3709
        %v5798 = vpack.c.b16 %v3722, %v3710
        %v5799 = vpack.c.b16 %v3723, %v3711
        %v5800 = vpack.c.b16 %v3724, %v3712
        %v5801 = vpack.c.b16 %v3725, %v3713
        %v5802 = vpack.c.b16 %v3726, %v3714
        %v5803 = vpack.c.b16 %v3739, %v3727
        %v5804 = vpack.c.b16 %v3740, %v3728
        %v5805 = vpack.c.b16 %v3741, %v3729
        %v5806 = vpack.c.b16 %v3742, %v3730
        %v5807 = vpack.c.b16 %v3743, %v3731
        %v5808 = vpack.c.b16 %v3744, %v3732
        %v5809 = vpack.c.b16 %v3745, %v3733
        %v5810 = vpack.c.b16 %v3746, %v3734
        %v5811 = vpack.c.b16 %v3747, %v3735
        %v5812 = vpack.c.b16 %v3748, %v3736
        %v5813 = vpack.c.b16 %v3749, %v3737
        %v5814 = vpack.c.b16 %v3750, %v3738
        %v5815 = vpack.c.b16 %v3763, %v3751
        %v5816 = vpack.c.b16 %v3764, %v3752
        %v5817 = vpack.c.b16 %v3765, %v3753
        %v5818 = vpack.c.b16 %v3766, %v3754
        %v5819 = vpack.c.b16 %v3767, %v3755
        %v5820 = vpack.c.b16 %v3768, %v3756
        %v5821 = vpack.c.b16 %v3769, %v3757
        %v5822 = vpack.c.b16 %v3770, %v3758
        %v5823 = vpack.c.b16 %v3771, %v3759
        %v5824 = vpack.c.b16 %v3772, %v3760
        %v5825 = vpack.c.b16 %v3773, %v3761
        %v5826 = vpack.c.b16 %v3774, %v3762
        %v5827 = vpack.c.b16 %v3787, %v3775
        %v5828 = vpack.c.b16 %v3788, %v3776
        %v5829 = vpack.c.b16 %v3789, %v3777
        %v5830 = vpack.c.b16 %v3790, %v3778
        %v5831 = vpack.c.b16 %v3791, %v3779
        %v5832 = vpack.c.b16 %v3792, %v3780
        %v5833 = vpack.c.b16 %v3793, %v3781
        %v5834 = vpack.c.b16 %v3794, %v3782
        %v5835 = vpack.c.b16 %v3795, %v3783
        %v5836 = vpack.c.b16 %v3796, %v3784
        %v5837 = vpack.c.b16 %v3797, %v3785
        %v5838 = vpack.c.b16 %v3798, %v3786
        %v5839 = vpack.c.b16 %v3811, %v3799
        %v5840 = vpack.c.b16 %v3812, %v3800
        %v5841 = vpack.c.b16 %v3813, %v3801
        %v5842 = vpack.c.b16 %v3814, %v3802
        %v5843 = vpack.c.b16 %v3815, %v3803
        %v5844 = vpack.c.b16 %v3816, %v3804
        %v5845 = vpack.c.b16 %v3817, %v3805
        %v5846 = vpack.c.b16 %v3818, %v3806
        %v5847 = vpack.c.b16 %v3819, %v3807
        %v5848 = vpack.c.b16 %v3820, %v3808
        %v5849 = vpack.c.b16 %v3821, %v3809
        %v5850 = vpack.c.b16 %v3822, %v3810
        %v5851 = vpack.c.b16 %v3835, %v3823
        %v5852 = vpack.c.b16 %v3836, %v3824
        %v5853 = vpack.c.b16 %v3837, %v3825
        %v5854 = vpack.c.b16 %v3838, %v3826
        %v5855 = vpack.c.b16 %v3839, %v3827
        %v5856 = vpack.c.b16 %v3840, %v3828
        %v5857 = vpack.c.b16 %v3841, %v3829
        %v5858 = vpack.c.b16 %v3842, %v3830
        %v5859 = vpack.c.b16 %v3843, %v3831
        %v5860 = vpack.c.b16 %v3844, %v3832
        %v5861 = vpack.c.b16 %v3845, %v3833
        %v5862 = vpack.c.b16 %v3846, %v3834
        %v5863 = vpack.c.b16 %v3859, %v3847
        %v5864 = vpack.c.b16 %v3860, %v3848
        %v5865 = vpack.c.b16 %v3861, %v3849
        %v5866 = vpack.c.b16 %v3862, %v3850
        %v5867 = vpack.c.b16 %v3863, %v3851
        %v5868 = vpack.c.b16 %v3864, %v3852
        %v5869 = vpack.c.b16 %v3865, %v3853
        %v5870 = vpack.c.b16 %v3866, %v3854
        %v5871 = vpack.c.b16 %v3867, %v3855
        %v5872 = vpack.c.b16 %v3868, %v3856
        %v5873 = vpack.c.b16 %v3869, %v3857
        %v5874 = vpack.c.b16 %v3870, %v3858
        %v5875 = vpack.c.b16 %v3883, %v3871
        %v5876 = vpack.c.b16 %v3884, %v3872
        %v5877 = vpack.c.b16 %v3885, %v3873
        %v5878 = vpack.c.b16 %v3886, %v3874
        %v5879 = vpack.c.b16 %v3887, %v3875
        %v5880 = vpack.c.b16 %v3888, %v3876
        %v5881 = vpack.c.b16 %v3889, %v3877
        %v5882 = vpack.c.b16 %v3890, %v3878
        %v5883 = vpack.c.b16 %v3891, %v3879
        %v5884 = vpack.c.b16 %v3892, %v3880
        %v5885 = vpack.c.b16 %v3893, %v3881
        %v5886 = vpack.c.b16 %v3894, %v3882
        %v5887 = vpack.c.b16 %v3907, %v3895
        %v5888 = vpack.c.b16 %v3908, %v3896
        %v5889 = vpack.c.b16 %v3909, %v3897
        %v5890 = vpack.c.b16 %v3910, %v3898
        %v5891 = vpack.c.b16 %v3911, %v3899
        %v5892 = vpack.c.b16 %v3912, %v3900
        %v5893 = vpack.c.b16 %v3913, %v3901
        %v5894 = vpack.c.b16 %v3914, %v3902
        %v5895 = vpack.c.b16 %v3915, %v3903
        %v5896 = vpack.c.b16 %v3916, %v3904
        %v5897 = vpack.c.b16 %v3917, %v3905
        %v5898 = vpack.c.b16 %v3918, %v3906
        %v5899 = vpack.c.b16 %v3931, %v3919
        %v5900 = vpack.c.b16 %v3932, %v3920
        %v5901 = vpack.c.b16 %v3933, %v3921
        %v5902 = vpack.c.b16 %v3934, %v3922
        %v5903 = vpack.c.b16 %v3935, %v3923
        %v5904 = vpack.c.b16 %v3936, %v3924
        %v5905 = vpack.c.b16 %v3937, %v3925
        %v5906 = vpack.c.b16 %v3938, %v3926
        %v5907 = vpack.c.b16 %v3939, %v3927
        %v5908 = vpack.c.b16 %v3940, %v3928
        %v5909 = vpack.c.b16 %v3941, %v3929
        %v5910 = vpack.c.b16 %v3942, %v3930
        %v5911 = vpack.c.b16 %v3955, %v3943
        %v5912 = vpack.c.b16 %v3956, %v3944
        %v5913 = vpack.c.b16 %v3957, %v3945
        %v5914 = vpack.c.b16 %v3958, %v3946
        %v5915 = vpack.c.b16 %v3959, %v3947
        %v5916 = vpack.c.b16 %v3960, %v3948
        %v5917 = vpack.c.b16 %v3961, %v3949
        %v5918 = vpack.c.b16 %v3962, %v3950
        %v5919 = vpack.c.b16 %v3963, %v3951
        %v5920 = vpack.c.b16 %v3964, %v3952
        %v5921 = vpack.c.b16 %v3965, %v3953
        %v5922 = vpack.c.b16 %v3966, %v3954
        %v5923 = vpack.c.b16 %v3979, %v3967
        %v5924 = vpack.c.b16 %v3980, %v3968
        %v5925 = vpack.c.b16 %v3981, %v3969
        %v5926 = vpack.c.b16 %v3982, %v3970
        %v5927 = vpack.c.b16 %v3983, %v3971
        %v5928 = vpack.c.b16 %v3984, %v3972
        %v5929 = vpack.c.b16 %v3985, %v3973
        %v5930 = vpack.c.b16 %v3986, %v3974
        %v5931 = vpack.c.b16 %v3987, %v3975
        %v5932 = vpack.c.b16 %v3988, %v3976
        %v5933 = vpack.c.b16 %v3989, %v3977
        %v5934 = vpack.c.b16 %v3990, %v3978
        %v5935 = vpack.c.b16 %v4003, %v3991
        %v5936 = vpack.c.b16 %v4004, %v3992
        %v5937 = vpack.c.b16 %v4005, %v3993
        %v5938 = vpack.c.b16 %v4006, %v3994
        %v5939 = vpack.c.b16 %v4007, %v3995
        %v5940 = vpack.c.b16 %v4008, %v3996
        %v5941 = vpack.c.b16 %v4009, %v3997
        %v5942 = vpack.c.b16 %v4010, %v3998
        %v5943 = vpack.c.b16 %v4011, %v3999
        %v5944 = vpack.c.b16 %v4012, %v4000
        %v5945 = vpack.c.b16 %v4013, %v4001
        %v5946 = vpack.c.b16 %v4014, %v4002
        %v5947 = vpack.c.b16 %v4027, %v4015
        %v5948 = vpack.c.b16 %v4028, %v4016
        %v5949 = vpack.c.b16 %v4029, %v4017
        %v5950 = vpack.c.b16 %v4030, %v4018
        %v5951 = vpack.c.b16 %v4031, %v4019
        %v5952 = vpack.c.b16 %v4032, %v4020
        %v5953 = vpack.c.b16 %v4033, %v4021
        %v5954 = vpack.c.b16 %v4034, %v4022
        %v5955 = vpack.c.b16 %v4035, %v4023
        %v5956 = vpack.c.b16 %v4036, %v4024
        %v5957 = vpack.c.b16 %v4037, %v4025
        %v5958 = vpack.c.b16 %v4038, %v4026
        %v5959 = vpack.c.b16 %v4051, %v4039
        %v5960 = vpack.c.b16 %v4052, %v4040
        %v5961 = vpack.c.b16 %v4053, %v4041
        %v5962 = vpack.c.b16 %v4054, %v4042
        %v5963 = vpack.c.b16 %v4055, %v4043
        %v5964 = vpack.c.b16 %v4056, %v4044
        %v5965 = vpack.c.b16 %v4057, %v4045
        %v5966 = vpack.c.b16 %v4058, %v4046
        %v5967 = vpack.c.b16 %v4059, %v4047
        %v5968 = vpack.c.b16 %v4060, %v4048
        %v5969 = vpack.c.b16 %v4061, %v4049
        %v5970 = vpack.c.b16 %v4062, %v4050
        %v5971 = vpack.c.b16 %v4075, %v4063
        %v5972 = vpack.c.b16 %v4076, %v4064
        %v5973 = vpack.c.b16 %v4077, %v4065
        %v5974 = vpack.c.b16 %v4078, %v4066
        %v5975 = vpack.c.b16 %v4079, %v4067
        %v5976 = vpack.c.b16 %v4080, %v4068
        %v5977 = vpack.c.b16 %v4081, %v4069
        %v5978 = vpack.c.b16 %v4082, %v4070
        %v5979 = vpack.c.b16 %v4083, %v4071
        %v5980 = vpack.c.b16 %v4084, %v4072
        %v5981 = vpack.c.b16 %v4085, %v4073
        %v5982 = vpack.c.b16 %v4086, %v4074
        %v5983 = vpack.c.b16 %v4099, %v4087
        %v5984 = vpack.c.b16 %v4100, %v4088
        %v5985 = vpack.c.b16 %v4101, %v4089
        %v5986 = vpack.c.b16 %v4102, %v4090
        %v5987 = vpack.c.b16 %v4103, %v4091
        %v5988 = vpack.c.b16 %v4104, %v4092
        %v5989 = vpack.c.b16 %v4105, %v4093
        %v5990 = vpack.c.b16 %v4106, %v4094
        %v5991 = vpack.c.b16 %v4107, %v4095
        %v5992 = vpack.c.b16 %v4108, %v4096
        %v5993 = vpack.c.b16 %v4109, %v4097
        %v5994 = vpack.c.b16 %v4110, %v4098
        %v5995 = vpack.c.b16 %v4123, %v4111
        %v5996 = vpack.c.b16 %v4124, %v4112
        %v5997 = vpack.c.b16 %v4125, %v4113
        %v5998 = vpack.c.b16 %v4126, %v4114
        %v5999 = vpack.c.b16 %v4127, %v4115
        %v6000 = vpack.c.b16 %v4128, %v4116
        %v6001 = vpack.c.b16 %v4129, %v4117
        %v6002 = vpack.c.b16 %v4130, %v4118
        %v6003 = vpack.c.b16 %v4131, %v4119
        %v6004 = vpack.c.b16 %v4132, %v4120
        %v6005 = vpack.c.b16 %v4133, %v4121
        %v6006 = vpack.c.b16 %v4134, %v4122
        %v6007 = vpack.c.b16 %v4147, %v4135
        %v6008 = vpack.c.b16 %v4148, %v4136
        %v6009 = vpack.c.b16 %v4149, %v4137
        %v6010 = vpack.c.b16 %v4150, %v4138
        %v6011 = vpack.c.b16 %v4151, %v4139
        %v6012 = vpack.c.b16 %v4152, %v4140
        %v6013 = vpack.c.b16 %v4153, %v4141
        %v6014 = vpack.c.b16 %v4154, %v4142
        %v6015 = vpack.c.b16 %v4155, %v4143
        %v6016 = vpack.c.b16 %v4156, %v4144
        %v6017 = vpack.c.b16 %v4157, %v4145
        %v6018 = vpack.c.b16 %v4158, %v4146
        %v6019 = vpack.c.b16 %v4171, %v4159
        %v6020 = vpack.c.b16 %v4172, %v4160
        %v6021 = vpack.c.b16 %v4173, %v4161
        %v6022 = vpack.c.b16 %v4174, %v4162
        %v6023 = vpack.c.b16 %v4175, %v4163
        %v6024 = vpack.c.b16 %v4176, %v4164
        %v6025 = vpack.c.b16 %v4177, %v4165
        %v6026 = vpack.c.b16 %v4178, %v4166
        %v6027 = vpack.c.b16 %v4179, %v4167
        %v6028 = vpack.c.b16 %v4180, %v4168
        %v6029 = vpack.c.b16 %v4181, %v4169
        %v6030 = vpack.c.b16 %v4182, %v4170
        %v6031 = vpack.c.b16 %v4195, %v4183
        %v6032 = vpack.c.b16 %v4196, %v4184
        %v6033 = vpack.c.b16 %v4197, %v4185
        %v6034 = vpack.c.b16 %v4198, %v4186
        %v6035 = vpack.c.b16 %v4199, %v4187
        %v6036 = vpack.c.b16 %v4200, %v4188
        %v6037 = vpack.c.b16 %v4201, %v4189
        %v6038 = vpack.c.b16 %v4202, %v4190
        %v6039 = vpack.c.b16 %v4203, %v4191
        %v6040 = vpack.c.b16 %v4204, %v4192
        %v6041 = vpack.c.b16 %v4205, %v4193
        %v6042 = vpack.c.b16 %v4206, %v4194
        %v6043 = vpack.c.b16 %v4219, %v4207
        %v6044 = vpack.c.b16 %v4220, %v4208
        %v6045 = vpack.c.b16 %v4221, %v4209
        %v6046 = vpack.c.b16 %v4222, %v4210
        %v6047 = vpack.c.b16 %v4223, %v4211
        %v6048 = vpack.c.b16 %v4224, %v4212
        %v6049 = vpack.c.b16 %v4225, %v4213
        %v6050 = vpack.c.b16 %v4226, %v4214
        %v6051 = vpack.c.b16 %v4227, %v4215
        %v6052 = vpack.c.b16 %v4228, %v4216
        %v6053 = vpack.c.b16 %v4229, %v4217
        %v6054 = vpack.c.b16 %v4230, %v4218
        %v6055 = vpack.c.b16 %v4243, %v4231
        %v6056 = vpack.c.b16 %v4244, %v4232
        %v6057 = vpack.c.b16 %v4245, %v4233
        %v6058 = vpack.c.b16 %v4246, %v4234
        %v6059 = vpack.c.b16 %v4247, %v4235
        %v6060 = vpack.c.b16 %v4248, %v4236
        %v6061 = vpack.c.b16 %v4249, %v4237
        %v6062 = vpack.c.b16 %v4250, %v4238
        %v6063 = vpack.c.b16 %v4251, %v4239
        %v6064 = vpack.c.b16 %v4252, %v4240
        %v6065 = vpack.c.b16 %v4253, %v4241
        %v6066 = vpack.c.b16 %v4254, %v4242
        %v6067 = vpack.c.b16 %v4267, %v4255
        %v6068 = vpack.c.b16 %v4268, %v4256
        %v6069 = vpack.c.b16 %v4269, %v4257
        %v6070 = vpack.c.b16 %v4270, %v4258
        %v6071 = vpack.c.b16 %v4271, %v4259
        %v6072 = vpack.c.b16 %v4272, %v4260
        %v6073 = vpack.c.b16 %v4273, %v4261
        %v6074 = vpack.c.b16 %v4274, %v4262
        %v6075 = vpack.c.b16 %v4275, %v4263
        %v6076 = vpack.c.b16 %v4276, %v4264
        %v6077 = vpack.c.b16 %v4277, %v4265
        %v6078 = vpack.c.b16 %v4278, %v4266
        %v6079 = vpack.c.b16 %v4291, %v4279
        %v6080 = vpack.c.b16 %v4292, %v4280
        %v6081 = vpack.c.b16 %v4293, %v4281
        %v6082 = vpack.c.b16 %v4294, %v4282
        %v6083 = vpack.c.b16 %v4295, %v4283
        %v6084 = vpack.c.b16 %v4296, %v4284
        %v6085 = vpack.c.b16 %v4297, %v4285
        %v6086 = vpack.c.b16 %v4298, %v4286
        %v6087 = vpack.c.b16 %v4299, %v4287
        %v6088 = vpack.c.b16 %v4300, %v4288
        %v6089 = vpack.c.b16 %v4301, %v4289
        %v6090 = vpack.c.b16 %v4302, %v4290
        %v6091 = vpack.c.b16 %v4315, %v4303
        %v6092 = vpack.c.b16 %v4316, %v4304
        %v6093 = vpack.c.b16 %v4317, %v4305
        %v6094 = vpack.c.b16 %v4318, %v4306
        %v6095 = vpack.c.b16 %v4319, %v4307
        %v6096 = vpack.c.b16 %v4320, %v4308
        %v6097 = vpack.c.b16 %v4321, %v4309
        %v6098 = vpack.c.b16 %v4322, %v4310
        %v6099 = vpack.c.b16 %v4323, %v4311
        %v6100 = vpack.c.b16 %v4324, %v4312
        %v6101 = vpack.c.b16 %v4325, %v4313
        %v6102 = vpack.c.b16 %v4326, %v4314
        %v6103 = vpack.c.b16 %v4339, %v4327
        %v6104 = vpack.c.b16 %v4340, %v4328
        %v6105 = vpack.c.b16 %v4341, %v4329
        %v6106 = vpack.c.b16 %v4342, %v4330
        %v6107 = vpack.c.b16 %v4343, %v4331
        %v6108 = vpack.c.b16 %v4344, %v4332
        %v6109 = vpack.c.b16 %v4345, %v4333
        %v6110 = vpack.c.b16 %v4346, %v4334
        %v6111 = vpack.c.b16 %v4347, %v4335
        %v6112 = vpack.c.b16 %v4348, %v4336
        %v6113 = vpack.c.b16 %v4349, %v4337
        %v6114 = vpack.c.b16 %v4350, %v4338
        %v6115 = vpack.c.b16 %v4363, %v4351
        %v6116 = vpack.c.b16 %v4364, %v4352
        %v6117 = vpack.c.b16 %v4365, %v4353
        %v6118 = vpack.c.b16 %v4366, %v4354
        %v6119 = vpack.c.b16 %v4367, %v4355
        %v6120 = vpack.c.b16 %v4368, %v4356
        %v6121 = vpack.c.b16 %v4369, %v4357
        %v6122 = vpack.c.b16 %v4370, %v4358
        %v6123 = vpack.c.b16 %v4371, %v4359
        %v6124 = vpack.c.b16 %v4372, %v4360
        %v6125 = vpack.c.b16 %v4373, %v4361
        %v6126 = vpack.c.b16 %v4374, %v4362
        %v6127 = vpack.c.b16 %v4387, %v4375
        %v6128 = vpack.c.b16 %v4388, %v4376
        %v6129 = vpack.c.b16 %v4389, %v4377
        %v6130 = vpack.c.b16 %v4390, %v4378
        %v6131 = vpack.c.b16 %v4391, %v4379
        %v6132 = vpack.c.b16 %v4392, %v4380
        %v6133 = vpack.c.b16 %v4393, %v4381
        %v6134 = vpack.c.b16 %v4394, %v4382
        %v6135 = vpack.c.b16 %v4395, %v4383
        %v6136 = vpack.c.b16 %v4396, %v4384
        %v6137 = vpack.c.b16 %v4397, %v4385
        %v6138 = vpack.c.b16 %v4398, %v4386
        %v6139 = vpack.c.b16 %v4411, %v4399
        %v6140 = vpack.c.b16 %v4412, %v4400
        %v6141 = vpack.c.b16 %v4413, %v4401
        %v6142 = vpack.c.b16 %v4414, %v4402
        %v6143 = vpack.c.b16 %v4415, %v4403
        %v6144 = vpack.c.b16 %v4416, %v4404
        %v6145 = vpack.c.b16 %v4417, %v4405
        %v6146 = vpack.c.b16 %v4418, %v4406
        %v6147 = vpack.c.b16 %v4419, %v4407
        %v6148 = vpack.c.b16 %v4420, %v4408
        %v6149 = vpack.c.b16 %v4421, %v4409
        %v6150 = vpack.c.b16 %v4422, %v4410
        %v6151 = vpack.c.b16 %v4435, %v4423
        %v6152 = vpack.c.b16 %v4436, %v4424
        %v6153 = vpack.c.b16 %v4437, %v4425
        %v6154 = vpack.c.b16 %v4438, %v4426
        %v6155 = vpack.c.b16 %v4439, %v4427
        %v6156 = vpack.c.b16 %v4440, %v4428
        %v6157 = vpack.c.b16 %v4441, %v4429
        %v6158 = vpack.c.b16 %v4442, %v4430
        %v6159 = vpack.c.b16 %v4443, %v4431
        %v6160 = vpack.c.b16 %v4444, %v4432
        %v6161 = vpack.c.b16 %v4445, %v4433
        %v6162 = vpack.c.b16 %v4446, %v4434
        %v6163 = vpack.c.b16 %v4459, %v4447
        %v6164 = vpack.c.b16 %v4460, %v4448
        %v6165 = vpack.c.b16 %v4461, %v4449
        %v6166 = vpack.c.b16 %v4462, %v4450
        %v6167 = vpack.c.b16 %v4463, %v4451
        %v6168 = vpack.c.b16 %v4464, %v4452
        %v6169 = vpack.c.b16 %v4465, %v4453
        %v6170 = vpack.c.b16 %v4466, %v4454
        %v6171 = vpack.c.b16 %v4467, %v4455
        %v6172 = vpack.c.b16 %v4468, %v4456
        %v6173 = vpack.c.b16 %v4469, %v4457
        %v6174 = vpack.c.b16 %v4470, %v4458
        %v6175 = vpack.c.b16 %v4483, %v4471
        %v6176 = vpack.c.b16 %v4484, %v4472
        %v6177 = vpack.c.b16 %v4485, %v4473
        %v6178 = vpack.c.b16 %v4486, %v4474
        %v6179 = vpack.c.b16 %v4487, %v4475
        %v6180 = vpack.c.b16 %v4488, %v4476
        %v6181 = vpack.c.b16 %v4489, %v4477
        %v6182 = vpack.c.b16 %v4490, %v4478
        %v6183 = vpack.c.b16 %v4491, %v4479
        %v6184 = vpack.c.b16 %v4492, %v4480
        %v6185 = vpack.c.b16 %v4493, %v4481
        %v6186 = vpack.c.b16 %v4494, %v4482
        %v6187 = vpack.c.b16 %v4507, %v4495
        %v6188 = vpack.c.b16 %v4508, %v4496
        %v6189 = vpack.c.b16 %v4509, %v4497
        %v6190 = vpack.c.b16 %v4510, %v4498
        %v6191 = vpack.c.b16 %v4511, %v4499
        %v6192 = vpack.c.b16 %v4512, %v4500
        %v6193 = vpack.c.b16 %v4513, %v4501
        %v6194 = vpack.c.b16 %v4514, %v4502
        %v6195 = vpack.c.b16 %v4515, %v4503
        %v6196 = vpack.c.b16 %v4516, %v4504
        %v6197 = vpack.c.b16 %v4517, %v4505
        %v6198 = vpack.c.b16 %v4518, %v4506
        %v6199 = vpack.c.b16 %v4531, %v4519
        %v6200 = vpack.c.b16 %v4532, %v4520
        %v6201 = vpack.c.b16 %v4533, %v4521
        %v6202 = vpack.c.b16 %v4534, %v4522
        %v6203 = vpack.c.b16 %v4535, %v4523
        %v6204 = vpack.c.b16 %v4536, %v4524
        %v6205 = vpack.c.b16 %v4537, %v4525
        %v6206 = vpack.c.b16 %v4538, %v4526
        %v6207 = vpack.c.b16 %v4539, %v4527
        %v6208 = vpack.c.b16 %v4540, %v4528
        %v6209 = vpack.c.b16 %v4541, %v4529
        %v6210 = vpack.c.b16 %v4542, %v4530
        %v6211 = vpack.c.b16 %v4555, %v4543
        %v6212 = vpack.c.b16 %v4556, %v4544
        %v6213 = vpack.c.b16 %v4557, %v4545
        %v6214 = vpack.c.b16 %v4558, %v4546
        %v6215 = vpack.c.b16 %v4559, %v4547
        %v6216 = vpack.c.b16 %v4560, %v4548
        %v6217 = vpack.c.b16 %v4561, %v4549
        %v6218 = vpack.c.b16 %v4562, %v4550
        %v6219 = vpack.c.b16 %v4563, %v4551
        %v6220 = vpack.c.b16 %v4564, %v4552
        %v6221 = vpack.c.b16 %v4565, %v4553
        %v6222 = vpack.c.b16 %v4566, %v4554
        %v6223 = vpack.c.b16 %v4579, %v4567
        %v6224 = vpack.c.b16 %v4580, %v4568
        %v6225 = vpack.c.b16 %v4581, %v4569
        %v6226 = vpack.c.b16 %v4582, %v4570
        %v6227 = vpack.c.b16 %v4583, %v4571
        %v6228 = vpack.c.b16 %v4584, %v4572
        %v6229 = vpack.c.b16 %v4585, %v4573
        %v6230 = vpack.c.b16 %v4586, %v4574
        %v6231 = vpack.c.b16 %v4587, %v4575
        %v6232 = vpack.c.b16 %v4588, %v4576
        %v6233 = vpack.c.b16 %v4589, %v4577
        %v6234 = vpack.c.b16 %v4590, %v4578
        %v6235 = vpack.c.b16 %v4603, %v4591
        %v6236 = vpack.c.b16 %v4604, %v4592
        %v6237 = vpack.c.b16 %v4605, %v4593
        %v6238 = vpack.c.b16 %v4606, %v4594
        %v6239 = vpack.c.b16 %v4607, %v4595
        %v6240 = vpack.c.b16 %v4608, %v4596
        %v6241 = vpack.c.b16 %v4609, %v4597
        %v6242 = vpack.c.b16 %v4610, %v4598
        %v6243 = vpack.c.b16 %v4611, %v4599
        %v6244 = vpack.c.b16 %v4612, %v4600
        %v6245 = vpack.c.b16 %v4613, %v4601
        %v6246 = vpack.c.b16 %v4614, %v4602
        %v6247 = vpack.c.b16 %v4627, %v4615
        %v6248 = vpack.c.b16 %v4628, %v4616
        %v6249 = vpack.c.b16 %v4629, %v4617
        %v6250 = vpack.c.b16 %v4630, %v4618
        %v6251 = vpack.c.b16 %v4631, %v4619
        %v6252 = vpack.c.b16 %v4632, %v4620
        %v6253 = vpack.c.b16 %v4633, %v4621
        %v6254 = vpack.c.b16 %v4634, %v4622
        %v6255 = vpack.c.b16 %v4635, %v4623
        %v6256 = vpack.c.b16 %v4636, %v4624
        %v6257 = vpack.c.b16 %v4637, %v4625
        %v6258 = vpack.c.b16 %v4638, %v4626
        %v6259 = vpack.c.b16 %v4651, %v4639
        %v6260 = vpack.c.b16 %v4652, %v4640
        %v6261 = vpack.c.b16 %v4653, %v4641
        %v6262 = vpack.c.b16 %v4654, %v4642
        %v6263 = vpack.c.b16 %v4655, %v4643
        %v6264 = vpack.c.b16 %v4656, %v4644
        %v6265 = vpack.c.b16 %v4657, %v4645
        %v6266 = vpack.c.b16 %v4658, %v4646
        %v6267 = vpack.c.b16 %v4659, %v4647
        %v6268 = vpack.c.b16 %v4660, %v4648
        %v6269 = vpack.c.b16 %v4661, %v4649
        %v6270 = vpack.c.b16 %v4662, %v4650
        %v6271 = vpack.c.b16 %v4675, %v4663
        %v6272 = vpack.c.b16 %v4676, %v4664
        %v6273 = vpack.c.b16 %v4677, %v4665
        %v6274 = vpack.c.b16 %v4678, %v4666
        %v6275 = vpack.c.b16 %v4679, %v4667
        %v6276 = vpack.c.b16 %v4680, %v4668
        %v6277 = vpack.c.b16 %v4681, %v4669
        %v6278 = vpack.c.b16 %v4682, %v4670
        %v6279 = vpack.c.b16 %v4683, %v4671
        %v6280 = vpack.c.b16 %v4684, %v4672
        %v6281 = vpack.c.b16 %v4685, %v4673
        %v6282 = vpack.c.b16 %v4686, %v4674
        %v6283 = vpack.c.b16 %v4699, %v4687
        %v6284 = vpack.c.b16 %v4700, %v4688
        %v6285 = vpack.c.b16 %v4701, %v4689
        %v6286 = vpack.c.b16 %v4702, %v4690
        %v6287 = vpack.c.b16 %v4703, %v4691
        %v6288 = vpack.c.b16 %v4704, %v4692
        %v6289 = vpack.c.b16 %v4705, %v4693
        %v6290 = vpack.c.b16 %v4706, %v4694
        %v6291 = vpack.c.b16 %v4707, %v4695
        %v6292 = vpack.c.b16 %v4708, %v4696
        %v6293 = vpack.c.b16 %v4709, %v4697
        %v6294 = vpack.c.b16 %v4710, %v4698
        %v6295 = vpack.c.b16 %v4723, %v4711
        %v6296 = vpack.c.b16 %v4724, %v4712
        %v6297 = vpack.c.b16 %v4725, %v4713
        %v6298 = vpack.c.b16 %v4726, %v4714
        %v6299 = vpack.c.b16 %v4727, %v4715
        %v6300 = vpack.c.b16 %v4728, %v4716
        %v6301 = vpack.c.b16 %v4729, %v4717
        %v6302 = vpack.c.b16 %v4730, %v4718
        %v6303 = vpack.c.b16 %v4731, %v4719
        %v6304 = vpack.c.b16 %v4732, %v4720
        %v6305 = vpack.c.b16 %v4733, %v4721
        %v6306 = vpack.c.b16 %v4734, %v4722
        %v6307 = vpack.c.b16 %v4747, %v4735
        %v6308 = vpack.c.b16 %v4748, %v4736
        %v6309 = vpack.c.b16 %v4749, %v4737
        %v6310 = vpack.c.b16 %v4750, %v4738
        %v6311 = vpack.c.b16 %v4751, %v4739
        %v6312 = vpack.c.b16 %v4752, %v4740
        %v6313 = vpack.c.b16 %v4753, %v4741
        %v6314 = vpack.c.b16 %v4754, %v4742
        %v6315 = vpack.c.b16 %v4755, %v4743
        %v6316 = vpack.c.b16 %v4756, %v4744
        %v6317 = vpack.c.b16 %v4757, %v4745
        %v6318 = vpack.c.b16 %v4758, %v4746
        %v6319 = vpack.c.b16 %v4771, %v4759
        %v6320 = vpack.c.b16 %v4772, %v4760
        %v6321 = vpack.c.b16 %v4773, %v4761
        %v6322 = vpack.c.b16 %v4774, %v4762
        %v6323 = vpack.c.b16 %v4775, %v4763
        %v6324 = vpack.c.b16 %v4776, %v4764
        %v6325 = vpack.c.b16 %v4777, %v4765
        %v6326 = vpack.c.b16 %v4778, %v4766
        %v6327 = vpack.c.b16 %v4779, %v4767
        %v6328 = vpack.c.b16 %v4780, %v4768
        %v6329 = vpack.c.b16 %v4781, %v4769
        %v6330 = vpack.c.b16 %v4782, %v4770
        %v6331 = vpack.c.b16 %v4795, %v4783
        %v6332 = vpack.c.b16 %v4796, %v4784
        %v6333 = vpack.c.b16 %v4797, %v4785
        %v6334 = vpack.c.b16 %v4798, %v4786
        %v6335 = vpack.c.b16 %v4799, %v4787
        %v6336 = vpack.c.b16 %v4800, %v4788
        %v6337 = vpack.c.b16 %v4801, %v4789
        %v6338 = vpack.c.b16 %v4802, %v4790
        %v6339 = vpack.c.b16 %v4803, %v4791
        %v6340 = vpack.c.b16 %v4804, %v4792
        %v6341 = vpack.c.b16 %v4805, %v4793
        %v6342 = vpack.c.b16 %v4806, %v4794
        %v6343 = vpack.c.b16 %v4819, %v4807
        %v6344 = vpack.c.b16 %v4820, %v4808
        %v6345 = vpack.c.b16 %v4821, %v4809
        %v6346 = vpack.c.b16 %v4822, %v4810
        %v6347 = vpack.c.b16 %v4823, %v4811
        %v6348 = vpack.c.b16 %v4824, %v4812
        %v6349 = vpack.c.b16 %v4825, %v4813
        %v6350 = vpack.c.b16 %v4826, %v4814
        %v6351 = vpack.c.b16 %v4827, %v4815
        %v6352 = vpack.c.b16 %v4828, %v4816
        %v6353 = vpack.c.b16 %v4829, %v4817
        %v6354 = vpack.c.b16 %v4830, %v4818
        %v6355 = vpack.c.b16 %v4843, %v4831
        %v6356 = vpack.c.b16 %v4844, %v4832
        %v6357 = vpack.c.b16 %v4845, %v4833
        %v6358 = vpack.c.b16 %v4846, %v4834
        %v6359 = vpack.c.b16 %v4847, %v4835
        %v6360 = vpack.c.b16 %v4848, %v4836
        %v6361 = vpack.c.b16 %v4849, %v4837
        %v6362 = vpack.c.b16 %v4850, %v4838
        %v6363 = vpack.c.b16 %v4851, %v4839
        %v6364 = vpack.c.b16 %v4852, %v4840
        %v6365 = vpack.c.b16 %v4853, %v4841
        %v6366 = vpack.c.b16 %v4854, %v4842
        %v6367 = vpack.c.b16 %v4867, %v4855
        %v6368 = vpack.c.b16 %v4868, %v4856
        %v6369 = vpack.c.b16 %v4869, %v4857
        %v6370 = vpack.c.b16 %v4870, %v4858
        %v6371 = vpack.c.b16 %v4871, %v4859
        %v6372 = vpack.c.b16 %v4872, %v4860
        %v6373 = vpack.c.b16 %v4873, %v4861
        %v6374 = vpack.c.b16 %v4874, %v4862
        %v6375 = vpack.c.b16 %v4875, %v4863
        %v6376 = vpack.c.b16 %v4876, %v4864
        %v6377 = vpack.c.b16 %v4877, %v4865
        %v6378 = vpack.c.b16 %v4878, %v4866
        %v6379 = vpack.c.b16 %v4891, %v4879
        %v6380 = vpack.c.b16 %v4892, %v4880
        %v6381 = vpack.c.b16 %v4893, %v4881
        %v6382 = vpack.c.b16 %v4894, %v4882
        %v6383 = vpack.c.b16 %v4895, %v4883
        %v6384 = vpack.c.b16 %v4896, %v4884
        %v6385 = vpack.c.b16 %v4897, %v4885
        %v6386 = vpack.c.b16 %v4898, %v4886
        %v6387 = vpack.c.b16 %v4899, %v4887
        %v6388 = vpack.c.b16 %v4900, %v4888
        %v6389 = vpack.c.b16 %v4901, %v4889
        %v6390 = vpack.c.b16 %v4902, %v4890
        %v6391 = vpack.c.b16 %v4915, %v4903
        %v6392 = vpack.c.b16 %v4916, %v4904
        %v6393 = vpack.c.b16 %v4917, %v4905
        %v6394 = vpack.c.b16 %v4918, %v4906
        %v6395 = vpack.c.b16 %v4919, %v4907
        %v6396 = vpack.c.b16 %v4920, %v4908
        %v6397 = vpack.c.b16 %v4921, %v4909
        %v6398 = vpack.c.b16 %v4922, %v4910
        %v6399 = vpack.c.b16 %v4923, %v4911
        %v6400 = vpack.c.b16 %v4924, %v4912
        %v6401 = vpack.c.b16 %v4925, %v4913
        %v6402 = vpack.c.b16 %v4926, %v4914
        %v6403 = vpack.c.b16 %v4939, %v4927
        %v6404 = vpack.c.b16 %v4940, %v4928
        %v6405 = vpack.c.b16 %v4941, %v4929
        %v6406 = vpack.c.b16 %v4942, %v4930
        %v6407 = vpack.c.b16 %v4943, %v4931
        %v6408 = vpack.c.b16 %v4944, %v4932
        %v6409 = vpack.c.b16 %v4945, %v4933
        %v6410 = vpack.c.b16 %v4946, %v4934
        %v6411 = vpack.c.b16 %v4947, %v4935
        %v6412 = vpack.c.b16 %v4948, %v4936
        %v6413 = vpack.c.b16 %v4949, %v4937
        %v6414 = vpack.c.b16 %v4950, %v4938
        %v6415 = vpack.c.b16 %v4963, %v4951
        %v6416 = vpack.c.b16 %v4964, %v4952
        %v6417 = vpack.c.b16 %v4965, %v4953
        %v6418 = vpack.c.b16 %v4966, %v4954
        %v6419 = vpack.c.b16 %v4967, %v4955
        %v6420 = vpack.c.b16 %v4968, %v4956
        %v6421 = vpack.c.b16 %v4969, %v4957
        %v6422 = vpack.c.b16 %v4970, %v4958
        %v6423 = vpack.c.b16 %v4971, %v4959
        %v6424 = vpack.c.b16 %v4972, %v4960
        %v6425 = vpack.c.b16 %v4973, %v4961
        %v6426 = vpack.c.b16 %v4974, %v4962
        %v6427 = vpack.c.b16 %v4987, %v4975
        %v6428 = vpack.c.b16 %v4988, %v4976
        %v6429 = vpack.c.b16 %v4989, %v4977
        %v6430 = vpack.c.b16 %v4990, %v4978
        %v6431 = vpack.c.b16 %v4991, %v4979
        %v6432 = vpack.c.b16 %v4992, %v4980
        %v6433 = vpack.c.b16 %v4993, %v4981
        %v6434 = vpack.c.b16 %v4994, %v4982
        %v6435 = vpack.c.b16 %v4995, %v4983
        %v6436 = vpack.c.b16 %v4996, %v4984
        %v6437 = vpack.c.b16 %v4997, %v4985
        %v6438 = vpack.c.b16 %v4998, %v4986
        %v6439 = vpack.c.b16 %v5011, %v4999
        %v6440 = vpack.c.b16 %v5012, %v5000
        %v6441 = vpack.c.b16 %v5013, %v5001
        %v6442 = vpack.c.b16 %v5014, %v5002
        %v6443 = vpack.c.b16 %v5015, %v5003
        %v6444 = vpack.c.b16 %v5016, %v5004
        %v6445 = vpack.c.b16 %v5017, %v5005
        %v6446 = vpack.c.b16 %v5018, %v5006
        %v6447 = vpack.c.b16 %v5019, %v5007
        %v6448 = vpack.c.b16 %v5020, %v5008
        %v6449 = vpack.c.b16 %v5021, %v5009
        %v6450 = vpack.c.b16 %v5022, %v5010
        %v6451 = vpack.c.b16 %v5035, %v5023
        %v6452 = vpack.c.b16 %v5036, %v5024
        %v6453 = vpack.c.b16 %v5037, %v5025
        %v6454 = vpack.c.b16 %v5038, %v5026
        %v6455 = vpack.c.b16 %v5039, %v5027
        %v6456 = vpack.c.b16 %v5040, %v5028
        %v6457 = vpack.c.b16 %v5041, %v5029
        %v6458 = vpack.c.b16 %v5042, %v5030
        %v6459 = vpack.c.b16 %v5043, %v5031
        %v6460 = vpack.c.b16 %v5044, %v5032
        %v6461 = vpack.c.b16 %v5045, %v5033
        %v6462 = vpack.c.b16 %v5046, %v5034
        %v6463 = vpack.c.b16 %v5059, %v5047
        %v6464 = vpack.c.b16 %v5060, %v5048
        %v6465 = vpack.c.b16 %v5061, %v5049
        %v6466 = vpack.c.b16 %v5062, %v5050
        %v6467 = vpack.c.b16 %v5063, %v5051
        %v6468 = vpack.c.b16 %v5064, %v5052
        %v6469 = vpack.c.b16 %v5065, %v5053
        %v6470 = vpack.c.b16 %v5066, %v5054
        %v6471 = vpack.c.b16 %v5067, %v5055
        %v6472 = vpack.c.b16 %v5068, %v5056
        %v6473 = vpack.c.b16 %v5069, %v5057
        %v6474 = vpack.c.b16 %v5070, %v5058
        %v6475 = vpack.c.b16 %v5083, %v5071
        %v6476 = vpack.c.b16 %v5084, %v5072
        %v6477 = vpack.c.b16 %v5085, %v5073
        %v6478 = vpack.c.b16 %v5086, %v5074
        %v6479 = vpack.c.b16 %v5087, %v5075
        %v6480 = vpack.c.b16 %v5088, %v5076
        %v6481 = vpack.c.b16 %v5089, %v5077
        %v6482 = vpack.c.b16 %v5090, %v5078
        %v6483 = vpack.c.b16 %v5091, %v5079
        %v6484 = vpack.c.b16 %v5092, %v5080
        %v6485 = vpack.c.b16 %v5093, %v5081
        %v6486 = vpack.c.b16 %v5094, %v5082
        %v6487 = vpack.c.b16 %v5107, %v5095
        %v6488 = vpack.c.b16 %v5108, %v5096
        %v6489 = vpack.c.b16 %v5109, %v5097
        %v6490 = vpack.c.b16 %v5110, %v5098
        %v6491 = vpack.c.b16 %v5111, %v5099
        %v6492 = vpack.c.b16 %v5112, %v5100
        %v6493 = vpack.c.b16 %v5113, %v5101
        %v6494 = vpack.c.b16 %v5114, %v5102
        %v6495 = vpack.c.b16 %v5115, %v5103
        %v6496 = vpack.c.b16 %v5116, %v5104
        %v6497 = vpack.c.b16 %v5117, %v5105
        %v6498 = vpack.c.b16 %v5118, %v5106
        %v6499 = vpack.c.b16 %v5131, %v5119
        %v6500 = vpack.c.b16 %v5132, %v5120
        %v6501 = vpack.c.b16 %v5133, %v5121
        %v6502 = vpack.c.b16 %v5134, %v5122
        %v6503 = vpack.c.b16 %v5135, %v5123
        %v6504 = vpack.c.b16 %v5136, %v5124
        %v6505 = vpack.c.b16 %v5137, %v5125
        %v6506 = vpack.c.b16 %v5138, %v5126
        %v6507 = vpack.c.b16 %v5139, %v5127
        %v6508 = vpack.c.b16 %v5140, %v5128
        %v6509 = vpack.c.b16 %v5141, %v5129
        %v6510 = vpack.c.b16 %v5142, %v5130
        %v6511 = vpack.c.b16 %v5155, %v5143
        %v6512 = vpack.c.b16 %v5156, %v5144
        %v6513 = vpack.c.b16 %v5157, %v5145
        %v6514 = vpack.c.b16 %v5158, %v5146
        %v6515 = vpack.c.b16 %v5159, %v5147
        %v6516 = vpack.c.b16 %v5160, %v5148
        %v6517 = vpack.c.b16 %v5161, %v5149
        %v6518 = vpack.c.b16 %v5162, %v5150
        %v6519 = vpack.c.b16 %v5163, %v5151
        %v6520 = vpack.c.b16 %v5164, %v5152
        %v6521 = vpack.c.b16 %v5165, %v5153
        %v6522 = vpack.c.b16 %v5166, %v5154
        %v6523 = vpack.c.b16 %v5179, %v5167
        %v6524 = vpack.c.b16 %v5180, %v5168
        %v6525 = vpack.c.b16 %v5181, %v5169
        %v6526 = vpack.c.b16 %v5182, %v5170
        %v6527 = vpack.c.b16 %v5183, %v5171
        %v6528 = vpack.c.b16 %v5184, %v5172
        %v6529 = vpack.c.b16 %v5185, %v5173
        %v6530 = vpack.c.b16 %v5186, %v5174
        %v6531 = vpack.c.b16 %v5187, %v5175
        %v6532 = vpack.c.b16 %v5188, %v5176
        %v6533 = vpack.c.b16 %v5189, %v5177
        %v6534 = vpack.c.b16 %v5190, %v5178
        %v6535 = vpack.c.b16 %v5203, %v5191
        %v6536 = vpack.c.b16 %v5204, %v5192
        %v6537 = vpack.c.b16 %v5205, %v5193
        %v6538 = vpack.c.b16 %v5206, %v5194
        %v6539 = vpack.c.b16 %v5207, %v5195
        %v6540 = vpack.c.b16 %v5208, %v5196
        %v6541 = vpack.c.b16 %v5209, %v5197
        %v6542 = vpack.c.b16 %v5210, %v5198
        %v6543 = vpack.c.b16 %v5211, %v5199
        %v6544 = vpack.c.b16 %v5212, %v5200
        %v6545 = vpack.c.b16 %v5213, %v5201
        %v6546 = vpack.c.b16 %v5214, %v5202
        %v6547 = vpack.c.b16 %v5227, %v5215
        %v6548 = vpack.c.b16 %v5228, %v5216
        %v6549 = vpack.c.b16 %v5229, %v5217
        %v6550 = vpack.c.b16 %v5230, %v5218
        %v6551 = vpack.c.b16 %v5231, %v5219
        %v6552 = vpack.c.b16 %v5232, %v5220
        %v6553 = vpack.c.b16 %v5233, %v5221
        %v6554 = vpack.c.b16 %v5234, %v5222
        %v6555 = vpack.c.b16 %v5235, %v5223
        %v6556 = vpack.c.b16 %v5236, %v5224
        %v6557 = vpack.c.b16 %v5237, %v5225
        %v6558 = vpack.c.b16 %v5238, %v5226
        %v6559 = vpack.c.b16 %v5251, %v5239
        %v6560 = vpack.c.b16 %v5252, %v5240
        %v6561 = vpack.c.b16 %v5253, %v5241
        %v6562 = vpack.c.b16 %v5254, %v5242
        %v6563 = vpack.c.b16 %v5255, %v5243
        %v6564 = vpack.c.b16 %v5256, %v5244
        %v6565 = vpack.c.b16 %v5257, %v5245
        %v6566 = vpack.c.b16 %v5258, %v5246
        %v6567 = vpack.c.b16 %v5259, %v5247
        %v6568 = vpack.c.b16 %v5260, %v5248
        %v6569 = vpack.c.b16 %v5261, %v5249
        %v6570 = vpack.c.b16 %v5262, %v5250
        %v6571 = vpack.c.b16 %v5275, %v5263
        %v6572 = vpack.c.b16 %v5276, %v5264
        %v6573 = vpack.c.b16 %v5277, %v5265
        %v6574 = vpack.c.b16 %v5278, %v5266
        %v6575 = vpack.c.b16 %v5279, %v5267
        %v6576 = vpack.c.b16 %v5280, %v5268
        %v6577 = vpack.c.b16 %v5281, %v5269
        %v6578 = vpack.c.b16 %v5282, %v5270
        %v6579 = vpack.c.b16 %v5283, %v5271
        %v6580 = vpack.c.b16 %v5284, %v5272
        %v6581 = vpack.c.b16 %v5285, %v5273
        %v6582 = vpack.c.b16 %v5286, %v5274
        %v6583 = vpack.c.b16 %v5299, %v5287
        %v6584 = vpack.c.b16 %v5300, %v5288
        %v6585 = vpack.c.b16 %v5301, %v5289
        %v6586 = vpack.c.b16 %v5302, %v5290
        %v6587 = vpack.c.b16 %v5303, %v5291
        %v6588 = vpack.c.b16 %v5304, %v5292
        %v6589 = vpack.c.b16 %v5305, %v5293
        %v6590 = vpack.c.b16 %v5306, %v5294
        %v6591 = vpack.c.b16 %v5307, %v5295
        %v6592 = vpack.c.b16 %v5308, %v5296
        %v6593 = vpack.c.b16 %v5309, %v5297
        %v6594 = vpack.c.b16 %v5310, %v5298
        %v6595 = vpack.c.b16 %v5323, %v5311
        %v6596 = vpack.c.b16 %v5324, %v5312
        %v6597 = vpack.c.b16 %v5325, %v5313
        %v6598 = vpack.c.b16 %v5326, %v5314
        %v6599 = vpack.c.b16 %v5327, %v5315
        %v6600 = vpack.c.b16 %v5328, %v5316
        %v6601 = vpack.c.b16 %v5329, %v5317
        %v6602 = vpack.c.b16 %v5330, %v5318
        %v6603 = vpack.c.b16 %v5331, %v5319
        %v6604 = vpack.c.b16 %v5332, %v5320
        %v6605 = vpack.c.b16 %v5333, %v5321
        %v6606 = vpack.c.b16 %v5334, %v5322
        %v6607 = vpack.c.b16 %v5347, %v5335
        %v6608 = vpack.c.b16 %v5348, %v5336
        %v6609 = vpack.c.b16 %v5349, %v5337
        %v6610 = vpack.c.b16 %v5350, %v5338
        %v6611 = vpack.c.b16 %v5351, %v5339
        %v6612 = vpack.c.b16 %v5352, %v5340
        %v6613 = vpack.c.b16 %v5353, %v5341
        %v6614 = vpack.c.b16 %v5354, %v5342
        %v6615 = vpack.c.b16 %v5355, %v5343
        %v6616 = vpack.c.b16 %v5356, %v5344
        %v6617 = vpack.c.b16 %v5357, %v5345
        %v6618 = vpack.c.b16 %v5358, %v5346
        %v6619 = vpack.c.b16 %v5371, %v5359
        %v6620 = vpack.c.b16 %v5372, %v5360
        %v6621 = vpack.c.b16 %v5373, %v5361
        %v6622 = vpack.c.b16 %v5374, %v5362
        %v6623 = vpack.c.b16 %v5375, %v5363
        %v6624 = vpack.c.b16 %v5376, %v5364
        %v6625 = vpack.c.b16 %v5377, %v5365
        %v6626 = vpack.c.b16 %v5378, %v5366
        %v6627 = vpack.c.b16 %v5379, %v5367
        %v6628 = vpack.c.b16 %v5380, %v5368
        %v6629 = vpack.c.b16 %v5381, %v5369
        %v6630 = vpack.c.b16 %v5382, %v5370
        %v6631 = vpack.c.b16 %v5395, %v5383
        %v6632 = vpack.c.b16 %v5396, %v5384
        %v6633 = vpack.c.b16 %v5397, %v5385
        %v6634 = vpack.c.b16 %v5398, %v5386
        %v6635 = vpack.c.b16 %v5399, %v5387
        %v6636 = vpack.c.b16 %v5400, %v5388
        %v6637 = vpack.c.b16 %v5401, %v5389
        %v6638 = vpack.c.b16 %v5402, %v5390
        %v6639 = vpack.c.b16 %v5403, %v5391
        %v6640 = vpack.c.b16 %v5404, %v5392
        %v6641 = vpack.c.b16 %v5405, %v5393
        %v6642 = vpack.c.b16 %v5406, %v5394
        %v6643 = vpack.c.b16 %v5419, %v5407
        %v6644 = vpack.c.b16 %v5420, %v5408
        %v6645 = vpack.c.b16 %v5421, %v5409
        %v6646 = vpack.c.b16 %v5422, %v5410
        %v6647 = vpack.c.b16 %v5423, %v5411
        %v6648 = vpack.c.b16 %v5424, %v5412
        %v6649 = vpack.c.b16 %v5425, %v5413
        %v6650 = vpack.c.b16 %v5426, %v5414
        %v6651 = vpack.c.b16 %v5427, %v5415
        %v6652 = vpack.c.b16 %v5428, %v5416
        %v6653 = vpack.c.b16 %v5429, %v5417
        %v6654 = vpack.c.b16 %v5430, %v5418
        %v6655 = vpack.c.b16 %v5443, %v5431
        %v6656 = vpack.c.b16 %v5444, %v5432
        %v6657 = vpack.c.b16 %v5445, %v5433
        %v6658 = vpack.c.b16 %v5446, %v5434
        %v6659 = vpack.c.b16 %v5447, %v5435
        %v6660 = vpack.c.b16 %v5448, %v5436
        %v6661 = vpack.c.b16 %v5449, %v5437
        %v6662 = vpack.c.b16 %v5450, %v5438
        %v6663 = vpack.c.b16 %v5451, %v5439
        %v6664 = vpack.c.b16 %v5452, %v5440
        %v6665 = vpack.c.b16 %v5453, %v5441
        %v6666 = vpack.c.b16 %v5454, %v5442
        %v6667 = vpack.c.b16 %v5467, %v5455
        %v6668 = vpack.c.b16 %v5468, %v5456
        %v6669 = vpack.c.b16 %v5469, %v5457
        %v6670 = vpack.c.b16 %v5470, %v5458
        %v6671 = vpack.c.b16 %v5471, %v5459
        %v6672 = vpack.c.b16 %v5472, %v5460
        %v6673 = vpack.c.b16 %v5473, %v5461
        %v6674 = vpack.c.b16 %v5474, %v5462
        %v6675 = vpack.c.b16 %v5475, %v5463
        %v6676 = vpack.c.b16 %v5476, %v5464
        %v6677 = vpack.c.b16 %v5477, %v5465
        %v6678 = vpack.c.b16 %v5478, %v5466
        %v6679 = vpack.c.b16 %v5491, %v5479
        %v6680 = vpack.c.b16 %v5492, %v5480
        %v6681 = vpack.c.b16 %v5493, %v5481
        %v6682 = vpack.c.b16 %v5494, %v5482
        %v6683 = vpack.c.b16 %v5495, %v5483
        %v6684 = vpack.c.b16 %v5496, %v5484
        %v6685 = vpack.c.b16 %v5497, %v5485
        %v6686 = vpack.c.b16 %v5498, %v5486
        %v6687 = vpack.c.b16 %v5499, %v5487
        %v6688 = vpack.c.b16 %v5500, %v5488
        %v6689 = vpack.c.b16 %v5501, %v5489
        %v6690 = vpack.c.b16 %v5502, %v5490
        %v6691 = vpack.c.b16 %v5515, %v5503
        %v6692 = vpack.c.b16 %v5516, %v5504
        %v6693 = vpack.c.b16 %v5517, %v5505
        %v6694 = vpack.c.b16 %v5518, %v5506
        %v6695 = vpack.c.b16 %v5519, %v5507
        %v6696 = vpack.c.b16 %v5520, %v5508
        %v6697 = vpack.c.b16 %v5521, %v5509
        %v6698 = vpack.c.b16 %v5522, %v5510
        %v6699 = vpack.c.b16 %v5523, %v5511
        %v6700 = vpack.c.b16 %v5524, %v5512
        %v6701 = vpack.c.b16 %v5525, %v5513
        %v6702 = vpack.c.b16 %v5526, %v5514
        %v6703 = vpack.c.b16 %v5539, %v5527
        %v6704 = vpack.c.b16 %v5540, %v5528
        %v6705 = vpack.c.b16 %v5541, %v5529
        %v6706 = vpack.c.b16 %v5542, %v5530
        %v6707 = vpack.c.b16 %v5543, %v5531
        %v6708 = vpack.c.b16 %v5544, %v5532
        %v6709 = vpack.c.b16 %v5545, %v5533
        %v6710 = vpack.c.b16 %v5546, %v5534
        %v6711 = vpack.c.b16 %v5547, %v5535
        %v6712 = vpack.c.b16 %v5548, %v5536
        %v6713 = vpack.c.b16 %v5549, %v5537
        %v6714 = vpack.c.b16 %v5550, %v5538
        %v6715 = vpack.c.b16 %v5563, %v5551
        %v6716 = vpack.c.b16 %v5564, %v5552
        %v6717 = vpack.c.b16 %v5565, %v5553
        %v6718 = vpack.c.b16 %v5566, %v5554
        %v6719 = vpack.c.b16 %v5567, %v5555
        %v6720 = vpack.c.b16 %v5568, %v5556
        %v6721 = vpack.c.b16 %v5569, %v5557
        %v6722 = vpack.c.b16 %v5570, %v5558
        %v6723 = vpack.c.b16 %v5571, %v5559
        %v6724 = vpack.c.b16 %v5572, %v5560
        %v6725 = vpack.c.b16 %v5573, %v5561
        %v6726 = vpack.c.b16 %v5574, %v5562
        %7879 = vmatprep.subr.bf16.mxu0 %v5576
        %7880 = vmatpush1.bf16.msra.mxu0 %v5575
        %7881 = vmatprep.subr.bf16.mxu0 %v5588
        %7882 = vmatpush1.bf16.msra.mxu0 %v5587
        %7883 = vmatprep.subr.bf16.mxu0 %v5600
        %7884 = vmatpush1.bf16.msra.mxu0 %v5599
        %7885 = vmatprep.subr.bf16.mxu0 %v5612
        %7886 = vmatpush1.bf16.msra.mxu0 %v5611
        %7887 = vmatprep.subr.bf16.mxu0 %v5624
        %7888 = vmatpush1.bf16.msra.mxu0 %v5623
        %7889 = vmatprep.subr.bf16.mxu0 %v5636
        %7890 = vmatpush1.bf16.msra.mxu0 %v5635
        %7891 = vmatprep.subr.bf16.mxu0 %v5648
        %7892 = vmatpush1.bf16.msra.mxu0 %v5647
        %7893 = vmatprep.subr.bf16.mxu0 %v5660
        %7894 = vmatpush1.bf16.msra.mxu0 %v5659
        %7895 = vmatprep.subr.bf16.mxu0 %v5672
        %7896 = vmatpush1.bf16.msra.mxu0 %v5671
        %7897 = vmatprep.subr.bf16.mxu0 %v5684
        %7898 = vmatpush1.bf16.msra.mxu0 %v5683
        %7899 = vmatprep.subr.bf16.mxu0 %v5696
        %7900 = vmatpush1.bf16.msra.mxu0 %v5695
        %7901 = vmatprep.subr.bf16.mxu0 %v5708
        %7902 = vmatpush1.bf16.msra.mxu0 %v5707
        %7903 = vmatprep.subr.bf16.mxu0 %v5720
        %7904 = vmatpush1.bf16.msra.mxu0 %v5719
        %7905 = vmatprep.subr.bf16.mxu0 %v5732
        %7906 = vmatpush1.bf16.msra.mxu0 %v5731
        %7907 = vmatprep.subr.bf16.mxu0 %v5744
        %7908 = vmatpush1.bf16.msra.mxu0 %v5743
        %7909 = vmatprep.subr.bf16.mxu0 %v5756
        %7910 = vmatpush1.bf16.msra.mxu0 %v5755
        %7911 = vmatprep.mubr.bf16.mxu0 %v956
        %7912 = vmatmul.mubr.bf16.gmra.mrb[0].mxu0 %v955
        %v7913 = vpop.f32.mrb[0].mxu0
        %v7914 = vadd.f32 0.0, %v7913
        %v7915 = vpop.f32.mrb[0].mxu0
        %v7916 = vadd.f32 0.0, %v7915
        %v7917 = vpop.f32.mrb[0].mxu0
        %v7918 = vpop.f32.mrb[0].mxu0
        %7919 = vdwg.mxu0
        %7920 = vmatprep.subr.bf16.mxu0 %v5768
        %7921 = vmatpush1.bf16.msra.mxu0 %v5767
        %7922 = vmatprep.subr.bf16.mxu0 %v5780
        %7923 = vmatpush1.bf16.msra.mxu0 %v5779
        %7924 = vmatprep.subr.bf16.mxu0 %v5792
        %7925 = vmatpush1.bf16.msra.mxu0 %v5791
        %7926 = vmatprep.subr.bf16.mxu0 %v5804
        %7927 = vmatpush1.bf16.msra.mxu0 %v5803
        %7928 = vmatprep.subr.bf16.mxu0 %v5816
        %7929 = vmatpush1.bf16.msra.mxu0 %v5815
        %7930 = vmatprep.subr.bf16.mxu0 %v5828
        %7931 = vmatpush1.bf16.msra.mxu0 %v5827
        %7932 = vmatprep.subr.bf16.mxu0 %v5840
        %7933 = vmatpush1.bf16.msra.mxu0 %v5839
        %7934 = vmatprep.subr.bf16.mxu0 %v5852
        %7935 = vmatpush1.bf16.msra.mxu0 %v5851
        %7936 = vmatprep.subr.bf16.mxu0 %v5864
        %7937 = vmatpush1.bf16.msra.mxu0 %v5863
        %7938 = vmatprep.subr.bf16.mxu0 %v5876
        %7939 = vmatpush1.bf16.msra.mxu0 %v5875
        %7940 = vmatprep.subr.bf16.mxu0 %v5888
        %7941 = vmatpush1.bf16.msra.mxu0 %v5887
        %7942 = vmatprep.subr.bf16.mxu0 %v5900
        %7943 = vmatpush1.bf16.msra.mxu0 %v5899
        %7944 = vmatprep.subr.bf16.mxu0 %v5912
        %7945 = vmatpush1.bf16.msra.mxu0 %v5911
        %7946 = vmatprep.subr.bf16.mxu0 %v5924
        %7947 = vmatpush1.bf16.msra.mxu0 %v5923
        %7948 = vmatprep.subr.bf16.mxu0 %v5936
        %7949 = vmatpush1.bf16.msra.mxu0 %v5935
        %7950 = vmatprep.subr.bf16.mxu0 %v5948
        %7951 = vmatpush1.bf16.msra.mxu0 %v5947
        %7952 = vmatprep.mubr.bf16.mxu0 %v958
        %7953 = vmatmul.mubr.bf16.gmra.mrb[0].mxu0 %v957
        %v7954 = vpop.f32.mrb[0].mxu0
        %v7955 = vadd.f32 %v7914, %v7954
        %v7956 = vpop.f32.mrb[0].mxu0
        %v7957 = vadd.f32 %v7916, %v7956
        %v7958 = vpop.f32.mrb[0].mxu0
        %v7959 = vpop.f32.mrb[0].mxu0
        %7960 = vdwg.mxu0
        %7961 = vmatprep.subr.bf16.mxu0 %v5960
        %7962 = vmatpush1.bf16.msra.mxu0 %v5959
        %7963 = vmatprep.subr.bf16.mxu0 %v5972
        %7964 = vmatpush1.bf16.msra.mxu0 %v5971
        %7965 = vmatprep.subr.bf16.mxu0 %v5984
        %7966 = vmatpush1.bf16.msra.mxu0 %v5983
        %7967 = vmatprep.subr.bf16.mxu0 %v5996
        %7968 = vmatpush1.bf16.msra.mxu0 %v5995
        %7969 = vmatprep.subr.bf16.mxu0 %v6008
        %7970 = vmatpush1.bf16.msra.mxu0 %v6007
        %7971 = vmatprep.subr.bf16.mxu0 %v6020
        %7972 = vmatpush1.bf16.msra.mxu0 %v6019
        %7973 = vmatprep.subr.bf16.mxu0 %v6032
        %7974 = vmatpush1.bf16.msra.mxu0 %v6031
        %7975 = vmatprep.subr.bf16.mxu0 %v6044
        %7976 = vmatpush1.bf16.msra.mxu0 %v6043
        %7977 = vmatprep.subr.bf16.mxu0 %v6056
        %7978 = vmatpush1.bf16.msra.mxu0 %v6055
        %7979 = vmatprep.subr.bf16.mxu0 %v6068
        %7980 = vmatpush1.bf16.msra.mxu0 %v6067
        %7981 = vmatprep.subr.bf16.mxu0 %v6080
        %7982 = vmatpush1.bf16.msra.mxu0 %v6079
        %7983 = vmatprep.subr.bf16.mxu0 %v6092
        %7984 = vmatpush1.bf16.msra.mxu0 %v6091
        %7985 = vmatprep.subr.bf16.mxu0 %v6104
        %7986 = vmatpush1.bf16.msra.mxu0 %v6103
        %7987 = vmatprep.subr.bf16.mxu0 %v6116
        %7988 = vmatpush1.bf16.msra.mxu0 %v6115
        %7989 = vmatprep.subr.bf16.mxu0 %v6128
        %7990 = vmatpush1.bf16.msra.mxu0 %v6127
        %7991 = vmatprep.subr.bf16.mxu0 %v6140
        %7992 = vmatpush1.bf16.msra.mxu0 %v6139
        %7993 = vmatprep.mubr.bf16.mxu0 %v960
        %7994 = vmatmul.mubr.bf16.gmra.mrb[0].mxu0 %v959
        %v7995 = vpop.f32.mrb[0].mxu0
        %v7996 = vadd.f32 %v7955, %v7995
        %v7997 = vpop.f32.mrb[0].mxu0
        %v7998 = vadd.f32 %v7957, %v7997
        %v7999 = vpop.f32.mrb[0].mxu0
        %v8000 = vpop.f32.mrb[0].mxu0
        %8001 = vdwg.mxu0
        %8002 = vmatprep.subr.bf16.mxu0 %v6152
        %8003 = vmatpush1.bf16.msra.mxu0 %v6151
        %8004 = vmatprep.subr.bf16.mxu0 %v6164
        %8005 = vmatpush1.bf16.msra.mxu0 %v6163
        %8006 = vmatprep.subr.bf16.mxu0 %v6176
        %8007 = vmatpush1.bf16.msra.mxu0 %v6175
        %8008 = vmatprep.subr.bf16.mxu0 %v6188
        %8009 = vmatpush1.bf16.msra.mxu0 %v6187
        %8010 = vmatprep.subr.bf16.mxu0 %v6200
        %8011 = vmatpush1.bf16.msra.mxu0 %v6199
        %8012 = vmatprep.subr.bf16.mxu0 %v6212
        %8013 = vmatpush1.bf16.msra.mxu0 %v6211
        %8014 = vmatprep.subr.bf16.mxu0 %v6224
        %8015 = vmatpush1.bf16.msra.mxu0 %v6223
        %8016 = vmatprep.subr.bf16.mxu0 %v6236
        %8017 = vmatpush1.bf16.msra.mxu0 %v6235
        %8018 = vmatprep.subr.bf16.mxu0 %v6248
        %8019 = vmatpush1.bf16.msra.mxu0 %v6247
        %8020 = vmatprep.subr.bf16.mxu0 %v6260
        %8021 = vmatpush1.bf16.msra.mxu0 %v6259
        %8022 = vmatprep.subr.bf16.mxu0 %v6272
        %8023 = vmatpush1.bf16.msra.mxu0 %v6271
        %8024 = vmatprep.subr.bf16.mxu0 %v6284
        %8025 = vmatpush1.bf16.msra.mxu0 %v6283
        %8026 = vmatprep.subr.bf16.mxu0 %v6296
        %8027 = vmatpush1.bf16.msra.mxu0 %v6295
        %8028 = vmatprep.subr.bf16.mxu0 %v6308
        %8029 = vmatpush1.bf16.msra.mxu0 %v6307
        %8030 = vmatprep.subr.bf16.mxu0 %v6320
        %8031 = vmatpush1.bf16.msra.mxu0 %v6319
        %8032 = vmatprep.subr.bf16.mxu0 %v6332
        %8033 = vmatpush1.bf16.msra.mxu0 %v6331
        %8034 = vmatprep.mubr.bf16.mxu0 %v962
        %8035 = vmatmul.mubr.bf16.gmra.mrb[0].mxu0 %v961
        %v8036 = vpop.f32.mrb[0].mxu0
        %v8037 = vadd.f32 %v7996, %v8036
        %v8038 = vpop.f32.mrb[0].mxu0
        %v8039 = vadd.f32 %v7998, %v8038
        %v8040 = vpop.f32.mrb[0].mxu0
        %v8041 = vpop.f32.mrb[0].mxu0
        %8042 = vdwg.mxu0
        %8043 = vmatprep.subr.bf16.mxu0 %v6344
        %8044 = vmatpush1.bf16.msra.mxu0 %v6343
        %8045 = vmatprep.subr.bf16.mxu0 %v6356
        %8046 = vmatpush1.bf16.msra.mxu0 %v6355
        %8047 = vmatprep.subr.bf16.mxu0 %v6368
        %8048 = vmatpush1.bf16.msra.mxu0 %v6367
        %8049 = vmatprep.subr.bf16.mxu0 %v6380
        %8050 = vmatpush1.bf16.msra.mxu0 %v6379
        %8051 = vmatprep.subr.bf16.mxu0 %v6392
        %8052 = vmatpush1.bf16.msra.mxu0 %v6391
        %8053 = vmatprep.subr.bf16.mxu0 %v6404
        %8054 = vmatpush1.bf16.msra.mxu0 %v6403
        %8055 = vmatprep.subr.bf16.mxu0 %v6416
        %8056 = vmatpush1.bf16.msra.mxu0 %v6415
        %8057 = vmatprep.subr.bf16.mxu0 %v6428
        %8058 = vmatpush1.bf16.msra.mxu0 %v6427
        %8059 = vmatprep.subr.bf16.mxu0 %v6440
        %8060 = vmatpush1.bf16.msra.mxu0 %v6439
        %8061 = vmatprep.subr.bf16.mxu0 %v6452
        %8062 = vmatpush1.bf16.msra.mxu0 %v6451
        %8063 = vmatprep.subr.bf16.mxu0 %v6464
        %8064 = vmatpush1.bf16.msra.mxu0 %v6463
        %8065 = vmatprep.subr.bf16.mxu0 %v6476
        %8066 = vmatpush1.bf16.msra.mxu0 %v6475
        %8067 = vmatprep.subr.bf16.mxu0 %v6488
        %8068 = vmatpush1.bf16.msra.mxu0 %v6487
        %8069 = vmatprep.subr.bf16.mxu0 %v6500
        %8070 = vmatpush1.bf16.msra.mxu0 %v6499
        %8071 = vmatprep.subr.bf16.mxu0 %v6512
        %8072 = vmatpush1.bf16.msra.mxu0 %v6511
        %8073 = vmatprep.subr.bf16.mxu0 %v6524
        %8074 = vmatpush1.bf16.msra.mxu0 %v6523
        %8075 = vmatprep.mubr.bf16.mxu0 %v964
        %8076 = vmatmul.mubr.bf16.gmra.mrb[0].mxu0 %v963
        %v8077 = vpop.f32.mrb[0].mxu0
        %v8078 = vadd.f32 %v8037, %v8077
        %v8079 = vpop.f32.mrb[0].mxu0
        %v8080 = vadd.f32 %v8039, %v8079
        %v8081 = vpop.f32.mrb[0].mxu0
        %v8082 = vpop.f32.mrb[0].mxu0
        %8083 = vdwg.mxu0
        %8084 = vmatprep.subr.bf16.mxu0 %v6536
        %8085 = vmatpush1.bf16.msra.mxu0 %v6535
        %8086 = vmatprep.subr.bf16.mxu0 %v6548
        %8087 = vmatpush1.bf16.msra.mxu0 %v6547
        %8088 = vmatprep.subr.bf16.mxu0 %v6560
        %8089 = vmatpush1.bf16.msra.mxu0 %v6559
        %8090 = vmatprep.subr.bf16.mxu0 %v6572
        %8091 = vmatpush1.bf16.msra.mxu0 %v6571
        %8092 = vmatprep.subr.bf16.mxu0 %v6584
        %8093 = vmatpush1.bf16.msra.mxu0 %v6583
        %8094 = vmatprep.subr.bf16.mxu0 %v6596
        %8095 = vmatpush1.bf16.msra.mxu0 %v6595
        %8096 = vmatprep.subr.bf16.mxu0 %v6608
        %8097 = vmatpush1.bf16.msra.mxu0 %v6607
        %8098 = vmatprep.subr.bf16.mxu0 %v6620
        %8099 = vmatpush1.bf16.msra.mxu0 %v6619
        %8100 = vmatprep.subr.bf16.mxu0 %v6632
        %8101 = vmatpush1.bf16.msra.mxu0 %v6631
        %8102 = vmatprep.subr.bf16.mxu0 %v6644
        %8103 = vmatpush1.bf16.msra.mxu0 %v6643
        %8104 = vmatprep.subr.bf16.mxu0 %v6656
        %8105 = vmatpush1.bf16.msra.mxu0 %v6655
        %8106 = vmatprep.subr.bf16.mxu0 %v6668
        %8107 = vmatpush1.bf16.msra.mxu0 %v6667
        %8108 = vmatprep.subr.bf16.mxu0 %v6680
        %8109 = vmatpush1.bf16.msra.mxu0 %v6679
        %8110 = vmatprep.subr.bf16.mxu0 %v6692
        %8111 = vmatpush1.bf16.msra.mxu0 %v6691
        %8112 = vmatprep.subr.bf16.mxu0 %v6704
        %8113 = vmatpush1.bf16.msra.mxu0 %v6703
        %8114 = vmatprep.subr.bf16.mxu0 %v6716
        %8115 = vmatpush1.bf16.msra.mxu0 %v6715
        %8116 = vmatprep.mubr.bf16.mxu0 %v966
        %8117 = vmatmul.mubr.bf16.gmra.mrb[0].mxu0 %v965
        %v8118 = vpop.f32.mrb[0].mxu0
        %v8119 = vadd.f32 %v8078, %v8118
        %v8120 = vpop.f32.mrb[0].mxu0
        %v8121 = vadd.f32 %v8080, %v8120
        %v8122 = vpop.f32.mrb[0].mxu0
        %v8123 = vpop.f32.mrb[0].mxu0
        %8124 = vdwg.mxu0
        %8125 = vmatprep.subr.bf16.mxu0 %v5578
        %8126 = vmatpush1.bf16.msra.mxu0 %v5577
        %8127 = vmatprep.subr.bf16.mxu0 %v5590
        %8128 = vmatpush1.bf16.msra.mxu0 %v5589
        %8129 = vmatprep.subr.bf16.mxu0 %v5602
        %8130 = vmatpush1.bf16.msra.mxu0 %v5601
        %8131 = vmatprep.subr.bf16.mxu0 %v5614
        %8132 = vmatpush1.bf16.msra.mxu0 %v5613
        %8133 = vmatprep.subr.bf16.mxu0 %v5626
        %8134 = vmatpush1.bf16.msra.mxu0 %v5625
        %8135 = vmatprep.subr.bf16.mxu0 %v5638
        %8136 = vmatpush1.bf16.msra.mxu0 %v5637
        %8137 = vmatprep.subr.bf16.mxu0 %v5650
        %8138 = vmatpush1.bf16.msra.mxu0 %v5649
        %8139 = vmatprep.subr.bf16.mxu0 %v5662
        %8140 = vmatpush1.bf16.msra.mxu0 %v5661
        %8141 = vmatprep.subr.bf16.mxu0 %v5674
        %8142 = vmatpush1.bf16.msra.mxu0 %v5673
        %8143 = vmatprep.subr.bf16.mxu0 %v5686
        %8144 = vmatpush1.bf16.msra.mxu0 %v5685
        %8145 = vmatprep.subr.bf16.mxu0 %v5698
        %8146 = vmatpush1.bf16.msra.mxu0 %v5697
        %8147 = vmatprep.subr.bf16.mxu0 %v5710
        %8148 = vmatpush1.bf16.msra.mxu0 %v5709
        %8149 = vmatprep.subr.bf16.mxu0 %v5722
        %8150 = vmatpush1.bf16.msra.mxu0 %v5721
        %8151 = vmatprep.subr.bf16.mxu0 %v5734
        %8152 = vmatpush1.bf16.msra.mxu0 %v5733
        %8153 = vmatprep.subr.bf16.mxu0 %v5746
        %8154 = vmatpush1.bf16.msra.mxu0 %v5745
        %8155 = vmatprep.subr.bf16.mxu0 %v5758
        %8156 = vmatpush1.bf16.msra.mxu0 %v5757
        %8157 = vmatprep.mubr.bf16.mxu0 %v956
        %8158 = vmatmul.mubr.bf16.gmra.mrb[0].mxu0 %v955
        %v8159 = vpop.f32.mrb[0].mxu0
        %v8160 = vadd.f32 0.0, %v8159
        %v8161 = vpop.f32.mrb[0].mxu0
        %v8162 = vadd.f32 0.0, %v8161
        %v8163 = vpop.f32.mrb[0].mxu0
        %v8164 = vpop.f32.mrb[0].mxu0
        %8165 = vdwg.mxu0
        %8166 = vmatprep.subr.bf16.mxu0 %v5770
        %8167 = vmatpush1.bf16.msra.mxu0 %v5769
        %8168 = vmatprep.subr.bf16.mxu0 %v5782
        %8169 = vmatpush1.bf16.msra.mxu0 %v5781
        %8170 = vmatprep.subr.bf16.mxu0 %v5794
        %8171 = vmatpush1.bf16.msra.mxu0 %v5793
        %8172 = vmatprep.subr.bf16.mxu0 %v5806
        %8173 = vmatpush1.bf16.msra.mxu0 %v5805
        %8174 = vmatprep.subr.bf16.mxu0 %v5818
        %8175 = vmatpush1.bf16.msra.mxu0 %v5817
        %8176 = vmatprep.subr.bf16.mxu0 %v5830
        %8177 = vmatpush1.bf16.msra.mxu0 %v5829
        %8178 = vmatprep.subr.bf16.mxu0 %v5842
        %8179 = vmatpush1.bf16.msra.mxu0 %v5841
        %8180 = vmatprep.subr.bf16.mxu0 %v5854
        %8181 = vmatpush1.bf16.msra.mxu0 %v5853
        %8182 = vmatprep.subr.bf16.mxu0 %v5866
        %8183 = vmatpush1.bf16.msra.mxu0 %v5865
        %8184 = vmatprep.subr.bf16.mxu0 %v5878
        %8185 = vmatpush1.bf16.msra.mxu0 %v5877
        %8186 = vmatprep.subr.bf16.mxu0 %v5890
        %8187 = vmatpush1.bf16.msra.mxu0 %v5889
        %8188 = vmatprep.subr.bf16.mxu0 %v5902
        %8189 = vmatpush1.bf16.msra.mxu0 %v5901
        %8190 = vmatprep.subr.bf16.mxu0 %v5914
        %8191 = vmatpush1.bf16.msra.mxu0 %v5913
        %8192 = vmatprep.subr.bf16.mxu0 %v5926
        %8193 = vmatpush1.bf16.msra.mxu0 %v5925
        %8194 = vmatprep.subr.bf16.mxu0 %v5938
        %8195 = vmatpush1.bf16.msra.mxu0 %v5937
        %8196 = vmatprep.subr.bf16.mxu0 %v5950
        %8197 = vmatpush1.bf16.msra.mxu0 %v5949
        %8198 = vmatprep.mubr.bf16.mxu0 %v958
        %8199 = vmatmul.mubr.bf16.gmra.mrb[0].mxu0 %v957
        %v8200 = vpop.f32.mrb[0].mxu0
        %v8201 = vadd.f32 %v8160, %v8200
        %v8202 = vpop.f32.mrb[0].mxu0
        %v8203 = vadd.f32 %v8162, %v8202
        %v8204 = vpop.f32.mrb[0].mxu0
        %v8205 = vpop.f32.mrb[0].mxu0
        %8206 = vdwg.mxu0
        %8207 = vmatprep.subr.bf16.mxu0 %v5962
        %8208 = vmatpush1.bf16.msra.mxu0 %v5961
        %8209 = vmatprep.subr.bf16.mxu0 %v5974
        %8210 = vmatpush1.bf16.msra.mxu0 %v5973
        %8211 = vmatprep.subr.bf16.mxu0 %v5986
        %8212 = vmatpush1.bf16.msra.mxu0 %v5985
        %8213 = vmatprep.subr.bf16.mxu0 %v5998
        %8214 = vmatpush1.bf16.msra.mxu0 %v5997
        %8215 = vmatprep.subr.bf16.mxu0 %v6010
        %8216 = vmatpush1.bf16.msra.mxu0 %v6009
        %8217 = vmatprep.subr.bf16.mxu0 %v6022
        %8218 = vmatpush1.bf16.msra.mxu0 %v6021
        %8219 = vmatprep.subr.bf16.mxu0 %v6034
        %8220 = vmatpush1.bf16.msra.mxu0 %v6033
        %8221 = vmatprep.subr.bf16.mxu0 %v6046
        %8222 = vmatpush1.bf16.msra.mxu0 %v6045
        %8223 = vmatprep.subr.bf16.mxu0 %v6058
        %8224 = vmatpush1.bf16.msra.mxu0 %v6057
        %8225 = vmatprep.subr.bf16.mxu0 %v6070
        %8226 = vmatpush1.bf16.msra.mxu0 %v6069
        %8227 = vmatprep.subr.bf16.mxu0 %v6082
        %8228 = vmatpush1.bf16.msra.mxu0 %v6081
        %8229 = vmatprep.subr.bf16.mxu0 %v6094
        %8230 = vmatpush1.bf16.msra.mxu0 %v6093
        %8231 = vmatprep.subr.bf16.mxu0 %v6106
        %8232 = vmatpush1.bf16.msra.mxu0 %v6105
        %8233 = vmatprep.subr.bf16.mxu0 %v6118
        %8234 = vmatpush1.bf16.msra.mxu0 %v6117
        %8235 = vmatprep.subr.bf16.mxu0 %v6130
        %8236 = vmatpush1.bf16.msra.mxu0 %v6129
        %8237 = vmatprep.subr.bf16.mxu0 %v6142
        %8238 = vmatpush1.bf16.msra.mxu0 %v6141
        %8239 = vmatprep.mubr.bf16.mxu0 %v960
        %8240 = vmatmul.mubr.bf16.gmra.mrb[0].mxu0 %v959
        %v8241 = vpop.f32.mrb[0].mxu0
        %v8242 = vadd.f32 %v8201, %v8241
        %v8243 = vpop.f32.mrb[0].mxu0
        %v8244 = vadd.f32 %v8203, %v8243
        %v8245 = vpop.f32.mrb[0].mxu0
        %v8246 = vpop.f32.mrb[0].mxu0
        %8247 = vdwg.mxu0
        %8248 = vmatprep.subr.bf16.mxu0 %v6154
        %8249 = vmatpush1.bf16.msra.mxu0 %v6153
        %8250 = vmatprep.subr.bf16.mxu0 %v6166
        %8251 = vmatpush1.bf16.msra.mxu0 %v6165
        %8252 = vmatprep.subr.bf16.mxu0 %v6178
        %8253 = vmatpush1.bf16.msra.mxu0 %v6177
        %8254 = vmatprep.subr.bf16.mxu0 %v6190
        %8255 = vmatpush1.bf16.msra.mxu0 %v6189
        %8256 = vmatprep.subr.bf16.mxu0 %v6202
        %8257 = vmatpush1.bf16.msra.mxu0 %v6201
        %8258 = vmatprep.subr.bf16.mxu0 %v6214
        %8259 = vmatpush1.bf16.msra.mxu0 %v6213
        %8260 = vmatprep.subr.bf16.mxu0 %v6226
        %8261 = vmatpush1.bf16.msra.mxu0 %v6225
        %8262 = vmatprep.subr.bf16.mxu0 %v6238
        %8263 = vmatpush1.bf16.msra.mxu0 %v6237
        %8264 = vmatprep.subr.bf16.mxu0 %v6250
        %8265 = vmatpush1.bf16.msra.mxu0 %v6249
        %8266 = vmatprep.subr.bf16.mxu0 %v6262
        %8267 = vmatpush1.bf16.msra.mxu0 %v6261
        %8268 = vmatprep.subr.bf16.mxu0 %v6274
        %8269 = vmatpush1.bf16.msra.mxu0 %v6273
        %8270 = vmatprep.subr.bf16.mxu0 %v6286
        %8271 = vmatpush1.bf16.msra.mxu0 %v6285
        %8272 = vmatprep.subr.bf16.mxu0 %v6298
        %8273 = vmatpush1.bf16.msra.mxu0 %v6297
        %8274 = vmatprep.subr.bf16.mxu0 %v6310
        %8275 = vmatpush1.bf16.msra.mxu0 %v6309
        %8276 = vmatprep.subr.bf16.mxu0 %v6322
        %8277 = vmatpush1.bf16.msra.mxu0 %v6321
        %8278 = vmatprep.subr.bf16.mxu0 %v6334
        %8279 = vmatpush1.bf16.msra.mxu0 %v6333
        %8280 = vmatprep.mubr.bf16.mxu0 %v962
        %8281 = vmatmul.mubr.bf16.gmra.mrb[0].mxu0 %v961
        %v8282 = vpop.f32.mrb[0].mxu0
        %v8283 = vadd.f32 %v8242, %v8282
        %v8284 = vpop.f32.mrb[0].mxu0
        %v8285 = vadd.f32 %v8244, %v8284
        %v8286 = vpop.f32.mrb[0].mxu0
        %v8287 = vpop.f32.mrb[0].mxu0
        %8288 = vdwg.mxu0
        %8289 = vmatprep.subr.bf16.mxu0 %v6346
        %8290 = vmatpush1.bf16.msra.mxu0 %v6345
        %8291 = vmatprep.subr.bf16.mxu0 %v6358
        %8292 = vmatpush1.bf16.msra.mxu0 %v6357
        %8293 = vmatprep.subr.bf16.mxu0 %v6370
        %8294 = vmatpush1.bf16.msra.mxu0 %v6369
        %8295 = vmatprep.subr.bf16.mxu0 %v6382
        %8296 = vmatpush1.bf16.msra.mxu0 %v6381
        %8297 = vmatprep.subr.bf16.mxu0 %v6394
        %8298 = vmatpush1.bf16.msra.mxu0 %v6393
        %8299 = vmatprep.subr.bf16.mxu0 %v6406
        %8300 = vmatpush1.bf16.msra.mxu0 %v6405
        %8301 = vmatprep.subr.bf16.mxu0 %v6418
        %8302 = vmatpush1.bf16.msra.mxu0 %v6417
        %8303 = vmatprep.subr.bf16.mxu0 %v6430
        %8304 = vmatpush1.bf16.msra.mxu0 %v6429
        %8305 = vmatprep.subr.bf16.mxu0 %v6442
        %8306 = vmatpush1.bf16.msra.mxu0 %v6441
        %8307 = vmatprep.subr.bf16.mxu0 %v6454
        %8308 = vmatpush1.bf16.msra.mxu0 %v6453
        %8309 = vmatprep.subr.bf16.mxu0 %v6466
        %8310 = vmatpush1.bf16.msra.mxu0 %v6465
        %8311 = vmatprep.subr.bf16.mxu0 %v6478
        %8312 = vmatpush1.bf16.msra.mxu0 %v6477
        %8313 = vmatprep.subr.bf16.mxu0 %v6490
        %8314 = vmatpush1.bf16.msra.mxu0 %v6489
        %8315 = vmatprep.subr.bf16.mxu0 %v6502
        %8316 = vmatpush1.bf16.msra.mxu0 %v6501
        %8317 = vmatprep.subr.bf16.mxu0 %v6514
        %8318 = vmatpush1.bf16.msra.mxu0 %v6513
        %8319 = vmatprep.subr.bf16.mxu0 %v6526
        %8320 = vmatpush1.bf16.msra.mxu0 %v6525
        %8321 = vmatprep.mubr.bf16.mxu0 %v964
        %8322 = vmatmul.mubr.bf16.gmra.mrb[0].mxu0 %v963
        %v8323 = vpop.f32.mrb[0].mxu0
        %v8324 = vadd.f32 %v8283, %v8323
        %v8325 = vpop.f32.mrb[0].mxu0
        %v8326 = vadd.f32 %v8285, %v8325
        %v8327 = vpop.f32.mrb[0].mxu0
        %v8328 = vpop.f32.mrb[0].mxu0
        %8329 = vdwg.mxu0
        %8330 = vmatprep.subr.bf16.mxu0 %v6538
        %8331 = vmatpush1.bf16.msra.mxu0 %v6537
        %8332 = vmatprep.subr.bf16.mxu0 %v6550
        %8333 = vmatpush1.bf16.msra.mxu0 %v6549
        %8334 = vmatprep.subr.bf16.mxu0 %v6562
        %8335 = vmatpush1.bf16.msra.mxu0 %v6561
        %8336 = vmatprep.subr.bf16.mxu0 %v6574
        %8337 = vmatpush1.bf16.msra.mxu0 %v6573
        %8338 = vmatprep.subr.bf16.mxu0 %v6586
        %8339 = vmatpush1.bf16.msra.mxu0 %v6585
        %8340 = vmatprep.subr.bf16.mxu0 %v6598
        %8341 = vmatpush1.bf16.msra.mxu0 %v6597
        %8342 = vmatprep.subr.bf16.mxu0 %v6610
        %8343 = vmatpush1.bf16.msra.mxu0 %v6609
        %8344 = vmatprep.subr.bf16.mxu0 %v6622
        %8345 = vmatpush1.bf16.msra.mxu0 %v6621
        %8346 = vmatprep.subr.bf16.mxu0 %v6634
        %8347 = vmatpush1.bf16.msra.mxu0 %v6633
        %8348 = vmatprep.subr.bf16.mxu0 %v6646
        %8349 = vmatpush1.bf16.msra.mxu0 %v6645
        %8350 = vmatprep.subr.bf16.mxu0 %v6658
        %8351 = vmatpush1.bf16.msra.mxu0 %v6657
        %8352 = vmatprep.subr.bf16.mxu0 %v6670
        %8353 = vmatpush1.bf16.msra.mxu0 %v6669
        %8354 = vmatprep.subr.bf16.mxu0 %v6682
        %8355 = vmatpush1.bf16.msra.mxu0 %v6681
        %8356 = vmatprep.subr.bf16.mxu0 %v6694
        %8357 = vmatpush1.bf16.msra.mxu0 %v6693
        %8358 = vmatprep.subr.bf16.mxu0 %v6706
        %8359 = vmatpush1.bf16.msra.mxu0 %v6705
        %8360 = vmatprep.subr.bf16.mxu0 %v6718
        %8361 = vmatpush1.bf16.msra.mxu0 %v6717
        %8362 = vmatprep.mubr.bf16.mxu0 %v966
        %8363 = vmatmul.mubr.bf16.gmra.mrb[0].mxu0 %v965
        %v8364 = vpop.f32.mrb[0].mxu0
        %v8365 = vadd.f32 %v8324, %v8364
        %v8366 = vpop.f32.mrb[0].mxu0
        %v8367 = vadd.f32 %v8326, %v8366
        %v8368 = vpop.f32.mrb[0].mxu0
        %v8369 = vpop.f32.mrb[0].mxu0
        %8370 = vdwg.mxu0
        %8371 = vmatprep.subr.bf16.mxu0 %v5580
        %8372 = vmatpush1.bf16.msra.mxu0 %v5579
        %8373 = vmatprep.subr.bf16.mxu0 %v5592
        %8374 = vmatpush1.bf16.msra.mxu0 %v5591
        %8375 = vmatprep.subr.bf16.mxu0 %v5604
        %8376 = vmatpush1.bf16.msra.mxu0 %v5603
        %8377 = vmatprep.subr.bf16.mxu0 %v5616
        %8378 = vmatpush1.bf16.msra.mxu0 %v5615
        %8379 = vmatprep.subr.bf16.mxu0 %v5628
        %8380 = vmatpush1.bf16.msra.mxu0 %v5627
        %8381 = vmatprep.subr.bf16.mxu0 %v5640
        %8382 = vmatpush1.bf16.msra.mxu0 %v5639
        %8383 = vmatprep.subr.bf16.mxu0 %v5652
        %8384 = vmatpush1.bf16.msra.mxu0 %v5651
        %8385 = vmatprep.subr.bf16.mxu0 %v5664
        %8386 = vmatpush1.bf16.msra.mxu0 %v5663
        %8387 = vmatprep.subr.bf16.mxu0 %v5676
        %8388 = vmatpush1.bf16.msra.mxu0 %v5675
        %8389 = vmatprep.subr.bf16.mxu0 %v5688
        %8390 = vmatpush1.bf16.msra.mxu0 %v5687
        %8391 = vmatprep.subr.bf16.mxu0 %v5700
        %8392 = vmatpush1.bf16.msra.mxu0 %v5699
        %8393 = vmatprep.subr.bf16.mxu0 %v5712
        %8394 = vmatpush1.bf16.msra.mxu0 %v5711
        %8395 = vmatprep.subr.bf16.mxu0 %v5724
        %8396 = vmatpush1.bf16.msra.mxu0 %v5723
        %8397 = vmatprep.subr.bf16.mxu0 %v5736
        %8398 = vmatpush1.bf16.msra.mxu0 %v5735
        %8399 = vmatprep.subr.bf16.mxu0 %v5748
        %8400 = vmatpush1.bf16.msra.mxu0 %v5747
        %8401 = vmatprep.subr.bf16.mxu0 %v5760
        %8402 = vmatpush1.bf16.msra.mxu0 %v5759
        %8403 = vmatprep.mubr.bf16.mxu0 %v956
        %8404 = vmatmul.mubr.bf16.gmra.mrb[0].mxu0 %v955
        %v8405 = vpop.f32.mrb[0].mxu0
        %v8406 = vadd.f32 0.0, %v8405
        %v8407 = vpop.f32.mrb[0].mxu0
        %v8408 = vadd.f32 0.0, %v8407
        %v8409 = vpop.f32.mrb[0].mxu0
        %v8410 = vpop.f32.mrb[0].mxu0
        %8411 = vdwg.mxu0
        %8412 = vmatprep.subr.bf16.mxu0 %v5772
        %8413 = vmatpush1.bf16.msra.mxu0 %v5771
        %8414 = vmatprep.subr.bf16.mxu0 %v5784
        %8415 = vmatpush1.bf16.msra.mxu0 %v5783
        %8416 = vmatprep.subr.bf16.mxu0 %v5796
        %8417 = vmatpush1.bf16.msra.mxu0 %v5795
        %8418 = vmatprep.subr.bf16.mxu0 %v5808
        %8419 = vmatpush1.bf16.msra.mxu0 %v5807
        %8420 = vmatprep.subr.bf16.mxu0 %v5820
        %8421 = vmatpush1.bf16.msra.mxu0 %v5819
        %8422 = vmatprep.subr.bf16.mxu0 %v5832
        %8423 = vmatpush1.bf16.msra.mxu0 %v5831
        %8424 = vmatprep.subr.bf16.mxu0 %v5844
        %8425 = vmatpush1.bf16.msra.mxu0 %v5843
        %8426 = vmatprep.subr.bf16.mxu0 %v5856
        %8427 = vmatpush1.bf16.msra.mxu0 %v5855
        %8428 = vmatprep.subr.bf16.mxu0 %v5868
        %8429 = vmatpush1.bf16.msra.mxu0 %v5867
        %8430 = vmatprep.subr.bf16.mxu0 %v5880
        %8431 = vmatpush1.bf16.msra.mxu0 %v5879
        %8432 = vmatprep.subr.bf16.mxu0 %v5892
        %8433 = vmatpush1.bf16.msra.mxu0 %v5891
        %8434 = vmatprep.subr.bf16.mxu0 %v5904
        %8435 = vmatpush1.bf16.msra.mxu0 %v5903
        %8436 = vmatprep.subr.bf16.mxu0 %v5916
        %8437 = vmatpush1.bf16.msra.mxu0 %v5915
        %8438 = vmatprep.subr.bf16.mxu0 %v5928
        %8439 = vmatpush1.bf16.msra.mxu0 %v5927
        %8440 = vmatprep.subr.bf16.mxu0 %v5940
        %8441 = vmatpush1.bf16.msra.mxu0 %v5939
        %8442 = vmatprep.subr.bf16.mxu0 %v5952
        %8443 = vmatpush1.bf16.msra.mxu0 %v5951
        %8444 = vmatprep.mubr.bf16.mxu0 %v958
        %8445 = vmatmul.mubr.bf16.gmra.mrb[0].mxu0 %v957
        %v8446 = vpop.f32.mrb[0].mxu0
        %v8447 = vadd.f32 %v8406, %v8446
        %v8448 = vpop.f32.mrb[0].mxu0
        %v8449 = vadd.f32 %v8408, %v8448
        %v8450 = vpop.f32.mrb[0].mxu0
        %v8451 = vpop.f32.mrb[0].mxu0
        %8452 = vdwg.mxu0
        %8453 = vmatprep.subr.bf16.mxu0 %v5964
        %8454 = vmatpush1.bf16.msra.mxu0 %v5963
        %8455 = vmatprep.subr.bf16.mxu0 %v5976
        %8456 = vmatpush1.bf16.msra.mxu0 %v5975
        %8457 = vmatprep.subr.bf16.mxu0 %v5988
        %8458 = vmatpush1.bf16.msra.mxu0 %v5987
        %8459 = vmatprep.subr.bf16.mxu0 %v6000
        %8460 = vmatpush1.bf16.msra.mxu0 %v5999
        %8461 = vmatprep.subr.bf16.mxu0 %v6012
        %8462 = vmatpush1.bf16.msra.mxu0 %v6011
        %8463 = vmatprep.subr.bf16.mxu0 %v6024
        %8464 = vmatpush1.bf16.msra.mxu0 %v6023
        %8465 = vmatprep.subr.bf16.mxu0 %v6036
        %8466 = vmatpush1.bf16.msra.mxu0 %v6035
        %8467 = vmatprep.subr.bf16.mxu0 %v6048
        %8468 = vmatpush1.bf16.msra.mxu0 %v6047
        %8469 = vmatprep.subr.bf16.mxu0 %v6060
        %8470 = vmatpush1.bf16.msra.mxu0 %v6059
        %8471 = vmatprep.subr.bf16.mxu0 %v6072
        %8472 = vmatpush1.bf16.msra.mxu0 %v6071
        %8473 = vmatprep.subr.bf16.mxu0 %v6084
        %8474 = vmatpush1.bf16.msra.mxu0 %v6083
        %8475 = vmatprep.subr.bf16.mxu0 %v6096
        %8476 = vmatpush1.bf16.msra.mxu0 %v6095
        %8477 = vmatprep.subr.bf16.mxu0 %v6108
        %8478 = vmatpush1.bf16.msra.mxu0 %v6107
        %8479 = vmatprep.subr.bf16.mxu0 %v6120
        %8480 = vmatpush1.bf16.msra.mxu0 %v6119
        %8481 = vmatprep.subr.bf16.mxu0 %v6132
        %8482 = vmatpush1.bf16.msra.mxu0 %v6131
        %8483 = vmatprep.subr.bf16.mxu0 %v6144
        %8484 = vmatpush1.bf16.msra.mxu0 %v6143
        %8485 = vmatprep.mubr.bf16.mxu0 %v960
        %8486 = vmatmul.mubr.bf16.gmra.mrb[0].mxu0 %v959
        %v8487 = vpop.f32.mrb[0].mxu0
        %v8488 = vadd.f32 %v8447, %v8487
        %v8489 = vpop.f32.mrb[0].mxu0
        %v8490 = vadd.f32 %v8449, %v8489
        %v8491 = vpop.f32.mrb[0].mxu0
        %v8492 = vpop.f32.mrb[0].mxu0
        %8493 = vdwg.mxu0
        %8494 = vmatprep.subr.bf16.mxu0 %v6156
        %8495 = vmatpush1.bf16.msra.mxu0 %v6155
        %8496 = vmatprep.subr.bf16.mxu0 %v6168
        %8497 = vmatpush1.bf16.msra.mxu0 %v6167
        %8498 = vmatprep.subr.bf16.mxu0 %v6180
        %8499 = vmatpush1.bf16.msra.mxu0 %v6179
        %8500 = vmatprep.subr.bf16.mxu0 %v6192
        %8501 = vmatpush1.bf16.msra.mxu0 %v6191
        %8502 = vmatprep.subr.bf16.mxu0 %v6204
        %8503 = vmatpush1.bf16.msra.mxu0 %v6203
        %8504 = vmatprep.subr.bf16.mxu0 %v6216
        %8505 = vmatpush1.bf16.msra.mxu0 %v6215
        %8506 = vmatprep.subr.bf16.mxu0 %v6228
        %8507 = vmatpush1.bf16.msra.mxu0 %v6227
        %8508 = vmatprep.subr.bf16.mxu0 %v6240
        %8509 = vmatpush1.bf16.msra.mxu0 %v6239
        %8510 = vmatprep.subr.bf16.mxu0 %v6252
        %8511 = vmatpush1.bf16.msra.mxu0 %v6251
        %8512 = vmatprep.subr.bf16.mxu0 %v6264
        %8513 = vmatpush1.bf16.msra.mxu0 %v6263
        %8514 = vmatprep.subr.bf16.mxu0 %v6276
        %8515 = vmatpush1.bf16.msra.mxu0 %v6275
        %8516 = vmatprep.subr.bf16.mxu0 %v6288
        %8517 = vmatpush1.bf16.msra.mxu0 %v6287
        %8518 = vmatprep.subr.bf16.mxu0 %v6300
        %8519 = vmatpush1.bf16.msra.mxu0 %v6299
        %8520 = vmatprep.subr.bf16.mxu0 %v6312
        %8521 = vmatpush1.bf16.msra.mxu0 %v6311
        %8522 = vmatprep.subr.bf16.mxu0 %v6324
        %8523 = vmatpush1.bf16.msra.mxu0 %v6323
        %8524 = vmatprep.subr.bf16.mxu0 %v6336
        %8525 = vmatpush1.bf16.msra.mxu0 %v6335
        %8526 = vmatprep.mubr.bf16.mxu0 %v962
        %8527 = vmatmul.mubr.bf16.gmra.mrb[0].mxu0 %v961
        %v8528 = vpop.f32.mrb[0].mxu0
        %v8529 = vadd.f32 %v8488, %v8528
        %v8530 = vpop.f32.mrb[0].mxu0
        %v8531 = vadd.f32 %v8490, %v8530
        %v8532 = vpop.f32.mrb[0].mxu0
        %v8533 = vpop.f32.mrb[0].mxu0
        %8534 = vdwg.mxu0
        %8535 = vmatprep.subr.bf16.mxu0 %v6348
        %8536 = vmatpush1.bf16.msra.mxu0 %v6347
        %8537 = vmatprep.subr.bf16.mxu0 %v6360
        %8538 = vmatpush1.bf16.msra.mxu0 %v6359
        %8539 = vmatprep.subr.bf16.mxu0 %v6372
        %8540 = vmatpush1.bf16.msra.mxu0 %v6371
        %8541 = vmatprep.subr.bf16.mxu0 %v6384
        %8542 = vmatpush1.bf16.msra.mxu0 %v6383
        %8543 = vmatprep.subr.bf16.mxu0 %v6396
        %8544 = vmatpush1.bf16.msra.mxu0 %v6395
        %8545 = vmatprep.subr.bf16.mxu0 %v6408
        %8546 = vmatpush1.bf16.msra.mxu0 %v6407
        %8547 = vmatprep.subr.bf16.mxu0 %v6420
        %8548 = vmatpush1.bf16.msra.mxu0 %v6419
        %8549 = vmatprep.subr.bf16.mxu0 %v6432
        %8550 = vmatpush1.bf16.msra.mxu0 %v6431
        %8551 = vmatprep.subr.bf16.mxu0 %v6444
        %8552 = vmatpush1.bf16.msra.mxu0 %v6443
        %8553 = vmatprep.subr.bf16.mxu0 %v6456
        %8554 = vmatpush1.bf16.msra.mxu0 %v6455
        %8555 = vmatprep.subr.bf16.mxu0 %v6468
        %8556 = vmatpush1.bf16.msra.mxu0 %v6467
        %8557 = vmatprep.subr.bf16.mxu0 %v6480
        %8558 = vmatpush1.bf16.msra.mxu0 %v6479
        %8559 = vmatprep.subr.bf16.mxu0 %v6492
        %8560 = vmatpush1.bf16.msra.mxu0 %v6491
        %8561 = vmatprep.subr.bf16.mxu0 %v6504
        %8562 = vmatpush1.bf16.msra.mxu0 %v6503
        %8563 = vmatprep.subr.bf16.mxu0 %v6516
        %8564 = vmatpush1.bf16.msra.mxu0 %v6515
        %8565 = vmatprep.subr.bf16.mxu0 %v6528
        %8566 = vmatpush1.bf16.msra.mxu0 %v6527
        %8567 = vmatprep.mubr.bf16.mxu0 %v964
        %8568 = vmatmul.mubr.bf16.gmra.mrb[0].mxu0 %v963
        %v8569 = vpop.f32.mrb[0].mxu0
        %v8570 = vadd.f32 %v8529, %v8569
        %v8571 = vpop.f32.mrb[0].mxu0
        %v8572 = vadd.f32 %v8531, %v8571
        %v8573 = vpop.f32.mrb[0].mxu0
        %v8574 = vpop.f32.mrb[0].mxu0
        %8575 = vdwg.mxu0
        %8576 = vmatprep.subr.bf16.mxu0 %v6540
        %8577 = vmatpush1.bf16.msra.mxu0 %v6539
        %8578 = vmatprep.subr.bf16.mxu0 %v6552
        %8579 = vmatpush1.bf16.msra.mxu0 %v6551
        %8580 = vmatprep.subr.bf16.mxu0 %v6564
        %8581 = vmatpush1.bf16.msra.mxu0 %v6563
        %8582 = vmatprep.subr.bf16.mxu0 %v6576
        %8583 = vmatpush1.bf16.msra.mxu0 %v6575
        %8584 = vmatprep.subr.bf16.mxu0 %v6588
        %8585 = vmatpush1.bf16.msra.mxu0 %v6587
        %8586 = vmatprep.subr.bf16.mxu0 %v6600
        %8587 = vmatpush1.bf16.msra.mxu0 %v6599
        %8588 = vmatprep.subr.bf16.mxu0 %v6612
        %8589 = vmatpush1.bf16.msra.mxu0 %v6611
        %8590 = vmatprep.subr.bf16.mxu0 %v6624
        %8591 = vmatpush1.bf16.msra.mxu0 %v6623
        %8592 = vmatprep.subr.bf16.mxu0 %v6636
        %8593 = vmatpush1.bf16.msra.mxu0 %v6635
        %8594 = vmatprep.subr.bf16.mxu0 %v6648
        %8595 = vmatpush1.bf16.msra.mxu0 %v6647
        %8596 = vmatprep.subr.bf16.mxu0 %v6660
        %8597 = vmatpush1.bf16.msra.mxu0 %v6659
        %8598 = vmatprep.subr.bf16.mxu0 %v6672
        %8599 = vmatpush1.bf16.msra.mxu0 %v6671
        %8600 = vmatprep.subr.bf16.mxu0 %v6684
        %8601 = vmatpush1.bf16.msra.mxu0 %v6683
        %8602 = vmatprep.subr.bf16.mxu0 %v6696
        %8603 = vmatpush1.bf16.msra.mxu0 %v6695
        %8604 = vmatprep.subr.bf16.mxu0 %v6708
        %8605 = vmatpush1.bf16.msra.mxu0 %v6707
        %8606 = vmatprep.subr.bf16.mxu0 %v6720
        %8607 = vmatpush1.bf16.msra.mxu0 %v6719
        %8608 = vmatprep.mubr.bf16.mxu0 %v966
        %8609 = vmatmul.mubr.bf16.gmra.mrb[0].mxu0 %v965
        %v8610 = vpop.f32.mrb[0].mxu0
        %v8611 = vadd.f32 %v8570, %v8610
        %v8612 = vpop.f32.mrb[0].mxu0
        %v8613 = vadd.f32 %v8572, %v8612
        %v8614 = vpop.f32.mrb[0].mxu0
        %v8615 = vpop.f32.mrb[0].mxu0
        %8616 = vdwg.mxu0
        %8617 = vmatprep.subr.bf16.mxu0 %v5582
        %8618 = vmatpush1.bf16.msra.mxu0 %v5581
        %8619 = vmatprep.subr.bf16.mxu0 %v5594
        %8620 = vmatpush1.bf16.msra.mxu0 %v5593
        %8621 = vmatprep.subr.bf16.mxu0 %v5606
        %8622 = vmatpush1.bf16.msra.mxu0 %v5605
        %8623 = vmatprep.subr.bf16.mxu0 %v5618
        %8624 = vmatpush1.bf16.msra.mxu0 %v5617
        %8625 = vmatprep.subr.bf16.mxu0 %v5630
        %8626 = vmatpush1.bf16.msra.mxu0 %v5629
        %8627 = vmatprep.subr.bf16.mxu0 %v5642
        %8628 = vmatpush1.bf16.msra.mxu0 %v5641
        %8629 = vmatprep.subr.bf16.mxu0 %v5654
        %8630 = vmatpush1.bf16.msra.mxu0 %v5653
        %8631 = vmatprep.subr.bf16.mxu0 %v5666
        %8632 = vmatpush1.bf16.msra.mxu0 %v5665
        %8633 = vmatprep.subr.bf16.mxu0 %v5678
        %8634 = vmatpush1.bf16.msra.mxu0 %v5677
        %8635 = vmatprep.subr.bf16.mxu0 %v5690
        %8636 = vmatpush1.bf16.msra.mxu0 %v5689
        %8637 = vmatprep.subr.bf16.mxu0 %v5702
        %8638 = vmatpush1.bf16.msra.mxu0 %v5701
        %8639 = vmatprep.subr.bf16.mxu0 %v5714
        %8640 = vmatpush1.bf16.msra.mxu0 %v5713
        %8641 = vmatprep.subr.bf16.mxu0 %v5726
        %8642 = vmatpush1.bf16.msra.mxu0 %v5725
        %8643 = vmatprep.subr.bf16.mxu0 %v5738
        %8644 = vmatpush1.bf16.msra.mxu0 %v5737
        %8645 = vmatprep.subr.bf16.mxu0 %v5750
        %8646 = vmatpush1.bf16.msra.mxu0 %v5749
        %8647 = vmatprep.subr.bf16.mxu0 %v5762
        %8648 = vmatpush1.bf16.msra.mxu0 %v5761
        %8649 = vmatprep.mubr.bf16.mxu0 %v956
        %8650 = vmatmul.mubr.bf16.gmra.mrb[0].mxu0 %v955
        %v8651 = vpop.f32.mrb[0].mxu0
        %v8652 = vadd.f32 0.0, %v8651
        %v8653 = vpop.f32.mrb[0].mxu0
        %v8654 = vadd.f32 0.0, %v8653
        %v8655 = vpop.f32.mrb[0].mxu0
        %v8656 = vpop.f32.mrb[0].mxu0
        %8657 = vdwg.mxu0
        %8658 = vmatprep.subr.bf16.mxu0 %v5774
        %8659 = vmatpush1.bf16.msra.mxu0 %v5773
        %8660 = vmatprep.subr.bf16.mxu0 %v5786
        %8661 = vmatpush1.bf16.msra.mxu0 %v5785
        %8662 = vmatprep.subr.bf16.mxu0 %v5798
        %8663 = vmatpush1.bf16.msra.mxu0 %v5797
        %8664 = vmatprep.subr.bf16.mxu0 %v5810
        %8665 = vmatpush1.bf16.msra.mxu0 %v5809
        %8666 = vmatprep.subr.bf16.mxu0 %v5822
        %8667 = vmatpush1.bf16.msra.mxu0 %v5821
        %8668 = vmatprep.subr.bf16.mxu0 %v5834
        %8669 = vmatpush1.bf16.msra.mxu0 %v5833
        %8670 = vmatprep.subr.bf16.mxu0 %v5846
        %8671 = vmatpush1.bf16.msra.mxu0 %v5845
        %8672 = vmatprep.subr.bf16.mxu0 %v5858
        %8673 = vmatpush1.bf16.msra.mxu0 %v5857
        %8674 = vmatprep.subr.bf16.mxu0 %v5870
        %8675 = vmatpush1.bf16.msra.mxu0 %v5869
        %8676 = vmatprep.subr.bf16.mxu0 %v5882
        %8677 = vmatpush1.bf16.msra.mxu0 %v5881
        %8678 = vmatprep.subr.bf16.mxu0 %v5894
        %8679 = vmatpush1.bf16.msra.mxu0 %v5893
        %8680 = vmatprep.subr.bf16.mxu0 %v5906
        %8681 = vmatpush1.bf16.msra.mxu0 %v5905
        %8682 = vmatprep.subr.bf16.mxu0 %v5918
        %8683 = vmatpush1.bf16.msra.mxu0 %v5917
        %8684 = vmatprep.subr.bf16.mxu0 %v5930
        %8685 = vmatpush1.bf16.msra.mxu0 %v5929
        %8686 = vmatprep.subr.bf16.mxu0 %v5942
        %8687 = vmatpush1.bf16.msra.mxu0 %v5941
        %8688 = vmatprep.subr.bf16.mxu0 %v5954
        %8689 = vmatpush1.bf16.msra.mxu0 %v5953
        %8690 = vmatprep.mubr.bf16.mxu0 %v958
        %8691 = vmatmul.mubr.bf16.gmra.mrb[0].mxu0 %v957
        %v8692 = vpop.f32.mrb[0].mxu0
        %v8693 = vadd.f32 %v8652, %v8692
        %v8694 = vpop.f32.mrb[0].mxu0
        %v8695 = vadd.f32 %v8654, %v8694
        %v8696 = vpop.f32.mrb[0].mxu0
        %v8697 = vpop.f32.mrb[0].mxu0
        %8698 = vdwg.mxu0
        %8699 = vmatprep.subr.bf16.mxu0 %v5966
        %8700 = vmatpush1.bf16.msra.mxu0 %v5965
        %8701 = vmatprep.subr.bf16.mxu0 %v5978
        %8702 = vmatpush1.bf16.msra.mxu0 %v5977
        %8703 = vmatprep.subr.bf16.mxu0 %v5990
        %8704 = vmatpush1.bf16.msra.mxu0 %v5989
        %8705 = vmatprep.subr.bf16.mxu0 %v6002
        %8706 = vmatpush1.bf16.msra.mxu0 %v6001
        %8707 = vmatprep.subr.bf16.mxu0 %v6014
        %8708 = vmatpush1.bf16.msra.mxu0 %v6013
        %8709 = vmatprep.subr.bf16.mxu0 %v6026
        %8710 = vmatpush1.bf16.msra.mxu0 %v6025
        %8711 = vmatprep.subr.bf16.mxu0 %v6038
        %8712 = vmatpush1.bf16.msra.mxu0 %v6037
        %8713 = vmatprep.subr.bf16.mxu0 %v6050
        %8714 = vmatpush1.bf16.msra.mxu0 %v6049
        %8715 = vmatprep.subr.bf16.mxu0 %v6062
        %8716 = vmatpush1.bf16.msra.mxu0 %v6061
        %8717 = vmatprep.subr.bf16.mxu0 %v6074
        %8718 = vmatpush1.bf16.msra.mxu0 %v6073
        %8719 = vmatprep.subr.bf16.mxu0 %v6086
        %8720 = vmatpush1.bf16.msra.mxu0 %v6085
        %8721 = vmatprep.subr.bf16.mxu0 %v6098
        %8722 = vmatpush1.bf16.msra.mxu0 %v6097
        %8723 = vmatprep.subr.bf16.mxu0 %v6110
        %8724 = vmatpush1.bf16.msra.mxu0 %v6109
        %8725 = vmatprep.subr.bf16.mxu0 %v6122
        %8726 = vmatpush1.bf16.msra.mxu0 %v6121
        %8727 = vmatprep.subr.bf16.mxu0 %v6134
        %8728 = vmatpush1.bf16.msra.mxu0 %v6133
        %8729 = vmatprep.subr.bf16.mxu0 %v6146
        %8730 = vmatpush1.bf16.msra.mxu0 %v6145
        %8731 = vmatprep.mubr.bf16.mxu0 %v960
        %8732 = vmatmul.mubr.bf16.gmra.mrb[0].mxu0 %v959
        %v8733 = vpop.f32.mrb[0].mxu0
        %v8734 = vadd.f32 %v8693, %v8733
        %v8735 = vpop.f32.mrb[0].mxu0
        %v8736 = vadd.f32 %v8695, %v8735
        %v8737 = vpop.f32.mrb[0].mxu0
        %v8738 = vpop.f32.mrb[0].mxu0
        %8739 = vdwg.mxu0
        %8740 = vmatprep.subr.bf16.mxu0 %v6158
        %8741 = vmatpush1.bf16.msra.mxu0 %v6157
        %8742 = vmatprep.subr.bf16.mxu0 %v6170
        %8743 = vmatpush1.bf16.msra.mxu0 %v6169
        %8744 = vmatprep.subr.bf16.mxu0 %v6182
        %8745 = vmatpush1.bf16.msra.mxu0 %v6181
        %8746 = vmatprep.subr.bf16.mxu0 %v6194
        %8747 = vmatpush1.bf16.msra.mxu0 %v6193
        %8748 = vmatprep.subr.bf16.mxu0 %v6206
        %8749 = vmatpush1.bf16.msra.mxu0 %v6205
        %8750 = vmatprep.subr.bf16.mxu0 %v6218
        %8751 = vmatpush1.bf16.msra.mxu0 %v6217
        %8752 = vmatprep.subr.bf16.mxu0 %v6230
        %8753 = vmatpush1.bf16.msra.mxu0 %v6229
        %8754 = vmatprep.subr.bf16.mxu0 %v6242
        %8755 = vmatpush1.bf16.msra.mxu0 %v6241
        %8756 = vmatprep.subr.bf16.mxu0 %v6254
        %8757 = vmatpush1.bf16.msra.mxu0 %v6253
        %8758 = vmatprep.subr.bf16.mxu0 %v6266
        %8759 = vmatpush1.bf16.msra.mxu0 %v6265
        %8760 = vmatprep.subr.bf16.mxu0 %v6278
        %8761 = vmatpush1.bf16.msra.mxu0 %v6277
        %8762 = vmatprep.subr.bf16.mxu0 %v6290
        %8763 = vmatpush1.bf16.msra.mxu0 %v6289
        %8764 = vmatprep.subr.bf16.mxu0 %v6302
        %8765 = vmatpush1.bf16.msra.mxu0 %v6301
        %8766 = vmatprep.subr.bf16.mxu0 %v6314
        %8767 = vmatpush1.bf16.msra.mxu0 %v6313
        %8768 = vmatprep.subr.bf16.mxu0 %v6326
        %8769 = vmatpush1.bf16.msra.mxu0 %v6325
        %8770 = vmatprep.subr.bf16.mxu0 %v6338
        %8771 = vmatpush1.bf16.msra.mxu0 %v6337
        %8772 = vmatprep.mubr.bf16.mxu0 %v962
        %8773 = vmatmul.mubr.bf16.gmra.mrb[0].mxu0 %v961
        %v8774 = vpop.f32.mrb[0].mxu0
        %v8775 = vadd.f32 %v8734, %v8774
        %v8776 = vpop.f32.mrb[0].mxu0
        %v8777 = vadd.f32 %v8736, %v8776
        %v8778 = vpop.f32.mrb[0].mxu0
        %v8779 = vpop.f32.mrb[0].mxu0
        %8780 = vdwg.mxu0
        %8781 = vmatprep.subr.bf16.mxu0 %v6350
        %8782 = vmatpush1.bf16.msra.mxu0 %v6349
        %8783 = vmatprep.subr.bf16.mxu0 %v6362
        %8784 = vmatpush1.bf16.msra.mxu0 %v6361
        %8785 = vmatprep.subr.bf16.mxu0 %v6374
        %8786 = vmatpush1.bf16.msra.mxu0 %v6373
        %8787 = vmatprep.subr.bf16.mxu0 %v6386
        %8788 = vmatpush1.bf16.msra.mxu0 %v6385
        %8789 = vmatprep.subr.bf16.mxu0 %v6398
        %8790 = vmatpush1.bf16.msra.mxu0 %v6397
        %8791 = vmatprep.subr.bf16.mxu0 %v6410
        %8792 = vmatpush1.bf16.msra.mxu0 %v6409
        %8793 = vmatprep.subr.bf16.mxu0 %v6422
        %8794 = vmatpush1.bf16.msra.mxu0 %v6421
        %8795 = vmatprep.subr.bf16.mxu0 %v6434
        %8796 = vmatpush1.bf16.msra.mxu0 %v6433
        %8797 = vmatprep.subr.bf16.mxu0 %v6446
        %8798 = vmatpush1.bf16.msra.mxu0 %v6445
        %8799 = vmatprep.subr.bf16.mxu0 %v6458
        %8800 = vmatpush1.bf16.msra.mxu0 %v6457
        %8801 = vmatprep.subr.bf16.mxu0 %v6470
        %8802 = vmatpush1.bf16.msra.mxu0 %v6469
        %8803 = vmatprep.subr.bf16.mxu0 %v6482
        %8804 = vmatpush1.bf16.msra.mxu0 %v6481
        %8805 = vmatprep.subr.bf16.mxu0 %v6494
        %8806 = vmatpush1.bf16.msra.mxu0 %v6493
        %8807 = vmatprep.subr.bf16.mxu0 %v6506
        %8808 = vmatpush1.bf16.msra.mxu0 %v6505
        %8809 = vmatprep.subr.bf16.mxu0 %v6518
        %8810 = vmatpush1.bf16.msra.mxu0 %v6517
        %8811 = vmatprep.subr.bf16.mxu0 %v6530
        %8812 = vmatpush1.bf16.msra.mxu0 %v6529
        %8813 = vmatprep.mubr.bf16.mxu0 %v964
        %8814 = vmatmul.mubr.bf16.gmra.mrb[0].mxu0 %v963
        %v8815 = vpop.f32.mrb[0].mxu0
        %v8816 = vadd.f32 %v8775, %v8815
        %v8817 = vpop.f32.mrb[0].mxu0
        %v8818 = vadd.f32 %v8777, %v8817
        %v8819 = vpop.f32.mrb[0].mxu0
        %v8820 = vpop.f32.mrb[0].mxu0
        %8821 = vdwg.mxu0
        %8822 = vmatprep.subr.bf16.mxu0 %v6542
        %8823 = vmatpush1.bf16.msra.mxu0 %v6541
        %8824 = vmatprep.subr.bf16.mxu0 %v6554
        %8825 = vmatpush1.bf16.msra.mxu0 %v6553
        %8826 = vmatprep.subr.bf16.mxu0 %v6566
        %8827 = vmatpush1.bf16.msra.mxu0 %v6565
        %8828 = vmatprep.subr.bf16.mxu0 %v6578
        %8829 = vmatpush1.bf16.msra.mxu0 %v6577
        %8830 = vmatprep.subr.bf16.mxu0 %v6590
        %8831 = vmatpush1.bf16.msra.mxu0 %v6589
        %8832 = vmatprep.subr.bf16.mxu0 %v6602
        %8833 = vmatpush1.bf16.msra.mxu0 %v6601
        %8834 = vmatprep.subr.bf16.mxu0 %v6614
        %8835 = vmatpush1.bf16.msra.mxu0 %v6613
        %8836 = vmatprep.subr.bf16.mxu0 %v6626
        %8837 = vmatpush1.bf16.msra.mxu0 %v6625
        %8838 = vmatprep.subr.bf16.mxu0 %v6638
        %8839 = vmatpush1.bf16.msra.mxu0 %v6637
        %8840 = vmatprep.subr.bf16.mxu0 %v6650
        %8841 = vmatpush1.bf16.msra.mxu0 %v6649
        %8842 = vmatprep.subr.bf16.mxu0 %v6662
        %8843 = vmatpush1.bf16.msra.mxu0 %v6661
        %8844 = vmatprep.subr.bf16.mxu0 %v6674
        %8845 = vmatpush1.bf16.msra.mxu0 %v6673
        %8846 = vmatprep.subr.bf16.mxu0 %v6686
        %8847 = vmatpush1.bf16.msra.mxu0 %v6685
        %8848 = vmatprep.subr.bf16.mxu0 %v6698
        %8849 = vmatpush1.bf16.msra.mxu0 %v6697
        %8850 = vmatprep.subr.bf16.mxu0 %v6710
        %8851 = vmatpush1.bf16.msra.mxu0 %v6709
        %8852 = vmatprep.subr.bf16.mxu0 %v6722
        %8853 = vmatpush1.bf16.msra.mxu0 %v6721
        %8854 = vmatprep.mubr.bf16.mxu0 %v966
        %8855 = vmatmul.mubr.bf16.gmra.mrb[0].mxu0 %v965
        %v8856 = vpop.f32.mrb[0].mxu0
        %v8857 = vadd.f32 %v8816, %v8856
        %v8858 = vpop.f32.mrb[0].mxu0
        %v8859 = vadd.f32 %v8818, %v8858
        %v8860 = vpop.f32.mrb[0].mxu0
        %v8861 = vpop.f32.mrb[0].mxu0
        %8862 = vdwg.mxu0
        %8863 = vmatprep.subr.bf16.mxu0 %v5584
        %8864 = vmatpush1.bf16.msra.mxu0 %v5583
        %8865 = vmatprep.subr.bf16.mxu0 %v5596
        %8866 = vmatpush1.bf16.msra.mxu0 %v5595
        %8867 = vmatprep.subr.bf16.mxu0 %v5608
        %8868 = vmatpush1.bf16.msra.mxu0 %v5607
        %8869 = vmatprep.subr.bf16.mxu0 %v5620
        %8870 = vmatpush1.bf16.msra.mxu0 %v5619
        %8871 = vmatprep.subr.bf16.mxu0 %v5632
        %8872 = vmatpush1.bf16.msra.mxu0 %v5631
        %8873 = vmatprep.subr.bf16.mxu0 %v5644
        %8874 = vmatpush1.bf16.msra.mxu0 %v5643
        %8875 = vmatprep.subr.bf16.mxu0 %v5656
        %8876 = vmatpush1.bf16.msra.mxu0 %v5655
        %8877 = vmatprep.subr.bf16.mxu0 %v5668
        %8878 = vmatpush1.bf16.msra.mxu0 %v5667
        %8879 = vmatprep.subr.bf16.mxu0 %v5680
        %8880 = vmatpush1.bf16.msra.mxu0 %v5679
        %8881 = vmatprep.subr.bf16.mxu0 %v5692
        %8882 = vmatpush1.bf16.msra.mxu0 %v5691
        %8883 = vmatprep.subr.bf16.mxu0 %v5704
        %8884 = vmatpush1.bf16.msra.mxu0 %v5703
        %8885 = vmatprep.subr.bf16.mxu0 %v5716
        %8886 = vmatpush1.bf16.msra.mxu0 %v5715
        %8887 = vmatprep.subr.bf16.mxu0 %v5728
        %8888 = vmatpush1.bf16.msra.mxu0 %v5727
        %8889 = vmatprep.subr.bf16.mxu0 %v5740
        %8890 = vmatpush1.bf16.msra.mxu0 %v5739
        %8891 = vmatprep.subr.bf16.mxu0 %v5752
        %8892 = vmatpush1.bf16.msra.mxu0 %v5751
        %8893 = vmatprep.subr.bf16.mxu0 %v5764
        %8894 = vmatpush1.bf16.msra.mxu0 %v5763
        %8895 = vmatprep.mubr.bf16.mxu0 %v956
        %8896 = vmatmul.mubr.bf16.gmra.mrb[0].mxu0 %v955
        %v8897 = vpop.f32.mrb[0].mxu0
        %v8898 = vadd.f32 0.0, %v8897
        %v8899 = vpop.f32.mrb[0].mxu0
        %v8900 = vadd.f32 0.0, %v8899
        %v8901 = vpop.f32.mrb[0].mxu0
        %v8902 = vpop.f32.mrb[0].mxu0
        %8903 = vdwg.mxu0
        %8904 = vmatprep.subr.bf16.mxu0 %v5776
        %8905 = vmatpush1.bf16.msra.mxu0 %v5775
        %8906 = vmatprep.subr.bf16.mxu0 %v5788
        %8907 = vmatpush1.bf16.msra.mxu0 %v5787
        %8908 = vmatprep.subr.bf16.mxu0 %v5800
        %8909 = vmatpush1.bf16.msra.mxu0 %v5799
        %8910 = vmatprep.subr.bf16.mxu0 %v5812
        %8911 = vmatpush1.bf16.msra.mxu0 %v5811
        %8912 = vmatprep.subr.bf16.mxu0 %v5824
        %8913 = vmatpush1.bf16.msra.mxu0 %v5823
        %8914 = vmatprep.subr.bf16.mxu0 %v5836
        %8915 = vmatpush1.bf16.msra.mxu0 %v5835
        %8916 = vmatprep.subr.bf16.mxu0 %v5848
        %8917 = vmatpush1.bf16.msra.mxu0 %v5847
        %8918 = vmatprep.subr.bf16.mxu0 %v5860
        %8919 = vmatpush1.bf16.msra.mxu0 %v5859
        %8920 = vmatprep.subr.bf16.mxu0 %v5872
        %8921 = vmatpush1.bf16.msra.mxu0 %v5871
        %8922 = vmatprep.subr.bf16.mxu0 %v5884
        %8923 = vmatpush1.bf16.msra.mxu0 %v5883
        %8924 = vmatprep.subr.bf16.mxu0 %v5896
        %8925 = vmatpush1.bf16.msra.mxu0 %v5895
        %8926 = vmatprep.subr.bf16.mxu0 %v5908
        %8927 = vmatpush1.bf16.msra.mxu0 %v5907
        %8928 = vmatprep.subr.bf16.mxu0 %v5920
        %8929 = vmatpush1.bf16.msra.mxu0 %v5919
        %8930 = vmatprep.subr.bf16.mxu0 %v5932
        %8931 = vmatpush1.bf16.msra.mxu0 %v5931
        %8932 = vmatprep.subr.bf16.mxu0 %v5944
        %8933 = vmatpush1.bf16.msra.mxu0 %v5943
        %8934 = vmatprep.subr.bf16.mxu0 %v5956
        %8935 = vmatpush1.bf16.msra.mxu0 %v5955
        %8936 = vmatprep.mubr.bf16.mxu0 %v958
        %8937 = vmatmul.mubr.bf16.gmra.mrb[0].mxu0 %v957
        %v8938 = vpop.f32.mrb[0].mxu0
        %v8939 = vadd.f32 %v8898, %v8938
        %v8940 = vpop.f32.mrb[0].mxu0
        %v8941 = vadd.f32 %v8900, %v8940
        %v8942 = vpop.f32.mrb[0].mxu0
        %v8943 = vpop.f32.mrb[0].mxu0
        %8944 = vdwg.mxu0
        %8945 = vmatprep.subr.bf16.mxu0 %v5968
        %8946 = vmatpush1.bf16.msra.mxu0 %v5967
        %8947 = vmatprep.subr.bf16.mxu0 %v5980
        %8948 = vmatpush1.bf16.msra.mxu0 %v5979
        %8949 = vmatprep.subr.bf16.mxu0 %v5992
        %8950 = vmatpush1.bf16.msra.mxu0 %v5991
        %8951 = vmatprep.subr.bf16.mxu0 %v6004
        %8952 = vmatpush1.bf16.msra.mxu0 %v6003
        %8953 = vmatprep.subr.bf16.mxu0 %v6016
        %8954 = vmatpush1.bf16.msra.mxu0 %v6015
        %8955 = vmatprep.subr.bf16.mxu0 %v6028
        %8956 = vmatpush1.bf16.msra.mxu0 %v6027
        %8957 = vmatprep.subr.bf16.mxu0 %v6040
        %8958 = vmatpush1.bf16.msra.mxu0 %v6039
        %8959 = vmatprep.subr.bf16.mxu0 %v6052
        %8960 = vmatpush1.bf16.msra.mxu0 %v6051
        %8961 = vmatprep.subr.bf16.mxu0 %v6064
        %8962 = vmatpush1.bf16.msra.mxu0 %v6063
        %8963 = vmatprep.subr.bf16.mxu0 %v6076
        %8964 = vmatpush1.bf16.msra.mxu0 %v6075
        %8965 = vmatprep.subr.bf16.mxu0 %v6088
        %8966 = vmatpush1.bf16.msra.mxu0 %v6087
        %8967 = vmatprep.subr.bf16.mxu0 %v6100
        %8968 = vmatpush1.bf16.msra.mxu0 %v6099
        %8969 = vmatprep.subr.bf16.mxu0 %v6112
        %8970 = vmatpush1.bf16.msra.mxu0 %v6111
        %8971 = vmatprep.subr.bf16.mxu0 %v6124
        %8972 = vmatpush1.bf16.msra.mxu0 %v6123
        %8973 = vmatprep.subr.bf16.mxu0 %v6136
        %8974 = vmatpush1.bf16.msra.mxu0 %v6135
        %8975 = vmatprep.subr.bf16.mxu0 %v6148
        %8976 = vmatpush1.bf16.msra.mxu0 %v6147
        %8977 = vmatprep.mubr.bf16.mxu0 %v960
        %8978 = vmatmul.mubr.bf16.gmra.mrb[0].mxu0 %v959
        %v8979 = vpop.f32.mrb[0].mxu0
        %v8980 = vadd.f32 %v8939, %v8979
        %v8981 = vpop.f32.mrb[0].mxu0
        %v8982 = vadd.f32 %v8941, %v8981
        %v8983 = vpop.f32.mrb[0].mxu0
        %v8984 = vpop.f32.mrb[0].mxu0
        %8985 = vdwg.mxu0
        %8986 = vmatprep.subr.bf16.mxu0 %v6160
        %8987 = vmatpush1.bf16.msra.mxu0 %v6159
        %8988 = vmatprep.subr.bf16.mxu0 %v6172
        %8989 = vmatpush1.bf16.msra.mxu0 %v6171
        %8990 = vmatprep.subr.bf16.mxu0 %v6184
        %8991 = vmatpush1.bf16.msra.mxu0 %v6183
        %8992 = vmatprep.subr.bf16.mxu0 %v6196
        %8993 = vmatpush1.bf16.msra.mxu0 %v6195
        %8994 = vmatprep.subr.bf16.mxu0 %v6208
        %8995 = vmatpush1.bf16.msra.mxu0 %v6207
        %8996 = vmatprep.subr.bf16.mxu0 %v6220
        %8997 = vmatpush1.bf16.msra.mxu0 %v6219
        %8998 = vmatprep.subr.bf16.mxu0 %v6232
        %8999 = vmatpush1.bf16.msra.mxu0 %v6231
        %9000 = vmatprep.subr.bf16.mxu0 %v6244
        %9001 = vmatpush1.bf16.msra.mxu0 %v6243
        %9002 = vmatprep.subr.bf16.mxu0 %v6256
        %9003 = vmatpush1.bf16.msra.mxu0 %v6255
        %9004 = vmatprep.subr.bf16.mxu0 %v6268
        %9005 = vmatpush1.bf16.msra.mxu0 %v6267
        %9006 = vmatprep.subr.bf16.mxu0 %v6280
        %9007 = vmatpush1.bf16.msra.mxu0 %v6279
        %9008 = vmatprep.subr.bf16.mxu0 %v6292
        %9009 = vmatpush1.bf16.msra.mxu0 %v6291
        %9010 = vmatprep.subr.bf16.mxu0 %v6304
        %9011 = vmatpush1.bf16.msra.mxu0 %v6303
        %9012 = vmatprep.subr.bf16.mxu0 %v6316
        %9013 = vmatpush1.bf16.msra.mxu0 %v6315
        %9014 = vmatprep.subr.bf16.mxu0 %v6328
        %9015 = vmatpush1.bf16.msra.mxu0 %v6327
        %9016 = vmatprep.subr.bf16.mxu0 %v6340
        %9017 = vmatpush1.bf16.msra.mxu0 %v6339
        %9018 = vmatprep.mubr.bf16.mxu0 %v962
        %9019 = vmatmul.mubr.bf16.gmra.mrb[0].mxu0 %v961
        %v9020 = vpop.f32.mrb[0].mxu0
        %v9021 = vadd.f32 %v8980, %v9020
        %v9022 = vpop.f32.mrb[0].mxu0
        %v9023 = vadd.f32 %v8982, %v9022
        %v9024 = vpop.f32.mrb[0].mxu0
        %v9025 = vpop.f32.mrb[0].mxu0
        %9026 = vdwg.mxu0
        %9027 = vmatprep.subr.bf16.mxu0 %v6352
        %9028 = vmatpush1.bf16.msra.mxu0 %v6351
        %9029 = vmatprep.subr.bf16.mxu0 %v6364
        %9030 = vmatpush1.bf16.msra.mxu0 %v6363
        %9031 = vmatprep.subr.bf16.mxu0 %v6376
        %9032 = vmatpush1.bf16.msra.mxu0 %v6375
        %9033 = vmatprep.subr.bf16.mxu0 %v6388
        %9034 = vmatpush1.bf16.msra.mxu0 %v6387
        %9035 = vmatprep.subr.bf16.mxu0 %v6400
        %9036 = vmatpush1.bf16.msra.mxu0 %v6399
        %9037 = vmatprep.subr.bf16.mxu0 %v6412
        %9038 = vmatpush1.bf16.msra.mxu0 %v6411
        %9039 = vmatprep.subr.bf16.mxu0 %v6424
        %9040 = vmatpush1.bf16.msra.mxu0 %v6423
        %9041 = vmatprep.subr.bf16.mxu0 %v6436
        %9042 = vmatpush1.bf16.msra.mxu0 %v6435
        %9043 = vmatprep.subr.bf16.mxu0 %v6448
        %9044 = vmatpush1.bf16.msra.mxu0 %v6447
        %9045 = vmatprep.subr.bf16.mxu0 %v6460
        %9046 = vmatpush1.bf16.msra.mxu0 %v6459
        %9047 = vmatprep.subr.bf16.mxu0 %v6472
        %9048 = vmatpush1.bf16.msra.mxu0 %v6471
        %9049 = vmatprep.subr.bf16.mxu0 %v6484
        %9050 = vmatpush1.bf16.msra.mxu0 %v6483
        %9051 = vmatprep.subr.bf16.mxu0 %v6496
        %9052 = vmatpush1.bf16.msra.mxu0 %v6495
        %9053 = vmatprep.subr.bf16.mxu0 %v6508
        %9054 = vmatpush1.bf16.msra.mxu0 %v6507
        %9055 = vmatprep.subr.bf16.mxu0 %v6520
        %9056 = vmatpush1.bf16.msra.mxu0 %v6519
        %9057 = vmatprep.subr.bf16.mxu0 %v6532
        %9058 = vmatpush1.bf16.msra.mxu0 %v6531
        %9059 = vmatprep.mubr.bf16.mxu0 %v964
        %9060 = vmatmul.mubr.bf16.gmra.mrb[0].mxu0 %v963
        %v9061 = vpop.f32.mrb[0].mxu0
        %v9062 = vadd.f32 %v9021, %v9061
        %v9063 = vpop.f32.mrb[0].mxu0
        %v9064 = vadd.f32 %v9023, %v9063
        %v9065 = vpop.f32.mrb[0].mxu0
        %v9066 = vpop.f32.mrb[0].mxu0
        %9067 = vdwg.mxu0
        %9068 = vmatprep.subr.bf16.mxu0 %v6544
        %9069 = vmatpush1.bf16.msra.mxu0 %v6543
        %9070 = vmatprep.subr.bf16.mxu0 %v6556
        %9071 = vmatpush1.bf16.msra.mxu0 %v6555
        %9072 = vmatprep.subr.bf16.mxu0 %v6568
        %9073 = vmatpush1.bf16.msra.mxu0 %v6567
        %9074 = vmatprep.subr.bf16.mxu0 %v6580
        %9075 = vmatpush1.bf16.msra.mxu0 %v6579
        %9076 = vmatprep.subr.bf16.mxu0 %v6592
        %9077 = vmatpush1.bf16.msra.mxu0 %v6591
        %9078 = vmatprep.subr.bf16.mxu0 %v6604
        %9079 = vmatpush1.bf16.msra.mxu0 %v6603
        %9080 = vmatprep.subr.bf16.mxu0 %v6616
        %9081 = vmatpush1.bf16.msra.mxu0 %v6615
        %9082 = vmatprep.subr.bf16.mxu0 %v6628
        %9083 = vmatpush1.bf16.msra.mxu0 %v6627
        %9084 = vmatprep.subr.bf16.mxu0 %v6640
        %9085 = vmatpush1.bf16.msra.mxu0 %v6639
        %9086 = vmatprep.subr.bf16.mxu0 %v6652
        %9087 = vmatpush1.bf16.msra.mxu0 %v6651
        %9088 = vmatprep.subr.bf16.mxu0 %v6664
        %9089 = vmatpush1.bf16.msra.mxu0 %v6663
        %9090 = vmatprep.subr.bf16.mxu0 %v6676
        %9091 = vmatpush1.bf16.msra.mxu0 %v6675
        %9092 = vmatprep.subr.bf16.mxu0 %v6688
        %9093 = vmatpush1.bf16.msra.mxu0 %v6687
        %9094 = vmatprep.subr.bf16.mxu0 %v6700
        %9095 = vmatpush1.bf16.msra.mxu0 %v6699
        %9096 = vmatprep.subr.bf16.mxu0 %v6712
        %9097 = vmatpush1.bf16.msra.mxu0 %v6711
        %9098 = vmatprep.subr.bf16.mxu0 %v6724
        %9099 = vmatpush1.bf16.msra.mxu0 %v6723
        %9100 = vmatprep.mubr.bf16.mxu0 %v966
        %9101 = vmatmul.mubr.bf16.gmra.mrb[0].mxu0 %v965
        %v9102 = vpop.f32.mrb[0].mxu0
        %v9103 = vadd.f32 %v9062, %v9102
        %v9104 = vpop.f32.mrb[0].mxu0
        %v9105 = vadd.f32 %v9064, %v9104
        %v9106 = vpop.f32.mrb[0].mxu0
        %v9107 = vpop.f32.mrb[0].mxu0
        %9108 = vdwg.mxu0
        %9109 = vmatprep.subr.bf16.mxu0 %v5586
        %9110 = vmatpush1.bf16.msra.mxu0 %v5585
        %9111 = vmatprep.subr.bf16.mxu0 %v5598
        %9112 = vmatpush1.bf16.msra.mxu0 %v5597
        %9113 = vmatprep.subr.bf16.mxu0 %v5610
        %9114 = vmatpush1.bf16.msra.mxu0 %v5609
        %9115 = vmatprep.subr.bf16.mxu0 %v5622
        %9116 = vmatpush1.bf16.msra.mxu0 %v5621
        %9117 = vmatprep.subr.bf16.mxu0 %v5634
        %9118 = vmatpush1.bf16.msra.mxu0 %v5633
        %9119 = vmatprep.subr.bf16.mxu0 %v5646
        %9120 = vmatpush1.bf16.msra.mxu0 %v5645
        %9121 = vmatprep.subr.bf16.mxu0 %v5658
        %9122 = vmatpush1.bf16.msra.mxu0 %v5657
        %9123 = vmatprep.subr.bf16.mxu0 %v5670
        %9124 = vmatpush1.bf16.msra.mxu0 %v5669
        %9125 = vmatprep.subr.bf16.mxu0 %v5682
        %9126 = vmatpush1.bf16.msra.mxu0 %v5681
        %9127 = vmatprep.subr.bf16.mxu0 %v5694
        %9128 = vmatpush1.bf16.msra.mxu0 %v5693
        %9129 = vmatprep.subr.bf16.mxu0 %v5706
        %9130 = vmatpush1.bf16.msra.mxu0 %v5705
        %9131 = vmatprep.subr.bf16.mxu0 %v5718
        %9132 = vmatpush1.bf16.msra.mxu0 %v5717
        %9133 = vmatprep.subr.bf16.mxu0 %v5730
        %9134 = vmatpush1.bf16.msra.mxu0 %v5729
        %9135 = vmatprep.subr.bf16.mxu0 %v5742
        %9136 = vmatpush1.bf16.msra.mxu0 %v5741
        %9137 = vmatprep.subr.bf16.mxu0 %v5754
        %9138 = vmatpush1.bf16.msra.mxu0 %v5753
        %9139 = vmatprep.subr.bf16.mxu0 %v5766
        %9140 = vmatpush1.bf16.msra.mxu0 %v5765
        %9141 = vmatprep.mubr.bf16.mxu0 %v956
        %9142 = vmatmul.mubr.bf16.gmra.mrb[0].mxu0 %v955
        %v9143 = vpop.f32.mrb[0].mxu0
        %v9144 = vadd.f32 0.0, %v9143
        %v9145 = vpop.f32.mrb[0].mxu0
        %v9146 = vadd.f32 0.0, %v9145
        %v9147 = vpop.f32.mrb[0].mxu0
        %v9148 = vpop.f32.mrb[0].mxu0
        %9149 = vdwg.mxu0
        %9150 = vmatprep.subr.bf16.mxu0 %v5778
        %9151 = vmatpush1.bf16.msra.mxu0 %v5777
        %9152 = vmatprep.subr.bf16.mxu0 %v5790
        %9153 = vmatpush1.bf16.msra.mxu0 %v5789
        %9154 = vmatprep.subr.bf16.mxu0 %v5802
        %9155 = vmatpush1.bf16.msra.mxu0 %v5801
        %9156 = vmatprep.subr.bf16.mxu0 %v5814
        %9157 = vmatpush1.bf16.msra.mxu0 %v5813
        %9158 = vmatprep.subr.bf16.mxu0 %v5826
        %9159 = vmatpush1.bf16.msra.mxu0 %v5825
        %9160 = vmatprep.subr.bf16.mxu0 %v5838
        %9161 = vmatpush1.bf16.msra.mxu0 %v5837
        %9162 = vmatprep.subr.bf16.mxu0 %v5850
        %9163 = vmatpush1.bf16.msra.mxu0 %v5849
        %9164 = vmatprep.subr.bf16.mxu0 %v5862
        %9165 = vmatpush1.bf16.msra.mxu0 %v5861
        %9166 = vmatprep.subr.bf16.mxu0 %v5874
        %9167 = vmatpush1.bf16.msra.mxu0 %v5873
        %9168 = vmatprep.subr.bf16.mxu0 %v5886
        %9169 = vmatpush1.bf16.msra.mxu0 %v5885
        %9170 = vmatprep.subr.bf16.mxu0 %v5898
        %9171 = vmatpush1.bf16.msra.mxu0 %v5897
        %9172 = vmatprep.subr.bf16.mxu0 %v5910
        %9173 = vmatpush1.bf16.msra.mxu0 %v5909
        %9174 = vmatprep.subr.bf16.mxu0 %v5922
        %9175 = vmatpush1.bf16.msra.mxu0 %v5921
        %9176 = vmatprep.subr.bf16.mxu0 %v5934
        %9177 = vmatpush1.bf16.msra.mxu0 %v5933
        %9178 = vmatprep.subr.bf16.mxu0 %v5946
        %9179 = vmatpush1.bf16.msra.mxu0 %v5945
        %9180 = vmatprep.subr.bf16.mxu0 %v5958
        %9181 = vmatpush1.bf16.msra.mxu0 %v5957
        %9182 = vmatprep.mubr.bf16.mxu0 %v958
        %9183 = vmatmul.mubr.bf16.gmra.mrb[0].mxu0 %v957
        %v9184 = vpop.f32.mrb[0].mxu0
        %v9185 = vadd.f32 %v9144, %v9184
        %v9186 = vpop.f32.mrb[0].mxu0
        %v9187 = vadd.f32 %v9146, %v9186
        %v9188 = vpop.f32.mrb[0].mxu0
        %v9189 = vpop.f32.mrb[0].mxu0
        %9190 = vdwg.mxu0
        %9191 = vmatprep.subr.bf16.mxu0 %v5970
        %9192 = vmatpush1.bf16.msra.mxu0 %v5969
        %9193 = vmatprep.subr.bf16.mxu0 %v5982
        %9194 = vmatpush1.bf16.msra.mxu0 %v5981
        %9195 = vmatprep.subr.bf16.mxu0 %v5994
        %9196 = vmatpush1.bf16.msra.mxu0 %v5993
        %9197 = vmatprep.subr.bf16.mxu0 %v6006
        %9198 = vmatpush1.bf16.msra.mxu0 %v6005
        %9199 = vmatprep.subr.bf16.mxu0 %v6018
        %9200 = vmatpush1.bf16.msra.mxu0 %v6017
        %9201 = vmatprep.subr.bf16.mxu0 %v6030
        %9202 = vmatpush1.bf16.msra.mxu0 %v6029
        %9203 = vmatprep.subr.bf16.mxu0 %v6042
        %9204 = vmatpush1.bf16.msra.mxu0 %v6041
        %9205 = vmatprep.subr.bf16.mxu0 %v6054
        %9206 = vmatpush1.bf16.msra.mxu0 %v6053
        %9207 = vmatprep.subr.bf16.mxu0 %v6066
        %9208 = vmatpush1.bf16.msra.mxu0 %v6065
        %9209 = vmatprep.subr.bf16.mxu0 %v6078
        %9210 = vmatpush1.bf16.msra.mxu0 %v6077
        %9211 = vmatprep.subr.bf16.mxu0 %v6090
        %9212 = vmatpush1.bf16.msra.mxu0 %v6089
        %9213 = vmatprep.subr.bf16.mxu0 %v6102
        %9214 = vmatpush1.bf16.msra.mxu0 %v6101
        %9215 = vmatprep.subr.bf16.mxu0 %v6114
        %9216 = vmatpush1.bf16.msra.mxu0 %v6113
        %9217 = vmatprep.subr.bf16.mxu0 %v6126
        %9218 = vmatpush1.bf16.msra.mxu0 %v6125
        %9219 = vmatprep.subr.bf16.mxu0 %v6138
        %9220 = vmatpush1.bf16.msra.mxu0 %v6137
        %9221 = vmatprep.subr.bf16.mxu0 %v6150
        %9222 = vmatpush1.bf16.msra.mxu0 %v6149
        %9223 = vmatprep.mubr.bf16.mxu0 %v960
        %9224 = vmatmul.mubr.bf16.gmra.mrb[0].mxu0 %v959
        %v9225 = vpop.f32.mrb[0].mxu0
        %v9226 = vadd.f32 %v9185, %v9225
        %v9227 = vpop.f32.mrb[0].mxu0
        %v9228 = vadd.f32 %v9187, %v9227
        %v9229 = vpop.f32.mrb[0].mxu0
        %v9230 = vpop.f32.mrb[0].mxu0
        %9231 = vdwg.mxu0
        %9232 = vmatprep.subr.bf16.mxu0 %v6162
        %9233 = vmatpush1.bf16.msra.mxu0 %v6161
        %9234 = vmatprep.subr.bf16.mxu0 %v6174
        %9235 = vmatpush1.bf16.msra.mxu0 %v6173
        %9236 = vmatprep.subr.bf16.mxu0 %v6186
        %9237 = vmatpush1.bf16.msra.mxu0 %v6185
        %9238 = vmatprep.subr.bf16.mxu0 %v6198
        %9239 = vmatpush1.bf16.msra.mxu0 %v6197
        %9240 = vmatprep.subr.bf16.mxu0 %v6210
        %9241 = vmatpush1.bf16.msra.mxu0 %v6209
        %9242 = vmatprep.subr.bf16.mxu0 %v6222
        %9243 = vmatpush1.bf16.msra.mxu0 %v6221
        %9244 = vmatprep.subr.bf16.mxu0 %v6234
        %9245 = vmatpush1.bf16.msra.mxu0 %v6233
        %9246 = vmatprep.subr.bf16.mxu0 %v6246
        %9247 = vmatpush1.bf16.msra.mxu0 %v6245
        %9248 = vmatprep.subr.bf16.mxu0 %v6258
        %9249 = vmatpush1.bf16.msra.mxu0 %v6257
        %9250 = vmatprep.subr.bf16.mxu0 %v6270
        %9251 = vmatpush1.bf16.msra.mxu0 %v6269
        %9252 = vmatprep.subr.bf16.mxu0 %v6282
        %9253 = vmatpush1.bf16.msra.mxu0 %v6281
        %9254 = vmatprep.subr.bf16.mxu0 %v6294
        %9255 = vmatpush1.bf16.msra.mxu0 %v6293
        %9256 = vmatprep.subr.bf16.mxu0 %v6306
        %9257 = vmatpush1.bf16.msra.mxu0 %v6305
        %9258 = vmatprep.subr.bf16.mxu0 %v6318
        %9259 = vmatpush1.bf16.msra.mxu0 %v6317
        %9260 = vmatprep.subr.bf16.mxu0 %v6330
        %9261 = vmatpush1.bf16.msra.mxu0 %v6329
        %9262 = vmatprep.subr.bf16.mxu0 %v6342
        %9263 = vmatpush1.bf16.msra.mxu0 %v6341
        %9264 = vmatprep.mubr.bf16.mxu0 %v962
        %9265 = vmatmul.mubr.bf16.gmra.mrb[0].mxu0 %v961
        %v9266 = vpop.f32.mrb[0].mxu0
        %v9267 = vadd.f32 %v9226, %v9266
        %v9268 = vpop.f32.mrb[0].mxu0
        %v9269 = vadd.f32 %v9228, %v9268
        %v9270 = vpop.f32.mrb[0].mxu0
        %v9271 = vpop.f32.mrb[0].mxu0
        %9272 = vdwg.mxu0
        %9273 = vmatprep.subr.bf16.mxu0 %v6354
        %9274 = vmatpush1.bf16.msra.mxu0 %v6353
        %9275 = vmatprep.subr.bf16.mxu0 %v6366
        %9276 = vmatpush1.bf16.msra.mxu0 %v6365
        %9277 = vmatprep.subr.bf16.mxu0 %v6378
        %9278 = vmatpush1.bf16.msra.mxu0 %v6377
        %9279 = vmatprep.subr.bf16.mxu0 %v6390
        %9280 = vmatpush1.bf16.msra.mxu0 %v6389
        %9281 = vmatprep.subr.bf16.mxu0 %v6402
        %9282 = vmatpush1.bf16.msra.mxu0 %v6401
        %9283 = vmatprep.subr.bf16.mxu0 %v6414
        %9284 = vmatpush1.bf16.msra.mxu0 %v6413
        %9285 = vmatprep.subr.bf16.mxu0 %v6426
        %9286 = vmatpush1.bf16.msra.mxu0 %v6425
        %9287 = vmatprep.subr.bf16.mxu0 %v6438
        %9288 = vmatpush1.bf16.msra.mxu0 %v6437
        %9289 = vmatprep.subr.bf16.mxu0 %v6450
        %9290 = vmatpush1.bf16.msra.mxu0 %v6449
        %9291 = vmatprep.subr.bf16.mxu0 %v6462
        %9292 = vmatpush1.bf16.msra.mxu0 %v6461
        %9293 = vmatprep.subr.bf16.mxu0 %v6474
        %9294 = vmatpush1.bf16.msra.mxu0 %v6473
        %9295 = vmatprep.subr.bf16.mxu0 %v6486
        %9296 = vmatpush1.bf16.msra.mxu0 %v6485
        %9297 = vmatprep.subr.bf16.mxu0 %v6498
        %9298 = vmatpush1.bf16.msra.mxu0 %v6497
        %9299 = vmatprep.subr.bf16.mxu0 %v6510
        %9300 = vmatpush1.bf16.msra.mxu0 %v6509
        %9301 = vmatprep.subr.bf16.mxu0 %v6522
        %9302 = vmatpush1.bf16.msra.mxu0 %v6521
        %9303 = vmatprep.subr.bf16.mxu0 %v6534
        %9304 = vmatpush1.bf16.msra.mxu0 %v6533
        %9305 = vmatprep.mubr.bf16.mxu0 %v964
        %9306 = vmatmul.mubr.bf16.gmra.mrb[0].mxu0 %v963
        %v9307 = vpop.f32.mrb[0].mxu0
        %v9308 = vadd.f32 %v9267, %v9307
        %v9309 = vpop.f32.mrb[0].mxu0
        %v9310 = vadd.f32 %v9269, %v9309
        %v9311 = vpop.f32.mrb[0].mxu0
        %v9312 = vpop.f32.mrb[0].mxu0
        %9313 = vdwg.mxu0
        %9314 = vmatprep.subr.bf16.mxu0 %v6546
        %9315 = vmatpush1.bf16.msra.mxu0 %v6545
        %9316 = vmatprep.subr.bf16.mxu0 %v6558
        %9317 = vmatpush1.bf16.msra.mxu0 %v6557
        %9318 = vmatprep.subr.bf16.mxu0 %v6570
        %9319 = vmatpush1.bf16.msra.mxu0 %v6569
        %9320 = vmatprep.subr.bf16.mxu0 %v6582
        %9321 = vmatpush1.bf16.msra.mxu0 %v6581
        %9322 = vmatprep.subr.bf16.mxu0 %v6594
        %9323 = vmatpush1.bf16.msra.mxu0 %v6593
        %9324 = vmatprep.subr.bf16.mxu0 %v6606
        %9325 = vmatpush1.bf16.msra.mxu0 %v6605
        %9326 = vmatprep.subr.bf16.mxu0 %v6618
        %9327 = vmatpush1.bf16.msra.mxu0 %v6617
        %9328 = vmatprep.subr.bf16.mxu0 %v6630
        %9329 = vmatpush1.bf16.msra.mxu0 %v6629
        %9330 = vmatprep.subr.bf16.mxu0 %v6642
        %9331 = vmatpush1.bf16.msra.mxu0 %v6641
        %9332 = vmatprep.subr.bf16.mxu0 %v6654
        %9333 = vmatpush1.bf16.msra.mxu0 %v6653
        %9334 = vmatprep.subr.bf16.mxu0 %v6666
        %9335 = vmatpush1.bf16.msra.mxu0 %v6665
        %9336 = vmatprep.subr.bf16.mxu0 %v6678
        %9337 = vmatpush1.bf16.msra.mxu0 %v6677
        %9338 = vmatprep.subr.bf16.mxu0 %v6690
        %9339 = vmatpush1.bf16.msra.mxu0 %v6689
        %9340 = vmatprep.subr.bf16.mxu0 %v6702
        %9341 = vmatpush1.bf16.msra.mxu0 %v6701
        %9342 = vmatprep.subr.bf16.mxu0 %v6714
        %9343 = vmatpush1.bf16.msra.mxu0 %v6713
        %9344 = vmatprep.subr.bf16.mxu0 %v6726
        %9345 = vmatpush1.bf16.msra.mxu0 %v6725
        %9346 = vmatprep.mubr.bf16.mxu0 %v966
        %9347 = vmatmul.mubr.bf16.gmra.mrb[0].mxu0 %v965
        %v9348 = vpop.f32.mrb[0].mxu0
        %v9349 = vadd.f32 %v9308, %v9348
        %v9350 = vpop.f32.mrb[0].mxu0
        %v9351 = vadd.f32 %v9310, %v9350
        %v9352 = vpop.f32.mrb[0].mxu0
        %v9353 = vpop.f32.mrb[0].mxu0
        %9354 = vdwg.mxu0
        %p9355 = scmp.eq.s32.totalorder %s28, 0
        // Predicated region
        $region93: #{split_compare_forward.1} parent=55 // pred_check
          %p9356 = pneg %p9355
        $region94: #{split_compare_forward.1} parent=55 // pred_check_branch
          %9358 = sbr.rel (%p9356) target = $region96
        $region95: #{split_compare_forward.1} parent=55 // pred_region
          %v9371 = vcombine.low %v8119, %v8121
          %v9372 = vcombine.low %v8365, %v8367
          %v9374 = vunpack.c.l.s4 1983009808
          %v9375 = vunpack.c.0.s8 %v9374
          %v9376 = vlaneseq
          %v9377 = vshrl.u32 %v9376, 7
          %v9378 = vsub.s32 %v9375, %v9377
          %v9379 = vrot.slane %v9371, %v9378
          %v9381 = vunpack.c.l.s4 1983009808
          %v9382 = vunpack.c.0.s8 %v9381
          %v9383 = vlaneseq
          %v9384 = vshrl.u32 %v9383, 7
          %v9385 = vsub.s32 %v9382, %v9384
          %v9386 = vrot.slane %v9372, %v9385
          %v9387 = vcombine.low %v9379, %v9386
          %v9388 = vcombine.low %v8611, %v8613
          %v9389 = vcombine.low %v8857, %v8859
          %v9391 = vunpack.c.l.s4 1983009808
          %v9392 = vunpack.c.0.s8 %v9391
          %v9393 = vlaneseq
          %v9394 = vshrl.u32 %v9393, 7
          %v9395 = vsub.s32 %v9392, %v9394
          %v9396 = vrot.slane %v9388, %v9395
          %v9398 = vunpack.c.l.s4 1983009808
          %v9399 = vunpack.c.0.s8 %v9398
          %v9400 = vlaneseq
          %v9401 = vshrl.u32 %v9400, 7
          %v9402 = vsub.s32 %v9399, %v9401
          %v9403 = vrot.slane %v9389, %v9402
          %v9404 = vcombine.low %v9396, %v9403
          %v9405 = vcombine.low %v9103, %v9105
          %v9406 = vcombine.low %v9349, %v9351
          %v9408 = vunpack.c.l.s4 1983009808
          %v9409 = vunpack.c.0.s8 %v9408
          %v9410 = vlaneseq
          %v9411 = vshrl.u32 %v9410, 7
          %v9412 = vsub.s32 %v9409, %v9411
          %v9413 = vrot.slane %v9405, %v9412
          %v9415 = vunpack.c.l.s4 1983009808
          %v9416 = vunpack.c.0.s8 %v9415
          %v9417 = vlaneseq
          %v9418 = vshrl.u32 %v9417, 7
          %v9419 = vsub.s32 %v9416, %v9418
          %v9420 = vrot.slane %v9406, %v9419
          %v9421 = vcombine.low %v9413, %v9420
          %9425 = vst [vmem:[#allocation2] sm:$0xff] %v9387
          %9426 = vst [vmem:[#allocation2 + $0x8] sm:$0xff] %v9404
          %9427 = vst [vmem:[#allocation2 + $0x10] sm:$0xff] %v9421
        $region96: #{split_compare_forward.1} parent=55 // pred_fallthru
          _
        %p9428 = scmp.ne.s32.totalorder %s28, 0
        // Predicated region
        $region97: #{split_compare_forward.1} parent=55 // pred_check
          %p9429 = pneg %p9428
        $region98: #{split_compare_forward.1} parent=55 // pred_check_branch
          %9431 = sbr.rel (%p9429) target = $region100
        $region99: #{split_compare_forward.1} parent=55 // pred_region
          %v9432 = vld [vmem:[#allocation2] sm:$0xff]
          %v9433 = vld [vmem:[#allocation2 + $0x8] sm:$0xff]
          %v9434 = vld [vmem:[#allocation2 + $0x10] sm:$0xff]
          %v9447 = vcombine.low %v8119, %v8121
          %v9448 = vcombine.low %v8365, %v8367
          %v9450 = vunpack.c.l.s4 1983009808
          %v9451 = vunpack.c.0.s8 %v9450
          %v9452 = vlaneseq
          %v9453 = vshrl.u32 %v9452, 7
          %v9454 = vsub.s32 %v9451, %v9453
          %v9455 = vrot.slane %v9447, %v9454
          %v9457 = vunpack.c.l.s4 1983009808
          %v9458 = vunpack.c.0.s8 %v9457
          %v9459 = vlaneseq
          %v9460 = vshrl.u32 %v9459, 7
          %v9461 = vsub.s32 %v9458, %v9460
          %v9462 = vrot.slane %v9448, %v9461
          %v9463 = vcombine.low %v9455, %v9462
          %v9464 = vcombine.low %v8611, %v8613
          %v9465 = vcombine.low %v8857, %v8859
          %v9467 = vunpack.c.l.s4 1983009808
          %v9468 = vunpack.c.0.s8 %v9467
          %v9469 = vlaneseq
          %v9470 = vshrl.u32 %v9469, 7
          %v9471 = vsub.s32 %v9468, %v9470
          %v9472 = vrot.slane %v9464, %v9471
          %v9474 = vunpack.c.l.s4 1983009808
          %v9475 = vunpack.c.0.s8 %v9474
          %v9476 = vlaneseq
          %v9477 = vshrl.u32 %v9476, 7
          %v9478 = vsub.s32 %v9475, %v9477
          %v9479 = vrot.slane %v9465, %v9478
          %v9480 = vcombine.low %v9472, %v9479
          %v9481 = vcombine.low %v9103, %v9105
          %v9482 = vcombine.low %v9349, %v9351
          %v9484 = vunpack.c.l.s4 1983009808
          %v9485 = vunpack.c.0.s8 %v9484
          %v9486 = vlaneseq
          %v9487 = vshrl.u32 %v9486, 7
          %v9488 = vsub.s32 %v9485, %v9487
          %v9489 = vrot.slane %v9481, %v9488
          %v9491 = vunpack.c.l.s4 1983009808
          %v9492 = vunpack.c.0.s8 %v9491
          %v9493 = vlaneseq
          %v9494 = vshrl.u32 %v9493, 7
          %v9495 = vsub.s32 %v9492, %v9494
          %v9496 = vrot.slane %v9482, %v9495
          %v9497 = vcombine.low %v9489, %v9496
          %v9501 = vadd.f32 %v9432, %v9463
          %v9502 = vadd.f32 %v9433, %v9480
          %v9503 = vadd.f32 %v9434, %v9497
          %9504 = vst [vmem:[#allocation2] sm:$0xff] %v9501
          %9505 = vst [vmem:[#allocation2 + $0x8] sm:$0xff] %v9502
          %9506 = vst [vmem:[#allocation2 + $0x10] sm:$0xff] %v9503
        $region100: #{split_compare_forward.1} parent=55 // pred_fallthru
          _
        %p9507 = scmp.eq.s32.totalorder %s28, 1
        // Predicated region
        $region101: #{split_compare_forward.1} parent=55 // pred_check
          %p9508 = pneg %p9507
        $region102: #{split_compare_forward.1} parent=55 // pred_check_branch
          %9510 = sbr.rel (%p9508) target = $region104
        $region103: #{split_compare_forward.1} parent=55 // pred_region
          %v9511 = vld [vmem:[#allocation2] sm:$0xff]
          %v9512 = vld [vmem:[#allocation2 + $0x8] sm:$0xff]
          %v9513 = vld [vmem:[#allocation2 + $0x10] sm:$0xff]
          %v9514 = vtanh.pop %v9511
          %v9515 = vtanh.pop %v9512
          %v9516 = vtanh.pop %v9513
          %s9517 = smul.u32 %s27, 1536
          %s9518 = sshra.s32 %s9517, 7
          %s9519 = sand.u32 %s9517, 127
          %s9520 = smul.addr %s9518, 2
          %s9521 = scalar_lea.vmem [#allocation14], %s9520
          %v9522 = vld [vmem:[%s9521] sm:$0xff]
          %v9523 = vld [vmem:[%s9521 + $0x8] sm:$0xff]
          %v9524 = vld [vmem:[%s9521 + $0x10] sm:$0xff]
          %v9528 = vcombine.high %v9514, %v9514
          %v9530 = vunpack.c.l.s4 1983009808
          %v9531 = vunpack.c.0.s8 %v9530
          %v9532 = vlaneseq
          %v9533 = vshrl.u32 %v9532, 7
          %v9534 = vsub.s32 %v9531, %v9533
          %v9535 = vrot.slane %v9514, %v9534
          %v9537 = vunpack.c.l.s4 1983009808
          %v9538 = vunpack.c.0.s8 %v9537
          %v9539 = vlaneseq
          %v9540 = vshrl.u32 %v9539, 7
          %v9541 = vsub.s32 %v9538, %v9540
          %v9542 = vrot.slane %v9528, %v9541
          %v9543 = vcombine.high %v9535, %v9535
          %v9544 = vcombine.high %v9542, %v9542
          %v9545 = vcombine.high %v9515, %v9515
          %v9547 = vunpack.c.l.s4 1983009808
          %v9548 = vunpack.c.0.s8 %v9547
          %v9549 = vlaneseq
          %v9550 = vshrl.u32 %v9549, 7
          %v9551 = vsub.s32 %v9548, %v9550
          %v9552 = vrot.slane %v9515, %v9551
          %v9554 = vunpack.c.l.s4 1983009808
          %v9555 = vunpack.c.0.s8 %v9554
          %v9556 = vlaneseq
          %v9557 = vshrl.u32 %v9556, 7
          %v9558 = vsub.s32 %v9555, %v9557
          %v9559 = vrot.slane %v9545, %v9558
          %v9560 = vcombine.high %v9552, %v9552
          %v9561 = vcombine.high %v9559, %v9559
          %v9562 = vcombine.high %v9516, %v9516
          %v9564 = vunpack.c.l.s4 1983009808
          %v9565 = vunpack.c.0.s8 %v9564
          %v9566 = vlaneseq
          %v9567 = vshrl.u32 %v9566, 7
          %v9568 = vsub.s32 %v9565, %v9567
          %v9569 = vrot.slane %v9516, %v9568
          %v9571 = vunpack.c.l.s4 1983009808
          %v9572 = vunpack.c.0.s8 %v9571
          %v9573 = vlaneseq
          %v9574 = vshrl.u32 %v9573, 7
          %v9575 = vsub.s32 %v9572, %v9574
          %v9576 = vrot.slane %v9562, %v9575
          %v9577 = vcombine.high %v9569, %v9569
          %v9578 = vcombine.high %v9576, %v9576
          %v9591 = vpack.c.bf16 %v9535, %v9535
          %v9592 = vpack.c.bf16 %v9543, %v9543
          %v9593 = vpack.c.bf16 %v9542, %v9542
          %v9594 = vpack.c.bf16 %v9544, %v9544
          %v9595 = vpack.c.bf16 %v9552, %v9552
          %v9596 = vpack.c.bf16 %v9560, %v9560
          %v9597 = vpack.c.bf16 %v9559, %v9559
          %v9598 = vpack.c.bf16 %v9561, %v9561
          %v9599 = vpack.c.bf16 %v9569, %v9569
          %v9600 = vpack.c.bf16 %v9577, %v9577
          %v9601 = vpack.c.bf16 %v9576, %v9576
          %v9602 = vpack.c.bf16 %v9578, %v9578
          %v9603 = vadd.f32 %v545, %v546
          %v9604 = vpack.c.bf16 %v9603, %v9603
          %v9605 = vld [vmem:[#allocation8] sm:$0xff]
          %v9606 = vld [vmem:[#allocation8 + $0x8] sm:$0xff]
          %v9607 = vld [vmem:[#allocation8 + $0x10] sm:$0xff]
          %v9608 = vld [vmem:[#allocation8 + $0x18] sm:$0xff]
          %v9609 = vld [vmem:[#allocation8 + $0x20] sm:$0xff]
          %v9610 = vld [vmem:[#allocation8 + $0x28] sm:$0xff]
          %v9611 = vld [vmem:[#allocation8 + $0x30] sm:$0xff]
          %v9612 = vld [vmem:[#allocation8 + $0x38] sm:$0xff]
          %v9613 = vld [vmem:[#allocation8 + $0x40] sm:$0xff]
          %v9614 = vld [vmem:[#allocation8 + $0x48] sm:$0xff]
          %v9615 = vld [vmem:[#allocation8 + $0x50] sm:$0xff]
          %v9616 = vld [vmem:[#allocation8 + $0x58] sm:$0xff]
          %v9617 = vld [vmem:[#allocation8 + $0x60] sm:$0xff]
          %v9618 = vld [vmem:[#allocation8 + $0x68] sm:$0xff]
          %v9619 = vld [vmem:[#allocation8 + $0x70] sm:$0xff]
          %v9620 = vld [vmem:[#allocation8 + $0x78] sm:$0xff]
          %v9621 = vld [vmem:[#allocation9] sm:$0xff]
          %v9623 = vlaneseq
          %v9624 = vshrl.u32 %v9623, 7
          %v9625 = vsub.s32 0, %v9624
          %v9626 = vrot.slane %v9621, %v9625
          %v9627 = vlaneseq
          %v9628 = vshrl.u32 %v9627, 7
          %v9629 = vsub.s32 1, %v9628
          %v9630 = vrot.slane %v9621, %v9629
          %v9631 = vlaneseq
          %v9632 = vshrl.u32 %v9631, 7
          %v9633 = vsub.s32 2, %v9632
          %v9634 = vrot.slane %v9621, %v9633
          %v9635 = vlaneseq
          %v9636 = vshrl.u32 %v9635, 7
          %v9637 = vsub.s32 3, %v9636
          %v9638 = vrot.slane %v9621, %v9637
          %v9639 = vlaneseq
          %v9640 = vshrl.u32 %v9639, 7
          %v9641 = vsub.s32 4, %v9640
          %v9642 = vrot.slane %v9621, %v9641
          %v9643 = vlaneseq
          %v9644 = vshrl.u32 %v9643, 7
          %v9645 = vsub.s32 5, %v9644
          %v9646 = vrot.slane %v9621, %v9645
          %v9647 = vlaneseq
          %v9648 = vshrl.u32 %v9647, 7
          %v9649 = vsub.s32 6, %v9648
          %v9650 = vrot.slane %v9621, %v9649
          %v9651 = vlaneseq
          %v9652 = vshrl.u32 %v9651, 7
          %v9653 = vsub.s32 7, %v9652
          %v9654 = vrot.slane %v9621, %v9653
          %v9679 = vunpack.c.l.b16 %v9605
          %v9680 = vunpack.c.h.b16 %v9605
          %v9681 = vunpack.c.l.b16 %v9606
          %v9682 = vunpack.c.h.b16 %v9606
          %v9683 = vunpack.c.l.b16 %v9607
          %v9684 = vunpack.c.h.b16 %v9607
          %v9685 = vunpack.c.l.b16 %v9608
          %v9686 = vunpack.c.h.b16 %v9608
          %v9687 = vunpack.c.l.b16 %v9609
          %v9688 = vunpack.c.h.b16 %v9609
          %v9689 = vunpack.c.l.b16 %v9610
          %v9690 = vunpack.c.h.b16 %v9610
          %v9691 = vunpack.c.l.b16 %v9611
          %v9692 = vunpack.c.h.b16 %v9611
          %v9693 = vunpack.c.l.b16 %v9612
          %v9694 = vunpack.c.h.b16 %v9612
          %v9695 = vunpack.c.l.b16 %v9613
          %v9696 = vunpack.c.h.b16 %v9613
          %v9697 = vunpack.c.l.b16 %v9614
          %v9698 = vunpack.c.h.b16 %v9614
          %v9699 = vunpack.c.l.b16 %v9615
          %v9700 = vunpack.c.h.b16 %v9615
          %v9701 = vunpack.c.l.b16 %v9616
          %v9702 = vunpack.c.h.b16 %v9616
          %v9703 = vunpack.c.l.b16 %v9617
          %v9704 = vunpack.c.h.b16 %v9617
          %v9705 = vunpack.c.l.b16 %v9618
          %v9706 = vunpack.c.h.b16 %v9618
          %v9707 = vunpack.c.l.b16 %v9619
          %v9708 = vunpack.c.h.b16 %v9619
          %v9709 = vunpack.c.l.b16 %v9620
          %v9710 = vunpack.c.h.b16 %v9620
          %v9711 = vpack.c.b16 %v9687, %v9679
          %v9712 = vpack.c.b16 %v9688, %v9680
          %v9713 = vpack.c.b16 %v9689, %v9681
          %v9714 = vpack.c.b16 %v9690, %v9682
          %v9715 = vpack.c.b16 %v9691, %v9683
          %v9716 = vpack.c.b16 %v9692, %v9684
          %v9717 = vpack.c.b16 %v9693, %v9685
          %v9718 = vpack.c.b16 %v9694, %v9686
          %v9719 = vpack.c.b16 %v9703, %v9695
          %v9720 = vpack.c.b16 %v9704, %v9696
          %v9721 = vpack.c.b16 %v9705, %v9697
          %v9722 = vpack.c.b16 %v9706, %v9698
          %v9723 = vpack.c.b16 %v9707, %v9699
          %v9724 = vpack.c.b16 %v9708, %v9700
          %v9725 = vpack.c.b16 %v9709, %v9701
          %v9726 = vpack.c.b16 %v9710, %v9702
          %v9744 = vsel %vm693, %v9604, 0
          %9746 = vmatprep.subr.bf16.mxu0 %v9712
          %9747 = vmatpush1.bf16.msra.mxu0 %v9711
          %9748 = vmatprep.subr.bf16.mxu0 %v9720
          %9749 = vmatpush1.bf16.msra.mxu0 %v9719
          %9750 = vmatprep.subr.bf16.mxu0 0
          %9751 = vmatpush1.bf16.msra.mxu0 0
          %9752 = vmatprep.subr.bf16.mxu0 0
          %9753 = vmatpush1.bf16.msra.mxu0 0
          %9754 = vmatprep.subr.bf16.mxu0 0
          %9755 = vmatpush1.bf16.msra.mxu0 0
          %9756 = vmatprep.subr.bf16.mxu0 0
          %9757 = vmatpush1.bf16.msra.mxu0 0
          %9758 = vmatprep.subr.bf16.mxu0 0
          %9759 = vmatpush1.bf16.msra.mxu0 0
          %9760 = vmatprep.subr.bf16.mxu0 0
          %9761 = vmatpush1.bf16.msra.mxu0 0
          %9762 = vmatprep.subr.bf16.mxu0 0
          %9763 = vmatpush1.bf16.msra.mxu0 0
          %9764 = vmatprep.subr.bf16.mxu0 0
          %9765 = vmatpush1.bf16.msra.mxu0 0
          %9766 = vmatprep.subr.bf16.mxu0 0
          %9767 = vmatpush1.bf16.msra.mxu0 0
          %9768 = vmatprep.subr.bf16.mxu0 0
          %9769 = vmatpush1.bf16.msra.mxu0 0
          %9770 = vmatprep.subr.bf16.mxu0 0
          %9771 = vmatpush1.bf16.msra.mxu0 0
          %9772 = vmatprep.subr.bf16.mxu0 0
          %9773 = vmatpush1.bf16.msra.mxu0 0
          %9774 = vmatprep.subr.bf16.mxu0 0
          %9775 = vmatpush1.bf16.msra.mxu0 0
          %9776 = vmatprep.subr.bf16.mxu0 0
          %9777 = vmatpush1.bf16.msra.mxu0 0
          %9778 = vmatprep.mubr.bf16.mxu0 0
          %9779 = vmatmul.mubr.bf16.gmra.mrb[0].mxu0 %v9744
          %v9780 = vpop.f32.mrb[0].mxu0
          %v9781 = vadd.f32 %v9626, %v9780
          %v9782 = vpop.f32.mrb[0].mxu0
          %v9783 = vadd.f32 %v9630, %v9782
          %v9784 = vpop.f32.mrb[0].mxu0
          %v9785 = vpop.f32.mrb[0].mxu0
          %9786 = vdwg.mxu0
          %9787 = vmatprep.subr.bf16.mxu0 %v9714
          %9788 = vmatpush1.bf16.msra.mxu0 %v9713
          %9789 = vmatprep.subr.bf16.mxu0 %v9722
          %9790 = vmatpush1.bf16.msra.mxu0 %v9721
          %9791 = vmatprep.subr.bf16.mxu0 0
          %9792 = vmatpush1.bf16.msra.mxu0 0
          %9793 = vmatprep.subr.bf16.mxu0 0
          %9794 = vmatpush1.bf16.msra.mxu0 0
          %9795 = vmatprep.subr.bf16.mxu0 0
          %9796 = vmatpush1.bf16.msra.mxu0 0
          %9797 = vmatprep.subr.bf16.mxu0 0
          %9798 = vmatpush1.bf16.msra.mxu0 0
          %9799 = vmatprep.subr.bf16.mxu0 0
          %9800 = vmatpush1.bf16.msra.mxu0 0
          %9801 = vmatprep.subr.bf16.mxu0 0
          %9802 = vmatpush1.bf16.msra.mxu0 0
          %9803 = vmatprep.subr.bf16.mxu0 0
          %9804 = vmatpush1.bf16.msra.mxu0 0
          %9805 = vmatprep.subr.bf16.mxu0 0
          %9806 = vmatpush1.bf16.msra.mxu0 0
          %9807 = vmatprep.subr.bf16.mxu0 0
          %9808 = vmatpush1.bf16.msra.mxu0 0
          %9809 = vmatprep.subr.bf16.mxu0 0
          %9810 = vmatpush1.bf16.msra.mxu0 0
          %9811 = vmatprep.subr.bf16.mxu0 0
          %9812 = vmatpush1.bf16.msra.mxu0 0
          %9813 = vmatprep.subr.bf16.mxu0 0
          %9814 = vmatpush1.bf16.msra.mxu0 0
          %9815 = vmatprep.subr.bf16.mxu0 0
          %9816 = vmatpush1.bf16.msra.mxu0 0
          %9817 = vmatprep.subr.bf16.mxu0 0
          %9818 = vmatpush1.bf16.msra.mxu0 0
          %9819 = vmatprep.mubr.bf16.mxu0 0
          %9820 = vmatmul.mubr.bf16.gmra.mrb[0].mxu0 %v9744
          %v9821 = vpop.f32.mrb[0].mxu0
          %v9822 = vadd.f32 %v9634, %v9821
          %v9823 = vpop.f32.mrb[0].mxu0
          %v9824 = vadd.f32 %v9638, %v9823
          %v9825 = vpop.f32.mrb[0].mxu0
          %v9826 = vpop.f32.mrb[0].mxu0
          %9827 = vdwg.mxu0
          %9828 = vmatprep.subr.bf16.mxu0 %v9716
          %9829 = vmatpush1.bf16.msra.mxu0 %v9715
          %9830 = vmatprep.subr.bf16.mxu0 %v9724
          %9831 = vmatpush1.bf16.msra.mxu0 %v9723
          %9832 = vmatprep.subr.bf16.mxu0 0
          %9833 = vmatpush1.bf16.msra.mxu0 0
          %9834 = vmatprep.subr.bf16.mxu0 0
          %9835 = vmatpush1.bf16.msra.mxu0 0
          %9836 = vmatprep.subr.bf16.mxu0 0
          %9837 = vmatpush1.bf16.msra.mxu0 0
          %9838 = vmatprep.subr.bf16.mxu0 0
          %9839 = vmatpush1.bf16.msra.mxu0 0
          %9840 = vmatprep.subr.bf16.mxu0 0
          %9841 = vmatpush1.bf16.msra.mxu0 0
          %9842 = vmatprep.subr.bf16.mxu0 0
          %9843 = vmatpush1.bf16.msra.mxu0 0
          %9844 = vmatprep.subr.bf16.mxu0 0
          %9845 = vmatpush1.bf16.msra.mxu0 0
          %9846 = vmatprep.subr.bf16.mxu0 0
          %9847 = vmatpush1.bf16.msra.mxu0 0
          %9848 = vmatprep.subr.bf16.mxu0 0
          %9849 = vmatpush1.bf16.msra.mxu0 0
          %9850 = vmatprep.subr.bf16.mxu0 0
          %9851 = vmatpush1.bf16.msra.mxu0 0
          %9852 = vmatprep.subr.bf16.mxu0 0
          %9853 = vmatpush1.bf16.msra.mxu0 0
          %9854 = vmatprep.subr.bf16.mxu0 0
          %9855 = vmatpush1.bf16.msra.mxu0 0
          %9856 = vmatprep.subr.bf16.mxu0 0
          %9857 = vmatpush1.bf16.msra.mxu0 0
          %9858 = vmatprep.subr.bf16.mxu0 0
          %9859 = vmatpush1.bf16.msra.mxu0 0
          %9860 = vmatprep.mubr.bf16.mxu0 0
          %9861 = vmatmul.mubr.bf16.gmra.mrb[0].mxu0 %v9744
          %v9862 = vpop.f32.mrb[0].mxu0
          %v9863 = vadd.f32 %v9642, %v9862
          %v9864 = vpop.f32.mrb[0].mxu0
          %v9865 = vadd.f32 %v9646, %v9864
          %v9866 = vpop.f32.mrb[0].mxu0
          %v9867 = vpop.f32.mrb[0].mxu0
          %9868 = vdwg.mxu0
          %9869 = vmatprep.subr.bf16.mxu0 %v9718
          %9870 = vmatpush1.bf16.msra.mxu0 %v9717
          %9871 = vmatprep.subr.bf16.mxu0 %v9726
          %9872 = vmatpush1.bf16.msra.mxu0 %v9725
          %9873 = vmatprep.subr.bf16.mxu0 0
          %9874 = vmatpush1.bf16.msra.mxu0 0
          %9875 = vmatprep.subr.bf16.mxu0 0
          %9876 = vmatpush1.bf16.msra.mxu0 0
          %9877 = vmatprep.subr.bf16.mxu0 0
          %9878 = vmatpush1.bf16.msra.mxu0 0
          %9879 = vmatprep.subr.bf16.mxu0 0
          %9880 = vmatpush1.bf16.msra.mxu0 0
          %9881 = vmatprep.subr.bf16.mxu0 0
          %9882 = vmatpush1.bf16.msra.mxu0 0
          %9883 = vmatprep.subr.bf16.mxu0 0
          %9884 = vmatpush1.bf16.msra.mxu0 0
          %9885 = vmatprep.subr.bf16.mxu0 0
          %9886 = vmatpush1.bf16.msra.mxu0 0
          %9887 = vmatprep.subr.bf16.mxu0 0
          %9888 = vmatpush1.bf16.msra.mxu0 0
          %9889 = vmatprep.subr.bf16.mxu0 0
          %9890 = vmatpush1.bf16.msra.mxu0 0
          %9891 = vmatprep.subr.bf16.mxu0 0
          %9892 = vmatpush1.bf16.msra.mxu0 0
          %9893 = vmatprep.subr.bf16.mxu0 0
          %9894 = vmatpush1.bf16.msra.mxu0 0
          %9895 = vmatprep.subr.bf16.mxu0 0
          %9896 = vmatpush1.bf16.msra.mxu0 0
          %9897 = vmatprep.subr.bf16.mxu0 0
          %9898 = vmatpush1.bf16.msra.mxu0 0
          %9899 = vmatprep.subr.bf16.mxu0 0
          %9900 = vmatpush1.bf16.msra.mxu0 0
          %9901 = vmatprep.mubr.bf16.mxu0 0
          %9902 = vmatmul.mubr.bf16.gmra.mrb[0].mxu0 %v9744
          %v9903 = vpop.f32.mrb[0].mxu0
          %v9904 = vadd.f32 %v9650, %v9903
          %v9905 = vpop.f32.mrb[0].mxu0
          %v9906 = vadd.f32 %v9654, %v9905
          %v9907 = vpop.f32.mrb[0].mxu0
          %v9908 = vpop.f32.mrb[0].mxu0
          %9909 = vdwg.mxu0
          %v9910 = vtanh.pop %v9781
          %v9911 = vtanh.pop %v9783
          %v9912 = vtanh.pop %v9822
          %v9913 = vtanh.pop %v9824
          %v9914 = vtanh.pop %v9863
          %v9915 = vtanh.pop %v9865
          %v9916 = vtanh.pop %v9904
          %v9917 = vtanh.pop %v9906
          %v9918 = vpack.c.bf16 %v9910, %v9910
          %v9919 = vpack.c.bf16 %v9911, %v9911
          %v9920 = vpack.c.bf16 %v9912, %v9912
          %v9921 = vpack.c.bf16 %v9913, %v9913
          %v9922 = vpack.c.bf16 %v9914, %v9914
          %v9923 = vpack.c.bf16 %v9915, %v9915
          %v9924 = vpack.c.bf16 %v9916, %v9916
          %v9925 = vpack.c.bf16 %v9917, %v9917
          %v9926 = vld [vmem:[%s473] sm:$0xff]
          %v9927 = vld [vmem:[%s473 + $0x8] sm:$0xff]
          %v9928 = vld [vmem:[%s473 + $0x10] sm:$0xff]
          %v9929 = vld [vmem:[%s473 + $0x18] sm:$0xff]
          %v9930 = vld [vmem:[%s473 + $0x20] sm:$0xff]
          %v9931 = vld [vmem:[%s473 + $0x28] sm:$0xff]
          %v9932 = vld [vmem:[%s473 + $0x30] sm:$0xff]
          %v9933 = vld [vmem:[%s473 + $0x38] sm:$0xff]
          %v9934 = vld [vmem:[%s473 + $0x40] sm:$0xff]
          %v9935 = vld [vmem:[%s473 + $0x48] sm:$0xff]
          %v9936 = vld [vmem:[%s473 + $0x50] sm:$0xff]
          %v9937 = vld [vmem:[%s473 + $0x58] sm:$0xff]
          %v9938 = vld [vmem:[%s473 + $0x60] sm:$0xff]
          %v9939 = vld [vmem:[%s473 + $0x68] sm:$0xff]
          %v9940 = vld [vmem:[%s473 + $0x70] sm:$0xff]
          %v9941 = vld [vmem:[%s473 + $0x78] sm:$0xff]
          %v9942 = vld [vmem:[%s473 + $0x80] sm:$0xff]
          %v9943 = vld [vmem:[%s473 + $0x88] sm:$0xff]
          %v9944 = vld [vmem:[%s473 + $0x90] sm:$0xff]
          %v9945 = vld [vmem:[%s473 + $0x98] sm:$0xff]
          %v9946 = vld [vmem:[%s473 + $0xa0] sm:$0xff]
          %v9947 = vld [vmem:[%s473 + $0xa8] sm:$0xff]
          %v9948 = vld [vmem:[%s473 + $0xb0] sm:$0xff]
          %v9949 = vld [vmem:[%s473 + $0xb8] sm:$0xff]
          %v9950 = vld [vmem:[%s473 + $0xc0] sm:$0xff]
          %v9951 = vld [vmem:[%s473 + $0xc8] sm:$0xff]
          %v9952 = vld [vmem:[%s473 + $0xd0] sm:$0xff]
          %v9953 = vld [vmem:[%s473 + $0xd8] sm:$0xff]
          %v9954 = vld [vmem:[%s473 + $0xe0] sm:$0xff]
          %v9955 = vld [vmem:[%s473 + $0xe8] sm:$0xff]
          %v9956 = vld [vmem:[%s473 + $0xf0] sm:$0xff]
          %v9957 = vld [vmem:[%s473 + $0xf8] sm:$0xff]
          %v9958 = vld [vmem:[%s473 + $0x100] sm:$0xff]
          %v9959 = vld [vmem:[%s473 + $0x108] sm:$0xff]
          %v9960 = vld [vmem:[%s473 + $0x110] sm:$0xff]
          %v9961 = vld [vmem:[%s473 + $0x118] sm:$0xff]
          %v9962 = vld [vmem:[%s473 + $0x120] sm:$0xff]
          %v9963 = vld [vmem:[%s473 + $0x128] sm:$0xff]
          %v9964 = vld [vmem:[%s473 + $0x130] sm:$0xff]
          %v9965 = vld [vmem:[%s473 + $0x138] sm:$0xff]
          %v9966 = vld [vmem:[%s473 + $0x140] sm:$0xff]
          %v9967 = vld [vmem:[%s473 + $0x148] sm:$0xff]
          %v9968 = vld [vmem:[%s473 + $0x150] sm:$0xff]
          %v9969 = vld [vmem:[%s473 + $0x158] sm:$0xff]
          %v9970 = vld [vmem:[%s473 + $0x160] sm:$0xff]
          %v9971 = vld [vmem:[%s473 + $0x168] sm:$0xff]
          %v9972 = vld [vmem:[%s473 + $0x170] sm:$0xff]
          %v9973 = vld [vmem:[%s473 + $0x178] sm:$0xff]
          %v9974 = vld [vmem:[%s473 + $0x180] sm:$0xff]
          %v9975 = vld [vmem:[%s473 + $0x188] sm:$0xff]
          %v9976 = vld [vmem:[%s473 + $0x190] sm:$0xff]
          %v9977 = vld [vmem:[%s473 + $0x198] sm:$0xff]
          %v9978 = vld [vmem:[%s473 + $0x1a0] sm:$0xff]
          %v9979 = vld [vmem:[%s473 + $0x1a8] sm:$0xff]
          %v9980 = vld [vmem:[%s473 + $0x1b0] sm:$0xff]
          %v9981 = vld [vmem:[%s473 + $0x1b8] sm:$0xff]
          %v9982 = vld [vmem:[%s473 + $0x1c0] sm:$0xff]
          %v9983 = vld [vmem:[%s473 + $0x1c8] sm:$0xff]
          %v9984 = vld [vmem:[%s473 + $0x1d0] sm:$0xff]
          %v9985 = vld [vmem:[%s473 + $0x1d8] sm:$0xff]
          %v9986 = vld [vmem:[%s473 + $0x1e0] sm:$0xff]
          %v9987 = vld [vmem:[%s473 + $0x1e8] sm:$0xff]
          %v9988 = vld [vmem:[%s473 + $0x1f0] sm:$0xff]
          %v9989 = vld [vmem:[%s473 + $0x1f8] sm:$0xff]
          %v9990 = vld [vmem:[%s473 + $0x200] sm:$0xff]
          %v9991 = vld [vmem:[%s473 + $0x208] sm:$0xff]
          %v9992 = vld [vmem:[%s473 + $0x210] sm:$0xff]
          %v9993 = vld [vmem:[%s473 + $0x218] sm:$0xff]
          %v9994 = vld [vmem:[%s473 + $0x220] sm:$0xff]
          %v9995 = vld [vmem:[%s473 + $0x228] sm:$0xff]
          %v9996 = vld [vmem:[%s473 + $0x230] sm:$0xff]
          %v9997 = vld [vmem:[%s473 + $0x238] sm:$0xff]
          %v9998 = vld [vmem:[%s473 + $0x240] sm:$0xff]
          %v9999 = vld [vmem:[%s473 + $0x248] sm:$0xff]
          %v10000 = vld [vmem:[%s473 + $0x250] sm:$0xff]
          %v10001 = vld [vmem:[%s473 + $0x258] sm:$0xff]
          %v10002 = vld [vmem:[%s473 + $0x260] sm:$0xff]
          %v10003 = vld [vmem:[%s473 + $0x268] sm:$0xff]
          %v10004 = vld [vmem:[%s473 + $0x270] sm:$0xff]
          %v10005 = vld [vmem:[%s473 + $0x278] sm:$0xff]
          %v10006 = vld [vmem:[%s473 + $0x280] sm:$0xff]
          %v10007 = vld [vmem:[%s473 + $0x288] sm:$0xff]
          %v10008 = vld [vmem:[%s473 + $0x290] sm:$0xff]
          %v10009 = vld [vmem:[%s473 + $0x298] sm:$0xff]
          %v10010 = vld [vmem:[%s473 + $0x2a0] sm:$0xff]
          %v10011 = vld [vmem:[%s473 + $0x2a8] sm:$0xff]
          %v10012 = vld [vmem:[%s473 + $0x2b0] sm:$0xff]
          %v10013 = vld [vmem:[%s473 + $0x2b8] sm:$0xff]
          %v10014 = vld [vmem:[%s473 + $0x2c0] sm:$0xff]
          %v10015 = vld [vmem:[%s473 + $0x2c8] sm:$0xff]
          %v10016 = vld [vmem:[%s473 + $0x2d0] sm:$0xff]
          %v10017 = vld [vmem:[%s473 + $0x2d8] sm:$0xff]
          %v10018 = vld [vmem:[%s473 + $0x2e0] sm:$0xff]
          %v10019 = vld [vmem:[%s473 + $0x2e8] sm:$0xff]
          %v10020 = vld [vmem:[%s473 + $0x2f0] sm:$0xff]
          %v10021 = vld [vmem:[%s473 + $0x2f8] sm:$0xff]
          %v10022 = vld [vmem:[%s473 + $0x300] sm:$0xff]
          %v10023 = vld [vmem:[%s473 + $0x308] sm:$0xff]
          %v10024 = vld [vmem:[%s473 + $0x310] sm:$0xff]
          %v10025 = vld [vmem:[%s473 + $0x318] sm:$0xff]
          %v10026 = vld [vmem:[%s473 + $0x320] sm:$0xff]
          %v10027 = vld [vmem:[%s473 + $0x328] sm:$0xff]
          %v10028 = vld [vmem:[%s473 + $0x330] sm:$0xff]
          %v10029 = vld [vmem:[%s473 + $0x338] sm:$0xff]
          %v10030 = vld [vmem:[%s473 + $0x340] sm:$0xff]
          %v10031 = vld [vmem:[%s473 + $0x348] sm:$0xff]
          %v10032 = vld [vmem:[%s473 + $0x350] sm:$0xff]
          %v10033 = vld [vmem:[%s473 + $0x358] sm:$0xff]
          %v10034 = vld [vmem:[%s473 + $0x360] sm:$0xff]
          %v10035 = vld [vmem:[%s473 + $0x368] sm:$0xff]
          %v10036 = vld [vmem:[%s473 + $0x370] sm:$0xff]
          %v10037 = vld [vmem:[%s473 + $0x378] sm:$0xff]
          %v10038 = vld [vmem:[%s473 + $0x380] sm:$0xff]
          %v10039 = vld [vmem:[%s473 + $0x388] sm:$0xff]
          %v10040 = vld [vmem:[%s473 + $0x390] sm:$0xff]
          %v10041 = vld [vmem:[%s473 + $0x398] sm:$0xff]
          %v10042 = vld [vmem:[%s473 + $0x3a0] sm:$0xff]
          %v10043 = vld [vmem:[%s473 + $0x3a8] sm:$0xff]
          %v10044 = vld [vmem:[%s473 + $0x3b0] sm:$0xff]
          %v10045 = vld [vmem:[%s473 + $0x3b8] sm:$0xff]
          %v10046 = vld [vmem:[%s473 + $0x3c0] sm:$0xff]
          %v10047 = vld [vmem:[%s473 + $0x3c8] sm:$0xff]
          %v10048 = vld [vmem:[%s473 + $0x3d0] sm:$0xff]
          %v10049 = vld [vmem:[%s473 + $0x3d8] sm:$0xff]
          %v10050 = vld [vmem:[%s473 + $0x3e0] sm:$0xff]
          %v10051 = vld [vmem:[%s473 + $0x3e8] sm:$0xff]
          %v10052 = vld [vmem:[%s473 + $0x3f0] sm:$0xff]
          %v10053 = vld [vmem:[%s473 + $0x3f8] sm:$0xff]
          %v10054 = vld [vmem:[%s473 + $0x400] sm:$0xff]
          %v10055 = vld [vmem:[%s473 + $0x408] sm:$0xff]
          %v10056 = vld [vmem:[%s473 + $0x410] sm:$0xff]
          %v10057 = vld [vmem:[%s473 + $0x418] sm:$0xff]
          %v10058 = vld [vmem:[%s473 + $0x420] sm:$0xff]
          %v10059 = vld [vmem:[%s473 + $0x428] sm:$0xff]
          %v10060 = vld [vmem:[%s473 + $0x430] sm:$0xff]
          %v10061 = vld [vmem:[%s473 + $0x438] sm:$0xff]
          %v10062 = vld [vmem:[%s473 + $0x440] sm:$0xff]
          %v10063 = vld [vmem:[%s473 + $0x448] sm:$0xff]
          %v10064 = vld [vmem:[%s473 + $0x450] sm:$0xff]
          %v10065 = vld [vmem:[%s473 + $0x458] sm:$0xff]
          %v10066 = vld [vmem:[%s473 + $0x460] sm:$0xff]
          %v10067 = vld [vmem:[%s473 + $0x468] sm:$0xff]
          %v10068 = vld [vmem:[%s473 + $0x470] sm:$0xff]
          %v10069 = vld [vmem:[%s473 + $0x478] sm:$0xff]
          %v10070 = vld [vmem:[%s473 + $0x480] sm:$0xff]
          %v10071 = vld [vmem:[%s473 + $0x488] sm:$0xff]
          %v10072 = vld [vmem:[%s473 + $0x490] sm:$0xff]
          %v10073 = vld [vmem:[%s473 + $0x498] sm:$0xff]
          %v10074 = vld [vmem:[%s473 + $0x4a0] sm:$0xff]
          %v10075 = vld [vmem:[%s473 + $0x4a8] sm:$0xff]
          %v10076 = vld [vmem:[%s473 + $0x4b0] sm:$0xff]
          %v10077 = vld [vmem:[%s473 + $0x4b8] sm:$0xff]
          %v10078 = vld [vmem:[%s473 + $0x4c0] sm:$0xff]
          %v10079 = vld [vmem:[%s473 + $0x4c8] sm:$0xff]
          %v10080 = vld [vmem:[%s473 + $0x4d0] sm:$0xff]
          %v10081 = vld [vmem:[%s473 + $0x4d8] sm:$0xff]
          %v10082 = vld [vmem:[%s473 + $0x4e0] sm:$0xff]
          %v10083 = vld [vmem:[%s473 + $0x4e8] sm:$0xff]
          %v10084 = vld [vmem:[%s473 + $0x4f0] sm:$0xff]
          %v10085 = vld [vmem:[%s473 + $0x4f8] sm:$0xff]
          %v10086 = vld [vmem:[%s473 + $0x500] sm:$0xff]
          %v10087 = vld [vmem:[%s473 + $0x508] sm:$0xff]
          %v10088 = vld [vmem:[%s473 + $0x510] sm:$0xff]
          %v10089 = vld [vmem:[%s473 + $0x518] sm:$0xff]
          %v10090 = vld [vmem:[%s473 + $0x520] sm:$0xff]
          %v10091 = vld [vmem:[%s473 + $0x528] sm:$0xff]
          %v10092 = vld [vmem:[%s473 + $0x530] sm:$0xff]
          %v10093 = vld [vmem:[%s473 + $0x538] sm:$0xff]
          %v10094 = vld [vmem:[%s473 + $0x540] sm:$0xff]
          %v10095 = vld [vmem:[%s473 + $0x548] sm:$0xff]
          %v10096 = vld [vmem:[%s473 + $0x550] sm:$0xff]
          %v10097 = vld [vmem:[%s473 + $0x558] sm:$0xff]
          %v10098 = vld [vmem:[%s473 + $0x560] sm:$0xff]
          %v10099 = vld [vmem:[%s473 + $0x568] sm:$0xff]
          %v10100 = vld [vmem:[%s473 + $0x570] sm:$0xff]
          %v10101 = vld [vmem:[%s473 + $0x578] sm:$0xff]
          %v10102 = vld [vmem:[%s473 + $0x580] sm:$0xff]
          %v10103 = vld [vmem:[%s473 + $0x588] sm:$0xff]
          %v10104 = vld [vmem:[%s473 + $0x590] sm:$0xff]
          %v10105 = vld [vmem:[%s473 + $0x598] sm:$0xff]
          %v10106 = vld [vmem:[%s473 + $0x5a0] sm:$0xff]
          %v10107 = vld [vmem:[%s473 + $0x5a8] sm:$0xff]
          %v10108 = vld [vmem:[%s473 + $0x5b0] sm:$0xff]
          %v10109 = vld [vmem:[%s473 + $0x5b8] sm:$0xff]
          %v10110 = vld [vmem:[%s473 + $0x5c0] sm:$0xff]
          %v10111 = vld [vmem:[%s473 + $0x5c8] sm:$0xff]
          %v10112 = vld [vmem:[%s473 + $0x5d0] sm:$0xff]
          %v10113 = vld [vmem:[%s473 + $0x5d8] sm:$0xff]
          %v10114 = vld [vmem:[%s473 + $0x5e0] sm:$0xff]
          %v10115 = vld [vmem:[%s473 + $0x5e8] sm:$0xff]
          %v10116 = vld [vmem:[%s473 + $0x5f0] sm:$0xff]
          %v10117 = vld [vmem:[%s473 + $0x5f8] sm:$0xff]
          %v10118 = vld [vmem:[%s473 + $0x600] sm:$0xff]
          %v10119 = vld [vmem:[%s473 + $0x608] sm:$0xff]
          %v10120 = vld [vmem:[%s473 + $0x610] sm:$0xff]
          %v10121 = vld [vmem:[%s473 + $0x618] sm:$0xff]
          %v10122 = vld [vmem:[%s473 + $0x620] sm:$0xff]
          %v10123 = vld [vmem:[%s473 + $0x628] sm:$0xff]
          %v10124 = vld [vmem:[%s473 + $0x630] sm:$0xff]
          %v10125 = vld [vmem:[%s473 + $0x638] sm:$0xff]
          %v10126 = vld [vmem:[%s473 + $0x640] sm:$0xff]
          %v10127 = vld [vmem:[%s473 + $0x648] sm:$0xff]
          %v10128 = vld [vmem:[%s473 + $0x650] sm:$0xff]
          %v10129 = vld [vmem:[%s473 + $0x658] sm:$0xff]
          %v10130 = vld [vmem:[%s473 + $0x660] sm:$0xff]
          %v10131 = vld [vmem:[%s473 + $0x668] sm:$0xff]
          %v10132 = vld [vmem:[%s473 + $0x670] sm:$0xff]
          %v10133 = vld [vmem:[%s473 + $0x678] sm:$0xff]
          %v10134 = vld [vmem:[%s473 + $0x680] sm:$0xff]
          %v10135 = vld [vmem:[%s473 + $0x688] sm:$0xff]
          %v10136 = vld [vmem:[%s473 + $0x690] sm:$0xff]
          %v10137 = vld [vmem:[%s473 + $0x698] sm:$0xff]
          %v10138 = vld [vmem:[%s473 + $0x6a0] sm:$0xff]
          %v10139 = vld [vmem:[%s473 + $0x6a8] sm:$0xff]
          %v10140 = vld [vmem:[%s473 + $0x6b0] sm:$0xff]
          %v10141 = vld [vmem:[%s473 + $0x6b8] sm:$0xff]
          %v10142 = vld [vmem:[%s473 + $0x6c0] sm:$0xff]
          %v10143 = vld [vmem:[%s473 + $0x6c8] sm:$0xff]
          %v10144 = vld [vmem:[%s473 + $0x6d0] sm:$0xff]
          %v10145 = vld [vmem:[%s473 + $0x6d8] sm:$0xff]
          %v10146 = vld [vmem:[%s473 + $0x6e0] sm:$0xff]
          %v10147 = vld [vmem:[%s473 + $0x6e8] sm:$0xff]
          %v10148 = vld [vmem:[%s473 + $0x6f0] sm:$0xff]
          %v10149 = vld [vmem:[%s473 + $0x6f8] sm:$0xff]
          %v10150 = vld [vmem:[%s473 + $0x700] sm:$0xff]
          %v10151 = vld [vmem:[%s473 + $0x708] sm:$0xff]
          %v10152 = vld [vmem:[%s473 + $0x710] sm:$0xff]
          %v10153 = vld [vmem:[%s473 + $0x718] sm:$0xff]
          %v10154 = vld [vmem:[%s473 + $0x720] sm:$0xff]
          %v10155 = vld [vmem:[%s473 + $0x728] sm:$0xff]
          %v10156 = vld [vmem:[%s473 + $0x730] sm:$0xff]
          %v10157 = vld [vmem:[%s473 + $0x738] sm:$0xff]
          %v10158 = vld [vmem:[%s473 + $0x740] sm:$0xff]
          %v10159 = vld [vmem:[%s473 + $0x748] sm:$0xff]
          %v10160 = vld [vmem:[%s473 + $0x750] sm:$0xff]
          %v10161 = vld [vmem:[%s473 + $0x758] sm:$0xff]
          %v10162 = vld [vmem:[%s473 + $0x760] sm:$0xff]
          %v10163 = vld [vmem:[%s473 + $0x768] sm:$0xff]
          %v10164 = vld [vmem:[%s473 + $0x770] sm:$0xff]
          %v10165 = vld [vmem:[%s473 + $0x778] sm:$0xff]
          %v10166 = vld [vmem:[%s473 + $0x780] sm:$0xff]
          %v10167 = vld [vmem:[%s473 + $0x788] sm:$0xff]
          %v10168 = vld [vmem:[%s473 + $0x790] sm:$0xff]
          %v10169 = vld [vmem:[%s473 + $0x798] sm:$0xff]
          %v10170 = vld [vmem:[%s473 + $0x7a0] sm:$0xff]
          %v10171 = vld [vmem:[%s473 + $0x7a8] sm:$0xff]
          %v10172 = vld [vmem:[%s473 + $0x7b0] sm:$0xff]
          %v10173 = vld [vmem:[%s473 + $0x7b8] sm:$0xff]
          %v10174 = vld [vmem:[%s473 + $0x7c0] sm:$0xff]
          %v10175 = vld [vmem:[%s473 + $0x7c8] sm:$0xff]
          %v10176 = vld [vmem:[%s473 + $0x7d0] sm:$0xff]
          %v10177 = vld [vmem:[%s473 + $0x7d8] sm:$0xff]
          %v10178 = vld [vmem:[%s473 + $0x7e0] sm:$0xff]
          %v10179 = vld [vmem:[%s473 + $0x7e8] sm:$0xff]
          %v10180 = vld [vmem:[%s473 + $0x7f0] sm:$0xff]
          %v10181 = vld [vmem:[%s473 + $0x7f8] sm:$0xff]
          %v10182 = vld [vmem:[%s482] sm:$0xf]
          %v10184 = vlaneseq
          %v10185 = vshrl.u32 %v10184, 7
          %v10186 = vsub.s32 0, %v10185
          %v10187 = vrot.slane %v10182, %v10186
          %v10188 = vlaneseq
          %v10189 = vshrl.u32 %v10188, 7
          %v10190 = vsub.s32 1, %v10189
          %v10191 = vrot.slane %v10182, %v10190
          %v10192 = vlaneseq
          %v10193 = vshrl.u32 %v10192, 7
          %v10194 = vsub.s32 2, %v10193
          %v10195 = vrot.slane %v10182, %v10194
          %v10196 = vlaneseq
          %v10197 = vshrl.u32 %v10196, 7
          %v10198 = vsub.s32 3, %v10197
          %v10199 = vrot.slane %v10182, %v10198
          %v10460 = vunpack.c.l.b16 %v9926
          %v10461 = vunpack.c.h.b16 %v9926
          %v10462 = vunpack.c.l.b16 %v9927
          %v10463 = vunpack.c.h.b16 %v9927
          %v10464 = vunpack.c.l.b16 %v9928
          %v10465 = vunpack.c.h.b16 %v9928
          %v10466 = vunpack.c.l.b16 %v9929
          %v10467 = vunpack.c.h.b16 %v9929
          %v10468 = vunpack.c.l.b16 %v9930
          %v10469 = vunpack.c.h.b16 %v9930
          %v10470 = vunpack.c.l.b16 %v9931
          %v10471 = vunpack.c.h.b16 %v9931
          %v10472 = vunpack.c.l.b16 %v9932
          %v10473 = vunpack.c.h.b16 %v9932
          %v10474 = vunpack.c.l.b16 %v9933
          %v10475 = vunpack.c.h.b16 %v9933
          %v10476 = vunpack.c.l.b16 %v9934
          %v10477 = vunpack.c.h.b16 %v9934
          %v10478 = vunpack.c.l.b16 %v9935
          %v10479 = vunpack.c.h.b16 %v9935
          %v10480 = vunpack.c.l.b16 %v9936
          %v10481 = vunpack.c.h.b16 %v9936
          %v10482 = vunpack.c.l.b16 %v9937
          %v10483 = vunpack.c.h.b16 %v9937
          %v10484 = vunpack.c.l.b16 %v9938
          %v10485 = vunpack.c.h.b16 %v9938
          %v10486 = vunpack.c.l.b16 %v9939
          %v10487 = vunpack.c.h.b16 %v9939
          %v10488 = vunpack.c.l.b16 %v9940
          %v10489 = vunpack.c.h.b16 %v9940
          %v10490 = vunpack.c.l.b16 %v9941
          %v10491 = vunpack.c.h.b16 %v9941
          %v10492 = vunpack.c.l.b16 %v9942
          %v10493 = vunpack.c.h.b16 %v9942
          %v10494 = vunpack.c.l.b16 %v9943
          %v10495 = vunpack.c.h.b16 %v9943
          %v10496 = vunpack.c.l.b16 %v9944
          %v10497 = vunpack.c.h.b16 %v9944
          %v10498 = vunpack.c.l.b16 %v9945
          %v10499 = vunpack.c.h.b16 %v9945
          %v10500 = vunpack.c.l.b16 %v9946
          %v10501 = vunpack.c.h.b16 %v9946
          %v10502 = vunpack.c.l.b16 %v9947
          %v10503 = vunpack.c.h.b16 %v9947
          %v10504 = vunpack.c.l.b16 %v9948
          %v10505 = vunpack.c.h.b16 %v9948
          %v10506 = vunpack.c.l.b16 %v9949
          %v10507 = vunpack.c.h.b16 %v9949
          %v10508 = vunpack.c.l.b16 %v9950
          %v10509 = vunpack.c.h.b16 %v9950
          %v10510 = vunpack.c.l.b16 %v9951
          %v10511 = vunpack.c.h.b16 %v9951
          %v10512 = vunpack.c.l.b16 %v9952
          %v10513 = vunpack.c.h.b16 %v9952
          %v10514 = vunpack.c.l.b16 %v9953
          %v10515 = vunpack.c.h.b16 %v9953
          %v10516 = vunpack.c.l.b16 %v9954
          %v10517 = vunpack.c.h.b16 %v9954
          %v10518 = vunpack.c.l.b16 %v9955
          %v10519 = vunpack.c.h.b16 %v9955
          %v10520 = vunpack.c.l.b16 %v9956
          %v10521 = vunpack.c.h.b16 %v9956
          %v10522 = vunpack.c.l.b16 %v9957
          %v10523 = vunpack.c.h.b16 %v9957
          %v10524 = vunpack.c.l.b16 %v9958
          %v10525 = vunpack.c.h.b16 %v9958
          %v10526 = vunpack.c.l.b16 %v9959
          %v10527 = vunpack.c.h.b16 %v9959
          %v10528 = vunpack.c.l.b16 %v9960
          %v10529 = vunpack.c.h.b16 %v9960
          %v10530 = vunpack.c.l.b16 %v9961
          %v10531 = vunpack.c.h.b16 %v9961
          %v10532 = vunpack.c.l.b16 %v9962
          %v10533 = vunpack.c.h.b16 %v9962
          %v10534 = vunpack.c.l.b16 %v9963
          %v10535 = vunpack.c.h.b16 %v9963
          %v10536 = vunpack.c.l.b16 %v9964
          %v10537 = vunpack.c.h.b16 %v9964
          %v10538 = vunpack.c.l.b16 %v9965
          %v10539 = vunpack.c.h.b16 %v9965
          %v10540 = vunpack.c.l.b16 %v9966
          %v10541 = vunpack.c.h.b16 %v9966
          %v10542 = vunpack.c.l.b16 %v9967
          %v10543 = vunpack.c.h.b16 %v9967
          %v10544 = vunpack.c.l.b16 %v9968
          %v10545 = vunpack.c.h.b16 %v9968
          %v10546 = vunpack.c.l.b16 %v9969
          %v10547 = vunpack.c.h.b16 %v9969
          %v10548 = vunpack.c.l.b16 %v9970
          %v10549 = vunpack.c.h.b16 %v9970
          %v10550 = vunpack.c.l.b16 %v9971
          %v10551 = vunpack.c.h.b16 %v9971
          %v10552 = vunpack.c.l.b16 %v9972
          %v10553 = vunpack.c.h.b16 %v9972
          %v10554 = vunpack.c.l.b16 %v9973
          %v10555 = vunpack.c.h.b16 %v9973
          %v10556 = vunpack.c.l.b16 %v9974
          %v10557 = vunpack.c.h.b16 %v9974
          %v10558 = vunpack.c.l.b16 %v9975
          %v10559 = vunpack.c.h.b16 %v9975
          %v10560 = vunpack.c.l.b16 %v9976
          %v10561 = vunpack.c.h.b16 %v9976
          %v10562 = vunpack.c.l.b16 %v9977
          %v10563 = vunpack.c.h.b16 %v9977
          %v10564 = vunpack.c.l.b16 %v9978
          %v10565 = vunpack.c.h.b16 %v9978
          %v10566 = vunpack.c.l.b16 %v9979
          %v10567 = vunpack.c.h.b16 %v9979
          %v10568 = vunpack.c.l.b16 %v9980
          %v10569 = vunpack.c.h.b16 %v9980
          %v10570 = vunpack.c.l.b16 %v9981
          %v10571 = vunpack.c.h.b16 %v9981
          %v10572 = vunpack.c.l.b16 %v9982
          %v10573 = vunpack.c.h.b16 %v9982
          %v10574 = vunpack.c.l.b16 %v9983
          %v10575 = vunpack.c.h.b16 %v9983
          %v10576 = vunpack.c.l.b16 %v9984
          %v10577 = vunpack.c.h.b16 %v9984
          %v10578 = vunpack.c.l.b16 %v9985
          %v10579 = vunpack.c.h.b16 %v9985
          %v10580 = vunpack.c.l.b16 %v9986
          %v10581 = vunpack.c.h.b16 %v9986
          %v10582 = vunpack.c.l.b16 %v9987
          %v10583 = vunpack.c.h.b16 %v9987
          %v10584 = vunpack.c.l.b16 %v9988
          %v10585 = vunpack.c.h.b16 %v9988
          %v10586 = vunpack.c.l.b16 %v9989
          %v10587 = vunpack.c.h.b16 %v9989
          %v10588 = vunpack.c.l.b16 %v9990
          %v10589 = vunpack.c.h.b16 %v9990
          %v10590 = vunpack.c.l.b16 %v9991
          %v10591 = vunpack.c.h.b16 %v9991
          %v10592 = vunpack.c.l.b16 %v9992
          %v10593 = vunpack.c.h.b16 %v9992
          %v10594 = vunpack.c.l.b16 %v9993
          %v10595 = vunpack.c.h.b16 %v9993
          %v10596 = vunpack.c.l.b16 %v9994
          %v10597 = vunpack.c.h.b16 %v9994
          %v10598 = vunpack.c.l.b16 %v9995
          %v10599 = vunpack.c.h.b16 %v9995
          %v10600 = vunpack.c.l.b16 %v9996
          %v10601 = vunpack.c.h.b16 %v9996
          %v10602 = vunpack.c.l.b16 %v9997
          %v10603 = vunpack.c.h.b16 %v9997
          %v10604 = vunpack.c.l.b16 %v9998
          %v10605 = vunpack.c.h.b16 %v9998
          %v10606 = vunpack.c.l.b16 %v9999
          %v10607 = vunpack.c.h.b16 %v9999
          %v10608 = vunpack.c.l.b16 %v10000
          %v10609 = vunpack.c.h.b16 %v10000
          %v10610 = vunpack.c.l.b16 %v10001
          %v10611 = vunpack.c.h.b16 %v10001
          %v10612 = vunpack.c.l.b16 %v10002
          %v10613 = vunpack.c.h.b16 %v10002
          %v10614 = vunpack.c.l.b16 %v10003
          %v10615 = vunpack.c.h.b16 %v10003
          %v10616 = vunpack.c.l.b16 %v10004
          %v10617 = vunpack.c.h.b16 %v10004
          %v10618 = vunpack.c.l.b16 %v10005
          %v10619 = vunpack.c.h.b16 %v10005
          %v10620 = vunpack.c.l.b16 %v10006
          %v10621 = vunpack.c.h.b16 %v10006
          %v10622 = vunpack.c.l.b16 %v10007
          %v10623 = vunpack.c.h.b16 %v10007
          %v10624 = vunpack.c.l.b16 %v10008
          %v10625 = vunpack.c.h.b16 %v10008
          %v10626 = vunpack.c.l.b16 %v10009
          %v10627 = vunpack.c.h.b16 %v10009
          %v10628 = vunpack.c.l.b16 %v10010
          %v10629 = vunpack.c.h.b16 %v10010
          %v10630 = vunpack.c.l.b16 %v10011
          %v10631 = vunpack.c.h.b16 %v10011
          %v10632 = vunpack.c.l.b16 %v10012
          %v10633 = vunpack.c.h.b16 %v10012
          %v10634 = vunpack.c.l.b16 %v10013
          %v10635 = vunpack.c.h.b16 %v10013
          %v10636 = vunpack.c.l.b16 %v10014
          %v10637 = vunpack.c.h.b16 %v10014
          %v10638 = vunpack.c.l.b16 %v10015
          %v10639 = vunpack.c.h.b16 %v10015
          %v10640 = vunpack.c.l.b16 %v10016
          %v10641 = vunpack.c.h.b16 %v10016
          %v10642 = vunpack.c.l.b16 %v10017
          %v10643 = vunpack.c.h.b16 %v10017
          %v10644 = vunpack.c.l.b16 %v10018
          %v10645 = vunpack.c.h.b16 %v10018
          %v10646 = vunpack.c.l.b16 %v10019
          %v10647 = vunpack.c.h.b16 %v10019
          %v10648 = vunpack.c.l.b16 %v10020
          %v10649 = vunpack.c.h.b16 %v10020
          %v10650 = vunpack.c.l.b16 %v10021
          %v10651 = vunpack.c.h.b16 %v10021
          %v10652 = vunpack.c.l.b16 %v10022
          %v10653 = vunpack.c.h.b16 %v10022
          %v10654 = vunpack.c.l.b16 %v10023
          %v10655 = vunpack.c.h.b16 %v10023
          %v10656 = vunpack.c.l.b16 %v10024
          %v10657 = vunpack.c.h.b16 %v10024
          %v10658 = vunpack.c.l.b16 %v10025
          %v10659 = vunpack.c.h.b16 %v10025
          %v10660 = vunpack.c.l.b16 %v10026
          %v10661 = vunpack.c.h.b16 %v10026
          %v10662 = vunpack.c.l.b16 %v10027
          %v10663 = vunpack.c.h.b16 %v10027
          %v10664 = vunpack.c.l.b16 %v10028
          %v10665 = vunpack.c.h.b16 %v10028
          %v10666 = vunpack.c.l.b16 %v10029
          %v10667 = vunpack.c.h.b16 %v10029
          %v10668 = vunpack.c.l.b16 %v10030
          %v10669 = vunpack.c.h.b16 %v10030
          %v10670 = vunpack.c.l.b16 %v10031
          %v10671 = vunpack.c.h.b16 %v10031
          %v10672 = vunpack.c.l.b16 %v10032
          %v10673 = vunpack.c.h.b16 %v10032
          %v10674 = vunpack.c.l.b16 %v10033
          %v10675 = vunpack.c.h.b16 %v10033
          %v10676 = vunpack.c.l.b16 %v10034
          %v10677 = vunpack.c.h.b16 %v10034
          %v10678 = vunpack.c.l.b16 %v10035
          %v10679 = vunpack.c.h.b16 %v10035
          %v10680 = vunpack.c.l.b16 %v10036
          %v10681 = vunpack.c.h.b16 %v10036
          %v10682 = vunpack.c.l.b16 %v10037
          %v10683 = vunpack.c.h.b16 %v10037
          %v10684 = vunpack.c.l.b16 %v10038
          %v10685 = vunpack.c.h.b16 %v10038
          %v10686 = vunpack.c.l.b16 %v10039
          %v10687 = vunpack.c.h.b16 %v10039
          %v10688 = vunpack.c.l.b16 %v10040
          %v10689 = vunpack.c.h.b16 %v10040
          %v10690 = vunpack.c.l.b16 %v10041
          %v10691 = vunpack.c.h.b16 %v10041
          %v10692 = vunpack.c.l.b16 %v10042
          %v10693 = vunpack.c.h.b16 %v10042
          %v10694 = vunpack.c.l.b16 %v10043
          %v10695 = vunpack.c.h.b16 %v10043
          %v10696 = vunpack.c.l.b16 %v10044
          %v10697 = vunpack.c.h.b16 %v10044
          %v10698 = vunpack.c.l.b16 %v10045
          %v10699 = vunpack.c.h.b16 %v10045
          %v10700 = vunpack.c.l.b16 %v10046
          %v10701 = vunpack.c.h.b16 %v10046
          %v10702 = vunpack.c.l.b16 %v10047
          %v10703 = vunpack.c.h.b16 %v10047
          %v10704 = vunpack.c.l.b16 %v10048
          %v10705 = vunpack.c.h.b16 %v10048
          %v10706 = vunpack.c.l.b16 %v10049
          %v10707 = vunpack.c.h.b16 %v10049
          %v10708 = vunpack.c.l.b16 %v10050
          %v10709 = vunpack.c.h.b16 %v10050
          %v10710 = vunpack.c.l.b16 %v10051
          %v10711 = vunpack.c.h.b16 %v10051
          %v10712 = vunpack.c.l.b16 %v10052
          %v10713 = vunpack.c.h.b16 %v10052
          %v10714 = vunpack.c.l.b16 %v10053
          %v10715 = vunpack.c.h.b16 %v10053
          %v10716 = vunpack.c.l.b16 %v10054
          %v10717 = vunpack.c.h.b16 %v10054
          %v10718 = vunpack.c.l.b16 %v10055
          %v10719 = vunpack.c.h.b16 %v10055
          %v10720 = vunpack.c.l.b16 %v10056
          %v10721 = vunpack.c.h.b16 %v10056
          %v10722 = vunpack.c.l.b16 %v10057
          %v10723 = vunpack.c.h.b16 %v10057
          %v10724 = vunpack.c.l.b16 %v10058
          %v10725 = vunpack.c.h.b16 %v10058
          %v10726 = vunpack.c.l.b16 %v10059
          %v10727 = vunpack.c.h.b16 %v10059
          %v10728 = vunpack.c.l.b16 %v10060
          %v10729 = vunpack.c.h.b16 %v10060
          %v10730 = vunpack.c.l.b16 %v10061
          %v10731 = vunpack.c.h.b16 %v10061
          %v10732 = vunpack.c.l.b16 %v10062
          %v10733 = vunpack.c.h.b16 %v10062
          %v10734 = vunpack.c.l.b16 %v10063
          %v10735 = vunpack.c.h.b16 %v10063
          %v10736 = vunpack.c.l.b16 %v10064
          %v10737 = vunpack.c.h.b16 %v10064
          %v10738 = vunpack.c.l.b16 %v10065
          %v10739 = vunpack.c.h.b16 %v10065
          %v10740 = vunpack.c.l.b16 %v10066
          %v10741 = vunpack.c.h.b16 %v10066
          %v10742 = vunpack.c.l.b16 %v10067
          %v10743 = vunpack.c.h.b16 %v10067
          %v10744 = vunpack.c.l.b16 %v10068
          %v10745 = vunpack.c.h.b16 %v10068
          %v10746 = vunpack.c.l.b16 %v10069
          %v10747 = vunpack.c.h.b16 %v10069
          %v10748 = vunpack.c.l.b16 %v10070
          %v10749 = vunpack.c.h.b16 %v10070
          %v10750 = vunpack.c.l.b16 %v10071
          %v10751 = vunpack.c.h.b16 %v10071
          %v10752 = vunpack.c.l.b16 %v10072
          %v10753 = vunpack.c.h.b16 %v10072
          %v10754 = vunpack.c.l.b16 %v10073
          %v10755 = vunpack.c.h.b16 %v10073
          %v10756 = vunpack.c.l.b16 %v10074
          %v10757 = vunpack.c.h.b16 %v10074
          %v10758 = vunpack.c.l.b16 %v10075
          %v10759 = vunpack.c.h.b16 %v10075
          %v10760 = vunpack.c.l.b16 %v10076
          %v10761 = vunpack.c.h.b16 %v10076
          %v10762 = vunpack.c.l.b16 %v10077
          %v10763 = vunpack.c.h.b16 %v10077
          %v10764 = vunpack.c.l.b16 %v10078
          %v10765 = vunpack.c.h.b16 %v10078
          %v10766 = vunpack.c.l.b16 %v10079
          %v10767 = vunpack.c.h.b16 %v10079
          %v10768 = vunpack.c.l.b16 %v10080
          %v10769 = vunpack.c.h.b16 %v10080
          %v10770 = vunpack.c.l.b16 %v10081
          %v10771 = vunpack.c.h.b16 %v10081
          %v10772 = vunpack.c.l.b16 %v10082
          %v10773 = vunpack.c.h.b16 %v10082
          %v10774 = vunpack.c.l.b16 %v10083
          %v10775 = vunpack.c.h.b16 %v10083
          %v10776 = vunpack.c.l.b16 %v10084
          %v10777 = vunpack.c.h.b16 %v10084
          %v10778 = vunpack.c.l.b16 %v10085
          %v10779 = vunpack.c.h.b16 %v10085
          %v10780 = vunpack.c.l.b16 %v10086
          %v10781 = vunpack.c.h.b16 %v10086
          %v10782 = vunpack.c.l.b16 %v10087
          %v10783 = vunpack.c.h.b16 %v10087
          %v10784 = vunpack.c.l.b16 %v10088
          %v10785 = vunpack.c.h.b16 %v10088
          %v10786 = vunpack.c.l.b16 %v10089
          %v10787 = vunpack.c.h.b16 %v10089
          %v10788 = vunpack.c.l.b16 %v10090
          %v10789 = vunpack.c.h.b16 %v10090
          %v10790 = vunpack.c.l.b16 %v10091
          %v10791 = vunpack.c.h.b16 %v10091
          %v10792 = vunpack.c.l.b16 %v10092
          %v10793 = vunpack.c.h.b16 %v10092
          %v10794 = vunpack.c.l.b16 %v10093
          %v10795 = vunpack.c.h.b16 %v10093
          %v10796 = vunpack.c.l.b16 %v10094
          %v10797 = vunpack.c.h.b16 %v10094
          %v10798 = vunpack.c.l.b16 %v10095
          %v10799 = vunpack.c.h.b16 %v10095
          %v10800 = vunpack.c.l.b16 %v10096
          %v10801 = vunpack.c.h.b16 %v10096
          %v10802 = vunpack.c.l.b16 %v10097
          %v10803 = vunpack.c.h.b16 %v10097
          %v10804 = vunpack.c.l.b16 %v10098
          %v10805 = vunpack.c.h.b16 %v10098
          %v10806 = vunpack.c.l.b16 %v10099
          %v10807 = vunpack.c.h.b16 %v10099
          %v10808 = vunpack.c.l.b16 %v10100
          %v10809 = vunpack.c.h.b16 %v10100
          %v10810 = vunpack.c.l.b16 %v10101
          %v10811 = vunpack.c.h.b16 %v10101
          %v10812 = vunpack.c.l.b16 %v10102
          %v10813 = vunpack.c.h.b16 %v10102
          %v10814 = vunpack.c.l.b16 %v10103
          %v10815 = vunpack.c.h.b16 %v10103
          %v10816 = vunpack.c.l.b16 %v10104
          %v10817 = vunpack.c.h.b16 %v10104
          %v10818 = vunpack.c.l.b16 %v10105
          %v10819 = vunpack.c.h.b16 %v10105
          %v10820 = vunpack.c.l.b16 %v10106
          %v10821 = vunpack.c.h.b16 %v10106
          %v10822 = vunpack.c.l.b16 %v10107
          %v10823 = vunpack.c.h.b16 %v10107
          %v10824 = vunpack.c.l.b16 %v10108
          %v10825 = vunpack.c.h.b16 %v10108
          %v10826 = vunpack.c.l.b16 %v10109
          %v10827 = vunpack.c.h.b16 %v10109
          %v10828 = vunpack.c.l.b16 %v10110
          %v10829 = vunpack.c.h.b16 %v10110
          %v10830 = vunpack.c.l.b16 %v10111
          %v10831 = vunpack.c.h.b16 %v10111
          %v10832 = vunpack.c.l.b16 %v10112
          %v10833 = vunpack.c.h.b16 %v10112
          %v10834 = vunpack.c.l.b16 %v10113
          %v10835 = vunpack.c.h.b16 %v10113
          %v10836 = vunpack.c.l.b16 %v10114
          %v10837 = vunpack.c.h.b16 %v10114
          %v10838 = vunpack.c.l.b16 %v10115
          %v10839 = vunpack.c.h.b16 %v10115
          %v10840 = vunpack.c.l.b16 %v10116
          %v10841 = vunpack.c.h.b16 %v10116
          %v10842 = vunpack.c.l.b16 %v10117
          %v10843 = vunpack.c.h.b16 %v10117
          %v10844 = vunpack.c.l.b16 %v10118
          %v10845 = vunpack.c.h.b16 %v10118
          %v10846 = vunpack.c.l.b16 %v10119
          %v10847 = vunpack.c.h.b16 %v10119
          %v10848 = vunpack.c.l.b16 %v10120
          %v10849 = vunpack.c.h.b16 %v10120
          %v10850 = vunpack.c.l.b16 %v10121
          %v10851 = vunpack.c.h.b16 %v10121
          %v10852 = vunpack.c.l.b16 %v10122
          %v10853 = vunpack.c.h.b16 %v10122
          %v10854 = vunpack.c.l.b16 %v10123
          %v10855 = vunpack.c.h.b16 %v10123
          %v10856 = vunpack.c.l.b16 %v10124
          %v10857 = vunpack.c.h.b16 %v10124
          %v10858 = vunpack.c.l.b16 %v10125
          %v10859 = vunpack.c.h.b16 %v10125
          %v10860 = vunpack.c.l.b16 %v10126
          %v10861 = vunpack.c.h.b16 %v10126
          %v10862 = vunpack.c.l.b16 %v10127
          %v10863 = vunpack.c.h.b16 %v10127
          %v10864 = vunpack.c.l.b16 %v10128
          %v10865 = vunpack.c.h.b16 %v10128
          %v10866 = vunpack.c.l.b16 %v10129
          %v10867 = vunpack.c.h.b16 %v10129
          %v10868 = vunpack.c.l.b16 %v10130
          %v10869 = vunpack.c.h.b16 %v10130
          %v10870 = vunpack.c.l.b16 %v10131
          %v10871 = vunpack.c.h.b16 %v10131
          %v10872 = vunpack.c.l.b16 %v10132
          %v10873 = vunpack.c.h.b16 %v10132
          %v10874 = vunpack.c.l.b16 %v10133
          %v10875 = vunpack.c.h.b16 %v10133
          %v10876 = vunpack.c.l.b16 %v10134
          %v10877 = vunpack.c.h.b16 %v10134
          %v10878 = vunpack.c.l.b16 %v10135
          %v10879 = vunpack.c.h.b16 %v10135
          %v10880 = vunpack.c.l.b16 %v10136
          %v10881 = vunpack.c.h.b16 %v10136
          %v10882 = vunpack.c.l.b16 %v10137
          %v10883 = vunpack.c.h.b16 %v10137
          %v10884 = vunpack.c.l.b16 %v10138
          %v10885 = vunpack.c.h.b16 %v10138
          %v10886 = vunpack.c.l.b16 %v10139
          %v10887 = vunpack.c.h.b16 %v10139
          %v10888 = vunpack.c.l.b16 %v10140
          %v10889 = vunpack.c.h.b16 %v10140
          %v10890 = vunpack.c.l.b16 %v10141
          %v10891 = vunpack.c.h.b16 %v10141
          %v10892 = vunpack.c.l.b16 %v10142
          %v10893 = vunpack.c.h.b16 %v10142
          %v10894 = vunpack.c.l.b16 %v10143
          %v10895 = vunpack.c.h.b16 %v10143
          %v10896 = vunpack.c.l.b16 %v10144
          %v10897 = vunpack.c.h.b16 %v10144
          %v10898 = vunpack.c.l.b16 %v10145
          %v10899 = vunpack.c.h.b16 %v10145
          %v10900 = vunpack.c.l.b16 %v10146
          %v10901 = vunpack.c.h.b16 %v10146
          %v10902 = vunpack.c.l.b16 %v10147
          %v10903 = vunpack.c.h.b16 %v10147
          %v10904 = vunpack.c.l.b16 %v10148
          %v10905 = vunpack.c.h.b16 %v10148
          %v10906 = vunpack.c.l.b16 %v10149
          %v10907 = vunpack.c.h.b16 %v10149
          %v10908 = vunpack.c.l.b16 %v10150
          %v10909 = vunpack.c.h.b16 %v10150
          %v10910 = vunpack.c.l.b16 %v10151
          %v10911 = vunpack.c.h.b16 %v10151
          %v10912 = vunpack.c.l.b16 %v10152
          %v10913 = vunpack.c.h.b16 %v10152
          %v10914 = vunpack.c.l.b16 %v10153
          %v10915 = vunpack.c.h.b16 %v10153
          %v10916 = vunpack.c.l.b16 %v10154
          %v10917 = vunpack.c.h.b16 %v10154
          %v10918 = vunpack.c.l.b16 %v10155
          %v10919 = vunpack.c.h.b16 %v10155
          %v10920 = vunpack.c.l.b16 %v10156
          %v10921 = vunpack.c.h.b16 %v10156
          %v10922 = vunpack.c.l.b16 %v10157
          %v10923 = vunpack.c.h.b16 %v10157
          %v10924 = vunpack.c.l.b16 %v10158
          %v10925 = vunpack.c.h.b16 %v10158
          %v10926 = vunpack.c.l.b16 %v10159
          %v10927 = vunpack.c.h.b16 %v10159
          %v10928 = vunpack.c.l.b16 %v10160
          %v10929 = vunpack.c.h.b16 %v10160
          %v10930 = vunpack.c.l.b16 %v10161
          %v10931 = vunpack.c.h.b16 %v10161
          %v10932 = vunpack.c.l.b16 %v10162
          %v10933 = vunpack.c.h.b16 %v10162
          %v10934 = vunpack.c.l.b16 %v10163
          %v10935 = vunpack.c.h.b16 %v10163
          %v10936 = vunpack.c.l.b16 %v10164
          %v10937 = vunpack.c.h.b16 %v10164
          %v10938 = vunpack.c.l.b16 %v10165
          %v10939 = vunpack.c.h.b16 %v10165
          %v10940 = vunpack.c.l.b16 %v10166
          %v10941 = vunpack.c.h.b16 %v10166
          %v10942 = vunpack.c.l.b16 %v10167
          %v10943 = vunpack.c.h.b16 %v10167
          %v10944 = vunpack.c.l.b16 %v10168
          %v10945 = vunpack.c.h.b16 %v10168
          %v10946 = vunpack.c.l.b16 %v10169
          %v10947 = vunpack.c.h.b16 %v10169
          %v10948 = vunpack.c.l.b16 %v10170
          %v10949 = vunpack.c.h.b16 %v10170
          %v10950 = vunpack.c.l.b16 %v10171
          %v10951 = vunpack.c.h.b16 %v10171
          %v10952 = vunpack.c.l.b16 %v10172
          %v10953 = vunpack.c.h.b16 %v10172
          %v10954 = vunpack.c.l.b16 %v10173
          %v10955 = vunpack.c.h.b16 %v10173
          %v10956 = vunpack.c.l.b16 %v10174
          %v10957 = vunpack.c.h.b16 %v10174
          %v10958 = vunpack.c.l.b16 %v10175
          %v10959 = vunpack.c.h.b16 %v10175
          %v10960 = vunpack.c.l.b16 %v10176
          %v10961 = vunpack.c.h.b16 %v10176
          %v10962 = vunpack.c.l.b16 %v10177
          %v10963 = vunpack.c.h.b16 %v10177
          %v10964 = vunpack.c.l.b16 %v10178
          %v10965 = vunpack.c.h.b16 %v10178
          %v10966 = vunpack.c.l.b16 %v10179
          %v10967 = vunpack.c.h.b16 %v10179
          %v10968 = vunpack.c.l.b16 %v10180
          %v10969 = vunpack.c.h.b16 %v10180
          %v10970 = vunpack.c.l.b16 %v10181
          %v10971 = vunpack.c.h.b16 %v10181
          %v10972 = vpack.c.b16 %v10464, %v10460
          %v10973 = vpack.c.b16 %v10465, %v10461
          %v10974 = vpack.c.b16 %v10466, %v10462
          %v10975 = vpack.c.b16 %v10467, %v10463
          %v10976 = vpack.c.b16 %v10472, %v10468
          %v10977 = vpack.c.b16 %v10473, %v10469
          %v10978 = vpack.c.b16 %v10474, %v10470
          %v10979 = vpack.c.b16 %v10475, %v10471
          %v10980 = vpack.c.b16 %v10480, %v10476
          %v10981 = vpack.c.b16 %v10481, %v10477
          %v10982 = vpack.c.b16 %v10482, %v10478
          %v10983 = vpack.c.b16 %v10483, %v10479
          %v10984 = vpack.c.b16 %v10488, %v10484
          %v10985 = vpack.c.b16 %v10489, %v10485
          %v10986 = vpack.c.b16 %v10490, %v10486
          %v10987 = vpack.c.b16 %v10491, %v10487
          %v10988 = vpack.c.b16 %v10496, %v10492
          %v10989 = vpack.c.b16 %v10497, %v10493
          %v10990 = vpack.c.b16 %v10498, %v10494
          %v10991 = vpack.c.b16 %v10499, %v10495
          %v10992 = vpack.c.b16 %v10504, %v10500
          %v10993 = vpack.c.b16 %v10505, %v10501
          %v10994 = vpack.c.b16 %v10506, %v10502
          %v10995 = vpack.c.b16 %v10507, %v10503
          %v10996 = vpack.c.b16 %v10512, %v10508
          %v10997 = vpack.c.b16 %v10513, %v10509
          %v10998 = vpack.c.b16 %v10514, %v10510
          %v10999 = vpack.c.b16 %v10515, %v10511
          %v11000 = vpack.c.b16 %v10520, %v10516
          %v11001 = vpack.c.b16 %v10521, %v10517
          %v11002 = vpack.c.b16 %v10522, %v10518
          %v11003 = vpack.c.b16 %v10523, %v10519
          %v11004 = vpack.c.b16 %v10528, %v10524
          %v11005 = vpack.c.b16 %v10529, %v10525
          %v11006 = vpack.c.b16 %v10530, %v10526
          %v11007 = vpack.c.b16 %v10531, %v10527
          %v11008 = vpack.c.b16 %v10536, %v10532
          %v11009 = vpack.c.b16 %v10537, %v10533
          %v11010 = vpack.c.b16 %v10538, %v10534
          %v11011 = vpack.c.b16 %v10539, %v10535
          %v11012 = vpack.c.b16 %v10544, %v10540
          %v11013 = vpack.c.b16 %v10545, %v10541
          %v11014 = vpack.c.b16 %v10546, %v10542
          %v11015 = vpack.c.b16 %v10547, %v10543
          %v11016 = vpack.c.b16 %v10552, %v10548
          %v11017 = vpack.c.b16 %v10553, %v10549
          %v11018 = vpack.c.b16 %v10554, %v10550
          %v11019 = vpack.c.b16 %v10555, %v10551
          %v11020 = vpack.c.b16 %v10560, %v10556
          %v11021 = vpack.c.b16 %v10561, %v10557
          %v11022 = vpack.c.b16 %v10562, %v10558
          %v11023 = vpack.c.b16 %v10563, %v10559
          %v11024 = vpack.c.b16 %v10568, %v10564
          %v11025 = vpack.c.b16 %v10569, %v10565
          %v11026 = vpack.c.b16 %v10570, %v10566
          %v11027 = vpack.c.b16 %v10571, %v10567
          %v11028 = vpack.c.b16 %v10576, %v10572
          %v11029 = vpack.c.b16 %v10577, %v10573
          %v11030 = vpack.c.b16 %v10578, %v10574
          %v11031 = vpack.c.b16 %v10579, %v10575
          %v11032 = vpack.c.b16 %v10584, %v10580
          %v11033 = vpack.c.b16 %v10585, %v10581
          %v11034 = vpack.c.b16 %v10586, %v10582
          %v11035 = vpack.c.b16 %v10587, %v10583
          %v11036 = vpack.c.b16 %v10592, %v10588
          %v11037 = vpack.c.b16 %v10593, %v10589
          %v11038 = vpack.c.b16 %v10594, %v10590
          %v11039 = vpack.c.b16 %v10595, %v10591
          %v11040 = vpack.c.b16 %v10600, %v10596
          %v11041 = vpack.c.b16 %v10601, %v10597
          %v11042 = vpack.c.b16 %v10602, %v10598
          %v11043 = vpack.c.b16 %v10603, %v10599
          %v11044 = vpack.c.b16 %v10608, %v10604
          %v11045 = vpack.c.b16 %v10609, %v10605
          %v11046 = vpack.c.b16 %v10610, %v10606
          %v11047 = vpack.c.b16 %v10611, %v10607
          %v11048 = vpack.c.b16 %v10616, %v10612
          %v11049 = vpack.c.b16 %v10617, %v10613
          %v11050 = vpack.c.b16 %v10618, %v10614
          %v11051 = vpack.c.b16 %v10619, %v10615
          %v11052 = vpack.c.b16 %v10624, %v10620
          %v11053 = vpack.c.b16 %v10625, %v10621
          %v11054 = vpack.c.b16 %v10626, %v10622
          %v11055 = vpack.c.b16 %v10627, %v10623
          %v11056 = vpack.c.b16 %v10632, %v10628
          %v11057 = vpack.c.b16 %v10633, %v10629
          %v11058 = vpack.c.b16 %v10634, %v10630
          %v11059 = vpack.c.b16 %v10635, %v10631
          %v11060 = vpack.c.b16 %v10640, %v10636
          %v11061 = vpack.c.b16 %v10641, %v10637
          %v11062 = vpack.c.b16 %v10642, %v10638
          %v11063 = vpack.c.b16 %v10643, %v10639
          %v11064 = vpack.c.b16 %v10648, %v10644
          %v11065 = vpack.c.b16 %v10649, %v10645
          %v11066 = vpack.c.b16 %v10650, %v10646
          %v11067 = vpack.c.b16 %v10651, %v10647
          %v11068 = vpack.c.b16 %v10656, %v10652
          %v11069 = vpack.c.b16 %v10657, %v10653
          %v11070 = vpack.c.b16 %v10658, %v10654
          %v11071 = vpack.c.b16 %v10659, %v10655
          %v11072 = vpack.c.b16 %v10664, %v10660
          %v11073 = vpack.c.b16 %v10665, %v10661
          %v11074 = vpack.c.b16 %v10666, %v10662
          %v11075 = vpack.c.b16 %v10667, %v10663
          %v11076 = vpack.c.b16 %v10672, %v10668
          %v11077 = vpack.c.b16 %v10673, %v10669
          %v11078 = vpack.c.b16 %v10674, %v10670
          %v11079 = vpack.c.b16 %v10675, %v10671
          %v11080 = vpack.c.b16 %v10680, %v10676
          %v11081 = vpack.c.b16 %v10681, %v10677
          %v11082 = vpack.c.b16 %v10682, %v10678
          %v11083 = vpack.c.b16 %v10683, %v10679
          %v11084 = vpack.c.b16 %v10688, %v10684
          %v11085 = vpack.c.b16 %v10689, %v10685
          %v11086 = vpack.c.b16 %v10690, %v10686
          %v11087 = vpack.c.b16 %v10691, %v10687
          %v11088 = vpack.c.b16 %v10696, %v10692
          %v11089 = vpack.c.b16 %v10697, %v10693
          %v11090 = vpack.c.b16 %v10698, %v10694
          %v11091 = vpack.c.b16 %v10699, %v10695
          %v11092 = vpack.c.b16 %v10704, %v10700
          %v11093 = vpack.c.b16 %v10705, %v10701
          %v11094 = vpack.c.b16 %v10706, %v10702
          %v11095 = vpack.c.b16 %v10707, %v10703
          %v11096 = vpack.c.b16 %v10712, %v10708
          %v11097 = vpack.c.b16 %v10713, %v10709
          %v11098 = vpack.c.b16 %v10714, %v10710
          %v11099 = vpack.c.b16 %v10715, %v10711
          %v11100 = vpack.c.b16 %v10720, %v10716
          %v11101 = vpack.c.b16 %v10721, %v10717
          %v11102 = vpack.c.b16 %v10722, %v10718
          %v11103 = vpack.c.b16 %v10723, %v10719
          %v11104 = vpack.c.b16 %v10728, %v10724
          %v11105 = vpack.c.b16 %v10729, %v10725
          %v11106 = vpack.c.b16 %v10730, %v10726
          %v11107 = vpack.c.b16 %v10731, %v10727
          %v11108 = vpack.c.b16 %v10736, %v10732
          %v11109 = vpack.c.b16 %v10737, %v10733
          %v11110 = vpack.c.b16 %v10738, %v10734
          %v11111 = vpack.c.b16 %v10739, %v10735
          %v11112 = vpack.c.b16 %v10744, %v10740
          %v11113 = vpack.c.b16 %v10745, %v10741
          %v11114 = vpack.c.b16 %v10746, %v10742
          %v11115 = vpack.c.b16 %v10747, %v10743
          %v11116 = vpack.c.b16 %v10752, %v10748
          %v11117 = vpack.c.b16 %v10753, %v10749
          %v11118 = vpack.c.b16 %v10754, %v10750
          %v11119 = vpack.c.b16 %v10755, %v10751
          %v11120 = vpack.c.b16 %v10760, %v10756
          %v11121 = vpack.c.b16 %v10761, %v10757
          %v11122 = vpack.c.b16 %v10762, %v10758
          %v11123 = vpack.c.b16 %v10763, %v10759
          %v11124 = vpack.c.b16 %v10768, %v10764
          %v11125 = vpack.c.b16 %v10769, %v10765
          %v11126 = vpack.c.b16 %v10770, %v10766
          %v11127 = vpack.c.b16 %v10771, %v10767
          %v11128 = vpack.c.b16 %v10776, %v10772
          %v11129 = vpack.c.b16 %v10777, %v10773
          %v11130 = vpack.c.b16 %v10778, %v10774
          %v11131 = vpack.c.b16 %v10779, %v10775
          %v11132 = vpack.c.b16 %v10784, %v10780
          %v11133 = vpack.c.b16 %v10785, %v10781
          %v11134 = vpack.c.b16 %v10786, %v10782
          %v11135 = vpack.c.b16 %v10787, %v10783
          %v11136 = vpack.c.b16 %v10792, %v10788
          %v11137 = vpack.c.b16 %v10793, %v10789
          %v11138 = vpack.c.b16 %v10794, %v10790
          %v11139 = vpack.c.b16 %v10795, %v10791
          %v11140 = vpack.c.b16 %v10800, %v10796
          %v11141 = vpack.c.b16 %v10801, %v10797
          %v11142 = vpack.c.b16 %v10802, %v10798
          %v11143 = vpack.c.b16 %v10803, %v10799
          %v11144 = vpack.c.b16 %v10808, %v10804
          %v11145 = vpack.c.b16 %v10809, %v10805
          %v11146 = vpack.c.b16 %v10810, %v10806
          %v11147 = vpack.c.b16 %v10811, %v10807
          %v11148 = vpack.c.b16 %v10816, %v10812
          %v11149 = vpack.c.b16 %v10817, %v10813
          %v11150 = vpack.c.b16 %v10818, %v10814
          %v11151 = vpack.c.b16 %v10819, %v10815
          %v11152 = vpack.c.b16 %v10824, %v10820
          %v11153 = vpack.c.b16 %v10825, %v10821
          %v11154 = vpack.c.b16 %v10826, %v10822
          %v11155 = vpack.c.b16 %v10827, %v10823
          %v11156 = vpack.c.b16 %v10832, %v10828
          %v11157 = vpack.c.b16 %v10833, %v10829
          %v11158 = vpack.c.b16 %v10834, %v10830
          %v11159 = vpack.c.b16 %v10835, %v10831
          %v11160 = vpack.c.b16 %v10840, %v10836
          %v11161 = vpack.c.b16 %v10841, %v10837
          %v11162 = vpack.c.b16 %v10842, %v10838
          %v11163 = vpack.c.b16 %v10843, %v10839
          %v11164 = vpack.c.b16 %v10848, %v10844
          %v11165 = vpack.c.b16 %v10849, %v10845
          %v11166 = vpack.c.b16 %v10850, %v10846
          %v11167 = vpack.c.b16 %v10851, %v10847
          %v11168 = vpack.c.b16 %v10856, %v10852
          %v11169 = vpack.c.b16 %v10857, %v10853
          %v11170 = vpack.c.b16 %v10858, %v10854
          %v11171 = vpack.c.b16 %v10859, %v10855
          %v11172 = vpack.c.b16 %v10864, %v10860
          %v11173 = vpack.c.b16 %v10865, %v10861
          %v11174 = vpack.c.b16 %v10866, %v10862
          %v11175 = vpack.c.b16 %v10867, %v10863
          %v11176 = vpack.c.b16 %v10872, %v10868
          %v11177 = vpack.c.b16 %v10873, %v10869
          %v11178 = vpack.c.b16 %v10874, %v10870
          %v11179 = vpack.c.b16 %v10875, %v10871
          %v11180 = vpack.c.b16 %v10880, %v10876
          %v11181 = vpack.c.b16 %v10881, %v10877
          %v11182 = vpack.c.b16 %v10882, %v10878
          %v11183 = vpack.c.b16 %v10883, %v10879
          %v11184 = vpack.c.b16 %v10888, %v10884
          %v11185 = vpack.c.b16 %v10889, %v10885
          %v11186 = vpack.c.b16 %v10890, %v10886
          %v11187 = vpack.c.b16 %v10891, %v10887
          %v11188 = vpack.c.b16 %v10896, %v10892
          %v11189 = vpack.c.b16 %v10897, %v10893
          %v11190 = vpack.c.b16 %v10898, %v10894
          %v11191 = vpack.c.b16 %v10899, %v10895
          %v11192 = vpack.c.b16 %v10904, %v10900
          %v11193 = vpack.c.b16 %v10905, %v10901
          %v11194 = vpack.c.b16 %v10906, %v10902
          %v11195 = vpack.c.b16 %v10907, %v10903
          %v11196 = vpack.c.b16 %v10912, %v10908
          %v11197 = vpack.c.b16 %v10913, %v10909
          %v11198 = vpack.c.b16 %v10914, %v10910
          %v11199 = vpack.c.b16 %v10915, %v10911
          %v11200 = vpack.c.b16 %v10920, %v10916
          %v11201 = vpack.c.b16 %v10921, %v10917
          %v11202 = vpack.c.b16 %v10922, %v10918
          %v11203 = vpack.c.b16 %v10923, %v10919
          %v11204 = vpack.c.b16 %v10928, %v10924
          %v11205 = vpack.c.b16 %v10929, %v10925
          %v11206 = vpack.c.b16 %v10930, %v10926
          %v11207 = vpack.c.b16 %v10931, %v10927
          %v11208 = vpack.c.b16 %v10936, %v10932
          %v11209 = vpack.c.b16 %v10937, %v10933
          %v11210 = vpack.c.b16 %v10938, %v10934
          %v11211 = vpack.c.b16 %v10939, %v10935
          %v11212 = vpack.c.b16 %v10944, %v10940
          %v11213 = vpack.c.b16 %v10945, %v10941
          %v11214 = vpack.c.b16 %v10946, %v10942
          %v11215 = vpack.c.b16 %v10947, %v10943
          %v11216 = vpack.c.b16 %v10952, %v10948
          %v11217 = vpack.c.b16 %v10953, %v10949
          %v11218 = vpack.c.b16 %v10954, %v10950
          %v11219 = vpack.c.b16 %v10955, %v10951
          %v11220 = vpack.c.b16 %v10960, %v10956
          %v11221 = vpack.c.b16 %v10961, %v10957
          %v11222 = vpack.c.b16 %v10962, %v10958
          %v11223 = vpack.c.b16 %v10963, %v10959
          %v11224 = vpack.c.b16 %v10968, %v10964
          %v11225 = vpack.c.b16 %v10969, %v10965
          %v11226 = vpack.c.b16 %v10970, %v10966
          %v11227 = vpack.c.b16 %v10971, %v10967
          %11484 = vmatprep.subr.bf16.mxu0 %v10973
          %11485 = vmatpush1.bf16.msra.mxu0 %v10972
          %11486 = vmatprep.subr.bf16.mxu0 %v10977
          %11487 = vmatpush1.bf16.msra.mxu0 %v10976
          %11488 = vmatprep.subr.bf16.mxu0 %v10981
          %11489 = vmatpush1.bf16.msra.mxu0 %v10980
          %11490 = vmatprep.subr.bf16.mxu0 %v10985
          %11491 = vmatpush1.bf16.msra.mxu0 %v10984
          %11492 = vmatprep.subr.bf16.mxu0 %v10989
          %11493 = vmatpush1.bf16.msra.mxu0 %v10988
          %11494 = vmatprep.subr.bf16.mxu0 %v10993
          %11495 = vmatpush1.bf16.msra.mxu0 %v10992
          %11496 = vmatprep.subr.bf16.mxu0 %v10997
          %11497 = vmatpush1.bf16.msra.mxu0 %v10996
          %11498 = vmatprep.subr.bf16.mxu0 %v11001
          %11499 = vmatpush1.bf16.msra.mxu0 %v11000
          %11500 = vmatprep.subr.bf16.mxu0 %v11005
          %11501 = vmatpush1.bf16.msra.mxu0 %v11004
          %11502 = vmatprep.subr.bf16.mxu0 %v11009
          %11503 = vmatpush1.bf16.msra.mxu0 %v11008
          %11504 = vmatprep.subr.bf16.mxu0 %v11013
          %11505 = vmatpush1.bf16.msra.mxu0 %v11012
          %11506 = vmatprep.subr.bf16.mxu0 %v11017
          %11507 = vmatpush1.bf16.msra.mxu0 %v11016
          %11508 = vmatprep.subr.bf16.mxu0 %v11021
          %11509 = vmatpush1.bf16.msra.mxu0 %v11020
          %11510 = vmatprep.subr.bf16.mxu0 %v11025
          %11511 = vmatpush1.bf16.msra.mxu0 %v11024
          %11512 = vmatprep.subr.bf16.mxu0 %v11029
          %11513 = vmatpush1.bf16.msra.mxu0 %v11028
          %11514 = vmatprep.subr.bf16.mxu0 %v11033
          %11515 = vmatpush1.bf16.msra.mxu0 %v11032
          %11516 = vmatprep.mubr.bf16.mxu0 %v9919
          %11517 = vmatmul.mubr.bf16.gmra.mrb[0].mxu0 %v9918
          %v11518 = vpop.f32.mrb[0].mxu0
          %v11519 = vadd.f32 %v10187, %v11518
          %v11520 = vpop.f32.mrb[0].mxu0
          %v11521 = vadd.f32 %v10191, %v11520
          %v11522 = vpop.f32.mrb[0].mxu0
          %v11523 = vpop.f32.mrb[0].mxu0
          %11524 = vdwg.mxu0
          %11525 = vmatprep.subr.bf16.mxu0 %v11037
          %11526 = vmatpush1.bf16.msra.mxu0 %v11036
          %11527 = vmatprep.subr.bf16.mxu0 %v11041
          %11528 = vmatpush1.bf16.msra.mxu0 %v11040
          %11529 = vmatprep.subr.bf16.mxu0 %v11045
          %11530 = vmatpush1.bf16.msra.mxu0 %v11044
          %11531 = vmatprep.subr.bf16.mxu0 %v11049
          %11532 = vmatpush1.bf16.msra.mxu0 %v11048
          %11533 = vmatprep.subr.bf16.mxu0 %v11053
          %11534 = vmatpush1.bf16.msra.mxu0 %v11052
          %11535 = vmatprep.subr.bf16.mxu0 %v11057
          %11536 = vmatpush1.bf16.msra.mxu0 %v11056
          %11537 = vmatprep.subr.bf16.mxu0 %v11061
          %11538 = vmatpush1.bf16.msra.mxu0 %v11060
          %11539 = vmatprep.subr.bf16.mxu0 %v11065
          %11540 = vmatpush1.bf16.msra.mxu0 %v11064
          %11541 = vmatprep.subr.bf16.mxu0 %v11069
          %11542 = vmatpush1.bf16.msra.mxu0 %v11068
          %11543 = vmatprep.subr.bf16.mxu0 %v11073
          %11544 = vmatpush1.bf16.msra.mxu0 %v11072
          %11545 = vmatprep.subr.bf16.mxu0 %v11077
          %11546 = vmatpush1.bf16.msra.mxu0 %v11076
          %11547 = vmatprep.subr.bf16.mxu0 %v11081
          %11548 = vmatpush1.bf16.msra.mxu0 %v11080
          %11549 = vmatprep.subr.bf16.mxu0 %v11085
          %11550 = vmatpush1.bf16.msra.mxu0 %v11084
          %11551 = vmatprep.subr.bf16.mxu0 %v11089
          %11552 = vmatpush1.bf16.msra.mxu0 %v11088
          %11553 = vmatprep.subr.bf16.mxu0 %v11093
          %11554 = vmatpush1.bf16.msra.mxu0 %v11092
          %11555 = vmatprep.subr.bf16.mxu0 %v11097
          %11556 = vmatpush1.bf16.msra.mxu0 %v11096
          %11557 = vmatprep.mubr.bf16.mxu0 %v9921
          %11558 = vmatmul.mubr.bf16.gmra.mrb[0].mxu0 %v9920
          %v11559 = vpop.f32.mrb[0].mxu0
          %v11560 = vadd.f32 %v11519, %v11559
          %v11561 = vpop.f32.mrb[0].mxu0
          %v11562 = vadd.f32 %v11521, %v11561
          %v11563 = vpop.f32.mrb[0].mxu0
          %v11564 = vpop.f32.mrb[0].mxu0
          %11565 = vdwg.mxu0
          %11566 = vmatprep.subr.bf16.mxu0 %v11101
          %11567 = vmatpush1.bf16.msra.mxu0 %v11100
          %11568 = vmatprep.subr.bf16.mxu0 %v11105
          %11569 = vmatpush1.bf16.msra.mxu0 %v11104
          %11570 = vmatprep.subr.bf16.mxu0 %v11109
          %11571 = vmatpush1.bf16.msra.mxu0 %v11108
          %11572 = vmatprep.subr.bf16.mxu0 %v11113
          %11573 = vmatpush1.bf16.msra.mxu0 %v11112
          %11574 = vmatprep.subr.bf16.mxu0 %v11117
          %11575 = vmatpush1.bf16.msra.mxu0 %v11116
          %11576 = vmatprep.subr.bf16.mxu0 %v11121
          %11577 = vmatpush1.bf16.msra.mxu0 %v11120
          %11578 = vmatprep.subr.bf16.mxu0 %v11125
          %11579 = vmatpush1.bf16.msra.mxu0 %v11124
          %11580 = vmatprep.subr.bf16.mxu0 %v11129
          %11581 = vmatpush1.bf16.msra.mxu0 %v11128
          %11582 = vmatprep.subr.bf16.mxu0 %v11133
          %11583 = vmatpush1.bf16.msra.mxu0 %v11132
          %11584 = vmatprep.subr.bf16.mxu0 %v11137
          %11585 = vmatpush1.bf16.msra.mxu0 %v11136
          %11586 = vmatprep.subr.bf16.mxu0 %v11141
          %11587 = vmatpush1.bf16.msra.mxu0 %v11140
          %11588 = vmatprep.subr.bf16.mxu0 %v11145
          %11589 = vmatpush1.bf16.msra.mxu0 %v11144
          %11590 = vmatprep.subr.bf16.mxu0 %v11149
          %11591 = vmatpush1.bf16.msra.mxu0 %v11148
          %11592 = vmatprep.subr.bf16.mxu0 %v11153
          %11593 = vmatpush1.bf16.msra.mxu0 %v11152
          %11594 = vmatprep.subr.bf16.mxu0 %v11157
          %11595 = vmatpush1.bf16.msra.mxu0 %v11156
          %11596 = vmatprep.subr.bf16.mxu0 %v11161
          %11597 = vmatpush1.bf16.msra.mxu0 %v11160
          %11598 = vmatprep.mubr.bf16.mxu0 %v9923
          %11599 = vmatmul.mubr.bf16.gmra.mrb[0].mxu0 %v9922
          %v11600 = vpop.f32.mrb[0].mxu0
          %v11601 = vadd.f32 %v11560, %v11600
          %v11602 = vpop.f32.mrb[0].mxu0
          %v11603 = vadd.f32 %v11562, %v11602
          %v11604 = vpop.f32.mrb[0].mxu0
          %v11605 = vpop.f32.mrb[0].mxu0
          %11606 = vdwg.mxu0
          %11607 = vmatprep.subr.bf16.mxu0 %v11165
          %11608 = vmatpush1.bf16.msra.mxu0 %v11164
          %11609 = vmatprep.subr.bf16.mxu0 %v11169
          %11610 = vmatpush1.bf16.msra.mxu0 %v11168
          %11611 = vmatprep.subr.bf16.mxu0 %v11173
          %11612 = vmatpush1.bf16.msra.mxu0 %v11172
          %11613 = vmatprep.subr.bf16.mxu0 %v11177
          %11614 = vmatpush1.bf16.msra.mxu0 %v11176
          %11615 = vmatprep.subr.bf16.mxu0 %v11181
          %11616 = vmatpush1.bf16.msra.mxu0 %v11180
          %11617 = vmatprep.subr.bf16.mxu0 %v11185
          %11618 = vmatpush1.bf16.msra.mxu0 %v11184
          %11619 = vmatprep.subr.bf16.mxu0 %v11189
          %11620 = vmatpush1.bf16.msra.mxu0 %v11188
          %11621 = vmatprep.subr.bf16.mxu0 %v11193
          %11622 = vmatpush1.bf16.msra.mxu0 %v11192
          %11623 = vmatprep.subr.bf16.mxu0 %v11197
          %11624 = vmatpush1.bf16.msra.mxu0 %v11196
          %11625 = vmatprep.subr.bf16.mxu0 %v11201
          %11626 = vmatpush1.bf16.msra.mxu0 %v11200
          %11627 = vmatprep.subr.bf16.mxu0 %v11205
          %11628 = vmatpush1.bf16.msra.mxu0 %v11204
          %11629 = vmatprep.subr.bf16.mxu0 %v11209
          %11630 = vmatpush1.bf16.msra.mxu0 %v11208
          %11631 = vmatprep.subr.bf16.mxu0 %v11213
          %11632 = vmatpush1.bf16.msra.mxu0 %v11212
          %11633 = vmatprep.subr.bf16.mxu0 %v11217
          %11634 = vmatpush1.bf16.msra.mxu0 %v11216
          %11635 = vmatprep.subr.bf16.mxu0 %v11221
          %11636 = vmatpush1.bf16.msra.mxu0 %v11220
          %11637 = vmatprep.subr.bf16.mxu0 %v11225
          %11638 = vmatpush1.bf16.msra.mxu0 %v11224
          %11639 = vmatprep.mubr.bf16.mxu0 %v9925
          %11640 = vmatmul.mubr.bf16.gmra.mrb[0].mxu0 %v9924
          %v11641 = vpop.f32.mrb[0].mxu0
          %v11642 = vadd.f32 %v11601, %v11641
          %v11643 = vpop.f32.mrb[0].mxu0
          %v11644 = vadd.f32 %v11603, %v11643
          %v11645 = vpop.f32.mrb[0].mxu0
          %v11646 = vpop.f32.mrb[0].mxu0
          %11647 = vdwg.mxu0
          %11648 = vmatprep.subr.bf16.mxu0 %v10975
          %11649 = vmatpush1.bf16.msra.mxu0 %v10974
          %11650 = vmatprep.subr.bf16.mxu0 %v10979
          %11651 = vmatpush1.bf16.msra.mxu0 %v10978
          %11652 = vmatprep.subr.bf16.mxu0 %v10983
          %11653 = vmatpush1.bf16.msra.mxu0 %v10982
          %11654 = vmatprep.subr.bf16.mxu0 %v10987
          %11655 = vmatpush1.bf16.msra.mxu0 %v10986
          %11656 = vmatprep.subr.bf16.mxu0 %v10991
          %11657 = vmatpush1.bf16.msra.mxu0 %v10990
          %11658 = vmatprep.subr.bf16.mxu0 %v10995
          %11659 = vmatpush1.bf16.msra.mxu0 %v10994
          %11660 = vmatprep.subr.bf16.mxu0 %v10999
          %11661 = vmatpush1.bf16.msra.mxu0 %v10998
          %11662 = vmatprep.subr.bf16.mxu0 %v11003
          %11663 = vmatpush1.bf16.msra.mxu0 %v11002
          %11664 = vmatprep.subr.bf16.mxu0 %v11007
          %11665 = vmatpush1.bf16.msra.mxu0 %v11006
          %11666 = vmatprep.subr.bf16.mxu0 %v11011
          %11667 = vmatpush1.bf16.msra.mxu0 %v11010
          %11668 = vmatprep.subr.bf16.mxu0 %v11015
          %11669 = vmatpush1.bf16.msra.mxu0 %v11014
          %11670 = vmatprep.subr.bf16.mxu0 %v11019
          %11671 = vmatpush1.bf16.msra.mxu0 %v11018
          %11672 = vmatprep.subr.bf16.mxu0 %v11023
          %11673 = vmatpush1.bf16.msra.mxu0 %v11022
          %11674 = vmatprep.subr.bf16.mxu0 %v11027
          %11675 = vmatpush1.bf16.msra.mxu0 %v11026
          %11676 = vmatprep.subr.bf16.mxu0 %v11031
          %11677 = vmatpush1.bf16.msra.mxu0 %v11030
          %11678 = vmatprep.subr.bf16.mxu0 %v11035
          %11679 = vmatpush1.bf16.msra.mxu0 %v11034
          %11680 = vmatprep.mubr.bf16.mxu0 %v9919
          %11681 = vmatmul.mubr.bf16.gmra.mrb[0].mxu0 %v9918
          %v11682 = vpop.f32.mrb[0].mxu0
          %v11683 = vadd.f32 %v10195, %v11682
          %v11684 = vpop.f32.mrb[0].mxu0
          %v11685 = vadd.f32 %v10199, %v11684
          %v11686 = vpop.f32.mrb[0].mxu0
          %v11687 = vpop.f32.mrb[0].mxu0
          %11688 = vdwg.mxu0
          %11689 = vmatprep.subr.bf16.mxu0 %v11039
          %11690 = vmatpush1.bf16.msra.mxu0 %v11038
          %11691 = vmatprep.subr.bf16.mxu0 %v11043
          %11692 = vmatpush1.bf16.msra.mxu0 %v11042
          %11693 = vmatprep.subr.bf16.mxu0 %v11047
          %11694 = vmatpush1.bf16.msra.mxu0 %v11046
          %11695 = vmatprep.subr.bf16.mxu0 %v11051
          %11696 = vmatpush1.bf16.msra.mxu0 %v11050
          %11697 = vmatprep.subr.bf16.mxu0 %v11055
          %11698 = vmatpush1.bf16.msra.mxu0 %v11054
          %11699 = vmatprep.subr.bf16.mxu0 %v11059
          %11700 = vmatpush1.bf16.msra.mxu0 %v11058
          %11701 = vmatprep.subr.bf16.mxu0 %v11063
          %11702 = vmatpush1.bf16.msra.mxu0 %v11062
          %11703 = vmatprep.subr.bf16.mxu0 %v11067
          %11704 = vmatpush1.bf16.msra.mxu0 %v11066
          %11705 = vmatprep.subr.bf16.mxu0 %v11071
          %11706 = vmatpush1.bf16.msra.mxu0 %v11070
          %11707 = vmatprep.subr.bf16.mxu0 %v11075
          %11708 = vmatpush1.bf16.msra.mxu0 %v11074
          %11709 = vmatprep.subr.bf16.mxu0 %v11079
          %11710 = vmatpush1.bf16.msra.mxu0 %v11078
          %11711 = vmatprep.subr.bf16.mxu0 %v11083
          %11712 = vmatpush1.bf16.msra.mxu0 %v11082
          %11713 = vmatprep.subr.bf16.mxu0 %v11087
          %11714 = vmatpush1.bf16.msra.mxu0 %v11086
          %11715 = vmatprep.subr.bf16.mxu0 %v11091
          %11716 = vmatpush1.bf16.msra.mxu0 %v11090
          %11717 = vmatprep.subr.bf16.mxu0 %v11095
          %11718 = vmatpush1.bf16.msra.mxu0 %v11094
          %11719 = vmatprep.subr.bf16.mxu0 %v11099
          %11720 = vmatpush1.bf16.msra.mxu0 %v11098
          %11721 = vmatprep.mubr.bf16.mxu0 %v9921
          %11722 = vmatmul.mubr.bf16.gmra.mrb[0].mxu0 %v9920
          %v11723 = vpop.f32.mrb[0].mxu0
          %v11724 = vadd.f32 %v11683, %v11723
          %v11725 = vpop.f32.mrb[0].mxu0
          %v11726 = vadd.f32 %v11685, %v11725
          %v11727 = vpop.f32.mrb[0].mxu0
          %v11728 = vpop.f32.mrb[0].mxu0
          %11729 = vdwg.mxu0
          %11730 = vmatprep.subr.bf16.mxu0 %v11103
          %11731 = vmatpush1.bf16.msra.mxu0 %v11102
          %11732 = vmatprep.subr.bf16.mxu0 %v11107
          %11733 = vmatpush1.bf16.msra.mxu0 %v11106
          %11734 = vmatprep.subr.bf16.mxu0 %v11111
          %11735 = vmatpush1.bf16.msra.mxu0 %v11110
          %11736 = vmatprep.subr.bf16.mxu0 %v11115
          %11737 = vmatpush1.bf16.msra.mxu0 %v11114
          %11738 = vmatprep.subr.bf16.mxu0 %v11119
          %11739 = vmatpush1.bf16.msra.mxu0 %v11118
          %11740 = vmatprep.subr.bf16.mxu0 %v11123
          %11741 = vmatpush1.bf16.msra.mxu0 %v11122
          %11742 = vmatprep.subr.bf16.mxu0 %v11127
          %11743 = vmatpush1.bf16.msra.mxu0 %v11126
          %11744 = vmatprep.subr.bf16.mxu0 %v11131
          %11745 = vmatpush1.bf16.msra.mxu0 %v11130
          %11746 = vmatprep.subr.bf16.mxu0 %v11135
          %11747 = vmatpush1.bf16.msra.mxu0 %v11134
          %11748 = vmatprep.subr.bf16.mxu0 %v11139
          %11749 = vmatpush1.bf16.msra.mxu0 %v11138
          %11750 = vmatprep.subr.bf16.mxu0 %v11143
          %11751 = vmatpush1.bf16.msra.mxu0 %v11142
          %11752 = vmatprep.subr.bf16.mxu0 %v11147
          %11753 = vmatpush1.bf16.msra.mxu0 %v11146
          %11754 = vmatprep.subr.bf16.mxu0 %v11151
          %11755 = vmatpush1.bf16.msra.mxu0 %v11150
          %11756 = vmatprep.subr.bf16.mxu0 %v11155
          %11757 = vmatpush1.bf16.msra.mxu0 %v11154
          %11758 = vmatprep.subr.bf16.mxu0 %v11159
          %11759 = vmatpush1.bf16.msra.mxu0 %v11158
          %11760 = vmatprep.subr.bf16.mxu0 %v11163
          %11761 = vmatpush1.bf16.msra.mxu0 %v11162
          %11762 = vmatprep.mubr.bf16.mxu0 %v9923
          %11763 = vmatmul.mubr.bf16.gmra.mrb[0].mxu0 %v9922
          %v11764 = vpop.f32.mrb[0].mxu0
          %v11765 = vadd.f32 %v11724, %v11764
          %v11766 = vpop.f32.mrb[0].mxu0
          %v11767 = vadd.f32 %v11726, %v11766
          %v11768 = vpop.f32.mrb[0].mxu0
          %v11769 = vpop.f32.mrb[0].mxu0
          %11770 = vdwg.mxu0
          %11771 = vmatprep.subr.bf16.mxu0 %v11167
          %11772 = vmatpush1.bf16.msra.mxu0 %v11166
          %11773 = vmatprep.subr.bf16.mxu0 %v11171
          %11774 = vmatpush1.bf16.msra.mxu0 %v11170
          %11775 = vmatprep.subr.bf16.mxu0 %v11175
          %11776 = vmatpush1.bf16.msra.mxu0 %v11174
          %11777 = vmatprep.subr.bf16.mxu0 %v11179
          %11778 = vmatpush1.bf16.msra.mxu0 %v11178
          %11779 = vmatprep.subr.bf16.mxu0 %v11183
          %11780 = vmatpush1.bf16.msra.mxu0 %v11182
          %11781 = vmatprep.subr.bf16.mxu0 %v11187
          %11782 = vmatpush1.bf16.msra.mxu0 %v11186
          %11783 = vmatprep.subr.bf16.mxu0 %v11191
          %11784 = vmatpush1.bf16.msra.mxu0 %v11190
          %11785 = vmatprep.subr.bf16.mxu0 %v11195
          %11786 = vmatpush1.bf16.msra.mxu0 %v11194
          %11787 = vmatprep.subr.bf16.mxu0 %v11199
          %11788 = vmatpush1.bf16.msra.mxu0 %v11198
          %11789 = vmatprep.subr.bf16.mxu0 %v11203
          %11790 = vmatpush1.bf16.msra.mxu0 %v11202
          %11791 = vmatprep.subr.bf16.mxu0 %v11207
          %11792 = vmatpush1.bf16.msra.mxu0 %v11206
          %11793 = vmatprep.subr.bf16.mxu0 %v11211
          %11794 = vmatpush1.bf16.msra.mxu0 %v11210
          %11795 = vmatprep.subr.bf16.mxu0 %v11215
          %11796 = vmatpush1.bf16.msra.mxu0 %v11214
          %11797 = vmatprep.subr.bf16.mxu0 %v11219
          %11798 = vmatpush1.bf16.msra.mxu0 %v11218
          %11799 = vmatprep.subr.bf16.mxu0 %v11223
          %11800 = vmatpush1.bf16.msra.mxu0 %v11222
          %11801 = vmatprep.subr.bf16.mxu0 %v11227
          %11802 = vmatpush1.bf16.msra.mxu0 %v11226
          %11803 = vmatprep.mubr.bf16.mxu0 %v9925
          %11804 = vmatmul.mubr.bf16.gmra.mrb[0].mxu0 %v9924
          %v11805 = vpop.f32.mrb[0].mxu0
          %v11806 = vadd.f32 %v11765, %v11805
          %v11807 = vpop.f32.mrb[0].mxu0
          %v11808 = vadd.f32 %v11767, %v11807
          %v11809 = vpop.f32.mrb[0].mxu0
          %v11810 = vpop.f32.mrb[0].mxu0
          %11811 = vdwg.mxu0
          %v11812 = vtanh.pop %v11642
          %v11813 = vtanh.pop %v11644
          %v11814 = vtanh.pop %v11806
          %v11815 = vtanh.pop %v11808
          %s11816 = smul.u32 %s27, 512
          %s11817 = sadd.s32 %s11816, 3072
          %s11818 = sshra.s32 %s11817, 7
          %s11819 = sand.u32 %s11817, 127
          %s11820 = smul.addr %s11818, 2
          %s11821 = scalar_lea.vmem [#allocation14], %s11820
          %v11822 = vld [vmem:[%s11821] sm:$0xff]
          %v11823 = vpack.c.bf16 %v11812, %v11812
          %v11824 = vpack.c.bf16 %v11813, %v11813
          %v11825 = vpack.c.bf16 %v11814, %v11814
          %v11826 = vpack.c.bf16 %v11815, %v11815
          %v11828 = vcombine.high %v11822, %v11822
          %v11830 = vunpack.c.l.s4 1983009808
          %v11831 = vunpack.c.0.s8 %v11830
          %v11832 = vlaneseq
          %v11833 = vshrl.u32 %v11832, 7
          %v11834 = vsub.s32 %v11831, %v11833
          %v11835 = vrot.slane %v11822, %v11834
          %v11837 = vunpack.c.l.s4 1983009808
          %v11838 = vunpack.c.0.s8 %v11837
          %v11839 = vlaneseq
          %v11840 = vshrl.u32 %v11839, 7
          %v11841 = vsub.s32 %v11838, %v11840
          %v11842 = vrot.slane %v11828, %v11841
          %v11843 = vcombine.high %v11835, %v11835
          %v11844 = vcombine.high %v11842, %v11842
          %11849 = vmatprep.subr.bf16.mxu0 %v11843
          %11850 = vmatpush1.bf16.xpose.msra.mxu0 %v11835
          %11851 = vmatprep.subr.bf16.mxu0 0
          %11852 = vmatpush1.bf16.xpose.msra.mxu0 0
          %11853 = vmatprep.subr.bf16.mxu0 0
          %11854 = vmatpush1.bf16.xpose.msra.mxu0 0
          %11855 = vmatprep.subr.bf16.mxu0 0
          %11856 = vmatpush1.bf16.xpose.msra.mxu0 0
          %11857 = vmatprep.subr.bf16.mxu0 0
          %11858 = vmatpush1.bf16.xpose.msra.mxu0 0
          %11859 = vmatprep.subr.bf16.mxu0 0
          %11860 = vmatpush1.bf16.xpose.msra.mxu0 0
          %11861 = vmatprep.subr.bf16.mxu0 0
          %11862 = vmatpush1.bf16.xpose.msra.mxu0 0
          %11863 = vmatprep.subr.bf16.mxu0 0
          %11864 = vmatpush1.bf16.xpose.msra.mxu0 0
          %11865 = vmatprep.subr.bf16.mxu0 0
          %11866 = vmatpush1.bf16.xpose.msra.mxu0 0
          %11867 = vmatprep.subr.bf16.mxu0 0
          %11868 = vmatpush1.bf16.xpose.msra.mxu0 0
          %11869 = vmatprep.subr.bf16.mxu0 0
          %11870 = vmatpush1.bf16.xpose.msra.mxu0 0
          %11871 = vmatprep.subr.bf16.mxu0 0
          %11872 = vmatpush1.bf16.xpose.msra.mxu0 0
          %11873 = vmatprep.subr.bf16.mxu0 0
          %11874 = vmatpush1.bf16.xpose.msra.mxu0 0
          %11875 = vmatprep.subr.bf16.mxu0 0
          %11876 = vmatpush1.bf16.xpose.msra.mxu0 0
          %11877 = vmatprep.subr.bf16.mxu0 0
          %11878 = vmatpush1.bf16.xpose.msra.mxu0 0
          %11879 = vmatprep.subr.bf16.mxu0 0
          %11880 = vmatpush1.bf16.xpose.msra.mxu0 0
          %11881 = vmatprep.mubr.bf16.mxu0 %v11824
          %11882 = vmatmul.mubr.bf16.gmra.mrb[0].mxu0 %v11823
          %v11883 = vpop.f32.mrb[0].mxu0
          %v11884 = vadd.f32 0.0, %v11883
          %v11885 = vpop.f32.mrb[0].mxu0
          %v11886 = vpop.f32.mrb[0].mxu0
          %v11887 = vpop.f32.mrb[0].mxu0
          %11888 = vdwg.mxu0
          %11889 = vmatprep.subr.bf16.mxu0 %v11844
          %11890 = vmatpush1.bf16.xpose.msra.mxu0 %v11842
          %11891 = vmatprep.subr.bf16.mxu0 0
          %11892 = vmatpush1.bf16.xpose.msra.mxu0 0
          %11893 = vmatprep.subr.bf16.mxu0 0
          %11894 = vmatpush1.bf16.xpose.msra.mxu0 0
          %11895 = vmatprep.subr.bf16.mxu0 0
          %11896 = vmatpush1.bf16.xpose.msra.mxu0 0
          %11897 = vmatprep.subr.bf16.mxu0 0
          %11898 = vmatpush1.bf16.xpose.msra.mxu0 0
          %11899 = vmatprep.subr.bf16.mxu0 0
          %11900 = vmatpush1.bf16.xpose.msra.mxu0 0
          %11901 = vmatprep.subr.bf16.mxu0 0
          %11902 = vmatpush1.bf16.xpose.msra.mxu0 0
          %11903 = vmatprep.subr.bf16.mxu0 0
          %11904 = vmatpush1.bf16.xpose.msra.mxu0 0
          %11905 = vmatprep.subr.bf16.mxu0 0
          %11906 = vmatpush1.bf16.xpose.msra.mxu0 0
          %11907 = vmatprep.subr.bf16.mxu0 0
          %11908 = vmatpush1.bf16.xpose.msra.mxu0 0
          %11909 = vmatprep.subr.bf16.mxu0 0
          %11910 = vmatpush1.bf16.xpose.msra.mxu0 0
          %11911 = vmatprep.subr.bf16.mxu0 0
          %11912 = vmatpush1.bf16.xpose.msra.mxu0 0
          %11913 = vmatprep.subr.bf16.mxu0 0
          %11914 = vmatpush1.bf16.xpose.msra.mxu0 0
          %11915 = vmatprep.subr.bf16.mxu0 0
          %11916 = vmatpush1.bf16.xpose.msra.mxu0 0
          %11917 = vmatprep.subr.bf16.mxu0 0
          %11918 = vmatpush1.bf16.xpose.msra.mxu0 0
          %11919 = vmatprep.subr.bf16.mxu0 0
          %11920 = vmatpush1.bf16.xpose.msra.mxu0 0
          %11921 = vmatprep.mubr.bf16.mxu0 %v11826
          %11922 = vmatmul.mubr.bf16.gmra.mrb[0].mxu0 %v11825
          %v11923 = vpop.f32.mrb[0].mxu0
          %v11924 = vadd.f32 %v11884, %v11923
          %v11925 = vpop.f32.mrb[0].mxu0
          %v11926 = vpop.f32.mrb[0].mxu0
          %v11927 = vpop.f32.mrb[0].mxu0
          %11928 = vdwg.mxu0
          %v11932 = vcombine.high %v9522, %v9522
          %v11934 = vunpack.c.l.s4 1983009808
          %v11935 = vunpack.c.0.s8 %v11934
          %v11936 = vlaneseq
          %v11937 = vshrl.u32 %v11936, 7
          %v11938 = vsub.s32 %v11935, %v11937
          %v11939 = vrot.slane %v9522, %v11938
          %v11941 = vunpack.c.l.s4 1983009808
          %v11942 = vunpack.c.0.s8 %v11941
          %v11943 = vlaneseq
          %v11944 = vshrl.u32 %v11943, 7
          %v11945 = vsub.s32 %v11942, %v11944
          %v11946 = vrot.slane %v11932, %v11945
          %v11947 = vcombine.high %v11939, %v11939
          %v11948 = vcombine.high %v11946, %v11946
          %v11949 = vcombine.high %v9523, %v9523
          %v11951 = vunpack.c.l.s4 1983009808
          %v11952 = vunpack.c.0.s8 %v11951
          %v11953 = vlaneseq
          %v11954 = vshrl.u32 %v11953, 7
          %v11955 = vsub.s32 %v11952, %v11954
          %v11956 = vrot.slane %v9523, %v11955
          %v11958 = vunpack.c.l.s4 1983009808
          %v11959 = vunpack.c.0.s8 %v11958
          %v11960 = vlaneseq
          %v11961 = vshrl.u32 %v11960, 7
          %v11962 = vsub.s32 %v11959, %v11961
          %v11963 = vrot.slane %v11949, %v11962
          %v11964 = vcombine.high %v11956, %v11956
          %v11965 = vcombine.high %v11963, %v11963
          %v11966 = vcombine.high %v9524, %v9524
          %v11968 = vunpack.c.l.s4 1983009808
          %v11969 = vunpack.c.0.s8 %v11968
          %v11970 = vlaneseq
          %v11971 = vshrl.u32 %v11970, 7
          %v11972 = vsub.s32 %v11969, %v11971
          %v11973 = vrot.slane %v9524, %v11972
          %v11975 = vunpack.c.l.s4 1983009808
          %v11976 = vunpack.c.0.s8 %v11975
          %v11977 = vlaneseq
          %v11978 = vshrl.u32 %v11977, 7
          %v11979 = vsub.s32 %v11976, %v11978
          %v11980 = vrot.slane %v11966, %v11979
          %v11981 = vcombine.high %v11973, %v11973
          %v11982 = vcombine.high %v11980, %v11980
          %11995 = vmatprep.subr.bf16.mxu0 %v11947
          %11996 = vmatpush1.bf16.xpose.msra.mxu0 %v11939
          %11997 = vmatprep.subr.bf16.mxu0 0
          %11998 = vmatpush1.bf16.xpose.msra.mxu0 0
          %11999 = vmatprep.subr.bf16.mxu0 0
          %12000 = vmatpush1.bf16.xpose.msra.mxu0 0
          %12001 = vmatprep.subr.bf16.mxu0 0
          %12002 = vmatpush1.bf16.xpose.msra.mxu0 0
          %12003 = vmatprep.subr.bf16.mxu0 0
          %12004 = vmatpush1.bf16.xpose.msra.mxu0 0
          %12005 = vmatprep.subr.bf16.mxu0 0
          %12006 = vmatpush1.bf16.xpose.msra.mxu0 0
          %12007 = vmatprep.subr.bf16.mxu0 0
          %12008 = vmatpush1.bf16.xpose.msra.mxu0 0
          %12009 = vmatprep.subr.bf16.mxu0 0
          %12010 = vmatpush1.bf16.xpose.msra.mxu0 0
          %12011 = vmatprep.subr.bf16.mxu0 0
          %12012 = vmatpush1.bf16.xpose.msra.mxu0 0
          %12013 = vmatprep.subr.bf16.mxu0 0
          %12014 = vmatpush1.bf16.xpose.msra.mxu0 0
          %12015 = vmatprep.subr.bf16.mxu0 0
          %12016 = vmatpush1.bf16.xpose.msra.mxu0 0
          %12017 = vmatprep.subr.bf16.mxu0 0
          %12018 = vmatpush1.bf16.xpose.msra.mxu0 0
          %12019 = vmatprep.subr.bf16.mxu0 0
          %12020 = vmatpush1.bf16.xpose.msra.mxu0 0
          %12021 = vmatprep.subr.bf16.mxu0 0
          %12022 = vmatpush1.bf16.xpose.msra.mxu0 0
          %12023 = vmatprep.subr.bf16.mxu0 0
          %12024 = vmatpush1.bf16.xpose.msra.mxu0 0
          %12025 = vmatprep.subr.bf16.mxu0 0
          %12026 = vmatpush1.bf16.xpose.msra.mxu0 0
          %12027 = vmatprep.mubr.bf16.mxu0 %v9592
          %12028 = vmatmul.mubr.bf16.gmra.mrb[0].mxu0 %v9591
          %v12029 = vpop.f32.mrb[0].mxu0
          %v12030 = vadd.f32 %v11924, %v12029
          %v12031 = vpop.f32.mrb[0].mxu0
          %v12032 = vpop.f32.mrb[0].mxu0
          %v12033 = vpop.f32.mrb[0].mxu0
          %12034 = vdwg.mxu0
          %12035 = vmatprep.subr.bf16.mxu0 %v11948
          %12036 = vmatpush1.bf16.xpose.msra.mxu0 %v11946
          %12037 = vmatprep.subr.bf16.mxu0 0
          %12038 = vmatpush1.bf16.xpose.msra.mxu0 0
          %12039 = vmatprep.subr.bf16.mxu0 0
          %12040 = vmatpush1.bf16.xpose.msra.mxu0 0
          %12041 = vmatprep.subr.bf16.mxu0 0
          %12042 = vmatpush1.bf16.xpose.msra.mxu0 0
          %12043 = vmatprep.subr.bf16.mxu0 0
          %12044 = vmatpush1.bf16.xpose.msra.mxu0 0
          %12045 = vmatprep.subr.bf16.mxu0 0
          %12046 = vmatpush1.bf16.xpose.msra.mxu0 0
          %12047 = vmatprep.subr.bf16.mxu0 0
          %12048 = vmatpush1.bf16.xpose.msra.mxu0 0
          %12049 = vmatprep.subr.bf16.mxu0 0
          %12050 = vmatpush1.bf16.xpose.msra.mxu0 0
          %12051 = vmatprep.subr.bf16.mxu0 0
          %12052 = vmatpush1.bf16.xpose.msra.mxu0 0
          %12053 = vmatprep.subr.bf16.mxu0 0
          %12054 = vmatpush1.bf16.xpose.msra.mxu0 0
          %12055 = vmatprep.subr.bf16.mxu0 0
          %12056 = vmatpush1.bf16.xpose.msra.mxu0 0
          %12057 = vmatprep.subr.bf16.mxu0 0
          %12058 = vmatpush1.bf16.xpose.msra.mxu0 0
          %12059 = vmatprep.subr.bf16.mxu0 0
          %12060 = vmatpush1.bf16.xpose.msra.mxu0 0
          %12061 = vmatprep.subr.bf16.mxu0 0
          %12062 = vmatpush1.bf16.xpose.msra.mxu0 0
          %12063 = vmatprep.subr.bf16.mxu0 0
          %12064 = vmatpush1.bf16.xpose.msra.mxu0 0
          %12065 = vmatprep.subr.bf16.mxu0 0
          %12066 = vmatpush1.bf16.xpose.msra.mxu0 0
          %12067 = vmatprep.mubr.bf16.mxu0 %v9594
          %12068 = vmatmul.mubr.bf16.gmra.mrb[0].mxu0 %v9593
          %v12069 = vpop.f32.mrb[0].mxu0
          %v12070 = vadd.f32 %v12030, %v12069
          %v12071 = vpop.f32.mrb[0].mxu0
          %v12072 = vpop.f32.mrb[0].mxu0
          %v12073 = vpop.f32.mrb[0].mxu0
          %12074 = vdwg.mxu0
          %12075 = vmatprep.subr.bf16.mxu0 %v11964
          %12076 = vmatpush1.bf16.xpose.msra.mxu0 %v11956
          %12077 = vmatprep.subr.bf16.mxu0 0
          %12078 = vmatpush1.bf16.xpose.msra.mxu0 0
          %12079 = vmatprep.subr.bf16.mxu0 0
          %12080 = vmatpush1.bf16.xpose.msra.mxu0 0
          %12081 = vmatprep.subr.bf16.mxu0 0
          %12082 = vmatpush1.bf16.xpose.msra.mxu0 0
          %12083 = vmatprep.subr.bf16.mxu0 0
          %12084 = vmatpush1.bf16.xpose.msra.mxu0 0
          %12085 = vmatprep.subr.bf16.mxu0 0
          %12086 = vmatpush1.bf16.xpose.msra.mxu0 0
          %12087 = vmatprep.subr.bf16.mxu0 0
          %12088 = vmatpush1.bf16.xpose.msra.mxu0 0
          %12089 = vmatprep.subr.bf16.mxu0 0
          %12090 = vmatpush1.bf16.xpose.msra.mxu0 0
          %12091 = vmatprep.subr.bf16.mxu0 0
          %12092 = vmatpush1.bf16.xpose.msra.mxu0 0
          %12093 = vmatprep.subr.bf16.mxu0 0
          %12094 = vmatpush1.bf16.xpose.msra.mxu0 0
          %12095 = vmatprep.subr.bf16.mxu0 0
          %12096 = vmatpush1.bf16.xpose.msra.mxu0 0
          %12097 = vmatprep.subr.bf16.mxu0 0
          %12098 = vmatpush1.bf16.xpose.msra.mxu0 0
          %12099 = vmatprep.subr.bf16.mxu0 0
          %12100 = vmatpush1.bf16.xpose.msra.mxu0 0
          %12101 = vmatprep.subr.bf16.mxu0 0
          %12102 = vmatpush1.bf16.xpose.msra.mxu0 0
          %12103 = vmatprep.subr.bf16.mxu0 0
          %12104 = vmatpush1.bf16.xpose.msra.mxu0 0
          %12105 = vmatprep.subr.bf16.mxu0 0
          %12106 = vmatpush1.bf16.xpose.msra.mxu0 0
          %12107 = vmatprep.mubr.bf16.mxu0 %v9596
          %12108 = vmatmul.mubr.bf16.gmra.mrb[0].mxu0 %v9595
          %v12109 = vpop.f32.mrb[0].mxu0
          %v12110 = vadd.f32 %v12070, %v12109
          %v12111 = vpop.f32.mrb[0].mxu0
          %v12112 = vpop.f32.mrb[0].mxu0
          %v12113 = vpop.f32.mrb[0].mxu0
          %12114 = vdwg.mxu0
          %12115 = vmatprep.subr.bf16.mxu0 %v11965
          %12116 = vmatpush1.bf16.xpose.msra.mxu0 %v11963
          %12117 = vmatprep.subr.bf16.mxu0 0
          %12118 = vmatpush1.bf16.xpose.msra.mxu0 0
          %12119 = vmatprep.subr.bf16.mxu0 0
          %12120 = vmatpush1.bf16.xpose.msra.mxu0 0
          %12121 = vmatprep.subr.bf16.mxu0 0
          %12122 = vmatpush1.bf16.xpose.msra.mxu0 0
          %12123 = vmatprep.subr.bf16.mxu0 0
          %12124 = vmatpush1.bf16.xpose.msra.mxu0 0
          %12125 = vmatprep.subr.bf16.mxu0 0
          %12126 = vmatpush1.bf16.xpose.msra.mxu0 0
          %12127 = vmatprep.subr.bf16.mxu0 0
          %12128 = vmatpush1.bf16.xpose.msra.mxu0 0
          %12129 = vmatprep.subr.bf16.mxu0 0
          %12130 = vmatpush1.bf16.xpose.msra.mxu0 0
          %12131 = vmatprep.subr.bf16.mxu0 0
          %12132 = vmatpush1.bf16.xpose.msra.mxu0 0
          %12133 = vmatprep.subr.bf16.mxu0 0
          %12134 = vmatpush1.bf16.xpose.msra.mxu0 0
          %12135 = vmatprep.subr.bf16.mxu0 0
          %12136 = vmatpush1.bf16.xpose.msra.mxu0 0
          %12137 = vmatprep.subr.bf16.mxu0 0
          %12138 = vmatpush1.bf16.xpose.msra.mxu0 0
          %12139 = vmatprep.subr.bf16.mxu0 0
          %12140 = vmatpush1.bf16.xpose.msra.mxu0 0
          %12141 = vmatprep.subr.bf16.mxu0 0
          %12142 = vmatpush1.bf16.xpose.msra.mxu0 0
          %12143 = vmatprep.subr.bf16.mxu0 0
          %12144 = vmatpush1.bf16.xpose.msra.mxu0 0
          %12145 = vmatprep.subr.bf16.mxu0 0
          %12146 = vmatpush1.bf16.xpose.msra.mxu0 0
          %12147 = vmatprep.mubr.bf16.mxu0 %v9598
          %12148 = vmatmul.mubr.bf16.gmra.mrb[0].mxu0 %v9597
          %v12149 = vpop.f32.mrb[0].mxu0
          %v12150 = vadd.f32 %v12110, %v12149
          %v12151 = vpop.f32.mrb[0].mxu0
          %v12152 = vpop.f32.mrb[0].mxu0
          %v12153 = vpop.f32.mrb[0].mxu0
          %12154 = vdwg.mxu0
          %12155 = vmatprep.subr.bf16.mxu0 %v11981
          %12156 = vmatpush1.bf16.xpose.msra.mxu0 %v11973
          %12157 = vmatprep.subr.bf16.mxu0 0
          %12158 = vmatpush1.bf16.xpose.msra.mxu0 0
          %12159 = vmatprep.subr.bf16.mxu0 0
          %12160 = vmatpush1.bf16.xpose.msra.mxu0 0
          %12161 = vmatprep.subr.bf16.mxu0 0
          %12162 = vmatpush1.bf16.xpose.msra.mxu0 0
          %12163 = vmatprep.subr.bf16.mxu0 0
          %12164 = vmatpush1.bf16.xpose.msra.mxu0 0
          %12165 = vmatprep.subr.bf16.mxu0 0
          %12166 = vmatpush1.bf16.xpose.msra.mxu0 0
          %12167 = vmatprep.subr.bf16.mxu0 0
          %12168 = vmatpush1.bf16.xpose.msra.mxu0 0
          %12169 = vmatprep.subr.bf16.mxu0 0
          %12170 = vmatpush1.bf16.xpose.msra.mxu0 0
          %12171 = vmatprep.subr.bf16.mxu0 0
          %12172 = vmatpush1.bf16.xpose.msra.mxu0 0
          %12173 = vmatprep.subr.bf16.mxu0 0
          %12174 = vmatpush1.bf16.xpose.msra.mxu0 0
          %12175 = vmatprep.subr.bf16.mxu0 0
          %12176 = vmatpush1.bf16.xpose.msra.mxu0 0
          %12177 = vmatprep.subr.bf16.mxu0 0
          %12178 = vmatpush1.bf16.xpose.msra.mxu0 0
          %12179 = vmatprep.subr.bf16.mxu0 0
          %12180 = vmatpush1.bf16.xpose.msra.mxu0 0
          %12181 = vmatprep.subr.bf16.mxu0 0
          %12182 = vmatpush1.bf16.xpose.msra.mxu0 0
          %12183 = vmatprep.subr.bf16.mxu0 0
          %12184 = vmatpush1.bf16.xpose.msra.mxu0 0
          %12185 = vmatprep.subr.bf16.mxu0 0
          %12186 = vmatpush1.bf16.xpose.msra.mxu0 0
          %12187 = vmatprep.mubr.bf16.mxu0 %v9600
          %12188 = vmatmul.mubr.bf16.gmra.mrb[0].mxu0 %v9599
          %v12189 = vpop.f32.mrb[0].mxu0
          %v12190 = vadd.f32 %v12150, %v12189
          %v12191 = vpop.f32.mrb[0].mxu0
          %v12192 = vpop.f32.mrb[0].mxu0
          %v12193 = vpop.f32.mrb[0].mxu0
          %12194 = vdwg.mxu0
          %12195 = vmatprep.subr.bf16.mxu0 %v11982
          %12196 = vmatpush1.bf16.xpose.msra.mxu0 %v11980
          %12197 = vmatprep.subr.bf16.mxu0 0
          %12198 = vmatpush1.bf16.xpose.msra.mxu0 0
          %12199 = vmatprep.subr.bf16.mxu0 0
          %12200 = vmatpush1.bf16.xpose.msra.mxu0 0
          %12201 = vmatprep.subr.bf16.mxu0 0
          %12202 = vmatpush1.bf16.xpose.msra.mxu0 0
          %12203 = vmatprep.subr.bf16.mxu0 0
          %12204 = vmatpush1.bf16.xpose.msra.mxu0 0
          %12205 = vmatprep.subr.bf16.mxu0 0
          %12206 = vmatpush1.bf16.xpose.msra.mxu0 0
          %12207 = vmatprep.subr.bf16.mxu0 0
          %12208 = vmatpush1.bf16.xpose.msra.mxu0 0
          %12209 = vmatprep.subr.bf16.mxu0 0
          %12210 = vmatpush1.bf16.xpose.msra.mxu0 0
          %12211 = vmatprep.subr.bf16.mxu0 0
          %12212 = vmatpush1.bf16.xpose.msra.mxu0 0
          %12213 = vmatprep.subr.bf16.mxu0 0
          %12214 = vmatpush1.bf16.xpose.msra.mxu0 0
          %12215 = vmatprep.subr.bf16.mxu0 0
          %12216 = vmatpush1.bf16.xpose.msra.mxu0 0
          %12217 = vmatprep.subr.bf16.mxu0 0
          %12218 = vmatpush1.bf16.xpose.msra.mxu0 0
          %12219 = vmatprep.subr.bf16.mxu0 0
          %12220 = vmatpush1.bf16.xpose.msra.mxu0 0
          %12221 = vmatprep.subr.bf16.mxu0 0
          %12222 = vmatpush1.bf16.xpose.msra.mxu0 0
          %12223 = vmatprep.subr.bf16.mxu0 0
          %12224 = vmatpush1.bf16.xpose.msra.mxu0 0
          %12225 = vmatprep.subr.bf16.mxu0 0
          %12226 = vmatpush1.bf16.xpose.msra.mxu0 0
          %12227 = vmatprep.mubr.bf16.mxu0 %v9602
          %12228 = vmatmul.mubr.bf16.gmra.mrb[0].mxu0 %v9601
          %v12229 = vpop.f32.mrb[0].mxu0
          %v12230 = vadd.f32 %v12190, %v12229
          %v12231 = vpop.f32.mrb[0].mxu0
          %v12232 = vpop.f32.mrb[0].mxu0
          %v12233 = vpop.f32.mrb[0].mxu0
          %12234 = vdwg.mxu0
          %vm12235 = vcmask 25600
          %12236 = vst.msk [vmem:[%s543] sm:$0x3] %vm12235, %v12230
        $region104: #{split_compare_forward.1} parent=55 // pred_fallthru
          _
        %p12237 = scmp.lt.s32.totalorder %s27, 1
        %s12238 = scalar_select %p12237, %s27, 1
        %s12239 = smul.addr %s12238, 2
        %s12240 = scalar_lea.vmem %s9, %s12239
        // Predicated region
        $region105: #{split_compare_forward.1} parent=55 // pred_check
          %p12241 = pneg %p264
        $region106: #{split_compare_forward.1} parent=55 // pred_check_branch
          %12243 = sbr.rel (%p12241) target = $region108
        $region107: #{split_compare_forward.1} parent=55 // pred_region
          _
        $region108: #{split_compare_forward.1} parent=55 // pred_fallthru
          _
      $region56: #{split_compare_forward.1} parent=5 // pred_fallthru
        _
      %p12244 = scmp.le.s32.totalorder 2, %s18
      // Predicated region
      $region109: #{split_compare_forward.1} parent=5 // pred_check
        %p12245 = pneg %p12244
      $region110: #{split_compare_forward.1} parent=5 // pred_check_branch
        %12247 = sbr.rel (%p12245) target = $region112
      $region111: #{split_compare_forward.1} parent=5 // pred_region
        %s12248 = ssub.s32 %s18, 2
        // Predicated region
        $region113: #{split_compare_forward.1} parent=111 // pred_check
          %p12249 = pneg %p270
        $region114: #{split_compare_forward.1} parent=111 // pred_check_branch
          %12251 = sbr.rel (%p12249) target = $region116
        $region115: #{split_compare_forward.1} parent=111 // pred_region
          %p12252 = scmp.lt.s32.totalorder %s29, 1
          %s12253 = scalar_select %p12252, %s29, 1
          %s12254 = smul.addr %s12253, 2
          %s12255 = scalar_lea.vmem %s9, %s12254
        $region116: #{split_compare_forward.1} parent=111 // pred_fallthru
          _
      $region112: #{split_compare_forward.1} parent=5 // pred_fallthru
        _
    $region6: #{split_compare_forward.1} parent=1 // loop_footer
      %s22 = sadd.s32 1, %s18
    $region7: #{split_compare_forward.1} parent=1 // loop_footer_branch
      %17 = sbr.rel target = $region3
    $region8: #{split_compare_forward.1} parent=1 // loop_exit
      _
    %12256 = vsyncpa [#allocation4], 1
    %s12257 = scalar_lea.sflag [#allocation4], 1
    %12258 = vsyncpa %s12257, 1
    %12259 = vsyncpa [#allocation6], 1
    %12260 = vsyncpa [#allocation10], 1

</llo_original>
